<compile_context>
chip_gen: v7x
topology: tpu7x:2x2x1
jax: 0.10.0
libtpu: 0.0.40
codegen_flags: <defaults>
</compile_context>

<pallas_src>
import functools
import math

import jax
import jax.numpy as jnp
from jax.experimental import pallas as pl
from jax.experimental.pallas import tpu as pltpu


# ---------------------------------------------------------------------------
# Preprocess (plain JAX -- fuses into one elementwise XLA op)
# ---------------------------------------------------------------------------
def preprocess(x):
    # Output channel order = [red, green, blue] with per-channel (x - m) / s.
    mean = jnp.array([0.485, 0.456, 0.406], jnp.float32).reshape(1, 3, 1, 1)
    std = jnp.array([0.229, 0.224, 0.225], jnp.float32).reshape(1, 3, 1, 1)
    return (x[:, ::-1, :, :] - mean) / std


# ---------------------------------------------------------------------------
# Fused 5-layer "Basic" block kernel (in-kernel im2col, one GEMM per layer)
# ---------------------------------------------------------------------------
_BASIC_CFG = [(8, 32), (32, 64), (64, 32), (32, 16), (16, 2)]
_CIN_PAD = [16, 32, 64, 32, 16]     # Cin padded to multiples of 16 (bf16 tiles)
_COUT_PAD = [32, 64, 32, 16, 8]     # final layer Cout padded 2 -> 8
_MAX_COL_ROWS = 7 * max(_CIN_PAD)   # 7 * 64 = 448


def _round_up(n, m):
    return ((n + m - 1) // m) * m


def _conv7x7_flat(act, w_ref, b_ref, col_ref, mask, Wp, relu, apply_mask):
    """One 7x7 conv (stride 1, pad 3) on a padded, flattened activation.

    act    : (Cin_p, N) f32 value; zero outside each image's valid interior.
    w_ref  : (7*Cout_p, 7*Cin_p) bf16 VMEM ref;
             w[kyi*Cout_p + co, kxi*Cin_p + ci] = weight[co, ci, kyi, kxi].
    b_ref  : (Cout_p, 1) f32 VMEM ref.
    col_ref: (>=7*Cin_p, N) bf16 VMEM scratch for column-shifted copies.
    mask   : (1, N) interior mask (1 inside each original HxW, else 0).
    """
    N = act.shape[1]
    cout7, cin7 = w_ref.shape
    cout = cout7 // 7
    cin = cin7 // 7

    # Column (x) taps: col[kxi*cin + ci, p] = act[ci, p + (kxi - 3)].
    # Roll in f32 (XLU), cast to bf16 at the (tile-aligned) store.
    for kxi in range(7):
        shift = (3 - kxi) % N
        shifted = act if shift == 0 else pltpu.roll(act, shift=shift, axis=1)
        col_ref[kxi * cin:(kxi + 1) * cin, :] = shifted.astype(jnp.bfloat16)

    # One MXU GEMM for all 7 kernel rows: (7*Cout_p, 7*Cin_p) @ (7*Cin_p, N).
    res = jnp.dot(w_ref[...], col_ref[0:cin7, :],
                  preferred_element_type=jnp.float32)        # (7*cout, N) f32

    # Row (y) taps: roll each kyi band into place; kyi == 3 is unshifted and
    # seeds the accumulator (no zeros materialization).
    acc = res[3 * cout:4 * cout, :]
    for kyi in (0, 1, 2, 4, 5, 6):
        shift = ((3 - kyi) * Wp) % N
        acc = acc + pltpu.roll(res[kyi * cout:(kyi + 1) * cout, :],
                               shift=shift, axis=1)

    acc = acc + b_ref[...]
    if relu:
        acc = jnp.maximum(acc, 0.0)
    if apply_mask:
        # Re-zero the padding frame / lane tails so the next conv sees true
        # zero padding (also kills cross-image wrap contamination from the
        # batch-folded rolls).
        acc = acc * mask
    return acc


def _basic_fused_kernel(x_ref, m_ref,
                        w0, b0, w1, b1, w2, b2, w3, b3, w4, b4,
                        o_ref, col_ref, *, Wp):
    # x_ref: (1, 16, N) padded-flat input tile (rows 8..15 zero); o_ref: (1, 8, N).
    mask = m_ref[...]                                        # (1, N) f32
    act = x_ref[0]                                           # (16, N) f32
    layers = ((w0, b0, True, True), (w1, b1, True, True), (w2, b2, True, True),
              (w3, b3, True, True), (w4, b4, False, False))
    for w_ref, b_ref, relu, apply_mask in layers:
        act = _conv7x7_flat(act, w_ref, b_ref, col_ref, mask, Wp,
                            relu, apply_mask)
    o_ref[0] = act                                           # (8, N); rows 0:2 = flow


def _pack_conv(w, b, pad_cin_to, pad_cout_to):
    """(Cout, Cin, 7, 7) -> bf16 (7*Cout_p, 7*Cin_p) stacked LHS + f32 (Cout_p,1) bias.

    w_stacked[kyi*Cout_p + co, kxi*Cin_p + ci] = w[co, ci, kyi, kxi].
    """
    cout, cin = w.shape[0], w.shape[1]
    if cin < pad_cin_to:
        w = jnp.pad(w, ((0, 0), (0, pad_cin_to - cin), (0, 0), (0, 0)))
        cin = pad_cin_to
    if cout < pad_cout_to:
        w = jnp.pad(w, ((0, pad_cout_to - cout), (0, 0), (0, 0), (0, 0)))
        b = jnp.pad(b, ((0, pad_cout_to - cout),))
        cout = pad_cout_to
    w_stacked = jnp.transpose(w, (2, 0, 3, 1)).reshape(7 * cout, 7 * cin)
    return w_stacked.astype(jnp.bfloat16), b.reshape(cout, 1).astype(jnp.float32)


def _num_tensorcores():
    # v7x has 2 TensorCores per chip; v5e/v6e have 1 (there the whole batch is
    # folded into the GEMM N dimension -- single grid step).
    try:
        kind = jax.devices()[0].device_kind.lower()
    except Exception:
        return 2
    if ("v5 lite" in kind or "v5e" in kind or "v6 lite" in kind or "v6e" in kind):
        return 1
    return 2


def basic_fused(x, layer_params):
    """Fused Basic block: 5x (7x7 conv [+ReLU]).  x: (B, 8, H, W) -> (B, 2, H, W)."""
    B, C, H, W = x.shape
    Hp, Wp = H + 6, W + 6
    L = Hp * Wp
    Lp = _round_up(L, 128)

    G = math.gcd(B, _num_tensorcores())          # grid steps (one per TensorCore)
    Bc = B // G
    N = Bc * Lp                                  # GEMM N dim: Bc images folded in lanes
    Cp = _CIN_PAD[0]                             # first-layer Cin padded to 16

    # Zero-padded, flattened, lane-aligned input; fold each core's Bc images
    # into the lane dimension.  (Layout plumbing only -- no 49x im2col.)
    xp = jnp.pad(x, ((0, 0), (0, Cp - C), (3, 3), (3, 3))).reshape(B, Cp, L)
    xp = jnp.pad(xp, ((0, 0), (0, 0), (0, Lp - L)))
    xp = xp.reshape(G, Bc, Cp, Lp).transpose(0, 2, 1, 3).reshape(G, Cp, N)

    mask = jnp.zeros((Hp, Wp), jnp.float32).at[3:3 + H, 3:3 + W].set(1.0)
    mask = jnp.pad(mask.reshape(1, L), ((0, 0), (0, Lp - L)))
    mask = jnp.tile(mask, (1, Bc))                                     # (1, N)

    packed = [_pack_conv(w, b, _CIN_PAD[i], _COUT_PAD[i])
              for i, (w, b) in enumerate(layer_params)]

    in_specs = [pl.BlockSpec((1, Cp, N), lambda g: (g, 0, 0)),
                pl.BlockSpec((1, N), lambda g: (0, 0))]
    args = [xp, mask]
    for w_s, b_s in packed:
        in_specs.append(pl.BlockSpec(w_s.shape, lambda g: (0, 0)))
        in_specs.append(pl.BlockSpec(b_s.shape, lambda g: (0, 0)))
        args.extend([w_s, b_s])

    # Cost estimate + VMEM budget (sized from the actual buffers, with headroom).
    flops = 2 * B * Lp * sum(49 * ci * co for ci, co in _BASIC_CFG)
    bytes_accessed = (xp.size * 4 + mask.size * 4 + G * 8 * N * 4 +
                      sum(w.size * 2 + b.size * 4 for w, b in packed))
    vmem_need = (2 * (Cp * N * 4 + N * 4 + 8 * N * 4) +
                 2 * sum(w.size * 2 + max(int(b.shape[0]), 8) * 128 * 4
                         for w, b in packed) +
                 _MAX_COL_ROWS * N * 2)
    vmem_limit = int(min(64 << 20, max(2 * vmem_need + (2 << 20), 16 << 20)))

    kernel = functools.partial(_basic_fused_kernel, Wp=Wp)
    out = pl.pallas_call(
        kernel,
        out_shape=jax.ShapeDtypeStruct((G, 8, N), jnp.float32),
        grid=(G,),
        in_specs=in_specs,
        out_specs=pl.BlockSpec((1, 8, N), lambda g: (g, 0, 0)),
        scratch_shapes=[pltpu.VMEM((_MAX_COL_ROWS, N), jnp.bfloat16)],
        compiler_params=pltpu.CompilerParams(
            dimension_semantics=("parallel",),
            vmem_limit_bytes=vmem_limit),
        cost_estimate=pl.CostEstimate(flops=flops, transcendentals=0,
                                      bytes_accessed=bytes_accessed),
    )(*args)

    out = out.reshape(G, 8, Bc, Lp).transpose(0, 2, 1, 3).reshape(B, 8, Lp)
    out = out[:, :2, :L].reshape(B, 2, Hp, Wp)
    return out[:, :, 3:3 + H, 3:3 + W]


# ---------------------------------------------------------------------------
# Plain-JAX glue (pooling, up-sampling, warping)
# ---------------------------------------------------------------------------
def avg_pool2(x):
    B, C, H, W = x.shape
    return x[:, :, : (H // 2) * 2, : (W // 2) * 2].reshape(
        B, C, H // 2, 2, W // 2, 2).mean(axis=(3, 5))


def upsample_x2_align_corners(x):
    # Matches F.interpolate(scale_factor=2, mode='bilinear', align_corners=True)
    B, C, H, W = x.shape
    Ho, Wo = 2 * H, 2 * W

    def coords(n_in, n_out):
        if n_in == 1:
            return jnp.zeros((n_out,), jnp.float32)
        return jnp.arange(n_out, dtype=jnp.float32) * (n_in - 1) / (n_out - 1)

    ys, xs = coords(H, Ho), coords(W, Wo)
    y0 = jnp.floor(ys).astype(jnp.int32)
    y1 = jnp.minimum(y0 + 1, H - 1)
    wy = (ys - y0.astype(jnp.float32))[None, None, :, None]
    x0 = jnp.floor(xs).astype(jnp.int32)
    x1 = jnp.minimum(x0 + 1, W - 1)
    wx = (xs - x0.astype(jnp.float32))[None, None, None, :]

    top, bot = x[:, :, y0, :], x[:, :, y1, :]
    v = top * (1.0 - wy) + bot * wy
    left, right = v[:, :, :, x0], v[:, :, :, x1]
    return left * (1.0 - wx) + right * wx


def grid_sample_bilinear_border(img, grid):
    # TODO(synk): grid_sample is a data-dependent gather; kept in plain JAX
    # rather than inside a Pallas kernel.  padding_mode='border' matches the
    # PyTorch reference's explicit setting.
    B, C, H, W = img.shape
    gx, gy = grid[..., 0], grid[..., 1]
    ix = jnp.clip(((gx + 1.0) * W - 1.0) / 2.0, 0.0, W - 1.0)
    iy = jnp.clip(((gy + 1.0) * H - 1.0) / 2.0, 0.0, H - 1.0)
    x0 = jnp.floor(ix).astype(jnp.int32)
    x1 = jnp.minimum(x0 + 1, W - 1)
    y0 = jnp.floor(iy).astype(jnp.int32)
    y1 = jnp.minimum(y0 + 1, H - 1)
    wx = ix - x0.astype(jnp.float32)
    wy = iy - y0.astype(jnp.float32)

    def gather_one(im, yy, xx):             # im: (C,H,W); yy/xx: (Ho,Wo)
        return im[:, yy, xx]

    gather = jax.vmap(gather_one, in_axes=(0, 0, 0))
    Ia = gather(img, y0, x0)
    Ib = gather(img, y0, x1)
    Ic = gather(img, y1, x0)
    Id = gather(img, y1, x1)
    wa = ((1 - wx) * (1 - wy))[:, None]
    wb = (wx * (1 - wy))[:, None]
    wc = ((1 - wx) * wy)[:, None]
    wd = (wx * wy)[:, None]
    return Ia * wa + Ib * wb + Ic * wc + Id * wd


def backward_warp(inp, flow):
    B, C, H, W = inp.shape
    horiz = jnp.broadcast_to(jnp.linspace(-1.0, 1.0, W).reshape(1, 1, 1, W),
                             (B, 1, H, W))
    vert = jnp.broadcast_to(jnp.linspace(-1.0, 1.0, H).reshape(1, 1, H, 1),
                            (B, 1, H, W))
    grid_base = jnp.concatenate([horiz, vert], axis=1)            # (B,2,H,W)
    flow_n = jnp.concatenate(
        [flow[:, 0:1] / ((W - 1.0) / 2.0),
         flow[:, 1:2] / ((H - 1.0) / 2.0)], axis=1)
    grid = jnp.transpose(grid_base + flow_n, (0, 2, 3, 1))        # (B,H,W,2)
    return grid_sample_bilinear_border(inp, grid)


# ---------------------------------------------------------------------------
# Network
# ---------------------------------------------------------------------------
def init_params(key):
    params = []
    for _lvl in range(6):
        layers = []
        for cin, cout in _BASIC_CFG:
            key, kw, kb = jax.random.split(key, 3)
            bound = 1.0 / math.sqrt(cin * 49)
            w = jax.random.uniform(kw, (cout, cin, 7, 7), jnp.float32,
                                   minval=-bound, maxval=bound)
            b = jax.random.uniform(kb, (cout,), jnp.float32,
                                   minval=-bound, maxval=bound)
            layers.append((w, b))
        params.append(layers)
    return params


def network_forward(tensor_first, tensor_second, params):
    firsts = [preprocess(tensor_first)]
    seconds = [preprocess(tensor_second)]
    for _ in range(5):
        if firsts[0].shape[2] > 32 or firsts[0].shape[3] > 32:
            firsts.insert(0, avg_pool2(firsts[0]))
            seconds.insert(0, avg_pool2(seconds[0]))

    B = firsts[0].shape[0]
    flow = jnp.zeros((B, 2,
                      int(math.floor(firsts[0].shape[2] / 2.0)),
                      int(math.floor(firsts[0].shape[3] / 2.0))), jnp.float32)

    for lvl in range(len(firsts)):
        up = upsample_x2_align_corners(flow) * 2.0
        if up.shape[2] != firsts[lvl].shape[2]:
            up = jnp.pad(up, ((0, 0), (0, 0), (0, 1), (0, 0)), mode="edge")
        if up.shape[3] != firsts[lvl].shape[3]:
            up = jnp.pad(up, ((0, 0), (0, 0), (0, 0), (0, 1)), mode="edge")
        warped = backward_warp(seconds[lvl], up)
        x = jnp.concatenate([firsts[lvl], warped, up], axis=1)    # (B, 8, H, W)
        flow = basic_fused(x, params[lvl]) + up
    return flow


if __name__ == "__main__":
    key = jax.random.PRNGKey(0)
    k1, k2, kp = jax.random.split(key, 3)
    tensor_first = jax.random.uniform(k1, (2, 3, 16, 16), jnp.float32)
    tensor_second = jax.random.uniform(k2, (2, 3, 16, 16), jnp.float32)
    params = init_params(kp)

    fwd = jax.jit(network_forward)
    flow = jax.block_until_ready(fwd(tensor_first, tensor_second, params))
    assert flow.shape == (2, 2, 16, 16) and flow.dtype == jnp.float32
    print("KERNEL_OK")
</pallas_src>

<mosaic_0001>
module attributes {stable_mosaic.version = 11 : i64} {
  func.func @_basic_fused_kernel(%arg0: i32, %arg1: memref<1x16x512xf32, #tpu.memory_space<vmem>>, %arg2: memref<1x512xf32, #tpu.memory_space<vmem>>, %arg3: memref<224x112xbf16, #tpu.memory_space<vmem>>, %arg4: memref<32x1xf32, #tpu.memory_space<vmem>>, %arg5: memref<448x224xbf16, #tpu.memory_space<vmem>>, %arg6: memref<64x1xf32, #tpu.memory_space<vmem>>, %arg7: memref<224x448xbf16, #tpu.memory_space<vmem>>, %arg8: memref<32x1xf32, #tpu.memory_space<vmem>>, %arg9: memref<112x224xbf16, #tpu.memory_space<vmem>>, %arg10: memref<16x1xf32, #tpu.memory_space<vmem>>, %arg11: memref<56x112xbf16, #tpu.memory_space<vmem>>, %arg12: memref<8x1xf32, #tpu.memory_space<vmem>>, %arg13: memref<1x8x512xf32, #tpu.memory_space<vmem>>, %arg14: memref<448x512xbf16, #tpu.memory_space<vmem>>) attributes {dimension_semantics = [#tpu.dimension_semantics<parallel>], iteration_bounds = array<i64: 2>, scalar_prefetch = 0 : i64, scratch_operands = 1 : i64, tpu.core_type = #tpu.core_type<tc>, window_params = [{transform_indices = @transform_0, window_bounds = array<i64: 1, 16, 512>}, {pipeline_mode = #tpu.pipeline_mode<synchronous>, transform_indices = @transform_1, window_bounds = array<i64: 1, 512>}, {pipeline_mode = #tpu.pipeline_mode<synchronous>, transform_indices = @transform_2, window_bounds = array<i64: 224, 112>}, {pipeline_mode = #tpu.pipeline_mode<synchronous>, transform_indices = @transform_3, window_bounds = array<i64: 32, 1>}, {pipeline_mode = #tpu.pipeline_mode<synchronous>, transform_indices = @transform_4, window_bounds = array<i64: 448, 224>}, {pipeline_mode = #tpu.pipeline_mode<synchronous>, transform_indices = @transform_5, window_bounds = array<i64: 64, 1>}, {pipeline_mode = #tpu.pipeline_mode<synchronous>, transform_indices = @transform_6, window_bounds = array<i64: 224, 448>}, {pipeline_mode = #tpu.pipeline_mode<synchronous>, transform_indices = @transform_7, window_bounds = array<i64: 32, 1>}, {pipeline_mode = #tpu.pipeline_mode<synchronous>, transform_indices = @transform_8, window_bounds = array<i64: 112, 224>}, {pipeline_mode = #tpu.pipeline_mode<synchronous>, transform_indices = @transform_9, window_bounds = array<i64: 16, 1>}, {pipeline_mode = #tpu.pipeline_mode<synchronous>, transform_indices = @transform_10, window_bounds = array<i64: 56, 112>}, {pipeline_mode = #tpu.pipeline_mode<synchronous>, transform_indices = @transform_11, window_bounds = array<i64: 8, 1>}, {transform_indices = @transform_12, window_bounds = array<i64: 1, 8, 512>}]} {
    %c0 = arith.constant 0 : index
    %c0_0 = arith.constant 0 : index
    %0 = vector.load %arg2[%c0, %c0_0] : memref<1x512xf32, #tpu.memory_space<vmem>>, vector<1x512xf32>
    %c0_1 = arith.constant 0 : index
    %c0_2 = arith.constant 0 : index
    %c0_3 = arith.constant 0 : index
    %1 = vector.load %arg1[%c0_1, %c0_2, %c0_3] : memref<1x16x512xf32, #tpu.memory_space<vmem>>, vector<1x16x512xf32>
    %2 = vector.shape_cast %1 : vector<1x16x512xf32> to vector<16x512xf32>
    %c3_i32 = arith.constant 3 : i32
    %3 = tpu.dynamic_rotate %2 by %c3_i32 dim 1 : vector<16x512xf32>, i32 -> vector<16x512xf32>
    %4 = arith.truncf %3 : vector<16x512xf32> to vector<16x512xbf16>
    %c0_4 = arith.constant 0 : index
    %c0_5 = arith.constant 0 : index
    %5 = vector.load %arg14[%c0_4, %c0_5] : memref<448x512xbf16, #tpu.memory_space<vmem>>, vector<16x512xbf16>
    tpu.vector_store %arg14[%c0_4, %c0_5], %4 {strides = array<i32>} : memref<448x512xbf16, #tpu.memory_space<vmem>>, vector<16x512xbf16>,
    %c2_i32 = arith.constant 2 : i32
    %6 = tpu.dynamic_rotate %2 by %c2_i32 dim 1 : vector<16x512xf32>, i32 -> vector<16x512xf32>
    %7 = arith.truncf %6 : vector<16x512xf32> to vector<16x512xbf16>
    %c16 = arith.constant 16 : index
    %c0_6 = arith.constant 0 : index
    %8 = vector.load %arg14[%c16, %c0_6] : memref<448x512xbf16, #tpu.memory_space<vmem>>, vector<16x512xbf16>
    tpu.vector_store %arg14[%c16, %c0_6], %7 {strides = array<i32>} : memref<448x512xbf16, #tpu.memory_space<vmem>>, vector<16x512xbf16>,
    %c1_i32 = arith.constant 1 : i32
    %9 = tpu.dynamic_rotate %2 by %c1_i32 dim 1 : vector<16x512xf32>, i32 -> vector<16x512xf32>
    %10 = arith.truncf %9 : vector<16x512xf32> to vector<16x512xbf16>
    %c32 = arith.constant 32 : index
    %c0_7 = arith.constant 0 : index
    %11 = vector.load %arg14[%c32, %c0_7] : memref<448x512xbf16, #tpu.memory_space<vmem>>, vector<16x512xbf16>
    tpu.vector_store %arg14[%c32, %c0_7], %10 {strides = array<i32>} : memref<448x512xbf16, #tpu.memory_space<vmem>>, vector<16x512xbf16>,
    %12 = arith.truncf %2 : vector<16x512xf32> to vector<16x512xbf16>
    %c48 = arith.constant 48 : index
    %c0_8 = arith.constant 0 : index
    %13 = vector.load %arg14[%c48, %c0_8] : memref<448x512xbf16, #tpu.memory_space<vmem>>, vector<16x512xbf16>
    tpu.vector_store %arg14[%c48, %c0_8], %12 {strides = array<i32>} : memref<448x512xbf16, #tpu.memory_space<vmem>>, vector<16x512xbf16>,
    %c511_i32 = arith.constant 511 : i32
    %14 = tpu.dynamic_rotate %2 by %c511_i32 dim 1 : vector<16x512xf32>, i32 -> vector<16x512xf32>
    %15 = arith.truncf %14 : vector<16x512xf32> to vector<16x512xbf16>
    %c64 = arith.constant 64 : index
    %c0_9 = arith.constant 0 : index
    %16 = vector.load %arg14[%c64, %c0_9] : memref<448x512xbf16, #tpu.memory_space<vmem>>, vector<16x512xbf16>
    tpu.vector_store %arg14[%c64, %c0_9], %15 {strides = array<i32>} : memref<448x512xbf16, #tpu.memory_space<vmem>>, vector<16x512xbf16>,
    %c510_i32 = arith.constant 510 : i32
    %17 = tpu.dynamic_rotate %2 by %c510_i32 dim 1 : vector<16x512xf32>, i32 -> vector<16x512xf32>
    %18 = arith.truncf %17 : vector<16x512xf32> to vector<16x512xbf16>
    %c80 = arith.constant 80 : index
    %c0_10 = arith.constant 0 : index
    %19 = vector.load %arg14[%c80, %c0_10] : memref<448x512xbf16, #tpu.memory_space<vmem>>, vector<16x512xbf16>
    tpu.vector_store %arg14[%c80, %c0_10], %18 {strides = array<i32>} : memref<448x512xbf16, #tpu.memory_space<vmem>>, vector<16x512xbf16>,
    %c509_i32 = arith.constant 509 : i32
    %20 = tpu.dynamic_rotate %2 by %c509_i32 dim 1 : vector<16x512xf32>, i32 -> vector<16x512xf32>
    %21 = arith.truncf %20 : vector<16x512xf32> to vector<16x512xbf16>
    %c96 = arith.constant 96 : index
    %c0_11 = arith.constant 0 : index
    %22 = vector.load %arg14[%c96, %c0_11] : memref<448x512xbf16, #tpu.memory_space<vmem>>, vector<16x512xbf16>
    tpu.vector_store %arg14[%c96, %c0_11], %21 {strides = array<i32>} : memref<448x512xbf16, #tpu.memory_space<vmem>>, vector<16x512xbf16>,
    %c0_12 = arith.constant 0 : index
    %c0_13 = arith.constant 0 : index
    %23 = vector.load %arg3[%c0_12, %c0_13] : memref<224x112xbf16, #tpu.memory_space<vmem>>, vector<224x112xbf16>
    %c0_14 = arith.constant 0 : index
    %c0_15 = arith.constant 0 : index
    %24 = vector.load %arg14[%c0_14, %c0_15] : memref<448x512xbf16, #tpu.memory_space<vmem>>, vector<112x512xbf16>
    %cst = arith.constant dense<0.000000e+00> : vector<224x512xf32>
    %25 = tpu.matmul %23, %24, %cst {dimension_numbers = #tpu.dot_dimension_numbers<[1], [0], [0], [1], [0, 0, 1, 1], [], []>} : vector<224x112xbf16>, vector<112x512xbf16>, vector<224x512xf32> -> vector<224x512xf32>
    %26 = vector.extract_strided_slice %25 {offsets = [96, 0], sizes = [32, 512], strides = [1, 1]} : vector<224x512xf32> to vector<32x512xf32>
    %27 = vector.extract_strided_slice %25 {offsets = [0, 0], sizes = [32, 512], strides = [1, 1]} : vector<224x512xf32> to vector<32x512xf32>
    %c66_i32 = arith.constant 66 : i32
    %28 = tpu.dynamic_rotate %27 by %c66_i32 dim 1 : vector<32x512xf32>, i32 -> vector<32x512xf32>
    %29 = arith.addf %26, %28 : vector<32x512xf32>
    %30 = vector.extract_strided_slice %25 {offsets = [32, 0], sizes = [32, 512], strides = [1, 1]} : vector<224x512xf32> to vector<32x512xf32>
    %c44_i32 = arith.constant 44 : i32
    %31 = tpu.dynamic_rotate %30 by %c44_i32 dim 1 : vector<32x512xf32>, i32 -> vector<32x512xf32>
    %32 = arith.addf %29, %31 : vector<32x512xf32>
    %33 = vector.extract_strided_slice %25 {offsets = [64, 0], sizes = [32, 512], strides = [1, 1]} : vector<224x512xf32> to vector<32x512xf32>
    %c22_i32 = arith.constant 22 : i32
    %34 = tpu.dynamic_rotate %33 by %c22_i32 dim 1 : vector<32x512xf32>, i32 -> vector<32x512xf32>
    %35 = arith.addf %32, %34 : vector<32x512xf32>
    %36 = vector.extract_strided_slice %25 {offsets = [128, 0], sizes = [32, 512], strides = [1, 1]} : vector<224x512xf32> to vector<32x512xf32>
    %c490_i32 = arith.constant 490 : i32
    %37 = tpu.dynamic_rotate %36 by %c490_i32 dim 1 : vector<32x512xf32>, i32 -> vector<32x512xf32>
    %38 = arith.addf %35, %37 : vector<32x512xf32>
    %39 = vector.extract_strided_slice %25 {offsets = [160, 0], sizes = [32, 512], strides = [1, 1]} : vector<224x512xf32> to vector<32x512xf32>
    %c468_i32 = arith.constant 468 : i32
    %40 = tpu.dynamic_rotate %39 by %c468_i32 dim 1 : vector<32x512xf32>, i32 -> vector<32x512xf32>
    %41 = arith.addf %38, %40 : vector<32x512xf32>
    %42 = vector.extract_strided_slice %25 {offsets = [192, 0], sizes = [32, 512], strides = [1, 1]} : vector<224x512xf32> to vector<32x512xf32>
    %c446_i32 = arith.constant 446 : i32
    %43 = tpu.dynamic_rotate %42 by %c446_i32 dim 1 : vector<32x512xf32>, i32 -> vector<32x512xf32>
    %44 = arith.addf %41, %43 : vector<32x512xf32>
    %c0_16 = arith.constant 0 : index
    %c0_17 = arith.constant 0 : index
    %45 = vector.load %arg4[%c0_16, %c0_17] : memref<32x1xf32, #tpu.memory_space<vmem>>, vector<32x1xf32>
    %46 = vector.broadcast %45 : vector<32x1xf32> to vector<32x512xf32>
    %47 = arith.addf %44, %46 : vector<32x512xf32>
    %cst_18 = arith.constant 0.000000e+00 : f32
    %48 = vector.broadcast %cst_18 : f32 to vector<32x512xf32>
    %49 = arith.maximumf %47, %48 : vector<32x512xf32>
    %50 = vector.broadcast %0 : vector<1x512xf32> to vector<32x512xf32>
    %51 = arith.mulf %49, %50 : vector<32x512xf32>
    %c3_i32_19 = arith.constant 3 : i32
    %52 = tpu.dynamic_rotate %51 by %c3_i32_19 dim 1 : vector<32x512xf32>, i32 -> vector<32x512xf32>
    %53 = arith.truncf %52 : vector<32x512xf32> to vector<32x512xbf16>
    %c0_20 = arith.constant 0 : index
    %c0_21 = arith.constant 0 : index
    %54 = vector.load %arg14[%c0_20, %c0_21] : memref<448x512xbf16, #tpu.memory_space<vmem>>, vector<32x512xbf16>
    tpu.vector_store %arg14[%c0_20, %c0_21], %53 {strides = array<i32>} : memref<448x512xbf16, #tpu.memory_space<vmem>>, vector<32x512xbf16>,
    %c2_i32_22 = arith.constant 2 : i32
    %55 = tpu.dynamic_rotate %51 by %c2_i32_22 dim 1 : vector<32x512xf32>, i32 -> vector<32x512xf32>
    %56 = arith.truncf %55 : vector<32x512xf32> to vector<32x512xbf16>
    %c32_23 = arith.constant 32 : index
    %c0_24 = arith.constant 0 : index
    %57 = vector.load %arg14[%c32_23, %c0_24] : memref<448x512xbf16, #tpu.memory_space<vmem>>, vector<32x512xbf16>
    tpu.vector_store %arg14[%c32_23, %c0_24], %56 {strides = array<i32>} : memref<448x512xbf16, #tpu.memory_space<vmem>>, vector<32x512xbf16>,
    %c1_i32_25 = arith.constant 1 : i32
    %58 = tpu.dynamic_rotate %51 by %c1_i32_25 dim 1 : vector<32x512xf32>, i32 -> vector<32x512xf32>
    %59 = arith.truncf %58 : vector<32x512xf32> to vector<32x512xbf16>
    %c64_26 = arith.constant 64 : index
    %c0_27 = arith.constant 0 : index
    %60 = vector.load %arg14[%c64_26, %c0_27] : memref<448x512xbf16, #tpu.memory_space<vmem>>, vector<32x512xbf16>
    tpu.vector_store %arg14[%c64_26, %c0_27], %59 {strides = array<i32>} : memref<448x512xbf16, #tpu.memory_space<vmem>>, vector<32x512xbf16>,
    %61 = arith.truncf %51 : vector<32x512xf32> to vector<32x512xbf16>
    %c96_28 = arith.constant 96 : index
    %c0_29 = arith.constant 0 : index
    %62 = vector.load %arg14[%c96_28, %c0_29] : memref<448x512xbf16, #tpu.memory_space<vmem>>, vector<32x512xbf16>
    tpu.vector_store %arg14[%c96_28, %c0_29], %61 {strides = array<i32>} : memref<448x512xbf16, #tpu.memory_space<vmem>>, vector<32x512xbf16>,
    %c511_i32_30 = arith.constant 511 : i32
    %63 = tpu.dynamic_rotate %51 by %c511_i32_30 dim 1 : vector<32x512xf32>, i32 -> vector<32x512xf32>
    %64 = arith.truncf %63 : vector<32x512xf32> to vector<32x512xbf16>
    %c128 = arith.constant 128 : index
    %c0_31 = arith.constant 0 : index
    %65 = vector.load %arg14[%c128, %c0_31] : memref<448x512xbf16, #tpu.memory_space<vmem>>, vector<32x512xbf16>
    tpu.vector_store %arg14[%c128, %c0_31], %64 {strides = array<i32>} : memref<448x512xbf16, #tpu.memory_space<vmem>>, vector<32x512xbf16>,
    %c510_i32_32 = arith.constant 510 : i32
    %66 = tpu.dynamic_rotate %51 by %c510_i32_32 dim 1 : vector<32x512xf32>, i32 -> vector<32x512xf32>
    %67 = arith.truncf %66 : vector<32x512xf32> to vector<32x512xbf16>
    %c160 = arith.constant 160 : index
    %c0_33 = arith.constant 0 : index
    %68 = vector.load %arg14[%c160, %c0_33] : memref<448x512xbf16, #tpu.memory_space<vmem>>, vector<32x512xbf16>
    tpu.vector_store %arg14[%c160, %c0_33], %67 {strides = array<i32>} : memref<448x512xbf16, #tpu.memory_space<vmem>>, vector<32x512xbf16>,
    %c509_i32_34 = arith.constant 509 : i32
    %69 = tpu.dynamic_rotate %51 by %c509_i32_34 dim 1 : vector<32x512xf32>, i32 -> vector<32x512xf32>
    %70 = arith.truncf %69 : vector<32x512xf32> to vector<32x512xbf16>
    %c192 = arith.constant 192 : index
    %c0_35 = arith.constant 0 : index
    %71 = vector.load %arg14[%c192, %c0_35] : memref<448x512xbf16, #tpu.memory_space<vmem>>, vector<32x512xbf16>
    tpu.vector_store %arg14[%c192, %c0_35], %70 {strides = array<i32>} : memref<448x512xbf16, #tpu.memory_space<vmem>>, vector<32x512xbf16>,
    %c0_36 = arith.constant 0 : index
    %c0_37 = arith.constant 0 : index
    %72 = vector.load %arg5[%c0_36, %c0_37] : memref<448x224xbf16, #tpu.memory_space<vmem>>, vector<448x224xbf16>
    %c0_38 = arith.constant 0 : index
    %c0_39 = arith.constant 0 : index
    %73 = vector.load %arg14[%c0_38, %c0_39] : memref<448x512xbf16, #tpu.memory_space<vmem>>, vector<224x512xbf16>
    %cst_40 = arith.constant dense<0.000000e+00> : vector<448x512xf32>
    %74 = tpu.matmul %72, %73, %cst_40 {dimension_numbers = #tpu.dot_dimension_numbers<[1], [0], [0], [1], [0, 0, 1, 1], [], []>} : vector<448x224xbf16>, vector<224x512xbf16>, vector<448x512xf32> -> vector<448x512xf32>
    %75 = vector.extract_strided_slice %74 {offsets = [192, 0], sizes = [64, 512], strides = [1, 1]} : vector<448x512xf32> to vector<64x512xf32>
    %76 = vector.extract_strided_slice %74 {offsets = [0, 0], sizes = [64, 512], strides = [1, 1]} : vector<448x512xf32> to vector<64x512xf32>
    %c66_i32_41 = arith.constant 66 : i32
    %77 = tpu.dynamic_rotate %76 by %c66_i32_41 dim 1 : vector<64x512xf32>, i32 -> vector<64x512xf32>
    %78 = arith.addf %75, %77 : vector<64x512xf32>
    %79 = vector.extract_strided_slice %74 {offsets = [64, 0], sizes = [64, 512], strides = [1, 1]} : vector<448x512xf32> to vector<64x512xf32>
    %c44_i32_42 = arith.constant 44 : i32
    %80 = tpu.dynamic_rotate %79 by %c44_i32_42 dim 1 : vector<64x512xf32>, i32 -> vector<64x512xf32>
    %81 = arith.addf %78, %80 : vector<64x512xf32>
    %82 = vector.extract_strided_slice %74 {offsets = [128, 0], sizes = [64, 512], strides = [1, 1]} : vector<448x512xf32> to vector<64x512xf32>
    %c22_i32_43 = arith.constant 22 : i32
    %83 = tpu.dynamic_rotate %82 by %c22_i32_43 dim 1 : vector<64x512xf32>, i32 -> vector<64x512xf32>
    %84 = arith.addf %81, %83 : vector<64x512xf32>
    %85 = vector.extract_strided_slice %74 {offsets = [256, 0], sizes = [64, 512], strides = [1, 1]} : vector<448x512xf32> to vector<64x512xf32>
    %c490_i32_44 = arith.constant 490 : i32
    %86 = tpu.dynamic_rotate %85 by %c490_i32_44 dim 1 : vector<64x512xf32>, i32 -> vector<64x512xf32>
    %87 = arith.addf %84, %86 : vector<64x512xf32>
    %88 = vector.extract_strided_slice %74 {offsets = [320, 0], sizes = [64, 512], strides = [1, 1]} : vector<448x512xf32> to vector<64x512xf32>
    %c468_i32_45 = arith.constant 468 : i32
    %89 = tpu.dynamic_rotate %88 by %c468_i32_45 dim 1 : vector<64x512xf32>, i32 -> vector<64x512xf32>
    %90 = arith.addf %87, %89 : vector<64x512xf32>
    %91 = vector.extract_strided_slice %74 {offsets = [384, 0], sizes = [64, 512], strides = [1, 1]} : vector<448x512xf32> to vector<64x512xf32>
    %c446_i32_46 = arith.constant 446 : i32
    %92 = tpu.dynamic_rotate %91 by %c446_i32_46 dim 1 : vector<64x512xf32>, i32 -> vector<64x512xf32>
    %93 = arith.addf %90, %92 : vector<64x512xf32>
    %c0_47 = arith.constant 0 : index
    %c0_48 = arith.constant 0 : index
    %94 = vector.load %arg6[%c0_47, %c0_48] : memref<64x1xf32, #tpu.memory_space<vmem>>, vector<64x1xf32>
    %95 = vector.broadcast %94 : vector<64x1xf32> to vector<64x512xf32>
    %96 = arith.addf %93, %95 : vector<64x512xf32>
    %cst_49 = arith.constant 0.000000e+00 : f32
    %97 = vector.broadcast %cst_49 : f32 to vector<64x512xf32>
    %98 = arith.maximumf %96, %97 : vector<64x512xf32>
    %99 = vector.broadcast %0 : vector<1x512xf32> to vector<64x512xf32>
    %100 = arith.mulf %98, %99 : vector<64x512xf32>
    %c3_i32_50 = arith.constant 3 : i32
    %101 = tpu.dynamic_rotate %100 by %c3_i32_50 dim 1 : vector<64x512xf32>, i32 -> vector<64x512xf32>
    %102 = arith.truncf %101 : vector<64x512xf32> to vector<64x512xbf16>
    %c0_51 = arith.constant 0 : index
    %c0_52 = arith.constant 0 : index
    %103 = vector.load %arg14[%c0_51, %c0_52] : memref<448x512xbf16, #tpu.memory_space<vmem>>, vector<64x512xbf16>
    tpu.vector_store %arg14[%c0_51, %c0_52], %102 {strides = array<i32>} : memref<448x512xbf16, #tpu.memory_space<vmem>>, vector<64x512xbf16>,
    %c2_i32_53 = arith.constant 2 : i32
    %104 = tpu.dynamic_rotate %100 by %c2_i32_53 dim 1 : vector<64x512xf32>, i32 -> vector<64x512xf32>
    %105 = arith.truncf %104 : vector<64x512xf32> to vector<64x512xbf16>
    %c64_54 = arith.constant 64 : index
    %c0_55 = arith.constant 0 : index
    %106 = vector.load %arg14[%c64_54, %c0_55] : memref<448x512xbf16, #tpu.memory_space<vmem>>, vector<64x512xbf16>
    tpu.vector_store %arg14[%c64_54, %c0_55], %105 {strides = array<i32>} : memref<448x512xbf16, #tpu.memory_space<vmem>>, vector<64x512xbf16>,
    %c1_i32_56 = arith.constant 1 : i32
    %107 = tpu.dynamic_rotate %100 by %c1_i32_56 dim 1 : vector<64x512xf32>, i32 -> vector<64x512xf32>
    %108 = arith.truncf %107 : vector<64x512xf32> to vector<64x512xbf16>
    %c128_57 = arith.constant 128 : index
    %c0_58 = arith.constant 0 : index
    %109 = vector.load %arg14[%c128_57, %c0_58] : memref<448x512xbf16, #tpu.memory_space<vmem>>, vector<64x512xbf16>
    tpu.vector_store %arg14[%c128_57, %c0_58], %108 {strides = array<i32>} : memref<448x512xbf16, #tpu.memory_space<vmem>>, vector<64x512xbf16>,
    %110 = arith.truncf %100 : vector<64x512xf32> to vector<64x512xbf16>
    %c192_59 = arith.constant 192 : index
    %c0_60 = arith.constant 0 : index
    %111 = vector.load %arg14[%c192_59, %c0_60] : memref<448x512xbf16, #tpu.memory_space<vmem>>, vector<64x512xbf16>
    tpu.vector_store %arg14[%c192_59, %c0_60], %110 {strides = array<i32>} : memref<448x512xbf16, #tpu.memory_space<vmem>>, vector<64x512xbf16>,
    %c511_i32_61 = arith.constant 511 : i32
    %112 = tpu.dynamic_rotate %100 by %c511_i32_61 dim 1 : vector<64x512xf32>, i32 -> vector<64x512xf32>
    %113 = arith.truncf %112 : vector<64x512xf32> to vector<64x512xbf16>
    %c256 = arith.constant 256 : index
    %c0_62 = arith.constant 0 : index
    %114 = vector.load %arg14[%c256, %c0_62] : memref<448x512xbf16, #tpu.memory_space<vmem>>, vector<64x512xbf16>
    tpu.vector_store %arg14[%c256, %c0_62], %113 {strides = array<i32>} : memref<448x512xbf16, #tpu.memory_space<vmem>>, vector<64x512xbf16>,
    %c510_i32_63 = arith.constant 510 : i32
    %115 = tpu.dynamic_rotate %100 by %c510_i32_63 dim 1 : vector<64x512xf32>, i32 -> vector<64x512xf32>
    %116 = arith.truncf %115 : vector<64x512xf32> to vector<64x512xbf16>
    %c320 = arith.constant 320 : index
    %c0_64 = arith.constant 0 : index
    %117 = vector.load %arg14[%c320, %c0_64] : memref<448x512xbf16, #tpu.memory_space<vmem>>, vector<64x512xbf16>
    tpu.vector_store %arg14[%c320, %c0_64], %116 {strides = array<i32>} : memref<448x512xbf16, #tpu.memory_space<vmem>>, vector<64x512xbf16>,
    %c509_i32_65 = arith.constant 509 : i32
    %118 = tpu.dynamic_rotate %100 by %c509_i32_65 dim 1 : vector<64x512xf32>, i32 -> vector<64x512xf32>
    %119 = arith.truncf %118 : vector<64x512xf32> to vector<64x512xbf16>
    %c384 = arith.constant 384 : index
    %c0_66 = arith.constant 0 : index
    %120 = vector.load %arg14[%c384, %c0_66] : memref<448x512xbf16, #tpu.memory_space<vmem>>, vector<64x512xbf16>
    tpu.vector_store %arg14[%c384, %c0_66], %119 {strides = array<i32>} : memref<448x512xbf16, #tpu.memory_space<vmem>>, vector<64x512xbf16>,
    %c0_67 = arith.constant 0 : index
    %c0_68 = arith.constant 0 : index
    %121 = vector.load %arg7[%c0_67, %c0_68] : memref<224x448xbf16, #tpu.memory_space<vmem>>, vector<224x448xbf16>
    %c0_69 = arith.constant 0 : index
    %c0_70 = arith.constant 0 : index
    %122 = vector.load %arg14[%c0_69, %c0_70] : memref<448x512xbf16, #tpu.memory_space<vmem>>, vector<448x512xbf16>
    %cst_71 = arith.constant dense<0.000000e+00> : vector<224x512xf32>
    %123 = tpu.matmul %121, %122, %cst_71 {dimension_numbers = #tpu.dot_dimension_numbers<[1], [0], [0], [1], [0, 0, 1, 1], [], []>} : vector<224x448xbf16>, vector<448x512xbf16>, vector<224x512xf32> -> vector<224x512xf32>
    %124 = vector.extract_strided_slice %123 {offsets = [96, 0], sizes = [32, 512], strides = [1, 1]} : vector<224x512xf32> to vector<32x512xf32>
    %125 = vector.extract_strided_slice %123 {offsets = [0, 0], sizes = [32, 512], strides = [1, 1]} : vector<224x512xf32> to vector<32x512xf32>
    %c66_i32_72 = arith.constant 66 : i32
    %126 = tpu.dynamic_rotate %125 by %c66_i32_72 dim 1 : vector<32x512xf32>, i32 -> vector<32x512xf32>
    %127 = arith.addf %124, %126 : vector<32x512xf32>
    %128 = vector.extract_strided_slice %123 {offsets = [32, 0], sizes = [32, 512], strides = [1, 1]} : vector<224x512xf32> to vector<32x512xf32>
    %c44_i32_73 = arith.constant 44 : i32
    %129 = tpu.dynamic_rotate %128 by %c44_i32_73 dim 1 : vector<32x512xf32>, i32 -> vector<32x512xf32>
    %130 = arith.addf %127, %129 : vector<32x512xf32>
    %131 = vector.extract_strided_slice %123 {offsets = [64, 0], sizes = [32, 512], strides = [1, 1]} : vector<224x512xf32> to vector<32x512xf32>
    %c22_i32_74 = arith.constant 22 : i32
    %132 = tpu.dynamic_rotate %131 by %c22_i32_74 dim 1 : vector<32x512xf32>, i32 -> vector<32x512xf32>
    %133 = arith.addf %130, %132 : vector<32x512xf32>
    %134 = vector.extract_strided_slice %123 {offsets = [128, 0], sizes = [32, 512], strides = [1, 1]} : vector<224x512xf32> to vector<32x512xf32>
    %c490_i32_75 = arith.constant 490 : i32
    %135 = tpu.dynamic_rotate %134 by %c490_i32_75 dim 1 : vector<32x512xf32>, i32 -> vector<32x512xf32>
    %136 = arith.addf %133, %135 : vector<32x512xf32>
    %137 = vector.extract_strided_slice %123 {offsets = [160, 0], sizes = [32, 512], strides = [1, 1]} : vector<224x512xf32> to vector<32x512xf32>
    %c468_i32_76 = arith.constant 468 : i32
    %138 = tpu.dynamic_rotate %137 by %c468_i32_76 dim 1 : vector<32x512xf32>, i32 -> vector<32x512xf32>
    %139 = arith.addf %136, %138 : vector<32x512xf32>
    %140 = vector.extract_strided_slice %123 {offsets = [192, 0], sizes = [32, 512], strides = [1, 1]} : vector<224x512xf32> to vector<32x512xf32>
    %c446_i32_77 = arith.constant 446 : i32
    %141 = tpu.dynamic_rotate %140 by %c446_i32_77 dim 1 : vector<32x512xf32>, i32 -> vector<32x512xf32>
    %142 = arith.addf %139, %141 : vector<32x512xf32>
    %c0_78 = arith.constant 0 : index
    %c0_79 = arith.constant 0 : index
    %143 = vector.load %arg8[%c0_78, %c0_79] : memref<32x1xf32, #tpu.memory_space<vmem>>, vector<32x1xf32>
    %144 = vector.broadcast %143 : vector<32x1xf32> to vector<32x512xf32>
    %145 = arith.addf %142, %144 : vector<32x512xf32>
    %cst_80 = arith.constant 0.000000e+00 : f32
    %146 = vector.broadcast %cst_80 : f32 to vector<32x512xf32>
    %147 = arith.maximumf %145, %146 : vector<32x512xf32>
    %148 = vector.broadcast %0 : vector<1x512xf32> to vector<32x512xf32>
    %149 = arith.mulf %147, %148 : vector<32x512xf32>
    %c3_i32_81 = arith.constant 3 : i32
    %150 = tpu.dynamic_rotate %149 by %c3_i32_81 dim 1 : vector<32x512xf32>, i32 -> vector<32x512xf32>
    %151 = arith.truncf %150 : vector<32x512xf32> to vector<32x512xbf16>
    %c0_82 = arith.constant 0 : index
    %c0_83 = arith.constant 0 : index
    %152 = vector.load %arg14[%c0_82, %c0_83] : memref<448x512xbf16, #tpu.memory_space<vmem>>, vector<32x512xbf16>
    tpu.vector_store %arg14[%c0_82, %c0_83], %151 {strides = array<i32>} : memref<448x512xbf16, #tpu.memory_space<vmem>>, vector<32x512xbf16>,
    %c2_i32_84 = arith.constant 2 : i32
    %153 = tpu.dynamic_rotate %149 by %c2_i32_84 dim 1 : vector<32x512xf32>, i32 -> vector<32x512xf32>
    %154 = arith.truncf %153 : vector<32x512xf32> to vector<32x512xbf16>
    %c32_85 = arith.constant 32 : index
    %c0_86 = arith.constant 0 : index
    %155 = vector.load %arg14[%c32_85, %c0_86] : memref<448x512xbf16, #tpu.memory_space<vmem>>, vector<32x512xbf16>
    tpu.vector_store %arg14[%c32_85, %c0_86], %154 {strides = array<i32>} : memref<448x512xbf16, #tpu.memory_space<vmem>>, vector<32x512xbf16>,
    %c1_i32_87 = arith.constant 1 : i32
    %156 = tpu.dynamic_rotate %149 by %c1_i32_87 dim 1 : vector<32x512xf32>, i32 -> vector<32x512xf32>
    %157 = arith.truncf %156 : vector<32x512xf32> to vector<32x512xbf16>
    %c64_88 = arith.constant 64 : index
    %c0_89 = arith.constant 0 : index
    %158 = vector.load %arg14[%c64_88, %c0_89] : memref<448x512xbf16, #tpu.memory_space<vmem>>, vector<32x512xbf16>
    tpu.vector_store %arg14[%c64_88, %c0_89], %157 {strides = array<i32>} : memref<448x512xbf16, #tpu.memory_space<vmem>>, vector<32x512xbf16>,
    %159 = arith.truncf %149 : vector<32x512xf32> to vector<32x512xbf16>
    %c96_90 = arith.constant 96 : index
    %c0_91 = arith.constant 0 : index
    %160 = vector.load %arg14[%c96_90, %c0_91] : memref<448x512xbf16, #tpu.memory_space<vmem>>, vector<32x512xbf16>
    tpu.vector_store %arg14[%c96_90, %c0_91], %159 {strides = array<i32>} : memref<448x512xbf16, #tpu.memory_space<vmem>>, vector<32x512xbf16>,
    %c511_i32_92 = arith.constant 511 : i32
    %161 = tpu.dynamic_rotate %149 by %c511_i32_92 dim 1 : vector<32x512xf32>, i32 -> vector<32x512xf32>
    %162 = arith.truncf %161 : vector<32x512xf32> to vector<32x512xbf16>
    %c128_93 = arith.constant 128 : index
    %c0_94 = arith.constant 0 : index
    %163 = vector.load %arg14[%c128_93, %c0_94] : memref<448x512xbf16, #tpu.memory_space<vmem>>, vector<32x512xbf16>
    tpu.vector_store %arg14[%c128_93, %c0_94], %162 {strides = array<i32>} : memref<448x512xbf16, #tpu.memory_space<vmem>>, vector<32x512xbf16>,
    %c510_i32_95 = arith.constant 510 : i32
    %164 = tpu.dynamic_rotate %149 by %c510_i32_95 dim 1 : vector<32x512xf32>, i32 -> vector<32x512xf32>
    %165 = arith.truncf %164 : vector<32x512xf32> to vector<32x512xbf16>
    %c160_96 = arith.constant 160 : index
    %c0_97 = arith.constant 0 : index
    %166 = vector.load %arg14[%c160_96, %c0_97] : memref<448x512xbf16, #tpu.memory_space<vmem>>, vector<32x512xbf16>
    tpu.vector_store %arg14[%c160_96, %c0_97], %165 {strides = array<i32>} : memref<448x512xbf16, #tpu.memory_space<vmem>>, vector<32x512xbf16>,
    %c509_i32_98 = arith.constant 509 : i32
    %167 = tpu.dynamic_rotate %149 by %c509_i32_98 dim 1 : vector<32x512xf32>, i32 -> vector<32x512xf32>
    %168 = arith.truncf %167 : vector<32x512xf32> to vector<32x512xbf16>
    %c192_99 = arith.constant 192 : index
    %c0_100 = arith.constant 0 : index
    %169 = vector.load %arg14[%c192_99, %c0_100] : memref<448x512xbf16, #tpu.memory_space<vmem>>, vector<32x512xbf16>
    tpu.vector_store %arg14[%c192_99, %c0_100], %168 {strides = array<i32>} : memref<448x512xbf16, #tpu.memory_space<vmem>>, vector<32x512xbf16>,
    %c0_101 = arith.constant 0 : index
    %c0_102 = arith.constant 0 : index
    %170 = vector.load %arg9[%c0_101, %c0_102] : memref<112x224xbf16, #tpu.memory_space<vmem>>, vector<112x224xbf16>
    %c0_103 = arith.constant 0 : index
    %c0_104 = arith.constant 0 : index
    %171 = vector.load %arg14[%c0_103, %c0_104] : memref<448x512xbf16, #tpu.memory_space<vmem>>, vector<224x512xbf16>
    %cst_105 = arith.constant dense<0.000000e+00> : vector<112x512xf32>
    %172 = tpu.matmul %170, %171, %cst_105 {dimension_numbers = #tpu.dot_dimension_numbers<[1], [0], [0], [1], [0, 0, 1, 1], [], []>} : vector<112x224xbf16>, vector<224x512xbf16>, vector<112x512xf32> -> vector<112x512xf32>
    %173 = vector.extract_strided_slice %172 {offsets = [48, 0], sizes = [16, 512], strides = [1, 1]} : vector<112x512xf32> to vector<16x512xf32>
    %174 = vector.extract_strided_slice %172 {offsets = [0, 0], sizes = [16, 512], strides = [1, 1]} : vector<112x512xf32> to vector<16x512xf32>
    %c66_i32_106 = arith.constant 66 : i32
    %175 = tpu.dynamic_rotate %174 by %c66_i32_106 dim 1 : vector<16x512xf32>, i32 -> vector<16x512xf32>
    %176 = arith.addf %173, %175 : vector<16x512xf32>
    %177 = vector.extract_strided_slice %172 {offsets = [16, 0], sizes = [16, 512], strides = [1, 1]} : vector<112x512xf32> to vector<16x512xf32>
    %c44_i32_107 = arith.constant 44 : i32
    %178 = tpu.dynamic_rotate %177 by %c44_i32_107 dim 1 : vector<16x512xf32>, i32 -> vector<16x512xf32>
    %179 = arith.addf %176, %178 : vector<16x512xf32>
    %180 = vector.extract_strided_slice %172 {offsets = [32, 0], sizes = [16, 512], strides = [1, 1]} : vector<112x512xf32> to vector<16x512xf32>
    %c22_i32_108 = arith.constant 22 : i32
    %181 = tpu.dynamic_rotate %180 by %c22_i32_108 dim 1 : vector<16x512xf32>, i32 -> vector<16x512xf32>
    %182 = arith.addf %179, %181 : vector<16x512xf32>
    %183 = vector.extract_strided_slice %172 {offsets = [64, 0], sizes = [16, 512], strides = [1, 1]} : vector<112x512xf32> to vector<16x512xf32>
    %c490_i32_109 = arith.constant 490 : i32
    %184 = tpu.dynamic_rotate %183 by %c490_i32_109 dim 1 : vector<16x512xf32>, i32 -> vector<16x512xf32>
    %185 = arith.addf %182, %184 : vector<16x512xf32>
    %186 = vector.extract_strided_slice %172 {offsets = [80, 0], sizes = [16, 512], strides = [1, 1]} : vector<112x512xf32> to vector<16x512xf32>
    %c468_i32_110 = arith.constant 468 : i32
    %187 = tpu.dynamic_rotate %186 by %c468_i32_110 dim 1 : vector<16x512xf32>, i32 -> vector<16x512xf32>
    %188 = arith.addf %185, %187 : vector<16x512xf32>
    %189 = vector.extract_strided_slice %172 {offsets = [96, 0], sizes = [16, 512], strides = [1, 1]} : vector<112x512xf32> to vector<16x512xf32>
    %c446_i32_111 = arith.constant 446 : i32
    %190 = tpu.dynamic_rotate %189 by %c446_i32_111 dim 1 : vector<16x512xf32>, i32 -> vector<16x512xf32>
    %191 = arith.addf %188, %190 : vector<16x512xf32>
    %c0_112 = arith.constant 0 : index
    %c0_113 = arith.constant 0 : index
    %192 = vector.load %arg10[%c0_112, %c0_113] : memref<16x1xf32, #tpu.memory_space<vmem>>, vector<16x1xf32>
    %193 = vector.broadcast %192 : vector<16x1xf32> to vector<16x512xf32>
    %194 = arith.addf %191, %193 : vector<16x512xf32>
    %cst_114 = arith.constant 0.000000e+00 : f32
    %195 = vector.broadcast %cst_114 : f32 to vector<16x512xf32>
    %196 = arith.maximumf %194, %195 : vector<16x512xf32>
    %197 = vector.broadcast %0 : vector<1x512xf32> to vector<16x512xf32>
    %198 = arith.mulf %196, %197 : vector<16x512xf32>
    %c3_i32_115 = arith.constant 3 : i32
    %199 = tpu.dynamic_rotate %198 by %c3_i32_115 dim 1 : vector<16x512xf32>, i32 -> vector<16x512xf32>
    %200 = arith.truncf %199 : vector<16x512xf32> to vector<16x512xbf16>
    %c0_116 = arith.constant 0 : index
    %c0_117 = arith.constant 0 : index
    %201 = vector.load %arg14[%c0_116, %c0_117] : memref<448x512xbf16, #tpu.memory_space<vmem>>, vector<16x512xbf16>
    tpu.vector_store %arg14[%c0_116, %c0_117], %200 {strides = array<i32>} : memref<448x512xbf16, #tpu.memory_space<vmem>>, vector<16x512xbf16>,
    %c2_i32_118 = arith.constant 2 : i32
    %202 = tpu.dynamic_rotate %198 by %c2_i32_118 dim 1 : vector<16x512xf32>, i32 -> vector<16x512xf32>
    %203 = arith.truncf %202 : vector<16x512xf32> to vector<16x512xbf16>
    %c16_119 = arith.constant 16 : index
    %c0_120 = arith.constant 0 : index
    %204 = vector.load %arg14[%c16_119, %c0_120] : memref<448x512xbf16, #tpu.memory_space<vmem>>, vector<16x512xbf16>
    tpu.vector_store %arg14[%c16_119, %c0_120], %203 {strides = array<i32>} : memref<448x512xbf16, #tpu.memory_space<vmem>>, vector<16x512xbf16>,
    %c1_i32_121 = arith.constant 1 : i32
    %205 = tpu.dynamic_rotate %198 by %c1_i32_121 dim 1 : vector<16x512xf32>, i32 -> vector<16x512xf32>
    %206 = arith.truncf %205 : vector<16x512xf32> to vector<16x512xbf16>
    %c32_122 = arith.constant 32 : index
    %c0_123 = arith.constant 0 : index
    %207 = vector.load %arg14[%c32_122, %c0_123] : memref<448x512xbf16, #tpu.memory_space<vmem>>, vector<16x512xbf16>
    tpu.vector_store %arg14[%c32_122, %c0_123], %206 {strides = array<i32>} : memref<448x512xbf16, #tpu.memory_space<vmem>>, vector<16x512xbf16>,
    %208 = arith.truncf %198 : vector<16x512xf32> to vector<16x512xbf16>
    %c48_124 = arith.constant 48 : index
    %c0_125 = arith.constant 0 : index
    %209 = vector.load %arg14[%c48_124, %c0_125] : memref<448x512xbf16, #tpu.memory_space<vmem>>, vector<16x512xbf16>
    tpu.vector_store %arg14[%c48_124, %c0_125], %208 {strides = array<i32>} : memref<448x512xbf16, #tpu.memory_space<vmem>>, vector<16x512xbf16>,
    %c511_i32_126 = arith.constant 511 : i32
    %210 = tpu.dynamic_rotate %198 by %c511_i32_126 dim 1 : vector<16x512xf32>, i32 -> vector<16x512xf32>
    %211 = arith.truncf %210 : vector<16x512xf32> to vector<16x512xbf16>
    %c64_127 = arith.constant 64 : index
    %c0_128 = arith.constant 0 : index
    %212 = vector.load %arg14[%c64_127, %c0_128] : memref<448x512xbf16, #tpu.memory_space<vmem>>, vector<16x512xbf16>
    tpu.vector_store %arg14[%c64_127, %c0_128], %211 {strides = array<i32>} : memref<448x512xbf16, #tpu.memory_space<vmem>>, vector<16x512xbf16>,
    %c510_i32_129 = arith.constant 510 : i32
    %213 = tpu.dynamic_rotate %198 by %c510_i32_129 dim 1 : vector<16x512xf32>, i32 -> vector<16x512xf32>
    %214 = arith.truncf %213 : vector<16x512xf32> to vector<16x512xbf16>
    %c80_130 = arith.constant 80 : index
    %c0_131 = arith.constant 0 : index
    %215 = vector.load %arg14[%c80_130, %c0_131] : memref<448x512xbf16, #tpu.memory_space<vmem>>, vector<16x512xbf16>
    tpu.vector_store %arg14[%c80_130, %c0_131], %214 {strides = array<i32>} : memref<448x512xbf16, #tpu.memory_space<vmem>>, vector<16x512xbf16>,
    %c509_i32_132 = arith.constant 509 : i32
    %216 = tpu.dynamic_rotate %198 by %c509_i32_132 dim 1 : vector<16x512xf32>, i32 -> vector<16x512xf32>
    %217 = arith.truncf %216 : vector<16x512xf32> to vector<16x512xbf16>
    %c96_133 = arith.constant 96 : index
    %c0_134 = arith.constant 0 : index
    %218 = vector.load %arg14[%c96_133, %c0_134] : memref<448x512xbf16, #tpu.memory_space<vmem>>, vector<16x512xbf16>
    tpu.vector_store %arg14[%c96_133, %c0_134], %217 {strides = array<i32>} : memref<448x512xbf16, #tpu.memory_space<vmem>>, vector<16x512xbf16>,
    %c0_135 = arith.constant 0 : index
    %c0_136 = arith.constant 0 : index
    %219 = vector.load %arg11[%c0_135, %c0_136] : memref<56x112xbf16, #tpu.memory_space<vmem>>, vector<56x112xbf16>
    %c0_137 = arith.constant 0 : index
    %c0_138 = arith.constant 0 : index
    %220 = vector.load %arg14[%c0_137, %c0_138] : memref<448x512xbf16, #tpu.memory_space<vmem>>, vector<112x512xbf16>
    %cst_139 = arith.constant dense<0.000000e+00> : vector<56x512xf32>
    %221 = tpu.matmul %219, %220, %cst_139 {dimension_numbers = #tpu.dot_dimension_numbers<[1], [0], [0], [1], [0, 0, 1, 1], [], []>} : vector<56x112xbf16>, vector<112x512xbf16>, vector<56x512xf32> -> vector<56x512xf32>
    %222 = vector.extract_strided_slice %221 {offsets = [24, 0], sizes = [8, 512], strides = [1, 1]} : vector<56x512xf32> to vector<8x512xf32>
    %223 = vector.extract_strided_slice %221 {offsets = [0, 0], sizes = [8, 512], strides = [1, 1]} : vector<56x512xf32> to vector<8x512xf32>
    %c66_i32_140 = arith.constant 66 : i32
    %224 = tpu.dynamic_rotate %223 by %c66_i32_140 dim 1 : vector<8x512xf32>, i32 -> vector<8x512xf32>
    %225 = arith.addf %222, %224 : vector<8x512xf32>
    %226 = vector.extract_strided_slice %221 {offsets = [8, 0], sizes = [8, 512], strides = [1, 1]} : vector<56x512xf32> to vector<8x512xf32>
    %c44_i32_141 = arith.constant 44 : i32
    %227 = tpu.dynamic_rotate %226 by %c44_i32_141 dim 1 : vector<8x512xf32>, i32 -> vector<8x512xf32>
    %228 = arith.addf %225, %227 : vector<8x512xf32>
    %229 = vector.extract_strided_slice %221 {offsets = [16, 0], sizes = [8, 512], strides = [1, 1]} : vector<56x512xf32> to vector<8x512xf32>
    %c22_i32_142 = arith.constant 22 : i32
    %230 = tpu.dynamic_rotate %229 by %c22_i32_142 dim 1 : vector<8x512xf32>, i32 -> vector<8x512xf32>
    %231 = arith.addf %228, %230 : vector<8x512xf32>
    %232 = vector.extract_strided_slice %221 {offsets = [32, 0], sizes = [8, 512], strides = [1, 1]} : vector<56x512xf32> to vector<8x512xf32>
    %c490_i32_143 = arith.constant 490 : i32
    %233 = tpu.dynamic_rotate %232 by %c490_i32_143 dim 1 : vector<8x512xf32>, i32 -> vector<8x512xf32>
    %234 = arith.addf %231, %233 : vector<8x512xf32>
    %235 = vector.extract_strided_slice %221 {offsets = [40, 0], sizes = [8, 512], strides = [1, 1]} : vector<56x512xf32> to vector<8x512xf32>
    %c468_i32_144 = arith.constant 468 : i32
    %236 = tpu.dynamic_rotate %235 by %c468_i32_144 dim 1 : vector<8x512xf32>, i32 -> vector<8x512xf32>
    %237 = arith.addf %234, %236 : vector<8x512xf32>
    %238 = vector.extract_strided_slice %221 {offsets = [48, 0], sizes = [8, 512], strides = [1, 1]} : vector<56x512xf32> to vector<8x512xf32>
    %c446_i32_145 = arith.constant 446 : i32
    %239 = tpu.dynamic_rotate %238 by %c446_i32_145 dim 1 : vector<8x512xf32>, i32 -> vector<8x512xf32>
    %240 = arith.addf %237, %239 : vector<8x512xf32>
    %c0_146 = arith.constant 0 : index
    %c0_147 = arith.constant 0 : index
    %241 = vector.load %arg12[%c0_146, %c0_147] : memref<8x1xf32, #tpu.memory_space<vmem>>, vector<8x1xf32>
    %242 = vector.broadcast %241 : vector<8x1xf32> to vector<8x512xf32>
    %243 = arith.addf %240, %242 : vector<8x512xf32>
    %c0_148 = arith.constant 0 : index
    %c0_149 = arith.constant 0 : index
    %c0_150 = arith.constant 0 : index
    %244 = vector.load %arg13[%c0_148, %c0_149, %c0_150] : memref<1x8x512xf32, #tpu.memory_space<vmem>>, vector<1x8x512xf32>
    %245 = vector.shape_cast %244 : vector<1x8x512xf32> to vector<8x512xf32>
    %246 = vector.shape_cast %243 : vector<8x512xf32> to vector<1x8x512xf32>
    tpu.vector_store %arg13[%c0_148, %c0_149, %c0_150], %246 {strides = array<i32>} : memref<1x8x512xf32, #tpu.memory_space<vmem>>, vector<1x8x512xf32>,
    return
  }
  func.func @transform_0(%arg0: i32) -> (i32, i32, i32) {
    %c0_i32 = arith.constant 0 : i32
    %c0_i32_0 = arith.constant 0 : i32
    %c0_i32_1 = arith.constant 0 : i32
    return %arg0, %c0_i32, %c0_i32_0 : i32, i32, i32
  }
  func.func @transform_1(%arg0: i32) -> (i32, i32) {
    %c0_i32 = arith.constant 0 : i32
    %c0_i32_0 = arith.constant 0 : i32
    %c0_i32_1 = arith.constant 0 : i32
    return %c0_i32, %c0_i32_0 : i32, i32
  }
  func.func @transform_2(%arg0: i32) -> (i32, i32) {
    %c0_i32 = arith.constant 0 : i32
    %c0_i32_0 = arith.constant 0 : i32
    %c0_i32_1 = arith.constant 0 : i32
    return %c0_i32, %c0_i32_0 : i32, i32
  }
  func.func @transform_3(%arg0: i32) -> (i32, i32) {
    %c0_i32 = arith.constant 0 : i32
    %c0_i32_0 = arith.constant 0 : i32
    %c0_i32_1 = arith.constant 0 : i32
    return %c0_i32, %c0_i32_0 : i32, i32
  }
  func.func @transform_4(%arg0: i32) -> (i32, i32) {
    %c0_i32 = arith.constant 0 : i32
    %c0_i32_0 = arith.constant 0 : i32
    %c0_i32_1 = arith.constant 0 : i32
    return %c0_i32, %c0_i32_0 : i32, i32
  }
  func.func @transform_5(%arg0: i32) -> (i32, i32) {
    %c0_i32 = arith.constant 0 : i32
    %c0_i32_0 = arith.constant 0 : i32
    %c0_i32_1 = arith.constant 0 : i32
    return %c0_i32, %c0_i32_0 : i32, i32
  }
  func.func @transform_6(%arg0: i32) -> (i32, i32) {
    %c0_i32 = arith.constant 0 : i32
    %c0_i32_0 = arith.constant 0 : i32
    %c0_i32_1 = arith.constant 0 : i32
    return %c0_i32, %c0_i32_0 : i32, i32
  }
  func.func @transform_7(%arg0: i32) -> (i32, i32) {
    %c0_i32 = arith.constant 0 : i32
    %c0_i32_0 = arith.constant 0 : i32
    %c0_i32_1 = arith.constant 0 : i32
    return %c0_i32, %c0_i32_0 : i32, i32
  }
  func.func @transform_8(%arg0: i32) -> (i32, i32) {
    %c0_i32 = arith.constant 0 : i32
    %c0_i32_0 = arith.constant 0 : i32
    %c0_i32_1 = arith.constant 0 : i32
    return %c0_i32, %c0_i32_0 : i32, i32
  }
  func.func @transform_9(%arg0: i32) -> (i32, i32) {
    %c0_i32 = arith.constant 0 : i32
    %c0_i32_0 = arith.constant 0 : i32
    %c0_i32_1 = arith.constant 0 : i32
    return %c0_i32, %c0_i32_0 : i32, i32
  }
  func.func @transform_10(%arg0: i32) -> (i32, i32) {
    %c0_i32 = arith.constant 0 : i32
    %c0_i32_0 = arith.constant 0 : i32
    %c0_i32_1 = arith.constant 0 : i32
    return %c0_i32, %c0_i32_0 : i32, i32
  }
  func.func @transform_11(%arg0: i32) -> (i32, i32) {
    %c0_i32 = arith.constant 0 : i32
    %c0_i32_0 = arith.constant 0 : i32
    %c0_i32_1 = arith.constant 0 : i32
    return %c0_i32, %c0_i32_0 : i32, i32
  }
  func.func @transform_12(%arg0: i32) -> (i32, i32, i32) {
    %c0_i32 = arith.constant 0 : i32
    %c0_i32_0 = arith.constant 0 : i32
    %c0_i32_1 = arith.constant 0 : i32
    return %arg0, %c0_i32, %c0_i32_0 : i32, i32, i32
  }
}

</mosaic_0001>

<llo_original>
// kernel: network_forward.1
$region0: #{network_forward.1}
  #allocation0 [shape = 'u32[]', space=smem, size = 0x4, offset = 0x4, fixed_abs, tag = 'smem constant byte address 0x4 - core index']
  #allocation1 [shape = 'u32[144,128]{1,0:T(1,128)}', space=vmem, size = 0x12000, scoped, tag = 'internal scratch']
  #allocation2 [shape = 'bf16[448,512]{1,0:T(16,128)(2,1)}', space=vmem, size = 0x70000, scoped, tag = 'scratch operand']
  %s0 = inlined_call_operand.vmem [shape: f32[2,16,512], index: 0, kind: input, shape index: {}]
  %s1 = inlined_call_operand.vmem [shape: f32[1,512], index: 1, kind: input, shape index: {}]
  %s2 = inlined_call_operand.vmem [shape: bf16[224,112], index: 2, kind: input, shape index: {}]
  %s3 = inlined_call_operand.vmem [shape: f32[32,1], index: 3, kind: input, shape index: {}]
  %s4 = inlined_call_operand.vmem [shape: bf16[448,224], index: 4, kind: input, shape index: {}]
  %s5 = inlined_call_operand.vmem [shape: f32[64,1], index: 5, kind: input, shape index: {}]
  %s6 = inlined_call_operand.vmem [shape: bf16[224,448], index: 6, kind: input, shape index: {}]
  %s7 = inlined_call_operand.vmem [shape: f32[32,1], index: 7, kind: input, shape index: {}]
  %s8 = inlined_call_operand.vmem [shape: bf16[112,224], index: 8, kind: input, shape index: {}]
  %s9 = inlined_call_operand.vmem [shape: f32[16,1], index: 9, kind: input, shape index: {}]
  %s10 = inlined_call_operand.vmem [shape: bf16[56,112], index: 10, kind: input, shape index: {}]
  %s11 = inlined_call_operand.vmem [shape: f32[8,1], index: 11, kind: input, shape index: {}]
  %s12 = inlined_call_operand.vmem [shape: f32[2,8,512], index: 12, kind: output, shape index: {}]
  %s13 = sld [smem:[#allocation0]]
  $region81: #{network_forward.1} parent=0
    _
  %s15 = ssub.s32 1, %s13
  %s16 = scalar_select 0, %s15, %s13
  loop: start=0, step=1, limit=4
  $region2: #{network_forward.1} parent=0 // loop_pre_header
    _
  $region3: #{network_forward.1} parent=0 // loop_header
    %s18 = sphi 0, %s22
    %p19 = scmp.ge.s32.totalorder %s18, 4
    %s28 = sphi 0, %s30
    %s31 = sphi 0, %s28
    %s32 = sphi 0, %s31
    %s48 = sphi 0, %s32
    %s52 = sphi 0, %s52
    %s54 = sphi 0, %s52
    %s55 = sphi 0, %s54
    %s69 = sphi 0, %s55
    %s73 = sphi 0, %s73
    %s75 = sphi 0, %s73
    %s76 = sphi 0, %s75
    %s90 = sphi 0, %s76
    %s94 = sphi 0, %s94
    %s96 = sphi 0, %s94
    %s97 = sphi 0, %s96
    %s111 = sphi 0, %s97
    %s115 = sphi 0, %s115
    %s117 = sphi 0, %s115
    %s118 = sphi 0, %s117
    %s132 = sphi 0, %s118
    %s136 = sphi 0, %s136
    %s138 = sphi 0, %s136
    %s139 = sphi 0, %s138
    %s153 = sphi 0, %s139
    %s157 = sphi 0, %s157
    %s159 = sphi 0, %s157
    %s160 = sphi 0, %s159
    %s174 = sphi 0, %s160
    %s178 = sphi 0, %s178
    %s180 = sphi 0, %s178
    %s181 = sphi 0, %s180
    %s195 = sphi 0, %s181
    %s199 = sphi 0, %s199
    %s201 = sphi 0, %s199
    %s202 = sphi 0, %s201
    %s216 = sphi 0, %s202
    %s220 = sphi 0, %s220
    %s222 = sphi 0, %s220
    %s223 = sphi 0, %s222
    %s237 = sphi 0, %s223
    %s241 = sphi 0, %s241
    %s243 = sphi 0, %s241
    %s244 = sphi 0, %s243
    %s258 = sphi 0, %s244
    %s262 = sphi 0, %s262
    %s264 = sphi 0, %s262
    %s265 = sphi 0, %s264
    %s279 = sphi 0, %s265
    %s285 = sphi 0, %s287
    %s288 = sphi 0, %s285
    %s289 = sphi 0, %s288
    %s305 = sphi 0, %s289
  $region4: #{network_forward.1} parent=0 // loop_header_branch
    %21 = sbr.rel (%p19) target = $region8
  $region5: #{network_forward.1} parent=0 // loop_body
    %s23 = ssub.s32 %s18, 1
    %s24 = ssub.s32 %s18, 2
    %s25 = sadd.s32 %s18, 1
    %s26 = ssub.s32 %s18, %s25
    %p27 = scmp.eq.s32.totalorder %s26, 0
    %s29 = sadd.s32 %s28, 1
    %s30 = scalar_select %p27, %s28, %s29
    %p33 = pneg %p27
    %p34 = scmp.eq.s32.totalorder %s18, 1
    %p35 = por %p33, %p34
    %p36 = scmp.ne.s32.totalorder %s28, %s31
    %p37 = scmp.eq.s32.totalorder %s18, 0
    %p38 = por %p36, %p37
    %p39 = scmp.ne.s32.totalorder %s28, %s31
    %p40 = scmp.eq.s32.totalorder %s23, 1
    %p41 = por %p39, %p40
    %p42 = scmp.ne.s32.totalorder %s31, %s32
    %p43 = scmp.eq.s32.totalorder %s23, 0
    %p44 = por %p42, %p43
    %p45 = scmp.ne.s32.totalorder %s31, %s32
    %p46 = scmp.eq.s32.totalorder %s24, 1
    %p47 = por %p45, %p46
    %p49 = scmp.ne.s32.totalorder %s32, %s48
    %p50 = scmp.eq.s32.totalorder %s24, 0
    %p51 = por %p49, %p50
    %s53 = sadd.s32 %s52, 1
    %p56 = scmp.eq.s32.totalorder %s18, 1
    %p57 = scmp.ne.s32.totalorder %s52, %s54
    %p58 = scmp.eq.s32.totalorder %s18, 0
    %p59 = por %p57, %p58
    %p60 = scmp.ne.s32.totalorder %s52, %s54
    %p61 = scmp.eq.s32.totalorder %s23, 1
    %p62 = por %p60, %p61
    %p63 = scmp.ne.s32.totalorder %s54, %s55
    %p64 = scmp.eq.s32.totalorder %s23, 0
    %p65 = por %p63, %p64
    %p66 = scmp.ne.s32.totalorder %s54, %s55
    %p67 = scmp.eq.s32.totalorder %s24, 1
    %p68 = por %p66, %p67
    %p70 = scmp.ne.s32.totalorder %s55, %s69
    %p71 = scmp.eq.s32.totalorder %s24, 0
    %p72 = por %p70, %p71
    %s74 = sadd.s32 %s73, 1
    %p77 = scmp.eq.s32.totalorder %s18, 1
    %p78 = scmp.ne.s32.totalorder %s73, %s75
    %p79 = scmp.eq.s32.totalorder %s18, 0
    %p80 = por %p78, %p79
    %p81 = scmp.ne.s32.totalorder %s73, %s75
    %p82 = scmp.eq.s32.totalorder %s23, 1
    %p83 = por %p81, %p82
    %p84 = scmp.ne.s32.totalorder %s75, %s76
    %p85 = scmp.eq.s32.totalorder %s23, 0
    %p86 = por %p84, %p85
    %p87 = scmp.ne.s32.totalorder %s75, %s76
    %p88 = scmp.eq.s32.totalorder %s24, 1
    %p89 = por %p87, %p88
    %p91 = scmp.ne.s32.totalorder %s76, %s90
    %p92 = scmp.eq.s32.totalorder %s24, 0
    %p93 = por %p91, %p92
    %s95 = sadd.s32 %s94, 1
    %p98 = scmp.eq.s32.totalorder %s18, 1
    %p99 = scmp.ne.s32.totalorder %s94, %s96
    %p100 = scmp.eq.s32.totalorder %s18, 0
    %p101 = por %p99, %p100
    %p102 = scmp.ne.s32.totalorder %s94, %s96
    %p103 = scmp.eq.s32.totalorder %s23, 1
    %p104 = por %p102, %p103
    %p105 = scmp.ne.s32.totalorder %s96, %s97
    %p106 = scmp.eq.s32.totalorder %s23, 0
    %p107 = por %p105, %p106
    %p108 = scmp.ne.s32.totalorder %s96, %s97
    %p109 = scmp.eq.s32.totalorder %s24, 1
    %p110 = por %p108, %p109
    %p112 = scmp.ne.s32.totalorder %s97, %s111
    %p113 = scmp.eq.s32.totalorder %s24, 0
    %p114 = por %p112, %p113
    %s116 = sadd.s32 %s115, 1
    %p119 = scmp.eq.s32.totalorder %s18, 1
    %p120 = scmp.ne.s32.totalorder %s115, %s117
    %p121 = scmp.eq.s32.totalorder %s18, 0
    %p122 = por %p120, %p121
    %p123 = scmp.ne.s32.totalorder %s115, %s117
    %p124 = scmp.eq.s32.totalorder %s23, 1
    %p125 = por %p123, %p124
    %p126 = scmp.ne.s32.totalorder %s117, %s118
    %p127 = scmp.eq.s32.totalorder %s23, 0
    %p128 = por %p126, %p127
    %p129 = scmp.ne.s32.totalorder %s117, %s118
    %p130 = scmp.eq.s32.totalorder %s24, 1
    %p131 = por %p129, %p130
    %p133 = scmp.ne.s32.totalorder %s118, %s132
    %p134 = scmp.eq.s32.totalorder %s24, 0
    %p135 = por %p133, %p134
    %s137 = sadd.s32 %s136, 1
    %p140 = scmp.eq.s32.totalorder %s18, 1
    %p141 = scmp.ne.s32.totalorder %s136, %s138
    %p142 = scmp.eq.s32.totalorder %s18, 0
    %p143 = por %p141, %p142
    %p144 = scmp.ne.s32.totalorder %s136, %s138
    %p145 = scmp.eq.s32.totalorder %s23, 1
    %p146 = por %p144, %p145
    %p147 = scmp.ne.s32.totalorder %s138, %s139
    %p148 = scmp.eq.s32.totalorder %s23, 0
    %p149 = por %p147, %p148
    %p150 = scmp.ne.s32.totalorder %s138, %s139
    %p151 = scmp.eq.s32.totalorder %s24, 1
    %p152 = por %p150, %p151
    %p154 = scmp.ne.s32.totalorder %s139, %s153
    %p155 = scmp.eq.s32.totalorder %s24, 0
    %p156 = por %p154, %p155
    %s158 = sadd.s32 %s157, 1
    %p161 = scmp.eq.s32.totalorder %s18, 1
    %p162 = scmp.ne.s32.totalorder %s157, %s159
    %p163 = scmp.eq.s32.totalorder %s18, 0
    %p164 = por %p162, %p163
    %p165 = scmp.ne.s32.totalorder %s157, %s159
    %p166 = scmp.eq.s32.totalorder %s23, 1
    %p167 = por %p165, %p166
    %p168 = scmp.ne.s32.totalorder %s159, %s160
    %p169 = scmp.eq.s32.totalorder %s23, 0
    %p170 = por %p168, %p169
    %p171 = scmp.ne.s32.totalorder %s159, %s160
    %p172 = scmp.eq.s32.totalorder %s24, 1
    %p173 = por %p171, %p172
    %p175 = scmp.ne.s32.totalorder %s160, %s174
    %p176 = scmp.eq.s32.totalorder %s24, 0
    %p177 = por %p175, %p176
    %s179 = sadd.s32 %s178, 1
    %p182 = scmp.eq.s32.totalorder %s18, 1
    %p183 = scmp.ne.s32.totalorder %s178, %s180
    %p184 = scmp.eq.s32.totalorder %s18, 0
    %p185 = por %p183, %p184
    %p186 = scmp.ne.s32.totalorder %s178, %s180
    %p187 = scmp.eq.s32.totalorder %s23, 1
    %p188 = por %p186, %p187
    %p189 = scmp.ne.s32.totalorder %s180, %s181
    %p190 = scmp.eq.s32.totalorder %s23, 0
    %p191 = por %p189, %p190
    %p192 = scmp.ne.s32.totalorder %s180, %s181
    %p193 = scmp.eq.s32.totalorder %s24, 1
    %p194 = por %p192, %p193
    %p196 = scmp.ne.s32.totalorder %s181, %s195
    %p197 = scmp.eq.s32.totalorder %s24, 0
    %p198 = por %p196, %p197
    %s200 = sadd.s32 %s199, 1
    %p203 = scmp.eq.s32.totalorder %s18, 1
    %p204 = scmp.ne.s32.totalorder %s199, %s201
    %p205 = scmp.eq.s32.totalorder %s18, 0
    %p206 = por %p204, %p205
    %p207 = scmp.ne.s32.totalorder %s199, %s201
    %p208 = scmp.eq.s32.totalorder %s23, 1
    %p209 = por %p207, %p208
    %p210 = scmp.ne.s32.totalorder %s201, %s202
    %p211 = scmp.eq.s32.totalorder %s23, 0
    %p212 = por %p210, %p211
    %p213 = scmp.ne.s32.totalorder %s201, %s202
    %p214 = scmp.eq.s32.totalorder %s24, 1
    %p215 = por %p213, %p214
    %p217 = scmp.ne.s32.totalorder %s202, %s216
    %p218 = scmp.eq.s32.totalorder %s24, 0
    %p219 = por %p217, %p218
    %s221 = sadd.s32 %s220, 1
    %p224 = scmp.eq.s32.totalorder %s18, 1
    %p225 = scmp.ne.s32.totalorder %s220, %s222
    %p226 = scmp.eq.s32.totalorder %s18, 0
    %p227 = por %p225, %p226
    %p228 = scmp.ne.s32.totalorder %s220, %s222
    %p229 = scmp.eq.s32.totalorder %s23, 1
    %p230 = por %p228, %p229
    %p231 = scmp.ne.s32.totalorder %s222, %s223
    %p232 = scmp.eq.s32.totalorder %s23, 0
    %p233 = por %p231, %p232
    %p234 = scmp.ne.s32.totalorder %s222, %s223
    %p235 = scmp.eq.s32.totalorder %s24, 1
    %p236 = por %p234, %p235
    %p238 = scmp.ne.s32.totalorder %s223, %s237
    %p239 = scmp.eq.s32.totalorder %s24, 0
    %p240 = por %p238, %p239
    %s242 = sadd.s32 %s241, 1
    %p245 = scmp.eq.s32.totalorder %s18, 1
    %p246 = scmp.ne.s32.totalorder %s241, %s243
    %p247 = scmp.eq.s32.totalorder %s18, 0
    %p248 = por %p246, %p247
    %p249 = scmp.ne.s32.totalorder %s241, %s243
    %p250 = scmp.eq.s32.totalorder %s23, 1
    %p251 = por %p249, %p250
    %p252 = scmp.ne.s32.totalorder %s243, %s244
    %p253 = scmp.eq.s32.totalorder %s23, 0
    %p254 = por %p252, %p253
    %p255 = scmp.ne.s32.totalorder %s243, %s244
    %p256 = scmp.eq.s32.totalorder %s24, 1
    %p257 = por %p255, %p256
    %p259 = scmp.ne.s32.totalorder %s244, %s258
    %p260 = scmp.eq.s32.totalorder %s24, 0
    %p261 = por %p259, %p260
    %s263 = sadd.s32 %s262, 1
    %p266 = scmp.eq.s32.totalorder %s18, 1
    %p267 = scmp.ne.s32.totalorder %s262, %s264
    %p268 = scmp.eq.s32.totalorder %s18, 0
    %p269 = por %p267, %p268
    %p270 = scmp.ne.s32.totalorder %s262, %s264
    %p271 = scmp.eq.s32.totalorder %s23, 1
    %p272 = por %p270, %p271
    %p273 = scmp.ne.s32.totalorder %s264, %s265
    %p274 = scmp.eq.s32.totalorder %s23, 0
    %p275 = por %p273, %p274
    %p276 = scmp.ne.s32.totalorder %s264, %s265
    %p277 = scmp.eq.s32.totalorder %s24, 1
    %p278 = por %p276, %p277
    %p280 = scmp.ne.s32.totalorder %s265, %s279
    %p281 = scmp.eq.s32.totalorder %s24, 0
    %p282 = por %p280, %p281
    %s283 = ssub.s32 %s18, %s25
    %p284 = scmp.eq.s32.totalorder %s283, 0
    %s286 = sadd.s32 %s285, 1
    %s287 = scalar_select %p284, %s285, %s286
    %p290 = pneg %p284
    %p291 = scmp.eq.s32.totalorder %s18, 1
    %p292 = por %p290, %p291
    %p293 = scmp.ne.s32.totalorder %s285, %s288
    %p294 = scmp.eq.s32.totalorder %s18, 0
    %p295 = por %p293, %p294
    %p296 = scmp.ne.s32.totalorder %s285, %s288
    %p297 = scmp.eq.s32.totalorder %s23, 1
    %p298 = por %p296, %p297
    %p299 = scmp.ne.s32.totalorder %s288, %s289
    %p300 = scmp.eq.s32.totalorder %s23, 0
    %p301 = por %p299, %p300
    %p302 = scmp.ne.s32.totalorder %s288, %s289
    %p303 = scmp.eq.s32.totalorder %s24, 1
    %p304 = por %p302, %p303
    %p306 = scmp.ne.s32.totalorder %s289, %s305
    %p307 = scmp.eq.s32.totalorder %s24, 0
    %p308 = por %p306, %p307
    %p309 = scmp.le.s32.totalorder 1, %s18
    %p310 = scmp.lt.s32.totalorder %s18, 3
    %p311 = pnand %p309, %p310
    %p312 = pneg %p311
    // Predicated region
    $region9: #{network_forward.1} parent=5 // pred_check
      _
    $region10: #{network_forward.1} parent=5 // pred_check_branch
      %314 = sbr.rel (%p311) target = $region12
    $region11: #{network_forward.1} parent=5 // pred_region
      %s315 = ssub.s32 %s18, 1
      // Predicated region
      $region13: #{network_forward.1} parent=11 // pred_check
        %p316 = pneg %p65
      $region14: #{network_forward.1} parent=11 // pred_check_branch
        %318 = sbr.rel (%p316) target = $region16
      $region15: #{network_forward.1} parent=11 // pred_region
        _
      $region16: #{network_forward.1} parent=11 // pred_fallthru
        _
      // Predicated region
      $region17: #{network_forward.1} parent=11 // pred_check
        %p319 = pneg %p86
      $region18: #{network_forward.1} parent=11 // pred_check_branch
        %321 = sbr.rel (%p319) target = $region20
      $region19: #{network_forward.1} parent=11 // pred_region
        _
      $region20: #{network_forward.1} parent=11 // pred_fallthru
        _
      // Predicated region
      $region21: #{network_forward.1} parent=11 // pred_check
        %p322 = pneg %p107
      $region22: #{network_forward.1} parent=11 // pred_check_branch
        %324 = sbr.rel (%p322) target = $region24
      $region23: #{network_forward.1} parent=11 // pred_region
        _
      $region24: #{network_forward.1} parent=11 // pred_fallthru
        _
      // Predicated region
      $region25: #{network_forward.1} parent=11 // pred_check
        %p325 = pneg %p128
      $region26: #{network_forward.1} parent=11 // pred_check_branch
        %327 = sbr.rel (%p325) target = $region28
      $region27: #{network_forward.1} parent=11 // pred_region
        _
      $region28: #{network_forward.1} parent=11 // pred_fallthru
        _
      // Predicated region
      $region29: #{network_forward.1} parent=11 // pred_check
        %p328 = pneg %p149
      $region30: #{network_forward.1} parent=11 // pred_check_branch
        %330 = sbr.rel (%p328) target = $region32
      $region31: #{network_forward.1} parent=11 // pred_region
        _
      $region32: #{network_forward.1} parent=11 // pred_fallthru
        _
      // Predicated region
      $region33: #{network_forward.1} parent=11 // pred_check
        %p331 = pneg %p170
      $region34: #{network_forward.1} parent=11 // pred_check_branch
        %333 = sbr.rel (%p331) target = $region36
      $region35: #{network_forward.1} parent=11 // pred_region
        _
      $region36: #{network_forward.1} parent=11 // pred_fallthru
        _
      // Predicated region
      $region37: #{network_forward.1} parent=11 // pred_check
        %p334 = pneg %p191
      $region38: #{network_forward.1} parent=11 // pred_check_branch
        %336 = sbr.rel (%p334) target = $region40
      $region39: #{network_forward.1} parent=11 // pred_region
        _
      $region40: #{network_forward.1} parent=11 // pred_fallthru
        _
      // Predicated region
      $region41: #{network_forward.1} parent=11 // pred_check
        %p337 = pneg %p212
      $region42: #{network_forward.1} parent=11 // pred_check_branch
        %339 = sbr.rel (%p337) target = $region44
      $region43: #{network_forward.1} parent=11 // pred_region
        _
      $region44: #{network_forward.1} parent=11 // pred_fallthru
        _
      // Predicated region
      $region45: #{network_forward.1} parent=11 // pred_check
        %p340 = pneg %p233
      $region46: #{network_forward.1} parent=11 // pred_check_branch
        %342 = sbr.rel (%p340) target = $region48
      $region47: #{network_forward.1} parent=11 // pred_region
        _
      $region48: #{network_forward.1} parent=11 // pred_fallthru
        _
      // Predicated region
      $region49: #{network_forward.1} parent=11 // pred_check
        %p343 = pneg %p254
      $region50: #{network_forward.1} parent=11 // pred_check_branch
        %345 = sbr.rel (%p343) target = $region52
      $region51: #{network_forward.1} parent=11 // pred_region
        _
      $region52: #{network_forward.1} parent=11 // pred_fallthru
        _
      // Predicated region
      $region53: #{network_forward.1} parent=11 // pred_check
        %p346 = pneg %p275
      $region54: #{network_forward.1} parent=11 // pred_check_branch
        %348 = sbr.rel (%p346) target = $region56
      $region55: #{network_forward.1} parent=11 // pred_region
        _
      $region56: #{network_forward.1} parent=11 // pred_fallthru
        _
    $region12: #{network_forward.1} parent=5 // pred_fallthru
      _
    %p349 = scmp.lt.s32.totalorder %s18, 2
    // Predicated region
    $region57: #{network_forward.1} parent=5 // pred_check
      %p350 = pneg %p349
    $region58: #{network_forward.1} parent=5 // pred_check_branch
      %352 = sbr.rel (%p350) target = $region60
    $region59: #{network_forward.1} parent=5 // pred_region
      // Predicated region
      $region61: #{network_forward.1} parent=59 // pred_check
        %p353 = pneg %p38
      $region62: #{network_forward.1} parent=59 // pred_check_branch
        %355 = sbr.rel (%p353) target = $region64
      $region63: #{network_forward.1} parent=59 // pred_region
        %p356 = scmp.lt.s32.totalorder %s18, 1
        %s357 = scalar_select %p356, %s18, 1
        %s358 = smul.addr %s357, 8
        %s359 = smul.addr %s358, 8
        %s360 = scalar_lea.vmem %s0, %s359
      $region64: #{network_forward.1} parent=59 // pred_fallthru
        _
    $region60: #{network_forward.1} parent=5 // pred_fallthru
      _
    %p361 = scmp.le.s32.totalorder 1, %s18
    %p362 = scmp.lt.s32.totalorder %s18, 3
    %p363 = pnand %p361, %p362
    %p364 = pneg %p363
    // Predicated region
    $region65: #{network_forward.1} parent=5 // pred_check
      _
    $region66: #{network_forward.1} parent=5 // pred_check_branch
      %366 = sbr.rel (%p363) target = $region68
    $region67: #{network_forward.1} parent=5 // pred_region
      %s367 = ssub.s32 %s18, 1
      %p368 = scmp.lt.s32.totalorder %s23, 1
      %s369 = scalar_select %p368, %s23, 1
      %s370 = smul.addr %s369, 8
      %s371 = smul.addr %s370, 8
      %s372 = scalar_lea.vmem %s0, %s371
      %p373 = pneg %p44
      %p374 = pneg %p41
      %p375 = pneg %p65
      %p376 = pneg %p62
      %p377 = pneg %p86
      %p378 = pneg %p83
      %p379 = pneg %p107
      %p380 = pneg %p104
      %p381 = pneg %p128
      %p382 = pneg %p125
      %p383 = pneg %p149
      %p384 = pneg %p146
      %p385 = pneg %p170
      %p386 = pneg %p167
      %p387 = pneg %p191
      %p388 = pneg %p188
      %p389 = pneg %p212
      %p390 = pneg %p209
      %p391 = pneg %p233
      %p392 = pneg %p230
      %p393 = pneg %p254
      %p394 = pneg %p251
      %p395 = pneg %p275
      %p396 = pneg %p272
      %p397 = pneg %p301
      %p398 = pneg %p298
      %p399 = scmp.lt.s32.totalorder %s23, 1
      %s400 = scalar_select %p399, %s23, 1
      %s401 = smul.addr %s400, 4
      %s402 = smul.addr %s401, 8
      %s403 = scalar_lea.vmem %s12, %s402
      %p404 = scmp.lt.s32.totalorder %s23, 1
      %s405 = scalar_select %p404, %s23, 1
      %s406 = smul.addr %s405, 8
      %s407 = smul.addr %s406, 8
      %s408 = scalar_lea.vmem %s0, %s407
      %p409 = scmp.lt.s32.totalorder %s23, 1
      %s410 = scalar_select %p409, %s23, 1
      %s411 = smul.addr %s410, 4
      %s412 = smul.addr %s411, 8
      %s413 = scalar_lea.vmem %s12, %s412
      %v415 = vld [vmem:[%s1] sm:$0xf]
      %v416 = vld [vmem:[%s408] sm:$0xff]
      %v417 = vld [vmem:[%s408 + $0x8] sm:$0xff]
      %v418 = vld [vmem:[%s408 + $0x10] sm:$0xff]
      %v419 = vld [vmem:[%s408 + $0x18] sm:$0xff]
      %v420 = vld [vmem:[%s408 + $0x20] sm:$0xff]
      %v421 = vld [vmem:[%s408 + $0x28] sm:$0xff]
      %v422 = vld [vmem:[%s408 + $0x30] sm:$0xff]
      %v423 = vld [vmem:[%s408 + $0x38] sm:$0xff]
      %424 = vrot.lane.b32.xlu0 %v416, 3
      %v425 = vpop.permute.xlu0 %424
      %426 = vrot.lane.b32.xlu0 %v420, 3
      %v427 = vpop.permute.xlu0 %426
      %428 = vrot.lane.b32.xlu0 %v417, 3
      %v429 = vpop.permute.xlu0 %428
      %430 = vrot.lane.b32.xlu0 %v421, 3
      %v431 = vpop.permute.xlu0 %430
      %432 = vrot.lane.b32.xlu0 %v418, 3
      %v433 = vpop.permute.xlu0 %432
      %434 = vrot.lane.b32.xlu0 %v422, 3
      %v435 = vpop.permute.xlu0 %434
      %436 = vrot.lane.b32.xlu0 %v419, 3
      %v437 = vpop.permute.xlu0 %436
      %438 = vrot.lane.b32.xlu0 %v423, 3
      %v439 = vpop.permute.xlu0 %438
      %v440 = vlaneseq
      %v441 = vand.u32 %v440, 127
      %vm442 = vcmp.lt.s32.totalorder %v441, 3
      %v443 = vsel %vm442, %v433, %v437
      %v444 = vsel %vm442, %v435, %v439
      %v445 = vsel %vm442, %v429, %v433
      %v446 = vsel %vm442, %v431, %v435
      %v447 = vsel %vm442, %v425, %v429
      %v448 = vsel %vm442, %v427, %v431
      %v449 = vsel %vm442, %v437, %v425
      %v450 = vsel %vm442, %v439, %v427
      %v451 = vpack.c.bf16 %v450, %v449
      %v452 = vpack.c.bf16 %v448, %v447
      %v453 = vpack.c.bf16 %v446, %v445
      %v454 = vpack.c.bf16 %v444, %v443
      %455 = vst [vmem:[#allocation2] sm:$0xff] %v451
      %456 = vst [vmem:[#allocation2 + $0x8] sm:$0xff] %v452
      %457 = vst [vmem:[#allocation2 + $0x10] sm:$0xff] %v453
      %458 = vst [vmem:[#allocation2 + $0x18] sm:$0xff] %v454
      %459 = vrot.lane.b32.xlu0 %v416, 2
      %v460 = vpop.permute.xlu0 %459
      %461 = vrot.lane.b32.xlu0 %v420, 2
      %v462 = vpop.permute.xlu0 %461
      %463 = vrot.lane.b32.xlu0 %v417, 2
      %v464 = vpop.permute.xlu0 %463
      %465 = vrot.lane.b32.xlu0 %v421, 2
      %v466 = vpop.permute.xlu0 %465
      %467 = vrot.lane.b32.xlu0 %v418, 2
      %v468 = vpop.permute.xlu0 %467
      %469 = vrot.lane.b32.xlu0 %v422, 2
      %v470 = vpop.permute.xlu0 %469
      %471 = vrot.lane.b32.xlu0 %v419, 2
      %v472 = vpop.permute.xlu0 %471
      %473 = vrot.lane.b32.xlu0 %v423, 2
      %v474 = vpop.permute.xlu0 %473
      %vm475 = vcmp.lt.s32.totalorder %v441, 2
      %v476 = vsel %vm475, %v468, %v472
      %v477 = vsel %vm475, %v470, %v474
      %v478 = vsel %vm475, %v464, %v468
      %v479 = vsel %vm475, %v466, %v470
      %v480 = vsel %vm475, %v460, %v464
      %v481 = vsel %vm475, %v462, %v466
      %v482 = vsel %vm475, %v472, %v460
      %v483 = vsel %vm475, %v474, %v462
      %v484 = vpack.c.bf16 %v483, %v482
      %v485 = vpack.c.bf16 %v481, %v480
      %v486 = vpack.c.bf16 %v479, %v478
      %v487 = vpack.c.bf16 %v477, %v476
      %488 = vst [vmem:[#allocation2 + $0x20] sm:$0xff] %v484
      %489 = vst [vmem:[#allocation2 + $0x28] sm:$0xff] %v485
      %490 = vst [vmem:[#allocation2 + $0x30] sm:$0xff] %v486
      %491 = vst [vmem:[#allocation2 + $0x38] sm:$0xff] %v487
      %492 = vrot.lane.b32.xlu0 %v416, 1
      %v493 = vpop.permute.xlu0 %492
      %494 = vrot.lane.b32.xlu0 %v420, 1
      %v495 = vpop.permute.xlu0 %494
      %496 = vrot.lane.b32.xlu0 %v417, 1
      %v497 = vpop.permute.xlu0 %496
      %498 = vrot.lane.b32.xlu0 %v421, 1
      %v499 = vpop.permute.xlu0 %498
      %500 = vrot.lane.b32.xlu0 %v418, 1
      %v501 = vpop.permute.xlu0 %500
      %502 = vrot.lane.b32.xlu0 %v422, 1
      %v503 = vpop.permute.xlu0 %502
      %504 = vrot.lane.b32.xlu0 %v419, 1
      %v505 = vpop.permute.xlu0 %504
      %506 = vrot.lane.b32.xlu0 %v423, 1
      %v507 = vpop.permute.xlu0 %506
      %vm508 = vcmp.lt.s32.totalorder %v441, 1
      %v509 = vsel %vm508, %v501, %v505
      %v510 = vsel %vm508, %v503, %v507
      %v511 = vsel %vm508, %v497, %v501
      %v512 = vsel %vm508, %v499, %v503
      %v513 = vsel %vm508, %v493, %v497
      %v514 = vsel %vm508, %v495, %v499
      %v515 = vsel %vm508, %v505, %v493
      %v516 = vsel %vm508, %v507, %v495
      %v517 = vpack.c.bf16 %v516, %v515
      %v518 = vpack.c.bf16 %v514, %v513
      %v519 = vpack.c.bf16 %v512, %v511
      %v520 = vpack.c.bf16 %v510, %v509
      %521 = vst [vmem:[#allocation2 + $0x40] sm:$0xff] %v517
      %522 = vst [vmem:[#allocation2 + $0x48] sm:$0xff] %v518
      %523 = vst [vmem:[#allocation2 + $0x50] sm:$0xff] %v519
      %524 = vst [vmem:[#allocation2 + $0x58] sm:$0xff] %v520
      %v525 = vpack.c.bf16 %v420, %v416
      %v526 = vpack.c.bf16 %v421, %v417
      %v527 = vpack.c.bf16 %v422, %v418
      %v528 = vpack.c.bf16 %v423, %v419
      %529 = vst [vmem:[#allocation2 + $0x60] sm:$0xff] %v525
      %530 = vst [vmem:[#allocation2 + $0x68] sm:$0xff] %v526
      %531 = vst [vmem:[#allocation2 + $0x70] sm:$0xff] %v527
      %532 = vst [vmem:[#allocation2 + $0x78] sm:$0xff] %v528
      %533 = vrot.lane.b32.xlu0 %v416, 127
      %v534 = vpop.permute.xlu0 %533
      %535 = vrot.lane.b32.xlu0 %v420, 127
      %v536 = vpop.permute.xlu0 %535
      %537 = vrot.lane.b32.xlu0 %v417, 127
      %v538 = vpop.permute.xlu0 %537
      %539 = vrot.lane.b32.xlu0 %v421, 127
      %v540 = vpop.permute.xlu0 %539
      %541 = vrot.lane.b32.xlu0 %v418, 127
      %v542 = vpop.permute.xlu0 %541
      %543 = vrot.lane.b32.xlu0 %v422, 127
      %v544 = vpop.permute.xlu0 %543
      %545 = vrot.lane.b32.xlu0 %v419, 127
      %v546 = vpop.permute.xlu0 %545
      %547 = vrot.lane.b32.xlu0 %v423, 127
      %v548 = vpop.permute.xlu0 %547
      %vm549 = vcmp.lt.s32.totalorder %v441, 127
      %v550 = vsel %vm549, %v542, %v546
      %v551 = vsel %vm549, %v544, %v548
      %v552 = vsel %vm549, %v538, %v542
      %v553 = vsel %vm549, %v540, %v544
      %v554 = vsel %vm549, %v534, %v538
      %v555 = vsel %vm549, %v536, %v540
      %v556 = vsel %vm549, %v546, %v534
      %v557 = vsel %vm549, %v548, %v536
      %v558 = vpack.c.bf16 %v555, %v554
      %v559 = vpack.c.bf16 %v553, %v552
      %v560 = vpack.c.bf16 %v551, %v550
      %v561 = vpack.c.bf16 %v557, %v556
      %562 = vst [vmem:[#allocation2 + $0x80] sm:$0xff] %v558
      %563 = vst [vmem:[#allocation2 + $0x88] sm:$0xff] %v559
      %564 = vst [vmem:[#allocation2 + $0x90] sm:$0xff] %v560
      %565 = vst [vmem:[#allocation2 + $0x98] sm:$0xff] %v561
      %566 = vrot.lane.b32.xlu0 %v416, 126
      %v567 = vpop.permute.xlu0 %566
      %568 = vrot.lane.b32.xlu0 %v420, 126
      %v569 = vpop.permute.xlu0 %568
      %570 = vrot.lane.b32.xlu0 %v417, 126
      %v571 = vpop.permute.xlu0 %570
      %572 = vrot.lane.b32.xlu0 %v421, 126
      %v573 = vpop.permute.xlu0 %572
      %574 = vrot.lane.b32.xlu0 %v418, 126
      %v575 = vpop.permute.xlu0 %574
      %576 = vrot.lane.b32.xlu0 %v422, 126
      %v577 = vpop.permute.xlu0 %576
      %578 = vrot.lane.b32.xlu0 %v419, 126
      %v579 = vpop.permute.xlu0 %578
      %580 = vrot.lane.b32.xlu0 %v423, 126
      %v581 = vpop.permute.xlu0 %580
      %vm582 = vcmp.lt.s32.totalorder %v441, 126
      %v583 = vsel %vm582, %v575, %v579
      %v584 = vsel %vm582, %v577, %v581
      %v585 = vsel %vm582, %v571, %v575
      %v586 = vsel %vm582, %v573, %v577
      %v587 = vsel %vm582, %v567, %v571
      %v588 = vsel %vm582, %v569, %v573
      %v589 = vsel %vm582, %v579, %v567
      %v590 = vsel %vm582, %v581, %v569
      %v591 = vpack.c.bf16 %v588, %v587
      %v592 = vpack.c.bf16 %v586, %v585
      %v593 = vpack.c.bf16 %v584, %v583
      %v594 = vpack.c.bf16 %v590, %v589
      %595 = vst [vmem:[#allocation2 + $0xa0] sm:$0xff] %v591
      %596 = vst [vmem:[#allocation2 + $0xa8] sm:$0xff] %v592
      %597 = vst [vmem:[#allocation2 + $0xb0] sm:$0xff] %v593
      %598 = vst [vmem:[#allocation2 + $0xb8] sm:$0xff] %v594
      %599 = vrot.lane.b32.xlu0 %v416, 125
      %v600 = vpop.permute.xlu0 %599
      %601 = vrot.lane.b32.xlu0 %v420, 125
      %v602 = vpop.permute.xlu0 %601
      %603 = vrot.lane.b32.xlu0 %v417, 125
      %v604 = vpop.permute.xlu0 %603
      %605 = vrot.lane.b32.xlu0 %v421, 125
      %v606 = vpop.permute.xlu0 %605
      %607 = vrot.lane.b32.xlu0 %v418, 125
      %v608 = vpop.permute.xlu0 %607
      %609 = vrot.lane.b32.xlu0 %v422, 125
      %v610 = vpop.permute.xlu0 %609
      %611 = vrot.lane.b32.xlu0 %v419, 125
      %v612 = vpop.permute.xlu0 %611
      %613 = vrot.lane.b32.xlu0 %v423, 125
      %v614 = vpop.permute.xlu0 %613
      %vm615 = vcmp.lt.s32.totalorder %v441, 125
      %v616 = vsel %vm615, %v608, %v612
      %v617 = vsel %vm615, %v610, %v614
      %v618 = vsel %vm615, %v604, %v608
      %v619 = vsel %vm615, %v606, %v610
      %v620 = vsel %vm615, %v600, %v604
      %v621 = vsel %vm615, %v602, %v606
      %v622 = vsel %vm615, %v612, %v600
      %v623 = vsel %vm615, %v614, %v602
      %v624 = vpack.c.bf16 %v621, %v620
      %v625 = vpack.c.bf16 %v619, %v618
      %v626 = vpack.c.bf16 %v617, %v616
      %v627 = vpack.c.bf16 %v623, %v622
      %628 = vst [vmem:[#allocation2 + $0xc0] sm:$0xff] %v624
      %629 = vst [vmem:[#allocation2 + $0xc8] sm:$0xff] %v625
      %630 = vst [vmem:[#allocation2 + $0xd0] sm:$0xff] %v626
      %631 = vst [vmem:[#allocation2 + $0xd8] sm:$0xff] %v627
      %v632 = vld [vmem:[%s2] sm:$0xf]
      %v633 = vld [vmem:[%s2 + $0x4] sm:$0xf]
      %v634 = vld [vmem:[%s2 + $0x8] sm:$0xf]
      %v635 = vld [vmem:[%s2 + $0xc] sm:$0xf]
      %v636 = vld [vmem:[%s2 + $0x10] sm:$0xf]
      %v637 = vld [vmem:[%s2 + $0x14] sm:$0xf]
      %v638 = vld [vmem:[%s2 + $0x18] sm:$0xf]
      %v639 = vld [vmem:[%s2 + $0x1c] sm:$0xf]
      %v640 = vld [vmem:[%s2 + $0x20] sm:$0xf]
      %v641 = vld [vmem:[%s2 + $0x24] sm:$0xf]
      %v642 = vld [vmem:[%s2 + $0x28] sm:$0xf]
      %v643 = vld [vmem:[%s2 + $0x2c] sm:$0xf]
      %v644 = vld [vmem:[%s2 + $0x30] sm:$0xf]
      %v645 = vld [vmem:[%s2 + $0x34] sm:$0xf]
      %v646 = vld [vmem:[%s2 + $0x38] sm:$0xf]
      %v647 = vld [vmem:[%s2 + $0x3c] sm:$0xf]
      %v648 = vld [vmem:[%s2 + $0x40] sm:$0xf]
      %v649 = vld [vmem:[%s2 + $0x44] sm:$0xf]
      %v650 = vld [vmem:[%s2 + $0x48] sm:$0xf]
      %v651 = vld [vmem:[%s2 + $0x4c] sm:$0xf]
      %v652 = vld [vmem:[%s2 + $0x50] sm:$0xf]
      %v653 = vld [vmem:[%s2 + $0x54] sm:$0xf]
      %v654 = vld [vmem:[%s2 + $0x58] sm:$0xf]
      %v655 = vld [vmem:[%s2 + $0x5c] sm:$0xf]
      %v656 = vld [vmem:[%s2 + $0x60] sm:$0xf]
      %v657 = vld [vmem:[%s2 + $0x64] sm:$0xf]
      %v658 = vld [vmem:[%s2 + $0x68] sm:$0xf]
      %v659 = vld [vmem:[%s2 + $0x6c] sm:$0xf]
      %v660 = vld [vmem:[#allocation2] sm:$0xff]
      %v661 = vld [vmem:[#allocation2 + $0x8] sm:$0xff]
      %v662 = vld [vmem:[#allocation2 + $0x10] sm:$0xff]
      %v663 = vld [vmem:[#allocation2 + $0x18] sm:$0xff]
      %v664 = vld [vmem:[#allocation2 + $0x20] sm:$0xff]
      %v665 = vld [vmem:[#allocation2 + $0x28] sm:$0xff]
      %v666 = vld [vmem:[#allocation2 + $0x30] sm:$0xff]
      %v667 = vld [vmem:[#allocation2 + $0x38] sm:$0xff]
      %v668 = vld [vmem:[#allocation2 + $0x40] sm:$0xff]
      %v669 = vld [vmem:[#allocation2 + $0x48] sm:$0xff]
      %v670 = vld [vmem:[#allocation2 + $0x50] sm:$0xff]
      %v671 = vld [vmem:[#allocation2 + $0x58] sm:$0xff]
      %v672 = vld [vmem:[#allocation2 + $0x60] sm:$0xff]
      %v673 = vld [vmem:[#allocation2 + $0x68] sm:$0xff]
      %v674 = vld [vmem:[#allocation2 + $0x70] sm:$0xff]
      %v675 = vld [vmem:[#allocation2 + $0x78] sm:$0xff]
      %v676 = vld [vmem:[#allocation2 + $0x80] sm:$0xff]
      %v677 = vld [vmem:[#allocation2 + $0x88] sm:$0xff]
      %v678 = vld [vmem:[#allocation2 + $0x90] sm:$0xff]
      %v679 = vld [vmem:[#allocation2 + $0x98] sm:$0xff]
      %v680 = vld [vmem:[#allocation2 + $0xa0] sm:$0xff]
      %v681 = vld [vmem:[#allocation2 + $0xa8] sm:$0xff]
      %v682 = vld [vmem:[#allocation2 + $0xb0] sm:$0xff]
      %v683 = vld [vmem:[#allocation2 + $0xb8] sm:$0xff]
      %v684 = vld [vmem:[#allocation2 + $0xc0] sm:$0xff]
      %v685 = vld [vmem:[#allocation2 + $0xc8] sm:$0xff]
      %v686 = vld [vmem:[#allocation2 + $0xd0] sm:$0xff]
      %v687 = vld [vmem:[#allocation2 + $0xd8] sm:$0xff]
      %v716 = vunpack.c.l.b16 %v632
      %v717 = vunpack.c.l.b16 %v633
      %v718 = vunpack.c.l.b16 %v634
      %v719 = vunpack.c.l.b16 %v635
      %v720 = vunpack.c.l.b16 %v636
      %v721 = vunpack.c.l.b16 %v637
      %v722 = vunpack.c.l.b16 %v638
      %v723 = vunpack.c.l.b16 %v639
      %v724 = vunpack.c.l.b16 %v640
      %v725 = vunpack.c.l.b16 %v641
      %v726 = vunpack.c.l.b16 %v642
      %v727 = vunpack.c.l.b16 %v643
      %v728 = vunpack.c.l.b16 %v644
      %v729 = vunpack.c.l.b16 %v645
      %v730 = vunpack.c.l.b16 %v646
      %v731 = vunpack.c.l.b16 %v647
      %v732 = vunpack.c.l.b16 %v648
      %v733 = vunpack.c.l.b16 %v649
      %v734 = vunpack.c.l.b16 %v650
      %v735 = vunpack.c.l.b16 %v651
      %v736 = vunpack.c.l.b16 %v652
      %v737 = vunpack.c.l.b16 %v653
      %v738 = vunpack.c.l.b16 %v654
      %v739 = vunpack.c.l.b16 %v655
      %v740 = vunpack.c.l.b16 %v656
      %v741 = vunpack.c.l.b16 %v657
      %v742 = vunpack.c.l.b16 %v658
      %v743 = vunpack.c.l.b16 %v659
      %v744 = vpack.c.b16 %v717, %v716
      %v745 = vpack.c.b16 %v719, %v718
      %v746 = vpack.c.b16 %v721, %v720
      %v747 = vpack.c.b16 %v723, %v722
      %v748 = vpack.c.b16 %v725, %v724
      %v749 = vpack.c.b16 %v727, %v726
      %v750 = vpack.c.b16 %v729, %v728
      %v751 = vpack.c.b16 %v731, %v730
      %v752 = vpack.c.b16 %v733, %v732
      %v753 = vpack.c.b16 %v735, %v734
      %v754 = vpack.c.b16 %v737, %v736
      %v755 = vpack.c.b16 %v739, %v738
      %v756 = vpack.c.b16 %v741, %v740
      %v757 = vpack.c.b16 %v743, %v742
      %vm758 = vcmask 916480
      %v760 = vsel %vm758, %v744, 0
      %v763 = vsel %vm758, %v745, 0
      %v766 = vsel %vm758, %v746, 0
      %v769 = vsel %vm758, %v747, 0
      %v772 = vsel %vm758, %v748, 0
      %v775 = vsel %vm758, %v749, 0
      %v778 = vsel %vm758, %v750, 0
      %v781 = vsel %vm758, %v751, 0
      %v784 = vsel %vm758, %v752, 0
      %v787 = vsel %vm758, %v753, 0
      %v790 = vsel %vm758, %v754, 0
      %v793 = vsel %vm758, %v755, 0
      %v796 = vsel %vm758, %v756, 0
      %v799 = vsel %vm758, %v757, 0
      %801 = vmatprep.subr.bf16.mxu0 %v661
      %802 = vmatpush1.bf16.msra.mxu0 %v660
      %803 = vmatprep.subr.bf16.mxu0 %v665
      %804 = vmatpush1.bf16.msra.mxu0 %v664
      %805 = vmatprep.subr.bf16.mxu0 %v669
      %806 = vmatpush1.bf16.msra.mxu0 %v668
      %807 = vmatprep.subr.bf16.mxu0 %v673
      %808 = vmatpush1.bf16.msra.mxu0 %v672
      %809 = vmatprep.subr.bf16.mxu0 %v677
      %810 = vmatpush1.bf16.msra.mxu0 %v676
      %811 = vmatprep.subr.bf16.mxu0 %v681
      %812 = vmatpush1.bf16.msra.mxu0 %v680
      %813 = vmatprep.subr.bf16.mxu0 %v685
      %814 = vmatpush1.bf16.msra.mxu0 %v684
      %815 = vmatprep.subr.bf16.mxu0 0
      %816 = vmatpush1.bf16.msra.mxu0 0
      %817 = vmatprep.subr.bf16.mxu0 0
      %818 = vmatpush1.bf16.msra.mxu0 0
      %819 = vmatprep.subr.bf16.mxu0 0
      %820 = vmatpush1.bf16.msra.mxu0 0
      %821 = vmatprep.subr.bf16.mxu0 0
      %822 = vmatpush1.bf16.msra.mxu0 0
      %823 = vmatprep.subr.bf16.mxu0 0
      %824 = vmatpush1.bf16.msra.mxu0 0
      %825 = vmatprep.subr.bf16.mxu0 0
      %826 = vmatpush1.bf16.msra.mxu0 0
      %827 = vmatprep.subr.bf16.mxu0 0
      %828 = vmatpush1.bf16.msra.mxu0 0
      %829 = vmatprep.subr.bf16.mxu0 0
      %830 = vmatpush1.bf16.msra.mxu0 0
      %831 = vmatprep.subr.bf16.mxu0 0
      %832 = vmatpush1.bf16.msra.mxu0 0
      %833 = vmatprep.mubr.bf16.mxu0 0
      %834 = vmatmul.mubr.bf16.gmra.mrb[0].mxu0 %v760
      %v835 = vpop.f32.mrb[0].mxu0
      %v836 = vadd.f32 0.0, %v835
      %v837 = vpop.f32.mrb[0].mxu0
      %v838 = vadd.f32 0.0, %v837
      %v839 = vpop.f32.mrb[0].mxu0
      %v840 = vadd.f32 0.0, %v839
      %v841 = vpop.f32.mrb[0].mxu0
      %v842 = vadd.f32 0.0, %v841
      %843 = vmatprep.mubr.bf16.mxu0 0
      %844 = vmatmul.mubr.bf16.gmra.mrb[0].mxu0 %v763
      %v845 = vpop.f32.mrb[0].mxu0
      %v846 = vadd.f32 0.0, %v845
      %v847 = vpop.f32.mrb[0].mxu0
      %v848 = vadd.f32 0.0, %v847
      %v849 = vpop.f32.mrb[0].mxu0
      %v850 = vadd.f32 0.0, %v849
      %v851 = vpop.f32.mrb[0].mxu0
      %v852 = vadd.f32 0.0, %v851
      %853 = vmatprep.mubr.bf16.mxu0 0
      %854 = vmatmul.mubr.bf16.gmra.mrb[0].mxu0 %v766
      %v855 = vpop.f32.mrb[0].mxu0
      %v856 = vadd.f32 0.0, %v855
      %v857 = vpop.f32.mrb[0].mxu0
      %v858 = vadd.f32 0.0, %v857
      %v859 = vpop.f32.mrb[0].mxu0
      %v860 = vadd.f32 0.0, %v859
      %v861 = vpop.f32.mrb[0].mxu0
      %v862 = vadd.f32 0.0, %v861
      %863 = vmatprep.mubr.bf16.mxu0 0
      %864 = vmatmul.mubr.bf16.gmra.mrb[0].mxu0 %v769
      %v865 = vpop.f32.mrb[0].mxu0
      %v866 = vadd.f32 0.0, %v865
      %v867 = vpop.f32.mrb[0].mxu0
      %v868 = vadd.f32 0.0, %v867
      %v869 = vpop.f32.mrb[0].mxu0
      %v870 = vadd.f32 0.0, %v869
      %v871 = vpop.f32.mrb[0].mxu0
      %v872 = vadd.f32 0.0, %v871
      %873 = vmatprep.mubr.bf16.mxu0 0
      %874 = vmatmul.mubr.bf16.gmra.mrb[0].mxu0 %v772
      %v875 = vpop.f32.mrb[0].mxu0
      %v876 = vadd.f32 0.0, %v875
      %v877 = vpop.f32.mrb[0].mxu0
      %v878 = vadd.f32 0.0, %v877
      %v879 = vpop.f32.mrb[0].mxu0
      %v880 = vadd.f32 0.0, %v879
      %v881 = vpop.f32.mrb[0].mxu0
      %v882 = vadd.f32 0.0, %v881
      %883 = vmatprep.mubr.bf16.mxu0 0
      %884 = vmatmul.mubr.bf16.gmra.mrb[0].mxu0 %v775
      %v885 = vpop.f32.mrb[0].mxu0
      %v886 = vadd.f32 0.0, %v885
      %v887 = vpop.f32.mrb[0].mxu0
      %v888 = vadd.f32 0.0, %v887
      %v889 = vpop.f32.mrb[0].mxu0
      %v890 = vadd.f32 0.0, %v889
      %v891 = vpop.f32.mrb[0].mxu0
      %v892 = vadd.f32 0.0, %v891
      %893 = vmatprep.mubr.bf16.mxu0 0
      %894 = vmatmul.mubr.bf16.gmra.mrb[0].mxu0 %v778
      %v895 = vpop.f32.mrb[0].mxu0
      %v896 = vadd.f32 0.0, %v895
      %v897 = vpop.f32.mrb[0].mxu0
      %v898 = vadd.f32 0.0, %v897
      %v899 = vpop.f32.mrb[0].mxu0
      %v900 = vadd.f32 0.0, %v899
      %v901 = vpop.f32.mrb[0].mxu0
      %v902 = vadd.f32 0.0, %v901
      %903 = vmatprep.mubr.bf16.mxu0 0
      %904 = vmatmul.mubr.bf16.gmra.mrb[0].mxu0 %v781
      %v905 = vpop.f32.mrb[0].mxu0
      %v906 = vadd.f32 0.0, %v905
      %v907 = vpop.f32.mrb[0].mxu0
      %v908 = vadd.f32 0.0, %v907
      %v909 = vpop.f32.mrb[0].mxu0
      %v910 = vadd.f32 0.0, %v909
      %v911 = vpop.f32.mrb[0].mxu0
      %v912 = vadd.f32 0.0, %v911
      %913 = vmatprep.mubr.bf16.mxu0 0
      %914 = vmatmul.mubr.bf16.gmra.mrb[0].mxu0 %v784
      %v915 = vpop.f32.mrb[0].mxu0
      %v916 = vadd.f32 0.0, %v915
      %v917 = vpop.f32.mrb[0].mxu0
      %v918 = vadd.f32 0.0, %v917
      %v919 = vpop.f32.mrb[0].mxu0
      %v920 = vadd.f32 0.0, %v919
      %v921 = vpop.f32.mrb[0].mxu0
      %v922 = vadd.f32 0.0, %v921
      %923 = vmatprep.mubr.bf16.mxu0 0
      %924 = vmatmul.mubr.bf16.gmra.mrb[0].mxu0 %v787
      %v925 = vpop.f32.mrb[0].mxu0
      %v926 = vadd.f32 0.0, %v925
      %v927 = vpop.f32.mrb[0].mxu0
      %v928 = vadd.f32 0.0, %v927
      %v929 = vpop.f32.mrb[0].mxu0
      %v930 = vadd.f32 0.0, %v929
      %v931 = vpop.f32.mrb[0].mxu0
      %v932 = vadd.f32 0.0, %v931
      %933 = vmatprep.mubr.bf16.mxu0 0
      %934 = vmatmul.mubr.bf16.gmra.mrb[0].mxu0 %v790
      %v935 = vpop.f32.mrb[0].mxu0
      %v936 = vadd.f32 0.0, %v935
      %v937 = vpop.f32.mrb[0].mxu0
      %v938 = vadd.f32 0.0, %v937
      %v939 = vpop.f32.mrb[0].mxu0
      %v940 = vadd.f32 0.0, %v939
      %v941 = vpop.f32.mrb[0].mxu0
      %v942 = vadd.f32 0.0, %v941
      %943 = vmatprep.mubr.bf16.mxu0 0
      %944 = vmatmul.mubr.bf16.gmra.mrb[0].mxu0 %v793
      %v945 = vpop.f32.mrb[0].mxu0
      %v946 = vadd.f32 0.0, %v945
      %v947 = vpop.f32.mrb[0].mxu0
      %v948 = vadd.f32 0.0, %v947
      %v949 = vpop.f32.mrb[0].mxu0
      %v950 = vadd.f32 0.0, %v949
      %v951 = vpop.f32.mrb[0].mxu0
      %v952 = vadd.f32 0.0, %v951
      %953 = vmatprep.mubr.bf16.mxu0 0
      %954 = vmatmul.mubr.bf16.gmra.mrb[0].mxu0 %v796
      %v955 = vpop.f32.mrb[0].mxu0
      %v956 = vadd.f32 0.0, %v955
      %v957 = vpop.f32.mrb[0].mxu0
      %v958 = vadd.f32 0.0, %v957
      %v959 = vpop.f32.mrb[0].mxu0
      %v960 = vadd.f32 0.0, %v959
      %v961 = vpop.f32.mrb[0].mxu0
      %v962 = vadd.f32 0.0, %v961
      %963 = vmatprep.mubr.bf16.mxu0 0
      %964 = vmatmul.mubr.bf16.gmra.mrb[0].mxu0 %v799
      %v965 = vpop.f32.mrb[0].mxu0
      %v966 = vadd.f32 0.0, %v965
      %v967 = vpop.f32.mrb[0].mxu0
      %v968 = vadd.f32 0.0, %v967
      %v969 = vpop.f32.mrb[0].mxu0
      %v970 = vadd.f32 0.0, %v969
      %v971 = vpop.f32.mrb[0].mxu0
      %v972 = vadd.f32 0.0, %v971
      %973 = vdwg.mxu0
      %974 = vmatprep.subr.bf16.mxu0 %v663
      %975 = vmatpush1.bf16.msra.mxu0 %v662
      %976 = vmatprep.subr.bf16.mxu0 %v667
      %977 = vmatpush1.bf16.msra.mxu0 %v666
      %978 = vmatprep.subr.bf16.mxu0 %v671
      %979 = vmatpush1.bf16.msra.mxu0 %v670
      %980 = vmatprep.subr.bf16.mxu0 %v675
      %981 = vmatpush1.bf16.msra.mxu0 %v674
      %982 = vmatprep.subr.bf16.mxu0 %v679
      %983 = vmatpush1.bf16.msra.mxu0 %v678
      %984 = vmatprep.subr.bf16.mxu0 %v683
      %985 = vmatpush1.bf16.msra.mxu0 %v682
      %986 = vmatprep.subr.bf16.mxu0 %v687
      %987 = vmatpush1.bf16.msra.mxu0 %v686
      %988 = vmatprep.subr.bf16.mxu0 0
      %989 = vmatpush1.bf16.msra.mxu0 0
      %990 = vmatprep.subr.bf16.mxu0 0
      %991 = vmatpush1.bf16.msra.mxu0 0
      %992 = vmatprep.subr.bf16.mxu0 0
      %993 = vmatpush1.bf16.msra.mxu0 0
      %994 = vmatprep.subr.bf16.mxu0 0
      %995 = vmatpush1.bf16.msra.mxu0 0
      %996 = vmatprep.subr.bf16.mxu0 0
      %997 = vmatpush1.bf16.msra.mxu0 0
      %998 = vmatprep.subr.bf16.mxu0 0
      %999 = vmatpush1.bf16.msra.mxu0 0
      %1000 = vmatprep.subr.bf16.mxu0 0
      %1001 = vmatpush1.bf16.msra.mxu0 0
      %1002 = vmatprep.subr.bf16.mxu0 0
      %1003 = vmatpush1.bf16.msra.mxu0 0
      %1004 = vmatprep.subr.bf16.mxu0 0
      %1005 = vmatpush1.bf16.msra.mxu0 0
      %1006 = vmatprep.mubr.bf16.mxu0 0
      %1007 = vmatmul.mubr.bf16.gmra.mrb[0].mxu0 %v760
      %v1008 = vpop.f32.mrb[0].mxu0
      %v1009 = vadd.f32 0.0, %v1008
      %v1010 = vpop.f32.mrb[0].mxu0
      %v1011 = vadd.f32 0.0, %v1010
      %v1012 = vpop.f32.mrb[0].mxu0
      %v1013 = vadd.f32 0.0, %v1012
      %v1014 = vpop.f32.mrb[0].mxu0
      %v1015 = vadd.f32 0.0, %v1014
      %1016 = vmatprep.mubr.bf16.mxu0 0
      %1017 = vmatmul.mubr.bf16.gmra.mrb[0].mxu0 %v763
      %v1018 = vpop.f32.mrb[0].mxu0
      %v1019 = vadd.f32 0.0, %v1018
      %v1020 = vpop.f32.mrb[0].mxu0
      %v1021 = vadd.f32 0.0, %v1020
      %v1022 = vpop.f32.mrb[0].mxu0
      %v1023 = vadd.f32 0.0, %v1022
      %v1024 = vpop.f32.mrb[0].mxu0
      %v1025 = vadd.f32 0.0, %v1024
      %1026 = vmatprep.mubr.bf16.mxu0 0
      %1027 = vmatmul.mubr.bf16.gmra.mrb[0].mxu0 %v766
      %v1028 = vpop.f32.mrb[0].mxu0
      %v1029 = vadd.f32 0.0, %v1028
      %v1030 = vpop.f32.mrb[0].mxu0
      %v1031 = vadd.f32 0.0, %v1030
      %v1032 = vpop.f32.mrb[0].mxu0
      %v1033 = vadd.f32 0.0, %v1032
      %v1034 = vpop.f32.mrb[0].mxu0
      %v1035 = vadd.f32 0.0, %v1034
      %1036 = vmatprep.mubr.bf16.mxu0 0
      %1037 = vmatmul.mubr.bf16.gmra.mrb[0].mxu0 %v769
      %v1038 = vpop.f32.mrb[0].mxu0
      %v1039 = vadd.f32 0.0, %v1038
      %v1040 = vpop.f32.mrb[0].mxu0
      %v1041 = vadd.f32 0.0, %v1040
      %v1042 = vpop.f32.mrb[0].mxu0
      %v1043 = vadd.f32 0.0, %v1042
      %v1044 = vpop.f32.mrb[0].mxu0
      %v1045 = vadd.f32 0.0, %v1044
      %1046 = vmatprep.mubr.bf16.mxu0 0
      %1047 = vmatmul.mubr.bf16.gmra.mrb[0].mxu0 %v772
      %v1048 = vpop.f32.mrb[0].mxu0
      %v1049 = vadd.f32 0.0, %v1048
      %v1050 = vpop.f32.mrb[0].mxu0
      %v1051 = vadd.f32 0.0, %v1050
      %v1052 = vpop.f32.mrb[0].mxu0
      %v1053 = vadd.f32 0.0, %v1052
      %v1054 = vpop.f32.mrb[0].mxu0
      %v1055 = vadd.f32 0.0, %v1054
      %1056 = vmatprep.mubr.bf16.mxu0 0
      %1057 = vmatmul.mubr.bf16.gmra.mrb[0].mxu0 %v775
      %v1058 = vpop.f32.mrb[0].mxu0
      %v1059 = vadd.f32 0.0, %v1058
      %v1060 = vpop.f32.mrb[0].mxu0
      %v1061 = vadd.f32 0.0, %v1060
      %v1062 = vpop.f32.mrb[0].mxu0
      %v1063 = vadd.f32 0.0, %v1062
      %v1064 = vpop.f32.mrb[0].mxu0
      %v1065 = vadd.f32 0.0, %v1064
      %1066 = vmatprep.mubr.bf16.mxu0 0
      %1067 = vmatmul.mubr.bf16.gmra.mrb[0].mxu0 %v778
      %v1068 = vpop.f32.mrb[0].mxu0
      %v1069 = vadd.f32 0.0, %v1068
      %v1070 = vpop.f32.mrb[0].mxu0
      %v1071 = vadd.f32 0.0, %v1070
      %v1072 = vpop.f32.mrb[0].mxu0
      %v1073 = vadd.f32 0.0, %v1072
      %v1074 = vpop.f32.mrb[0].mxu0
      %v1075 = vadd.f32 0.0, %v1074
      %1076 = vmatprep.mubr.bf16.mxu0 0
      %1077 = vmatmul.mubr.bf16.gmra.mrb[0].mxu0 %v781
      %v1078 = vpop.f32.mrb[0].mxu0
      %v1079 = vadd.f32 0.0, %v1078
      %v1080 = vpop.f32.mrb[0].mxu0
      %v1081 = vadd.f32 0.0, %v1080
      %v1082 = vpop.f32.mrb[0].mxu0
      %v1083 = vadd.f32 0.0, %v1082
      %v1084 = vpop.f32.mrb[0].mxu0
      %v1085 = vadd.f32 0.0, %v1084
      %1086 = vmatprep.mubr.bf16.mxu0 0
      %1087 = vmatmul.mubr.bf16.gmra.mrb[0].mxu0 %v784
      %v1088 = vpop.f32.mrb[0].mxu0
      %v1089 = vadd.f32 0.0, %v1088
      %v1090 = vpop.f32.mrb[0].mxu0
      %v1091 = vadd.f32 0.0, %v1090
      %v1092 = vpop.f32.mrb[0].mxu0
      %v1093 = vadd.f32 0.0, %v1092
      %v1094 = vpop.f32.mrb[0].mxu0
      %v1095 = vadd.f32 0.0, %v1094
      %1096 = vmatprep.mubr.bf16.mxu0 0
      %1097 = vmatmul.mubr.bf16.gmra.mrb[0].mxu0 %v787
      %v1098 = vpop.f32.mrb[0].mxu0
      %v1099 = vadd.f32 0.0, %v1098
      %v1100 = vpop.f32.mrb[0].mxu0
      %v1101 = vadd.f32 0.0, %v1100
      %v1102 = vpop.f32.mrb[0].mxu0
      %v1103 = vadd.f32 0.0, %v1102
      %v1104 = vpop.f32.mrb[0].mxu0
      %v1105 = vadd.f32 0.0, %v1104
      %1106 = vmatprep.mubr.bf16.mxu0 0
      %1107 = vmatmul.mubr.bf16.gmra.mrb[0].mxu0 %v790
      %v1108 = vpop.f32.mrb[0].mxu0
      %v1109 = vadd.f32 0.0, %v1108
      %v1110 = vpop.f32.mrb[0].mxu0
      %v1111 = vadd.f32 0.0, %v1110
      %v1112 = vpop.f32.mrb[0].mxu0
      %v1113 = vadd.f32 0.0, %v1112
      %v1114 = vpop.f32.mrb[0].mxu0
      %v1115 = vadd.f32 0.0, %v1114
      %1116 = vmatprep.mubr.bf16.mxu0 0
      %1117 = vmatmul.mubr.bf16.gmra.mrb[0].mxu0 %v793
      %v1118 = vpop.f32.mrb[0].mxu0
      %v1119 = vadd.f32 0.0, %v1118
      %v1120 = vpop.f32.mrb[0].mxu0
      %v1121 = vadd.f32 0.0, %v1120
      %v1122 = vpop.f32.mrb[0].mxu0
      %v1123 = vadd.f32 0.0, %v1122
      %v1124 = vpop.f32.mrb[0].mxu0
      %v1125 = vadd.f32 0.0, %v1124
      %1126 = vmatprep.mubr.bf16.mxu0 0
      %1127 = vmatmul.mubr.bf16.gmra.mrb[0].mxu0 %v796
      %v1128 = vpop.f32.mrb[0].mxu0
      %v1129 = vadd.f32 0.0, %v1128
      %v1130 = vpop.f32.mrb[0].mxu0
      %v1131 = vadd.f32 0.0, %v1130
      %v1132 = vpop.f32.mrb[0].mxu0
      %v1133 = vadd.f32 0.0, %v1132
      %v1134 = vpop.f32.mrb[0].mxu0
      %v1135 = vadd.f32 0.0, %v1134
      %1136 = vmatprep.mubr.bf16.mxu0 0
      %1137 = vmatmul.mubr.bf16.gmra.mrb[0].mxu0 %v799
      %v1138 = vpop.f32.mrb[0].mxu0
      %v1139 = vadd.f32 0.0, %v1138
      %v1140 = vpop.f32.mrb[0].mxu0
      %v1141 = vadd.f32 0.0, %v1140
      %v1142 = vpop.f32.mrb[0].mxu0
      %v1143 = vadd.f32 0.0, %v1142
      %v1144 = vpop.f32.mrb[0].mxu0
      %v1145 = vadd.f32 0.0, %v1144
      %1146 = vdwg.mxu0
      %1147 = vrot.lane.b32.xlu0 %v836, 66
      %v1148 = vpop.permute.xlu0 %1147
      %1149 = vrot.lane.b32.xlu0 %v840, 66
      %v1150 = vpop.permute.xlu0 %1149
      %1151 = vrot.lane.b32.xlu0 %v846, 66
      %v1152 = vpop.permute.xlu0 %1151
      %1153 = vrot.lane.b32.xlu0 %v850, 66
      %v1154 = vpop.permute.xlu0 %1153
      %1155 = vrot.lane.b32.xlu0 %v838, 66
      %v1156 = vpop.permute.xlu0 %1155
      %1157 = vrot.lane.b32.xlu0 %v842, 66
      %v1158 = vpop.permute.xlu0 %1157
      %1159 = vrot.lane.b32.xlu0 %v848, 66
      %v1160 = vpop.permute.xlu0 %1159
      %1161 = vrot.lane.b32.xlu0 %v852, 66
      %v1162 = vpop.permute.xlu0 %1161
      %1163 = vrot.lane.b32.xlu0 %v1009, 66
      %v1164 = vpop.permute.xlu0 %1163
      %1165 = vrot.lane.b32.xlu0 %v1013, 66
      %v1166 = vpop.permute.xlu0 %1165
      %1167 = vrot.lane.b32.xlu0 %v1019, 66
      %v1168 = vpop.permute.xlu0 %1167
      %1169 = vrot.lane.b32.xlu0 %v1023, 66
      %v1170 = vpop.permute.xlu0 %1169
      %1171 = vrot.lane.b32.xlu0 %v1011, 66
      %v1172 = vpop.permute.xlu0 %1171
      %1173 = vrot.lane.b32.xlu0 %v1015, 66
      %v1174 = vpop.permute.xlu0 %1173
      %1175 = vrot.lane.b32.xlu0 %v1021, 66
      %v1176 = vpop.permute.xlu0 %1175
      %1177 = vrot.lane.b32.xlu0 %v1025, 66
      %v1178 = vpop.permute.xlu0 %1177
      %vm1179 = vcmp.lt.s32.totalorder %v441, 66
      %v1180 = vsel %vm1179, %v1164, %v1172
      %v1181 = vsel %vm1179, %v1166, %v1174
      %v1182 = vsel %vm1179, %v1168, %v1176
      %v1183 = vsel %vm1179, %v1170, %v1178
      %v1184 = vsel %vm1179, %v1156, %v1164
      %v1185 = vsel %vm1179, %v1158, %v1166
      %v1186 = vsel %vm1179, %v1160, %v1168
      %v1187 = vsel %vm1179, %v1162, %v1170
      %v1188 = vsel %vm1179, %v1148, %v1156
      %v1189 = vsel %vm1179, %v1150, %v1158
      %v1190 = vsel %vm1179, %v1152, %v1160
      %v1191 = vsel %vm1179, %v1154, %v1162
      %v1192 = vsel %vm1179, %v1172, %v1148
      %v1193 = vsel %vm1179, %v1174, %v1150
      %v1194 = vsel %vm1179, %v1176, %v1152
      %v1195 = vsel %vm1179, %v1178, %v1154
      %v1196 = vadd.f32 %v896, %v1192
      %v1197 = vadd.f32 %v898, %v1188
      %v1198 = vadd.f32 %v1069, %v1184
      %v1199 = vadd.f32 %v1071, %v1180
      %v1200 = vadd.f32 %v900, %v1193
      %v1201 = vadd.f32 %v902, %v1189
      %v1202 = vadd.f32 %v1073, %v1185
      %v1203 = vadd.f32 %v1075, %v1181
      %v1204 = vadd.f32 %v906, %v1194
      %v1205 = vadd.f32 %v908, %v1190
      %v1206 = vadd.f32 %v1079, %v1186
      %v1207 = vadd.f32 %v1081, %v1182
      %v1208 = vadd.f32 %v910, %v1195
      %v1209 = vadd.f32 %v912, %v1191
      %v1210 = vadd.f32 %v1083, %v1187
      %v1211 = vadd.f32 %v1085, %v1183
      %1212 = vrot.lane.b32.xlu0 %v856, 44
      %v1213 = vpop.permute.xlu0 %1212
      %1214 = vrot.lane.b32.xlu0 %v860, 44
      %v1215 = vpop.permute.xlu0 %1214
      %1216 = vrot.lane.b32.xlu0 %v866, 44
      %v1217 = vpop.permute.xlu0 %1216
      %1218 = vrot.lane.b32.xlu0 %v870, 44
      %v1219 = vpop.permute.xlu0 %1218
      %1220 = vrot.lane.b32.xlu0 %v858, 44
      %v1221 = vpop.permute.xlu0 %1220
      %1222 = vrot.lane.b32.xlu0 %v862, 44
      %v1223 = vpop.permute.xlu0 %1222
      %1224 = vrot.lane.b32.xlu0 %v868, 44
      %v1225 = vpop.permute.xlu0 %1224
      %1226 = vrot.lane.b32.xlu0 %v872, 44
      %v1227 = vpop.permute.xlu0 %1226
      %1228 = vrot.lane.b32.xlu0 %v1029, 44
      %v1229 = vpop.permute.xlu0 %1228
      %1230 = vrot.lane.b32.xlu0 %v1033, 44
      %v1231 = vpop.permute.xlu0 %1230
      %1232 = vrot.lane.b32.xlu0 %v1039, 44
      %v1233 = vpop.permute.xlu0 %1232
      %1234 = vrot.lane.b32.xlu0 %v1043, 44
      %v1235 = vpop.permute.xlu0 %1234
      %1236 = vrot.lane.b32.xlu0 %v1031, 44
      %v1237 = vpop.permute.xlu0 %1236
      %1238 = vrot.lane.b32.xlu0 %v1035, 44
      %v1239 = vpop.permute.xlu0 %1238
      %1240 = vrot.lane.b32.xlu0 %v1041, 44
      %v1241 = vpop.permute.xlu0 %1240
      %1242 = vrot.lane.b32.xlu0 %v1045, 44
      %v1243 = vpop.permute.xlu0 %1242
      %vm1244 = vcmp.lt.s32.totalorder %v441, 44
      %v1245 = vsel %vm1244, %v1229, %v1237
      %v1246 = vsel %vm1244, %v1231, %v1239
      %v1247 = vsel %vm1244, %v1233, %v1241
      %v1248 = vsel %vm1244, %v1235, %v1243
      %v1249 = vsel %vm1244, %v1221, %v1229
      %v1250 = vsel %vm1244, %v1223, %v1231
      %v1251 = vsel %vm1244, %v1225, %v1233
      %v1252 = vsel %vm1244, %v1227, %v1235
      %v1253 = vsel %vm1244, %v1213, %v1221
      %v1254 = vsel %vm1244, %v1215, %v1223
      %v1255 = vsel %vm1244, %v1217, %v1225
      %v1256 = vsel %vm1244, %v1219, %v1227
      %v1257 = vsel %vm1244, %v1237, %v1213
      %v1258 = vsel %vm1244, %v1239, %v1215
      %v1259 = vsel %vm1244, %v1241, %v1217
      %v1260 = vsel %vm1244, %v1243, %v1219
      %v1261 = vadd.f32 %v1196, %v1257
      %v1262 = vadd.f32 %v1197, %v1253
      %v1263 = vadd.f32 %v1198, %v1249
      %v1264 = vadd.f32 %v1199, %v1245
      %v1265 = vadd.f32 %v1200, %v1258
      %v1266 = vadd.f32 %v1201, %v1254
      %v1267 = vadd.f32 %v1202, %v1250
      %v1268 = vadd.f32 %v1203, %v1246
      %v1269 = vadd.f32 %v1204, %v1259
      %v1270 = vadd.f32 %v1205, %v1255
      %v1271 = vadd.f32 %v1206, %v1251
      %v1272 = vadd.f32 %v1207, %v1247
      %v1273 = vadd.f32 %v1208, %v1260
      %v1274 = vadd.f32 %v1209, %v1256
      %v1275 = vadd.f32 %v1210, %v1252
      %v1276 = vadd.f32 %v1211, %v1248
      %1277 = vrot.lane.b32.xlu0 %v876, 22
      %v1278 = vpop.permute.xlu0 %1277
      %1279 = vrot.lane.b32.xlu0 %v880, 22
      %v1280 = vpop.permute.xlu0 %1279
      %1281 = vrot.lane.b32.xlu0 %v886, 22
      %v1282 = vpop.permute.xlu0 %1281
      %1283 = vrot.lane.b32.xlu0 %v890, 22
      %v1284 = vpop.permute.xlu0 %1283
      %1285 = vrot.lane.b32.xlu0 %v878, 22
      %v1286 = vpop.permute.xlu0 %1285
      %1287 = vrot.lane.b32.xlu0 %v882, 22
      %v1288 = vpop.permute.xlu0 %1287
      %1289 = vrot.lane.b32.xlu0 %v888, 22
      %v1290 = vpop.permute.xlu0 %1289
      %1291 = vrot.lane.b32.xlu0 %v892, 22
      %v1292 = vpop.permute.xlu0 %1291
      %1293 = vrot.lane.b32.xlu0 %v1049, 22
      %v1294 = vpop.permute.xlu0 %1293
      %1295 = vrot.lane.b32.xlu0 %v1053, 22
      %v1296 = vpop.permute.xlu0 %1295
      %1297 = vrot.lane.b32.xlu0 %v1059, 22
      %v1298 = vpop.permute.xlu0 %1297
      %1299 = vrot.lane.b32.xlu0 %v1063, 22
      %v1300 = vpop.permute.xlu0 %1299
      %1301 = vrot.lane.b32.xlu0 %v1051, 22
      %v1302 = vpop.permute.xlu0 %1301
      %1303 = vrot.lane.b32.xlu0 %v1055, 22
      %v1304 = vpop.permute.xlu0 %1303
      %1305 = vrot.lane.b32.xlu0 %v1061, 22
      %v1306 = vpop.permute.xlu0 %1305
      %1307 = vrot.lane.b32.xlu0 %v1065, 22
      %v1308 = vpop.permute.xlu0 %1307
      %vm1309 = vcmp.lt.s32.totalorder %v441, 22
      %v1310 = vsel %vm1309, %v1294, %v1302
      %v1311 = vsel %vm1309, %v1296, %v1304
      %v1312 = vsel %vm1309, %v1298, %v1306
      %v1313 = vsel %vm1309, %v1300, %v1308
      %v1314 = vsel %vm1309, %v1286, %v1294
      %v1315 = vsel %vm1309, %v1288, %v1296
      %v1316 = vsel %vm1309, %v1290, %v1298
      %v1317 = vsel %vm1309, %v1292, %v1300
      %v1318 = vsel %vm1309, %v1278, %v1286
      %v1319 = vsel %vm1309, %v1280, %v1288
      %v1320 = vsel %vm1309, %v1282, %v1290
      %v1321 = vsel %vm1309, %v1284, %v1292
      %v1322 = vsel %vm1309, %v1302, %v1278
      %v1323 = vsel %vm1309, %v1304, %v1280
      %v1324 = vsel %vm1309, %v1306, %v1282
      %v1325 = vsel %vm1309, %v1308, %v1284
      %v1326 = vadd.f32 %v1261, %v1322
      %v1327 = vadd.f32 %v1262, %v1318
      %v1328 = vadd.f32 %v1263, %v1314
      %v1329 = vadd.f32 %v1264, %v1310
      %v1330 = vadd.f32 %v1265, %v1323
      %v1331 = vadd.f32 %v1266, %v1319
      %v1332 = vadd.f32 %v1267, %v1315
      %v1333 = vadd.f32 %v1268, %v1311
      %v1334 = vadd.f32 %v1269, %v1324
      %v1335 = vadd.f32 %v1270, %v1320
      %v1336 = vadd.f32 %v1271, %v1316
      %v1337 = vadd.f32 %v1272, %v1312
      %v1338 = vadd.f32 %v1273, %v1325
      %v1339 = vadd.f32 %v1274, %v1321
      %v1340 = vadd.f32 %v1275, %v1317
      %v1341 = vadd.f32 %v1276, %v1313
      %1342 = vrot.lane.b32.xlu0 %v916, 106
      %v1343 = vpop.permute.xlu0 %1342
      %1344 = vrot.lane.b32.xlu0 %v920, 106
      %v1345 = vpop.permute.xlu0 %1344
      %1346 = vrot.lane.b32.xlu0 %v926, 106
      %v1347 = vpop.permute.xlu0 %1346
      %1348 = vrot.lane.b32.xlu0 %v930, 106
      %v1349 = vpop.permute.xlu0 %1348
      %1350 = vrot.lane.b32.xlu0 %v918, 106
      %v1351 = vpop.permute.xlu0 %1350
      %1352 = vrot.lane.b32.xlu0 %v922, 106
      %v1353 = vpop.permute.xlu0 %1352
      %1354 = vrot.lane.b32.xlu0 %v928, 106
      %v1355 = vpop.permute.xlu0 %1354
      %1356 = vrot.lane.b32.xlu0 %v932, 106
      %v1357 = vpop.permute.xlu0 %1356
      %1358 = vrot.lane.b32.xlu0 %v1089, 106
      %v1359 = vpop.permute.xlu0 %1358
      %1360 = vrot.lane.b32.xlu0 %v1093, 106
      %v1361 = vpop.permute.xlu0 %1360
      %1362 = vrot.lane.b32.xlu0 %v1099, 106
      %v1363 = vpop.permute.xlu0 %1362
      %1364 = vrot.lane.b32.xlu0 %v1103, 106
      %v1365 = vpop.permute.xlu0 %1364
      %1366 = vrot.lane.b32.xlu0 %v1091, 106
      %v1367 = vpop.permute.xlu0 %1366
      %1368 = vrot.lane.b32.xlu0 %v1095, 106
      %v1369 = vpop.permute.xlu0 %1368
      %1370 = vrot.lane.b32.xlu0 %v1101, 106
      %v1371 = vpop.permute.xlu0 %1370
      %1372 = vrot.lane.b32.xlu0 %v1105, 106
      %v1373 = vpop.permute.xlu0 %1372
      %vm1374 = vcmp.lt.s32.totalorder %v441, 106
      %v1375 = vsel %vm1374, %v1359, %v1367
      %v1376 = vsel %vm1374, %v1361, %v1369
      %v1377 = vsel %vm1374, %v1363, %v1371
      %v1378 = vsel %vm1374, %v1365, %v1373
      %v1379 = vsel %vm1374, %v1351, %v1359
      %v1380 = vsel %vm1374, %v1353, %v1361
      %v1381 = vsel %vm1374, %v1355, %v1363
      %v1382 = vsel %vm1374, %v1357, %v1365
      %v1383 = vsel %vm1374, %v1343, %v1351
      %v1384 = vsel %vm1374, %v1345, %v1353
      %v1385 = vsel %vm1374, %v1347, %v1355
      %v1386 = vsel %vm1374, %v1349, %v1357
      %v1387 = vsel %vm1374, %v1367, %v1343
      %v1388 = vsel %vm1374, %v1369, %v1345
      %v1389 = vsel %vm1374, %v1371, %v1347
      %v1390 = vsel %vm1374, %v1373, %v1349
      %v1391 = vadd.f32 %v1326, %v1383
      %v1392 = vadd.f32 %v1327, %v1379
      %v1393 = vadd.f32 %v1328, %v1375
      %v1394 = vadd.f32 %v1329, %v1387
      %v1395 = vadd.f32 %v1330, %v1384
      %v1396 = vadd.f32 %v1331, %v1380
      %v1397 = vadd.f32 %v1332, %v1376
      %v1398 = vadd.f32 %v1333, %v1388
      %v1399 = vadd.f32 %v1334, %v1385
      %v1400 = vadd.f32 %v1335, %v1381
      %v1401 = vadd.f32 %v1336, %v1377
      %v1402 = vadd.f32 %v1337, %v1389
      %v1403 = vadd.f32 %v1338, %v1386
      %v1404 = vadd.f32 %v1339, %v1382
      %v1405 = vadd.f32 %v1340, %v1378
      %v1406 = vadd.f32 %v1341, %v1390
      %1407 = vrot.lane.b32.xlu0 %v936, 84
      %v1408 = vpop.permute.xlu0 %1407
      %1409 = vrot.lane.b32.xlu0 %v940, 84
      %v1410 = vpop.permute.xlu0 %1409
      %1411 = vrot.lane.b32.xlu0 %v946, 84
      %v1412 = vpop.permute.xlu0 %1411
      %1413 = vrot.lane.b32.xlu0 %v950, 84
      %v1414 = vpop.permute.xlu0 %1413
      %1415 = vrot.lane.b32.xlu0 %v938, 84
      %v1416 = vpop.permute.xlu0 %1415
      %1417 = vrot.lane.b32.xlu0 %v942, 84
      %v1418 = vpop.permute.xlu0 %1417
      %1419 = vrot.lane.b32.xlu0 %v948, 84
      %v1420 = vpop.permute.xlu0 %1419
      %1421 = vrot.lane.b32.xlu0 %v952, 84
      %v1422 = vpop.permute.xlu0 %1421
      %1423 = vrot.lane.b32.xlu0 %v1109, 84
      %v1424 = vpop.permute.xlu0 %1423
      %1425 = vrot.lane.b32.xlu0 %v1113, 84
      %v1426 = vpop.permute.xlu0 %1425
      %1427 = vrot.lane.b32.xlu0 %v1119, 84
      %v1428 = vpop.permute.xlu0 %1427
      %1429 = vrot.lane.b32.xlu0 %v1123, 84
      %v1430 = vpop.permute.xlu0 %1429
      %1431 = vrot.lane.b32.xlu0 %v1111, 84
      %v1432 = vpop.permute.xlu0 %1431
      %1433 = vrot.lane.b32.xlu0 %v1115, 84
      %v1434 = vpop.permute.xlu0 %1433
      %1435 = vrot.lane.b32.xlu0 %v1121, 84
      %v1436 = vpop.permute.xlu0 %1435
      %1437 = vrot.lane.b32.xlu0 %v1125, 84
      %v1438 = vpop.permute.xlu0 %1437
      %vm1439 = vcmp.lt.s32.totalorder %v441, 84
      %v1440 = vsel %vm1439, %v1424, %v1432
      %v1441 = vsel %vm1439, %v1426, %v1434
      %v1442 = vsel %vm1439, %v1428, %v1436
      %v1443 = vsel %vm1439, %v1430, %v1438
      %v1444 = vsel %vm1439, %v1416, %v1424
      %v1445 = vsel %vm1439, %v1418, %v1426
      %v1446 = vsel %vm1439, %v1420, %v1428
      %v1447 = vsel %vm1439, %v1422, %v1430
      %v1448 = vsel %vm1439, %v1408, %v1416
      %v1449 = vsel %vm1439, %v1410, %v1418
      %v1450 = vsel %vm1439, %v1412, %v1420
      %v1451 = vsel %vm1439, %v1414, %v1422
      %v1452 = vsel %vm1439, %v1432, %v1408
      %v1453 = vsel %vm1439, %v1434, %v1410
      %v1454 = vsel %vm1439, %v1436, %v1412
      %v1455 = vsel %vm1439, %v1438, %v1414
      %v1456 = vadd.f32 %v1391, %v1448
      %v1457 = vadd.f32 %v1392, %v1444
      %v1458 = vadd.f32 %v1393, %v1440
      %v1459 = vadd.f32 %v1394, %v1452
      %v1460 = vadd.f32 %v1395, %v1449
      %v1461 = vadd.f32 %v1396, %v1445
      %v1462 = vadd.f32 %v1397, %v1441
      %v1463 = vadd.f32 %v1398, %v1453
      %v1464 = vadd.f32 %v1399, %v1450
      %v1465 = vadd.f32 %v1400, %v1446
      %v1466 = vadd.f32 %v1401, %v1442
      %v1467 = vadd.f32 %v1402, %v1454
      %v1468 = vadd.f32 %v1403, %v1451
      %v1469 = vadd.f32 %v1404, %v1447
      %v1470 = vadd.f32 %v1405, %v1443
      %v1471 = vadd.f32 %v1406, %v1455
      %1472 = vrot.lane.b32.xlu0 %v956, 62
      %v1473 = vpop.permute.xlu0 %1472
      %1474 = vrot.lane.b32.xlu0 %v960, 62
      %v1475 = vpop.permute.xlu0 %1474
      %1476 = vrot.lane.b32.xlu0 %v966, 62
      %v1477 = vpop.permute.xlu0 %1476
      %1478 = vrot.lane.b32.xlu0 %v970, 62
      %v1479 = vpop.permute.xlu0 %1478
      %1480 = vrot.lane.b32.xlu0 %v958, 62
      %v1481 = vpop.permute.xlu0 %1480
      %1482 = vrot.lane.b32.xlu0 %v962, 62
      %v1483 = vpop.permute.xlu0 %1482
      %1484 = vrot.lane.b32.xlu0 %v968, 62
      %v1485 = vpop.permute.xlu0 %1484
      %1486 = vrot.lane.b32.xlu0 %v972, 62
      %v1487 = vpop.permute.xlu0 %1486
      %1488 = vrot.lane.b32.xlu0 %v1129, 62
      %v1489 = vpop.permute.xlu0 %1488
      %1490 = vrot.lane.b32.xlu0 %v1133, 62
      %v1491 = vpop.permute.xlu0 %1490
      %1492 = vrot.lane.b32.xlu0 %v1139, 62
      %v1493 = vpop.permute.xlu0 %1492
      %1494 = vrot.lane.b32.xlu0 %v1143, 62
      %v1495 = vpop.permute.xlu0 %1494
      %1496 = vrot.lane.b32.xlu0 %v1131, 62
      %v1497 = vpop.permute.xlu0 %1496
      %1498 = vrot.lane.b32.xlu0 %v1135, 62
      %v1499 = vpop.permute.xlu0 %1498
      %1500 = vrot.lane.b32.xlu0 %v1141, 62
      %v1501 = vpop.permute.xlu0 %1500
      %1502 = vrot.lane.b32.xlu0 %v1145, 62
      %v1503 = vpop.permute.xlu0 %1502
      %vm1504 = vcmp.lt.s32.totalorder %v441, 62
      %v1505 = vsel %vm1504, %v1489, %v1497
      %v1506 = vsel %vm1504, %v1491, %v1499
      %v1507 = vsel %vm1504, %v1493, %v1501
      %v1508 = vsel %vm1504, %v1495, %v1503
      %v1509 = vsel %vm1504, %v1481, %v1489
      %v1510 = vsel %vm1504, %v1483, %v1491
      %v1511 = vsel %vm1504, %v1485, %v1493
      %v1512 = vsel %vm1504, %v1487, %v1495
      %v1513 = vsel %vm1504, %v1473, %v1481
      %v1514 = vsel %vm1504, %v1475, %v1483
      %v1515 = vsel %vm1504, %v1477, %v1485
      %v1516 = vsel %vm1504, %v1479, %v1487
      %v1517 = vsel %vm1504, %v1497, %v1473
      %v1518 = vsel %vm1504, %v1499, %v1475
      %v1519 = vsel %vm1504, %v1501, %v1477
      %v1520 = vsel %vm1504, %v1503, %v1479
      %v1521 = vadd.f32 %v1456, %v1513
      %v1522 = vadd.f32 %v1457, %v1509
      %v1523 = vadd.f32 %v1458, %v1505
      %v1524 = vadd.f32 %v1459, %v1517
      %v1525 = vadd.f32 %v1460, %v1514
      %v1526 = vadd.f32 %v1461, %v1510
      %v1527 = vadd.f32 %v1462, %v1506
      %v1528 = vadd.f32 %v1463, %v1518
      %v1529 = vadd.f32 %v1464, %v1515
      %v1530 = vadd.f32 %v1465, %v1511
      %v1531 = vadd.f32 %v1466, %v1507
      %v1532 = vadd.f32 %v1467, %v1519
      %v1533 = vadd.f32 %v1468, %v1516
      %v1534 = vadd.f32 %v1469, %v1512
      %v1535 = vadd.f32 %v1470, %v1508
      %v1536 = vadd.f32 %v1471, %v1520
      %v1537 = vld [vmem:[%s3] sm:$0xff]
      %v1538 = vld [vmem:[%s3 + $0x8] sm:$0xff]
      %v1539 = vld [vmem:[%s3 + $0x10] sm:$0xff]
      %v1540 = vld [vmem:[%s3 + $0x18] sm:$0xff]
      %1542 = vset.pattern.permute.xlu0 0
      %1543 = vperm.xlu0 %1542, %v1537
      %v1544 = vpop.permute.xlu0 %1543
      %1547 = vset.pattern.permute.xlu0 0
      %1548 = vperm.xlu0 %1547, %v1538
      %v1549 = vpop.permute.xlu0 %1548
      %1552 = vset.pattern.permute.xlu0 0
      %1553 = vperm.xlu0 %1552, %v1539
      %v1554 = vpop.permute.xlu0 %1553
      %1557 = vset.pattern.permute.xlu0 0
      %1558 = vperm.xlu0 %1557, %v1540
      %v1559 = vpop.permute.xlu0 %1558
      %v1561 = vadd.f32 %v1521, %v1544
      %v1562 = vadd.f32 %v1522, %v1544
      %v1563 = vadd.f32 %v1523, %v1544
      %v1564 = vadd.f32 %v1524, %v1544
      %v1565 = vadd.f32 %v1525, %v1549
      %v1566 = vadd.f32 %v1526, %v1549
      %v1567 = vadd.f32 %v1527, %v1549
      %v1568 = vadd.f32 %v1528, %v1549
      %v1569 = vadd.f32 %v1529, %v1554
      %v1570 = vadd.f32 %v1530, %v1554
      %v1571 = vadd.f32 %v1531, %v1554
      %v1572 = vadd.f32 %v1532, %v1554
      %v1573 = vadd.f32 %v1533, %v1559
      %v1574 = vadd.f32 %v1534, %v1559
      %v1575 = vadd.f32 %v1535, %v1559
      %v1576 = vadd.f32 %v1536, %v1559
      %v1577 = vmax.f32 %v1561, 0.0
      %v1578 = vmax.f32 %v1562, 0.0
      %v1579 = vmax.f32 %v1563, 0.0
      %v1580 = vmax.f32 %v1564, 0.0
      %v1581 = vmax.f32 %v1565, 0.0
      %v1582 = vmax.f32 %v1566, 0.0
      %v1583 = vmax.f32 %v1567, 0.0
      %v1584 = vmax.f32 %v1568, 0.0
      %v1585 = vmax.f32 %v1569, 0.0
      %v1586 = vmax.f32 %v1570, 0.0
      %v1587 = vmax.f32 %v1571, 0.0
      %v1588 = vmax.f32 %v1572, 0.0
      %v1589 = vmax.f32 %v1573, 0.0
      %v1590 = vmax.f32 %v1574, 0.0
      %v1591 = vmax.f32 %v1575, 0.0
      %v1592 = vmax.f32 %v1576, 0.0
      %v1594 = vlaneseq
      %v1595 = vshrl.u32 %v1594, 7
      %v1596 = vsub.s32 0, %v1595
      %v1597 = vrot.slane %v415, %v1596
      %v1598 = vlaneseq
      %v1599 = vshrl.u32 %v1598, 7
      %v1600 = vsub.s32 1, %v1599
      %v1601 = vrot.slane %v415, %v1600
      %v1602 = vlaneseq
      %v1603 = vshrl.u32 %v1602, 7
      %v1604 = vsub.s32 2, %v1603
      %v1605 = vrot.slane %v415, %v1604
      %v1606 = vlaneseq
      %v1607 = vshrl.u32 %v1606, 7
      %v1608 = vsub.s32 3, %v1607
      %v1609 = vrot.slane %v415, %v1608
      %v1614 = vmul.f32 %v1577, %v1597
      %v1615 = vmul.f32 %v1578, %v1601
      %v1616 = vmul.f32 %v1579, %v1605
      %v1617 = vmul.f32 %v1580, %v1609
      %v1618 = vmul.f32 %v1581, %v1597
      %v1619 = vmul.f32 %v1582, %v1601
      %v1620 = vmul.f32 %v1583, %v1605
      %v1621 = vmul.f32 %v1584, %v1609
      %v1622 = vmul.f32 %v1585, %v1597
      %v1623 = vmul.f32 %v1586, %v1601
      %v1624 = vmul.f32 %v1587, %v1605
      %v1625 = vmul.f32 %v1588, %v1609
      %v1626 = vmul.f32 %v1589, %v1597
      %v1627 = vmul.f32 %v1590, %v1601
      %v1628 = vmul.f32 %v1591, %v1605
      %v1629 = vmul.f32 %v1592, %v1609
      %1630 = vrot.lane.b32.xlu0 %v1614, 3
      %v1631 = vpop.permute.xlu0 %1630
      %1632 = vrot.lane.b32.xlu0 %v1618, 3
      %v1633 = vpop.permute.xlu0 %1632
      %1634 = vrot.lane.b32.xlu0 %v1622, 3
      %v1635 = vpop.permute.xlu0 %1634
      %1636 = vrot.lane.b32.xlu0 %v1626, 3
      %v1637 = vpop.permute.xlu0 %1636
      %1638 = vrot.lane.b32.xlu0 %v1615, 3
      %v1639 = vpop.permute.xlu0 %1638
      %1640 = vrot.lane.b32.xlu0 %v1619, 3
      %v1641 = vpop.permute.xlu0 %1640
      %1642 = vrot.lane.b32.xlu0 %v1623, 3
      %v1643 = vpop.permute.xlu0 %1642
      %1644 = vrot.lane.b32.xlu0 %v1627, 3
      %v1645 = vpop.permute.xlu0 %1644
      %1646 = vrot.lane.b32.xlu0 %v1616, 3
      %v1647 = vpop.permute.xlu0 %1646
      %1648 = vrot.lane.b32.xlu0 %v1620, 3
      %v1649 = vpop.permute.xlu0 %1648
      %1650 = vrot.lane.b32.xlu0 %v1624, 3
      %v1651 = vpop.permute.xlu0 %1650
      %1652 = vrot.lane.b32.xlu0 %v1628, 3
      %v1653 = vpop.permute.xlu0 %1652
      %1654 = vrot.lane.b32.xlu0 %v1617, 3
      %v1655 = vpop.permute.xlu0 %1654
      %1656 = vrot.lane.b32.xlu0 %v1621, 3
      %v1657 = vpop.permute.xlu0 %1656
      %1658 = vrot.lane.b32.xlu0 %v1625, 3
      %v1659 = vpop.permute.xlu0 %1658
      %1660 = vrot.lane.b32.xlu0 %v1629, 3
      %v1661 = vpop.permute.xlu0 %1660
      %v1662 = vsel %vm442, %v1647, %v1655
      %v1663 = vsel %vm442, %v1649, %v1657
      %v1664 = vsel %vm442, %v1651, %v1659
      %v1665 = vsel %vm442, %v1653, %v1661
      %v1666 = vsel %vm442, %v1639, %v1647
      %v1667 = vsel %vm442, %v1641, %v1649
      %v1668 = vsel %vm442, %v1643, %v1651
      %v1669 = vsel %vm442, %v1645, %v1653
      %v1670 = vsel %vm442, %v1631, %v1639
      %v1671 = vsel %vm442, %v1633, %v1641
      %v1672 = vsel %vm442, %v1635, %v1643
      %v1673 = vsel %vm442, %v1637, %v1645
      %v1674 = vsel %vm442, %v1655, %v1631
      %v1675 = vsel %vm442, %v1657, %v1633
      %v1676 = vsel %vm442, %v1659, %v1635
      %v1677 = vsel %vm442, %v1661, %v1637
      %v1678 = vpack.c.bf16 %v1675, %v1674
      %v1679 = vpack.c.bf16 %v1671, %v1670
      %v1680 = vpack.c.bf16 %v1667, %v1666
      %v1681 = vpack.c.bf16 %v1663, %v1662
      %v1682 = vpack.c.bf16 %v1677, %v1676
      %v1683 = vpack.c.bf16 %v1673, %v1672
      %v1684 = vpack.c.bf16 %v1669, %v1668
      %v1685 = vpack.c.bf16 %v1665, %v1664
      %1686 = vst [vmem:[#allocation2] sm:$0xff] %v1678
      %1687 = vst [vmem:[#allocation2 + $0x8] sm:$0xff] %v1679
      %1688 = vst [vmem:[#allocation2 + $0x10] sm:$0xff] %v1680
      %1689 = vst [vmem:[#allocation2 + $0x18] sm:$0xff] %v1681
      %1690 = vst [vmem:[#allocation2 + $0x20] sm:$0xff] %v1682
      %1691 = vst [vmem:[#allocation2 + $0x28] sm:$0xff] %v1683
      %1692 = vst [vmem:[#allocation2 + $0x30] sm:$0xff] %v1684
      %1693 = vst [vmem:[#allocation2 + $0x38] sm:$0xff] %v1685
      %1694 = vrot.lane.b32.xlu0 %v1614, 2
      %v1695 = vpop.permute.xlu0 %1694
      %1696 = vrot.lane.b32.xlu0 %v1618, 2
      %v1697 = vpop.permute.xlu0 %1696
      %1698 = vrot.lane.b32.xlu0 %v1622, 2
      %v1699 = vpop.permute.xlu0 %1698
      %1700 = vrot.lane.b32.xlu0 %v1626, 2
      %v1701 = vpop.permute.xlu0 %1700
      %1702 = vrot.lane.b32.xlu0 %v1615, 2
      %v1703 = vpop.permute.xlu0 %1702
      %1704 = vrot.lane.b32.xlu0 %v1619, 2
      %v1705 = vpop.permute.xlu0 %1704
      %1706 = vrot.lane.b32.xlu0 %v1623, 2
      %v1707 = vpop.permute.xlu0 %1706
      %1708 = vrot.lane.b32.xlu0 %v1627, 2
      %v1709 = vpop.permute.xlu0 %1708
      %1710 = vrot.lane.b32.xlu0 %v1616, 2
      %v1711 = vpop.permute.xlu0 %1710
      %1712 = vrot.lane.b32.xlu0 %v1620, 2
      %v1713 = vpop.permute.xlu0 %1712
      %1714 = vrot.lane.b32.xlu0 %v1624, 2
      %v1715 = vpop.permute.xlu0 %1714
      %1716 = vrot.lane.b32.xlu0 %v1628, 2
      %v1717 = vpop.permute.xlu0 %1716
      %1718 = vrot.lane.b32.xlu0 %v1617, 2
      %v1719 = vpop.permute.xlu0 %1718
      %1720 = vrot.lane.b32.xlu0 %v1621, 2
      %v1721 = vpop.permute.xlu0 %1720
      %1722 = vrot.lane.b32.xlu0 %v1625, 2
      %v1723 = vpop.permute.xlu0 %1722
      %1724 = vrot.lane.b32.xlu0 %v1629, 2
      %v1725 = vpop.permute.xlu0 %1724
      %v1726 = vsel %vm475, %v1711, %v1719
      %v1727 = vsel %vm475, %v1713, %v1721
      %v1728 = vsel %vm475, %v1715, %v1723
      %v1729 = vsel %vm475, %v1717, %v1725
      %v1730 = vsel %vm475, %v1703, %v1711
      %v1731 = vsel %vm475, %v1705, %v1713
      %v1732 = vsel %vm475, %v1707, %v1715
      %v1733 = vsel %vm475, %v1709, %v1717
      %v1734 = vsel %vm475, %v1695, %v1703
      %v1735 = vsel %vm475, %v1697, %v1705
      %v1736 = vsel %vm475, %v1699, %v1707
      %v1737 = vsel %vm475, %v1701, %v1709
      %v1738 = vsel %vm475, %v1719, %v1695
      %v1739 = vsel %vm475, %v1721, %v1697
      %v1740 = vsel %vm475, %v1723, %v1699
      %v1741 = vsel %vm475, %v1725, %v1701
      %v1742 = vpack.c.bf16 %v1739, %v1738
      %v1743 = vpack.c.bf16 %v1735, %v1734
      %v1744 = vpack.c.bf16 %v1731, %v1730
      %v1745 = vpack.c.bf16 %v1727, %v1726
      %v1746 = vpack.c.bf16 %v1741, %v1740
      %v1747 = vpack.c.bf16 %v1737, %v1736
      %v1748 = vpack.c.bf16 %v1733, %v1732
      %v1749 = vpack.c.bf16 %v1729, %v1728
      %1750 = vst [vmem:[#allocation2 + $0x40] sm:$0xff] %v1742
      %1751 = vst [vmem:[#allocation2 + $0x48] sm:$0xff] %v1743
      %1752 = vst [vmem:[#allocation2 + $0x50] sm:$0xff] %v1744
      %1753 = vst [vmem:[#allocation2 + $0x58] sm:$0xff] %v1745
      %1754 = vst [vmem:[#allocation2 + $0x60] sm:$0xff] %v1746
      %1755 = vst [vmem:[#allocation2 + $0x68] sm:$0xff] %v1747
      %1756 = vst [vmem:[#allocation2 + $0x70] sm:$0xff] %v1748
      %1757 = vst [vmem:[#allocation2 + $0x78] sm:$0xff] %v1749
      %1758 = vrot.lane.b32.xlu0 %v1614, 1
      %v1759 = vpop.permute.xlu0 %1758
      %1760 = vrot.lane.b32.xlu0 %v1618, 1
      %v1761 = vpop.permute.xlu0 %1760
      %1762 = vrot.lane.b32.xlu0 %v1622, 1
      %v1763 = vpop.permute.xlu0 %1762
      %1764 = vrot.lane.b32.xlu0 %v1626, 1
      %v1765 = vpop.permute.xlu0 %1764
      %1766 = vrot.lane.b32.xlu0 %v1615, 1
      %v1767 = vpop.permute.xlu0 %1766
      %1768 = vrot.lane.b32.xlu0 %v1619, 1
      %v1769 = vpop.permute.xlu0 %1768
      %1770 = vrot.lane.b32.xlu0 %v1623, 1
      %v1771 = vpop.permute.xlu0 %1770
      %1772 = vrot.lane.b32.xlu0 %v1627, 1
      %v1773 = vpop.permute.xlu0 %1772
      %1774 = vrot.lane.b32.xlu0 %v1616, 1
      %v1775 = vpop.permute.xlu0 %1774
      %1776 = vrot.lane.b32.xlu0 %v1620, 1
      %v1777 = vpop.permute.xlu0 %1776
      %1778 = vrot.lane.b32.xlu0 %v1624, 1
      %v1779 = vpop.permute.xlu0 %1778
      %1780 = vrot.lane.b32.xlu0 %v1628, 1
      %v1781 = vpop.permute.xlu0 %1780
      %1782 = vrot.lane.b32.xlu0 %v1617, 1
      %v1783 = vpop.permute.xlu0 %1782
      %1784 = vrot.lane.b32.xlu0 %v1621, 1
      %v1785 = vpop.permute.xlu0 %1784
      %1786 = vrot.lane.b32.xlu0 %v1625, 1
      %v1787 = vpop.permute.xlu0 %1786
      %1788 = vrot.lane.b32.xlu0 %v1629, 1
      %v1789 = vpop.permute.xlu0 %1788
      %v1790 = vsel %vm508, %v1775, %v1783
      %v1791 = vsel %vm508, %v1777, %v1785
      %v1792 = vsel %vm508, %v1779, %v1787
      %v1793 = vsel %vm508, %v1781, %v1789
      %v1794 = vsel %vm508, %v1767, %v1775
      %v1795 = vsel %vm508, %v1769, %v1777
      %v1796 = vsel %vm508, %v1771, %v1779
      %v1797 = vsel %vm508, %v1773, %v1781
      %v1798 = vsel %vm508, %v1759, %v1767
      %v1799 = vsel %vm508, %v1761, %v1769
      %v1800 = vsel %vm508, %v1763, %v1771
      %v1801 = vsel %vm508, %v1765, %v1773
      %v1802 = vsel %vm508, %v1783, %v1759
      %v1803 = vsel %vm508, %v1785, %v1761
      %v1804 = vsel %vm508, %v1787, %v1763
      %v1805 = vsel %vm508, %v1789, %v1765
      %v1806 = vpack.c.bf16 %v1803, %v1802
      %v1807 = vpack.c.bf16 %v1799, %v1798
      %v1808 = vpack.c.bf16 %v1795, %v1794
      %v1809 = vpack.c.bf16 %v1791, %v1790
      %v1810 = vpack.c.bf16 %v1805, %v1804
      %v1811 = vpack.c.bf16 %v1801, %v1800
      %v1812 = vpack.c.bf16 %v1797, %v1796
      %v1813 = vpack.c.bf16 %v1793, %v1792
      %1814 = vst [vmem:[#allocation2 + $0x80] sm:$0xff] %v1806
      %1815 = vst [vmem:[#allocation2 + $0x88] sm:$0xff] %v1807
      %1816 = vst [vmem:[#allocation2 + $0x90] sm:$0xff] %v1808
      %1817 = vst [vmem:[#allocation2 + $0x98] sm:$0xff] %v1809
      %1818 = vst [vmem:[#allocation2 + $0xa0] sm:$0xff] %v1810
      %1819 = vst [vmem:[#allocation2 + $0xa8] sm:$0xff] %v1811
      %1820 = vst [vmem:[#allocation2 + $0xb0] sm:$0xff] %v1812
      %1821 = vst [vmem:[#allocation2 + $0xb8] sm:$0xff] %v1813
      %v1822 = vpack.c.bf16 %v1618, %v1614
      %v1823 = vpack.c.bf16 %v1619, %v1615
      %v1824 = vpack.c.bf16 %v1620, %v1616
      %v1825 = vpack.c.bf16 %v1621, %v1617
      %v1826 = vpack.c.bf16 %v1626, %v1622
      %v1827 = vpack.c.bf16 %v1627, %v1623
      %v1828 = vpack.c.bf16 %v1628, %v1624
      %v1829 = vpack.c.bf16 %v1629, %v1625
      %1830 = vst [vmem:[#allocation2 + $0xc0] sm:$0xff] %v1822
      %1831 = vst [vmem:[#allocation2 + $0xc8] sm:$0xff] %v1823
      %1832 = vst [vmem:[#allocation2 + $0xd0] sm:$0xff] %v1824
      %1833 = vst [vmem:[#allocation2 + $0xd8] sm:$0xff] %v1825
      %1834 = vst [vmem:[#allocation2 + $0xe0] sm:$0xff] %v1826
      %1835 = vst [vmem:[#allocation2 + $0xe8] sm:$0xff] %v1827
      %1836 = vst [vmem:[#allocation2 + $0xf0] sm:$0xff] %v1828
      %1837 = vst [vmem:[#allocation2 + $0xf8] sm:$0xff] %v1829
      %1838 = vrot.lane.b32.xlu0 %v1614, 127
      %v1839 = vpop.permute.xlu0 %1838
      %1840 = vrot.lane.b32.xlu0 %v1618, 127
      %v1841 = vpop.permute.xlu0 %1840
      %1842 = vrot.lane.b32.xlu0 %v1622, 127
      %v1843 = vpop.permute.xlu0 %1842
      %1844 = vrot.lane.b32.xlu0 %v1626, 127
      %v1845 = vpop.permute.xlu0 %1844
      %1846 = vrot.lane.b32.xlu0 %v1615, 127
      %v1847 = vpop.permute.xlu0 %1846
      %1848 = vrot.lane.b32.xlu0 %v1619, 127
      %v1849 = vpop.permute.xlu0 %1848
      %1850 = vrot.lane.b32.xlu0 %v1623, 127
      %v1851 = vpop.permute.xlu0 %1850
      %1852 = vrot.lane.b32.xlu0 %v1627, 127
      %v1853 = vpop.permute.xlu0 %1852
      %1854 = vrot.lane.b32.xlu0 %v1616, 127
      %v1855 = vpop.permute.xlu0 %1854
      %1856 = vrot.lane.b32.xlu0 %v1620, 127
      %v1857 = vpop.permute.xlu0 %1856
      %1858 = vrot.lane.b32.xlu0 %v1624, 127
      %v1859 = vpop.permute.xlu0 %1858
      %1860 = vrot.lane.b32.xlu0 %v1628, 127
      %v1861 = vpop.permute.xlu0 %1860
      %1862 = vrot.lane.b32.xlu0 %v1617, 127
      %v1863 = vpop.permute.xlu0 %1862
      %1864 = vrot.lane.b32.xlu0 %v1621, 127
      %v1865 = vpop.permute.xlu0 %1864
      %1866 = vrot.lane.b32.xlu0 %v1625, 127
      %v1867 = vpop.permute.xlu0 %1866
      %1868 = vrot.lane.b32.xlu0 %v1629, 127
      %v1869 = vpop.permute.xlu0 %1868
      %v1870 = vsel %vm549, %v1855, %v1863
      %v1871 = vsel %vm549, %v1857, %v1865
      %v1872 = vsel %vm549, %v1859, %v1867
      %v1873 = vsel %vm549, %v1861, %v1869
      %v1874 = vsel %vm549, %v1847, %v1855
      %v1875 = vsel %vm549, %v1849, %v1857
      %v1876 = vsel %vm549, %v1851, %v1859
      %v1877 = vsel %vm549, %v1853, %v1861
      %v1878 = vsel %vm549, %v1839, %v1847
      %v1879 = vsel %vm549, %v1841, %v1849
      %v1880 = vsel %vm549, %v1843, %v1851
      %v1881 = vsel %vm549, %v1845, %v1853
      %v1882 = vsel %vm549, %v1863, %v1839
      %v1883 = vsel %vm549, %v1865, %v1841
      %v1884 = vsel %vm549, %v1867, %v1843
      %v1885 = vsel %vm549, %v1869, %v1845
      %v1886 = vpack.c.bf16 %v1879, %v1878
      %v1887 = vpack.c.bf16 %v1875, %v1874
      %v1888 = vpack.c.bf16 %v1871, %v1870
      %v1889 = vpack.c.bf16 %v1883, %v1882
      %v1890 = vpack.c.bf16 %v1881, %v1880
      %v1891 = vpack.c.bf16 %v1877, %v1876
      %v1892 = vpack.c.bf16 %v1873, %v1872
      %v1893 = vpack.c.bf16 %v1885, %v1884
      %1894 = vst [vmem:[#allocation2 + $0x100] sm:$0xff] %v1886
      %1895 = vst [vmem:[#allocation2 + $0x108] sm:$0xff] %v1887
      %1896 = vst [vmem:[#allocation2 + $0x110] sm:$0xff] %v1888
      %1897 = vst [vmem:[#allocation2 + $0x118] sm:$0xff] %v1889
      %1898 = vst [vmem:[#allocation2 + $0x120] sm:$0xff] %v1890
      %1899 = vst [vmem:[#allocation2 + $0x128] sm:$0xff] %v1891
      %1900 = vst [vmem:[#allocation2 + $0x130] sm:$0xff] %v1892
      %1901 = vst [vmem:[#allocation2 + $0x138] sm:$0xff] %v1893
      %1902 = vrot.lane.b32.xlu0 %v1614, 126
      %v1903 = vpop.permute.xlu0 %1902
      %1904 = vrot.lane.b32.xlu0 %v1618, 126
      %v1905 = vpop.permute.xlu0 %1904
      %1906 = vrot.lane.b32.xlu0 %v1622, 126
      %v1907 = vpop.permute.xlu0 %1906
      %1908 = vrot.lane.b32.xlu0 %v1626, 126
      %v1909 = vpop.permute.xlu0 %1908
      %1910 = vrot.lane.b32.xlu0 %v1615, 126
      %v1911 = vpop.permute.xlu0 %1910
      %1912 = vrot.lane.b32.xlu0 %v1619, 126
      %v1913 = vpop.permute.xlu0 %1912
      %1914 = vrot.lane.b32.xlu0 %v1623, 126
      %v1915 = vpop.permute.xlu0 %1914
      %1916 = vrot.lane.b32.xlu0 %v1627, 126
      %v1917 = vpop.permute.xlu0 %1916
      %1918 = vrot.lane.b32.xlu0 %v1616, 126
      %v1919 = vpop.permute.xlu0 %1918
      %1920 = vrot.lane.b32.xlu0 %v1620, 126
      %v1921 = vpop.permute.xlu0 %1920
      %1922 = vrot.lane.b32.xlu0 %v1624, 126
      %v1923 = vpop.permute.xlu0 %1922
      %1924 = vrot.lane.b32.xlu0 %v1628, 126
      %v1925 = vpop.permute.xlu0 %1924
      %1926 = vrot.lane.b32.xlu0 %v1617, 126
      %v1927 = vpop.permute.xlu0 %1926
      %1928 = vrot.lane.b32.xlu0 %v1621, 126
      %v1929 = vpop.permute.xlu0 %1928
      %1930 = vrot.lane.b32.xlu0 %v1625, 126
      %v1931 = vpop.permute.xlu0 %1930
      %1932 = vrot.lane.b32.xlu0 %v1629, 126
      %v1933 = vpop.permute.xlu0 %1932
      %v1934 = vsel %vm582, %v1919, %v1927
      %v1935 = vsel %vm582, %v1921, %v1929
      %v1936 = vsel %vm582, %v1923, %v1931
      %v1937 = vsel %vm582, %v1925, %v1933
      %v1938 = vsel %vm582, %v1911, %v1919
      %v1939 = vsel %vm582, %v1913, %v1921
      %v1940 = vsel %vm582, %v1915, %v1923
      %v1941 = vsel %vm582, %v1917, %v1925
      %v1942 = vsel %vm582, %v1903, %v1911
      %v1943 = vsel %vm582, %v1905, %v1913
      %v1944 = vsel %vm582, %v1907, %v1915
      %v1945 = vsel %vm582, %v1909, %v1917
      %v1946 = vsel %vm582, %v1927, %v1903
      %v1947 = vsel %vm582, %v1929, %v1905
      %v1948 = vsel %vm582, %v1931, %v1907
      %v1949 = vsel %vm582, %v1933, %v1909
      %v1950 = vpack.c.bf16 %v1943, %v1942
      %v1951 = vpack.c.bf16 %v1939, %v1938
      %v1952 = vpack.c.bf16 %v1935, %v1934
      %v1953 = vpack.c.bf16 %v1947, %v1946
      %v1954 = vpack.c.bf16 %v1945, %v1944
      %v1955 = vpack.c.bf16 %v1941, %v1940
      %v1956 = vpack.c.bf16 %v1937, %v1936
      %v1957 = vpack.c.bf16 %v1949, %v1948
      %1958 = vst [vmem:[#allocation2 + $0x140] sm:$0xff] %v1950
      %1959 = vst [vmem:[#allocation2 + $0x148] sm:$0xff] %v1951
      %1960 = vst [vmem:[#allocation2 + $0x150] sm:$0xff] %v1952
      %1961 = vst [vmem:[#allocation2 + $0x158] sm:$0xff] %v1953
      %1962 = vst [vmem:[#allocation2 + $0x160] sm:$0xff] %v1954
      %1963 = vst [vmem:[#allocation2 + $0x168] sm:$0xff] %v1955
      %1964 = vst [vmem:[#allocation2 + $0x170] sm:$0xff] %v1956
      %1965 = vst [vmem:[#allocation2 + $0x178] sm:$0xff] %v1957
      %1966 = vrot.lane.b32.xlu0 %v1614, 125
      %v1967 = vpop.permute.xlu0 %1966
      %1968 = vrot.lane.b32.xlu0 %v1618, 125
      %v1969 = vpop.permute.xlu0 %1968
      %1970 = vrot.lane.b32.xlu0 %v1622, 125
      %v1971 = vpop.permute.xlu0 %1970
      %1972 = vrot.lane.b32.xlu0 %v1626, 125
      %v1973 = vpop.permute.xlu0 %1972
      %1974 = vrot.lane.b32.xlu0 %v1615, 125
      %v1975 = vpop.permute.xlu0 %1974
      %1976 = vrot.lane.b32.xlu0 %v1619, 125
      %v1977 = vpop.permute.xlu0 %1976
      %1978 = vrot.lane.b32.xlu0 %v1623, 125
      %v1979 = vpop.permute.xlu0 %1978
      %1980 = vrot.lane.b32.xlu0 %v1627, 125
      %v1981 = vpop.permute.xlu0 %1980
      %1982 = vrot.lane.b32.xlu0 %v1616, 125
      %v1983 = vpop.permute.xlu0 %1982
      %1984 = vrot.lane.b32.xlu0 %v1620, 125
      %v1985 = vpop.permute.xlu0 %1984
      %1986 = vrot.lane.b32.xlu0 %v1624, 125
      %v1987 = vpop.permute.xlu0 %1986
      %1988 = vrot.lane.b32.xlu0 %v1628, 125
      %v1989 = vpop.permute.xlu0 %1988
      %1990 = vrot.lane.b32.xlu0 %v1617, 125
      %v1991 = vpop.permute.xlu0 %1990
      %1992 = vrot.lane.b32.xlu0 %v1621, 125
      %v1993 = vpop.permute.xlu0 %1992
      %1994 = vrot.lane.b32.xlu0 %v1625, 125
      %v1995 = vpop.permute.xlu0 %1994
      %1996 = vrot.lane.b32.xlu0 %v1629, 125
      %v1997 = vpop.permute.xlu0 %1996
      %v1998 = vsel %vm615, %v1983, %v1991
      %v1999 = vsel %vm615, %v1985, %v1993
      %v2000 = vsel %vm615, %v1987, %v1995
      %v2001 = vsel %vm615, %v1989, %v1997
      %v2002 = vsel %vm615, %v1975, %v1983
      %v2003 = vsel %vm615, %v1977, %v1985
      %v2004 = vsel %vm615, %v1979, %v1987
      %v2005 = vsel %vm615, %v1981, %v1989
      %v2006 = vsel %vm615, %v1967, %v1975
      %v2007 = vsel %vm615, %v1969, %v1977
      %v2008 = vsel %vm615, %v1971, %v1979
      %v2009 = vsel %vm615, %v1973, %v1981
      %v2010 = vsel %vm615, %v1991, %v1967
      %v2011 = vsel %vm615, %v1993, %v1969
      %v2012 = vsel %vm615, %v1995, %v1971
      %v2013 = vsel %vm615, %v1997, %v1973
      %v2014 = vpack.c.bf16 %v2007, %v2006
      %v2015 = vpack.c.bf16 %v2003, %v2002
      %v2016 = vpack.c.bf16 %v1999, %v1998
      %v2017 = vpack.c.bf16 %v2011, %v2010
      %v2018 = vpack.c.bf16 %v2009, %v2008
      %v2019 = vpack.c.bf16 %v2005, %v2004
      %v2020 = vpack.c.bf16 %v2001, %v2000
      %v2021 = vpack.c.bf16 %v2013, %v2012
      %2022 = vst [vmem:[#allocation2 + $0x180] sm:$0xff] %v2014
      %2023 = vst [vmem:[#allocation2 + $0x188] sm:$0xff] %v2015
      %2024 = vst [vmem:[#allocation2 + $0x190] sm:$0xff] %v2016
      %2025 = vst [vmem:[#allocation2 + $0x198] sm:$0xff] %v2017
      %2026 = vst [vmem:[#allocation2 + $0x1a0] sm:$0xff] %v2018
      %2027 = vst [vmem:[#allocation2 + $0x1a8] sm:$0xff] %v2019
      %2028 = vst [vmem:[#allocation2 + $0x1b0] sm:$0xff] %v2020
      %2029 = vst [vmem:[#allocation2 + $0x1b8] sm:$0xff] %v2021
      %v2030 = vld [vmem:[%s4] sm:$0xff]
      %v2031 = vld [vmem:[%s4 + $0x8] sm:$0xff]
      %v2032 = vld [vmem:[%s4 + $0x10] sm:$0xff]
      %v2033 = vld [vmem:[%s4 + $0x18] sm:$0xff]
      %v2034 = vld [vmem:[%s4 + $0x20] sm:$0xff]
      %v2035 = vld [vmem:[%s4 + $0x28] sm:$0xff]
      %v2036 = vld [vmem:[%s4 + $0x30] sm:$0xff]
      %v2037 = vld [vmem:[%s4 + $0x38] sm:$0xff]
      %v2038 = vld [vmem:[%s4 + $0x40] sm:$0xff]
      %v2039 = vld [vmem:[%s4 + $0x48] sm:$0xff]
      %v2040 = vld [vmem:[%s4 + $0x50] sm:$0xff]
      %v2041 = vld [vmem:[%s4 + $0x58] sm:$0xff]
      %v2042 = vld [vmem:[%s4 + $0x60] sm:$0xff]
      %v2043 = vld [vmem:[%s4 + $0x68] sm:$0xff]
      %v2044 = vld [vmem:[%s4 + $0x70] sm:$0xff]
      %v2045 = vld [vmem:[%s4 + $0x78] sm:$0xff]
      %v2046 = vld [vmem:[%s4 + $0x80] sm:$0xff]
      %v2047 = vld [vmem:[%s4 + $0x88] sm:$0xff]
      %v2048 = vld [vmem:[%s4 + $0x90] sm:$0xff]
      %v2049 = vld [vmem:[%s4 + $0x98] sm:$0xff]
      %v2050 = vld [vmem:[%s4 + $0xa0] sm:$0xff]
      %v2051 = vld [vmem:[%s4 + $0xa8] sm:$0xff]
      %v2052 = vld [vmem:[%s4 + $0xb0] sm:$0xff]
      %v2053 = vld [vmem:[%s4 + $0xb8] sm:$0xff]
      %v2054 = vld [vmem:[%s4 + $0xc0] sm:$0xff]
      %v2055 = vld [vmem:[%s4 + $0xc8] sm:$0xff]
      %v2056 = vld [vmem:[%s4 + $0xd0] sm:$0xff]
      %v2057 = vld [vmem:[%s4 + $0xd8] sm:$0xff]
      %v2058 = vld [vmem:[%s4 + $0xe0] sm:$0xff]
      %v2059 = vld [vmem:[%s4 + $0xe8] sm:$0xff]
      %v2060 = vld [vmem:[%s4 + $0xf0] sm:$0xff]
      %v2061 = vld [vmem:[%s4 + $0xf8] sm:$0xff]
      %v2062 = vld [vmem:[%s4 + $0x100] sm:$0xff]
      %v2063 = vld [vmem:[%s4 + $0x108] sm:$0xff]
      %v2064 = vld [vmem:[%s4 + $0x110] sm:$0xff]
      %v2065 = vld [vmem:[%s4 + $0x118] sm:$0xff]
      %v2066 = vld [vmem:[%s4 + $0x120] sm:$0xff]
      %v2067 = vld [vmem:[%s4 + $0x128] sm:$0xff]
      %v2068 = vld [vmem:[%s4 + $0x130] sm:$0xff]
      %v2069 = vld [vmem:[%s4 + $0x138] sm:$0xff]
      %v2070 = vld [vmem:[%s4 + $0x140] sm:$0xff]
      %v2071 = vld [vmem:[%s4 + $0x148] sm:$0xff]
      %v2072 = vld [vmem:[%s4 + $0x150] sm:$0xff]
      %v2073 = vld [vmem:[%s4 + $0x158] sm:$0xff]
      %v2074 = vld [vmem:[%s4 + $0x160] sm:$0xff]
      %v2075 = vld [vmem:[%s4 + $0x168] sm:$0xff]
      %v2076 = vld [vmem:[%s4 + $0x170] sm:$0xff]
      %v2077 = vld [vmem:[%s4 + $0x178] sm:$0xff]
      %v2078 = vld [vmem:[%s4 + $0x180] sm:$0xff]
      %v2079 = vld [vmem:[%s4 + $0x188] sm:$0xff]
      %v2080 = vld [vmem:[%s4 + $0x190] sm:$0xff]
      %v2081 = vld [vmem:[%s4 + $0x198] sm:$0xff]
      %v2082 = vld [vmem:[%s4 + $0x1a0] sm:$0xff]
      %v2083 = vld [vmem:[%s4 + $0x1a8] sm:$0xff]
      %v2084 = vld [vmem:[%s4 + $0x1b0] sm:$0xff]
      %v2085 = vld [vmem:[%s4 + $0x1b8] sm:$0xff]
      %v2086 = vld [vmem:[#allocation2] sm:$0xff]
      %v2087 = vld [vmem:[#allocation2 + $0x8] sm:$0xff]
      %v2088 = vld [vmem:[#allocation2 + $0x10] sm:$0xff]
      %v2089 = vld [vmem:[#allocation2 + $0x18] sm:$0xff]
      %v2090 = vld [vmem:[#allocation2 + $0x20] sm:$0xff]
      %v2091 = vld [vmem:[#allocation2 + $0x28] sm:$0xff]
      %v2092 = vld [vmem:[#allocation2 + $0x30] sm:$0xff]
      %v2093 = vld [vmem:[#allocation2 + $0x38] sm:$0xff]
      %v2094 = vld [vmem:[#allocation2 + $0x40] sm:$0xff]
      %v2095 = vld [vmem:[#allocation2 + $0x48] sm:$0xff]
      %v2096 = vld [vmem:[#allocation2 + $0x50] sm:$0xff]
      %v2097 = vld [vmem:[#allocation2 + $0x58] sm:$0xff]
      %v2098 = vld [vmem:[#allocation2 + $0x60] sm:$0xff]
      %v2099 = vld [vmem:[#allocation2 + $0x68] sm:$0xff]
      %v2100 = vld [vmem:[#allocation2 + $0x70] sm:$0xff]
      %v2101 = vld [vmem:[#allocation2 + $0x78] sm:$0xff]
      %v2102 = vld [vmem:[#allocation2 + $0x80] sm:$0xff]
      %v2103 = vld [vmem:[#allocation2 + $0x88] sm:$0xff]
      %v2104 = vld [vmem:[#allocation2 + $0x90] sm:$0xff]
      %v2105 = vld [vmem:[#allocation2 + $0x98] sm:$0xff]
      %v2106 = vld [vmem:[#allocation2 + $0xa0] sm:$0xff]
      %v2107 = vld [vmem:[#allocation2 + $0xa8] sm:$0xff]
      %v2108 = vld [vmem:[#allocation2 + $0xb0] sm:$0xff]
      %v2109 = vld [vmem:[#allocation2 + $0xb8] sm:$0xff]
      %v2110 = vld [vmem:[#allocation2 + $0xc0] sm:$0xff]
      %v2111 = vld [vmem:[#allocation2 + $0xc8] sm:$0xff]
      %v2112 = vld [vmem:[#allocation2 + $0xd0] sm:$0xff]
      %v2113 = vld [vmem:[#allocation2 + $0xd8] sm:$0xff]
      %v2114 = vld [vmem:[#allocation2 + $0xe0] sm:$0xff]
      %v2115 = vld [vmem:[#allocation2 + $0xe8] sm:$0xff]
      %v2116 = vld [vmem:[#allocation2 + $0xf0] sm:$0xff]
      %v2117 = vld [vmem:[#allocation2 + $0xf8] sm:$0xff]
      %v2118 = vld [vmem:[#allocation2 + $0x100] sm:$0xff]
      %v2119 = vld [vmem:[#allocation2 + $0x108] sm:$0xff]
      %v2120 = vld [vmem:[#allocation2 + $0x110] sm:$0xff]
      %v2121 = vld [vmem:[#allocation2 + $0x118] sm:$0xff]
      %v2122 = vld [vmem:[#allocation2 + $0x120] sm:$0xff]
      %v2123 = vld [vmem:[#allocation2 + $0x128] sm:$0xff]
      %v2124 = vld [vmem:[#allocation2 + $0x130] sm:$0xff]
      %v2125 = vld [vmem:[#allocation2 + $0x138] sm:$0xff]
      %v2126 = vld [vmem:[#allocation2 + $0x140] sm:$0xff]
      %v2127 = vld [vmem:[#allocation2 + $0x148] sm:$0xff]
      %v2128 = vld [vmem:[#allocation2 + $0x150] sm:$0xff]
      %v2129 = vld [vmem:[#allocation2 + $0x158] sm:$0xff]
      %v2130 = vld [vmem:[#allocation2 + $0x160] sm:$0xff]
      %v2131 = vld [vmem:[#allocation2 + $0x168] sm:$0xff]
      %v2132 = vld [vmem:[#allocation2 + $0x170] sm:$0xff]
      %v2133 = vld [vmem:[#allocation2 + $0x178] sm:$0xff]
      %v2134 = vld [vmem:[#allocation2 + $0x180] sm:$0xff]
      %v2135 = vld [vmem:[#allocation2 + $0x188] sm:$0xff]
      %v2136 = vld [vmem:[#allocation2 + $0x190] sm:$0xff]
      %v2137 = vld [vmem:[#allocation2 + $0x198] sm:$0xff]
      %v2138 = vld [vmem:[#allocation2 + $0x1a0] sm:$0xff]
      %v2139 = vld [vmem:[#allocation2 + $0x1a8] sm:$0xff]
      %v2140 = vld [vmem:[#allocation2 + $0x1b0] sm:$0xff]
      %v2141 = vld [vmem:[#allocation2 + $0x1b8] sm:$0xff]
      %v2198 = vunpack.c.l.b16 %v2030
      %v2199 = vunpack.c.h.b16 %v2030
      %v2200 = vunpack.c.l.b16 %v2031
      %v2201 = vunpack.c.h.b16 %v2031
      %v2202 = vunpack.c.l.b16 %v2032
      %v2203 = vunpack.c.h.b16 %v2032
      %v2204 = vunpack.c.l.b16 %v2033
      %v2205 = vunpack.c.h.b16 %v2033
      %v2206 = vunpack.c.l.b16 %v2034
      %v2207 = vunpack.c.h.b16 %v2034
      %v2208 = vunpack.c.l.b16 %v2035
      %v2209 = vunpack.c.h.b16 %v2035
      %v2210 = vunpack.c.l.b16 %v2036
      %v2211 = vunpack.c.h.b16 %v2036
      %v2212 = vunpack.c.l.b16 %v2037
      %v2213 = vunpack.c.h.b16 %v2037
      %v2214 = vunpack.c.l.b16 %v2038
      %v2215 = vunpack.c.h.b16 %v2038
      %v2216 = vunpack.c.l.b16 %v2039
      %v2217 = vunpack.c.h.b16 %v2039
      %v2218 = vunpack.c.l.b16 %v2040
      %v2219 = vunpack.c.h.b16 %v2040
      %v2220 = vunpack.c.l.b16 %v2041
      %v2221 = vunpack.c.h.b16 %v2041
      %v2222 = vunpack.c.l.b16 %v2042
      %v2223 = vunpack.c.h.b16 %v2042
      %v2224 = vunpack.c.l.b16 %v2043
      %v2225 = vunpack.c.h.b16 %v2043
      %v2226 = vunpack.c.l.b16 %v2044
      %v2227 = vunpack.c.h.b16 %v2044
      %v2228 = vunpack.c.l.b16 %v2045
      %v2229 = vunpack.c.h.b16 %v2045
      %v2230 = vunpack.c.l.b16 %v2046
      %v2231 = vunpack.c.h.b16 %v2046
      %v2232 = vunpack.c.l.b16 %v2047
      %v2233 = vunpack.c.h.b16 %v2047
      %v2234 = vunpack.c.l.b16 %v2048
      %v2235 = vunpack.c.h.b16 %v2048
      %v2236 = vunpack.c.l.b16 %v2049
      %v2237 = vunpack.c.h.b16 %v2049
      %v2238 = vunpack.c.l.b16 %v2050
      %v2239 = vunpack.c.h.b16 %v2050
      %v2240 = vunpack.c.l.b16 %v2051
      %v2241 = vunpack.c.h.b16 %v2051
      %v2242 = vunpack.c.l.b16 %v2052
      %v2243 = vunpack.c.h.b16 %v2052
      %v2244 = vunpack.c.l.b16 %v2053
      %v2245 = vunpack.c.h.b16 %v2053
      %v2246 = vunpack.c.l.b16 %v2054
      %v2247 = vunpack.c.h.b16 %v2054
      %v2248 = vunpack.c.l.b16 %v2055
      %v2249 = vunpack.c.h.b16 %v2055
      %v2250 = vunpack.c.l.b16 %v2056
      %v2251 = vunpack.c.h.b16 %v2056
      %v2252 = vunpack.c.l.b16 %v2057
      %v2253 = vunpack.c.h.b16 %v2057
      %v2254 = vunpack.c.l.b16 %v2058
      %v2255 = vunpack.c.h.b16 %v2058
      %v2256 = vunpack.c.l.b16 %v2059
      %v2257 = vunpack.c.h.b16 %v2059
      %v2258 = vunpack.c.l.b16 %v2060
      %v2259 = vunpack.c.h.b16 %v2060
      %v2260 = vunpack.c.l.b16 %v2061
      %v2261 = vunpack.c.h.b16 %v2061
      %v2262 = vunpack.c.l.b16 %v2062
      %v2263 = vunpack.c.h.b16 %v2062
      %v2264 = vunpack.c.l.b16 %v2063
      %v2265 = vunpack.c.h.b16 %v2063
      %v2266 = vunpack.c.l.b16 %v2064
      %v2267 = vunpack.c.h.b16 %v2064
      %v2268 = vunpack.c.l.b16 %v2065
      %v2269 = vunpack.c.h.b16 %v2065
      %v2270 = vunpack.c.l.b16 %v2066
      %v2271 = vunpack.c.h.b16 %v2066
      %v2272 = vunpack.c.l.b16 %v2067
      %v2273 = vunpack.c.h.b16 %v2067
      %v2274 = vunpack.c.l.b16 %v2068
      %v2275 = vunpack.c.h.b16 %v2068
      %v2276 = vunpack.c.l.b16 %v2069
      %v2277 = vunpack.c.h.b16 %v2069
      %v2278 = vunpack.c.l.b16 %v2070
      %v2279 = vunpack.c.h.b16 %v2070
      %v2280 = vunpack.c.l.b16 %v2071
      %v2281 = vunpack.c.h.b16 %v2071
      %v2282 = vunpack.c.l.b16 %v2072
      %v2283 = vunpack.c.h.b16 %v2072
      %v2284 = vunpack.c.l.b16 %v2073
      %v2285 = vunpack.c.h.b16 %v2073
      %v2286 = vunpack.c.l.b16 %v2074
      %v2287 = vunpack.c.h.b16 %v2074
      %v2288 = vunpack.c.l.b16 %v2075
      %v2289 = vunpack.c.h.b16 %v2075
      %v2290 = vunpack.c.l.b16 %v2076
      %v2291 = vunpack.c.h.b16 %v2076
      %v2292 = vunpack.c.l.b16 %v2077
      %v2293 = vunpack.c.h.b16 %v2077
      %v2294 = vunpack.c.l.b16 %v2078
      %v2295 = vunpack.c.h.b16 %v2078
      %v2296 = vunpack.c.l.b16 %v2079
      %v2297 = vunpack.c.h.b16 %v2079
      %v2298 = vunpack.c.l.b16 %v2080
      %v2299 = vunpack.c.h.b16 %v2080
      %v2300 = vunpack.c.l.b16 %v2081
      %v2301 = vunpack.c.h.b16 %v2081
      %v2302 = vunpack.c.l.b16 %v2082
      %v2303 = vunpack.c.h.b16 %v2082
      %v2304 = vunpack.c.l.b16 %v2083
      %v2305 = vunpack.c.h.b16 %v2083
      %v2306 = vunpack.c.l.b16 %v2084
      %v2307 = vunpack.c.h.b16 %v2084
      %v2308 = vunpack.c.l.b16 %v2085
      %v2309 = vunpack.c.h.b16 %v2085
      %v2310 = vpack.c.b16 %v2200, %v2198
      %v2311 = vpack.c.b16 %v2201, %v2199
      %v2312 = vpack.c.b16 %v2204, %v2202
      %v2313 = vpack.c.b16 %v2205, %v2203
      %v2314 = vpack.c.b16 %v2208, %v2206
      %v2315 = vpack.c.b16 %v2209, %v2207
      %v2316 = vpack.c.b16 %v2212, %v2210
      %v2317 = vpack.c.b16 %v2213, %v2211
      %v2318 = vpack.c.b16 %v2216, %v2214
      %v2319 = vpack.c.b16 %v2217, %v2215
      %v2320 = vpack.c.b16 %v2220, %v2218
      %v2321 = vpack.c.b16 %v2221, %v2219
      %v2322 = vpack.c.b16 %v2224, %v2222
      %v2323 = vpack.c.b16 %v2225, %v2223
      %v2324 = vpack.c.b16 %v2228, %v2226
      %v2325 = vpack.c.b16 %v2229, %v2227
      %v2326 = vpack.c.b16 %v2232, %v2230
      %v2327 = vpack.c.b16 %v2233, %v2231
      %v2328 = vpack.c.b16 %v2236, %v2234
      %v2329 = vpack.c.b16 %v2237, %v2235
      %v2330 = vpack.c.b16 %v2240, %v2238
      %v2331 = vpack.c.b16 %v2241, %v2239
      %v2332 = vpack.c.b16 %v2244, %v2242
      %v2333 = vpack.c.b16 %v2245, %v2243
      %v2334 = vpack.c.b16 %v2248, %v2246
      %v2335 = vpack.c.b16 %v2249, %v2247
      %v2336 = vpack.c.b16 %v2252, %v2250
      %v2337 = vpack.c.b16 %v2253, %v2251
      %v2338 = vpack.c.b16 %v2256, %v2254
      %v2339 = vpack.c.b16 %v2257, %v2255
      %v2340 = vpack.c.b16 %v2260, %v2258
      %v2341 = vpack.c.b16 %v2261, %v2259
      %v2342 = vpack.c.b16 %v2264, %v2262
      %v2343 = vpack.c.b16 %v2265, %v2263
      %v2344 = vpack.c.b16 %v2268, %v2266
      %v2345 = vpack.c.b16 %v2269, %v2267
      %v2346 = vpack.c.b16 %v2272, %v2270
      %v2347 = vpack.c.b16 %v2273, %v2271
      %v2348 = vpack.c.b16 %v2276, %v2274
      %v2349 = vpack.c.b16 %v2277, %v2275
      %v2350 = vpack.c.b16 %v2280, %v2278
      %v2351 = vpack.c.b16 %v2281, %v2279
      %v2352 = vpack.c.b16 %v2284, %v2282
      %v2353 = vpack.c.b16 %v2285, %v2283
      %v2354 = vpack.c.b16 %v2288, %v2286
      %v2355 = vpack.c.b16 %v2289, %v2287
      %v2356 = vpack.c.b16 %v2292, %v2290
      %v2357 = vpack.c.b16 %v2293, %v2291
      %v2358 = vpack.c.b16 %v2296, %v2294
      %v2359 = vpack.c.b16 %v2297, %v2295
      %v2360 = vpack.c.b16 %v2300, %v2298
      %v2361 = vpack.c.b16 %v2301, %v2299
      %v2362 = vpack.c.b16 %v2304, %v2302
      %v2363 = vpack.c.b16 %v2305, %v2303
      %v2364 = vpack.c.b16 %v2308, %v2306
      %v2365 = vpack.c.b16 %v2309, %v2307
      %vm2394 = vcmask 785408
      %v2396 = vsel %vm2394, %v2311, 0
      %v2399 = vsel %vm2394, %v2313, 0
      %v2402 = vsel %vm2394, %v2315, 0
      %v2405 = vsel %vm2394, %v2317, 0
      %v2408 = vsel %vm2394, %v2319, 0
      %v2411 = vsel %vm2394, %v2321, 0
      %v2414 = vsel %vm2394, %v2323, 0
      %v2417 = vsel %vm2394, %v2325, 0
      %v2420 = vsel %vm2394, %v2327, 0
      %v2423 = vsel %vm2394, %v2329, 0
      %v2426 = vsel %vm2394, %v2331, 0
      %v2429 = vsel %vm2394, %v2333, 0
      %v2432 = vsel %vm2394, %v2335, 0
      %v2435 = vsel %vm2394, %v2337, 0
      %v2438 = vsel %vm2394, %v2339, 0
      %v2441 = vsel %vm2394, %v2341, 0
      %v2444 = vsel %vm2394, %v2343, 0
      %v2447 = vsel %vm2394, %v2345, 0
      %v2450 = vsel %vm2394, %v2347, 0
      %v2453 = vsel %vm2394, %v2349, 0
      %v2456 = vsel %vm2394, %v2351, 0
      %v2459 = vsel %vm2394, %v2353, 0
      %v2462 = vsel %vm2394, %v2355, 0
      %v2465 = vsel %vm2394, %v2357, 0
      %v2468 = vsel %vm2394, %v2359, 0
      %v2471 = vsel %vm2394, %v2361, 0
      %v2474 = vsel %vm2394, %v2363, 0
      %v2477 = vsel %vm2394, %v2365, 0
      %2479 = vmatprep.subr.bf16.mxu0 %v2087
      %2480 = vmatpush1.bf16.msra.mxu0 %v2086
      %2481 = vmatprep.subr.bf16.mxu0 %v2091
      %2482 = vmatpush1.bf16.msra.mxu0 %v2090
      %2483 = vmatprep.subr.bf16.mxu0 %v2095
      %2484 = vmatpush1.bf16.msra.mxu0 %v2094
      %2485 = vmatprep.subr.bf16.mxu0 %v2099
      %2486 = vmatpush1.bf16.msra.mxu0 %v2098
      %2487 = vmatprep.subr.bf16.mxu0 %v2103
      %2488 = vmatpush1.bf16.msra.mxu0 %v2102
      %2489 = vmatprep.subr.bf16.mxu0 %v2107
      %2490 = vmatpush1.bf16.msra.mxu0 %v2106
      %2491 = vmatprep.subr.bf16.mxu0 %v2111
      %2492 = vmatpush1.bf16.msra.mxu0 %v2110
      %2493 = vmatprep.subr.bf16.mxu0 %v2115
      %2494 = vmatpush1.bf16.msra.mxu0 %v2114
      %2495 = vmatprep.subr.bf16.mxu0 %v2119
      %2496 = vmatpush1.bf16.msra.mxu0 %v2118
      %2497 = vmatprep.subr.bf16.mxu0 %v2123
      %2498 = vmatpush1.bf16.msra.mxu0 %v2122
      %2499 = vmatprep.subr.bf16.mxu0 %v2127
      %2500 = vmatpush1.bf16.msra.mxu0 %v2126
      %2501 = vmatprep.subr.bf16.mxu0 %v2131
      %2502 = vmatpush1.bf16.msra.mxu0 %v2130
      %2503 = vmatprep.subr.bf16.mxu0 %v2135
      %2504 = vmatpush1.bf16.msra.mxu0 %v2134
      %2505 = vmatprep.subr.bf16.mxu0 %v2139
      %2506 = vmatpush1.bf16.msra.mxu0 %v2138
      %2507 = vmatprep.subr.bf16.mxu0 0
      %2508 = vmatpush1.bf16.msra.mxu0 0
      %2509 = vmatprep.subr.bf16.mxu0 0
      %2510 = vmatpush1.bf16.msra.mxu0 0
      %2511 = vmatprep.mubr.bf16.mxu0 %v2396
      %2512 = vmatmul.mubr.bf16.gmra.mrb[0].mxu0 %v2310
      %v2513 = vpop.f32.mrb[0].mxu0
      %v2514 = vadd.f32 0.0, %v2513
      %v2515 = vpop.f32.mrb[0].mxu0
      %v2516 = vadd.f32 0.0, %v2515
      %v2517 = vpop.f32.mrb[0].mxu0
      %v2518 = vadd.f32 0.0, %v2517
      %v2519 = vpop.f32.mrb[0].mxu0
      %v2520 = vadd.f32 0.0, %v2519
      %2521 = vmatprep.mubr.bf16.mxu0 %v2399
      %2522 = vmatmul.mubr.bf16.gmra.mrb[0].mxu0 %v2312
      %v2523 = vpop.f32.mrb[0].mxu0
      %v2524 = vadd.f32 0.0, %v2523
      %v2525 = vpop.f32.mrb[0].mxu0
      %v2526 = vadd.f32 0.0, %v2525
      %v2527 = vpop.f32.mrb[0].mxu0
      %v2528 = vadd.f32 0.0, %v2527
      %v2529 = vpop.f32.mrb[0].mxu0
      %v2530 = vadd.f32 0.0, %v2529
      %2531 = vmatprep.mubr.bf16.mxu0 %v2402
      %2532 = vmatmul.mubr.bf16.gmra.mrb[0].mxu0 %v2314
      %v2533 = vpop.f32.mrb[0].mxu0
      %v2534 = vadd.f32 0.0, %v2533
      %v2535 = vpop.f32.mrb[0].mxu0
      %v2536 = vadd.f32 0.0, %v2535
      %v2537 = vpop.f32.mrb[0].mxu0
      %v2538 = vadd.f32 0.0, %v2537
      %v2539 = vpop.f32.mrb[0].mxu0
      %v2540 = vadd.f32 0.0, %v2539
      %2541 = vmatprep.mubr.bf16.mxu0 %v2405
      %2542 = vmatmul.mubr.bf16.gmra.mrb[0].mxu0 %v2316
      %v2543 = vpop.f32.mrb[0].mxu0
      %v2544 = vadd.f32 0.0, %v2543
      %v2545 = vpop.f32.mrb[0].mxu0
      %v2546 = vadd.f32 0.0, %v2545
      %v2547 = vpop.f32.mrb[0].mxu0
      %v2548 = vadd.f32 0.0, %v2547
      %v2549 = vpop.f32.mrb[0].mxu0
      %v2550 = vadd.f32 0.0, %v2549
      %2551 = vmatprep.mubr.bf16.mxu0 %v2408
      %2552 = vmatmul.mubr.bf16.gmra.mrb[0].mxu0 %v2318
      %v2553 = vpop.f32.mrb[0].mxu0
      %v2554 = vadd.f32 0.0, %v2553
      %v2555 = vpop.f32.mrb[0].mxu0
      %v2556 = vadd.f32 0.0, %v2555
      %v2557 = vpop.f32.mrb[0].mxu0
      %v2558 = vadd.f32 0.0, %v2557
      %v2559 = vpop.f32.mrb[0].mxu0
      %v2560 = vadd.f32 0.0, %v2559
      %2561 = vmatprep.mubr.bf16.mxu0 %v2411
      %2562 = vmatmul.mubr.bf16.gmra.mrb[0].mxu0 %v2320
      %v2563 = vpop.f32.mrb[0].mxu0
      %v2564 = vadd.f32 0.0, %v2563
      %v2565 = vpop.f32.mrb[0].mxu0
      %v2566 = vadd.f32 0.0, %v2565
      %v2567 = vpop.f32.mrb[0].mxu0
      %v2568 = vadd.f32 0.0, %v2567
      %v2569 = vpop.f32.mrb[0].mxu0
      %v2570 = vadd.f32 0.0, %v2569
      %2571 = vmatprep.mubr.bf16.mxu0 %v2414
      %2572 = vmatmul.mubr.bf16.gmra.mrb[0].mxu0 %v2322
      %v2573 = vpop.f32.mrb[0].mxu0
      %v2574 = vadd.f32 0.0, %v2573
      %v2575 = vpop.f32.mrb[0].mxu0
      %v2576 = vadd.f32 0.0, %v2575
      %v2577 = vpop.f32.mrb[0].mxu0
      %v2578 = vadd.f32 0.0, %v2577
      %v2579 = vpop.f32.mrb[0].mxu0
      %v2580 = vadd.f32 0.0, %v2579
      %2581 = vmatprep.mubr.bf16.mxu0 %v2417
      %2582 = vmatmul.mubr.bf16.gmra.mrb[0].mxu0 %v2324
      %v2583 = vpop.f32.mrb[0].mxu0
      %v2584 = vadd.f32 0.0, %v2583
      %v2585 = vpop.f32.mrb[0].mxu0
      %v2586 = vadd.f32 0.0, %v2585
      %v2587 = vpop.f32.mrb[0].mxu0
      %v2588 = vadd.f32 0.0, %v2587
      %v2589 = vpop.f32.mrb[0].mxu0
      %v2590 = vadd.f32 0.0, %v2589
      %2591 = vmatprep.mubr.bf16.mxu0 %v2420
      %2592 = vmatmul.mubr.bf16.gmra.mrb[0].mxu0 %v2326
      %v2593 = vpop.f32.mrb[0].mxu0
      %v2594 = vadd.f32 0.0, %v2593
      %v2595 = vpop.f32.mrb[0].mxu0
      %v2596 = vadd.f32 0.0, %v2595
      %v2597 = vpop.f32.mrb[0].mxu0
      %v2598 = vadd.f32 0.0, %v2597
      %v2599 = vpop.f32.mrb[0].mxu0
      %v2600 = vadd.f32 0.0, %v2599
      %2601 = vmatprep.mubr.bf16.mxu0 %v2423
      %2602 = vmatmul.mubr.bf16.gmra.mrb[0].mxu0 %v2328
      %v2603 = vpop.f32.mrb[0].mxu0
      %v2604 = vadd.f32 0.0, %v2603
      %v2605 = vpop.f32.mrb[0].mxu0
      %v2606 = vadd.f32 0.0, %v2605
      %v2607 = vpop.f32.mrb[0].mxu0
      %v2608 = vadd.f32 0.0, %v2607
      %v2609 = vpop.f32.mrb[0].mxu0
      %v2610 = vadd.f32 0.0, %v2609
      %2611 = vmatprep.mubr.bf16.mxu0 %v2426
      %2612 = vmatmul.mubr.bf16.gmra.mrb[0].mxu0 %v2330
      %v2613 = vpop.f32.mrb[0].mxu0
      %v2614 = vadd.f32 0.0, %v2613
      %v2615 = vpop.f32.mrb[0].mxu0
      %v2616 = vadd.f32 0.0, %v2615
      %v2617 = vpop.f32.mrb[0].mxu0
      %v2618 = vadd.f32 0.0, %v2617
      %v2619 = vpop.f32.mrb[0].mxu0
      %v2620 = vadd.f32 0.0, %v2619
      %2621 = vmatprep.mubr.bf16.mxu0 %v2429
      %2622 = vmatmul.mubr.bf16.gmra.mrb[0].mxu0 %v2332
      %v2623 = vpop.f32.mrb[0].mxu0
      %v2624 = vadd.f32 0.0, %v2623
      %v2625 = vpop.f32.mrb[0].mxu0
      %v2626 = vadd.f32 0.0, %v2625
      %v2627 = vpop.f32.mrb[0].mxu0
      %v2628 = vadd.f32 0.0, %v2627
      %v2629 = vpop.f32.mrb[0].mxu0
      %v2630 = vadd.f32 0.0, %v2629
      %2631 = vmatprep.mubr.bf16.mxu0 %v2432
      %2632 = vmatmul.mubr.bf16.gmra.mrb[0].mxu0 %v2334
      %v2633 = vpop.f32.mrb[0].mxu0
      %v2634 = vadd.f32 0.0, %v2633
      %v2635 = vpop.f32.mrb[0].mxu0
      %v2636 = vadd.f32 0.0, %v2635
      %v2637 = vpop.f32.mrb[0].mxu0
      %v2638 = vadd.f32 0.0, %v2637
      %v2639 = vpop.f32.mrb[0].mxu0
      %v2640 = vadd.f32 0.0, %v2639
      %2641 = vmatprep.mubr.bf16.mxu0 %v2435
      %2642 = vmatmul.mubr.bf16.gmra.mrb[0].mxu0 %v2336
      %v2643 = vpop.f32.mrb[0].mxu0
      %v2644 = vadd.f32 0.0, %v2643
      %v2645 = vpop.f32.mrb[0].mxu0
      %v2646 = vadd.f32 0.0, %v2645
      %v2647 = vpop.f32.mrb[0].mxu0
      %v2648 = vadd.f32 0.0, %v2647
      %v2649 = vpop.f32.mrb[0].mxu0
      %v2650 = vadd.f32 0.0, %v2649
      %2651 = vmatprep.mubr.bf16.mxu0 %v2438
      %2652 = vmatmul.mubr.bf16.gmra.mrb[0].mxu0 %v2338
      %v2653 = vpop.f32.mrb[0].mxu0
      %v2654 = vadd.f32 0.0, %v2653
      %v2655 = vpop.f32.mrb[0].mxu0
      %v2656 = vadd.f32 0.0, %v2655
      %v2657 = vpop.f32.mrb[0].mxu0
      %v2658 = vadd.f32 0.0, %v2657
      %v2659 = vpop.f32.mrb[0].mxu0
      %v2660 = vadd.f32 0.0, %v2659
      %2661 = vmatprep.mubr.bf16.mxu0 %v2441
      %2662 = vmatmul.mubr.bf16.gmra.mrb[0].mxu0 %v2340
      %v2663 = vpop.f32.mrb[0].mxu0
      %v2664 = vadd.f32 0.0, %v2663
      %v2665 = vpop.f32.mrb[0].mxu0
      %v2666 = vadd.f32 0.0, %v2665
      %v2667 = vpop.f32.mrb[0].mxu0
      %v2668 = vadd.f32 0.0, %v2667
      %v2669 = vpop.f32.mrb[0].mxu0
      %v2670 = vadd.f32 0.0, %v2669
      %2671 = vmatprep.mubr.bf16.mxu0 %v2444
      %2672 = vmatmul.mubr.bf16.gmra.mrb[0].mxu0 %v2342
      %v2673 = vpop.f32.mrb[0].mxu0
      %v2674 = vadd.f32 0.0, %v2673
      %v2675 = vpop.f32.mrb[0].mxu0
      %v2676 = vadd.f32 0.0, %v2675
      %v2677 = vpop.f32.mrb[0].mxu0
      %v2678 = vadd.f32 0.0, %v2677
      %v2679 = vpop.f32.mrb[0].mxu0
      %v2680 = vadd.f32 0.0, %v2679
      %2681 = vmatprep.mubr.bf16.mxu0 %v2447
      %2682 = vmatmul.mubr.bf16.gmra.mrb[0].mxu0 %v2344
      %v2683 = vpop.f32.mrb[0].mxu0
      %v2684 = vadd.f32 0.0, %v2683
      %v2685 = vpop.f32.mrb[0].mxu0
      %v2686 = vadd.f32 0.0, %v2685
      %v2687 = vpop.f32.mrb[0].mxu0
      %v2688 = vadd.f32 0.0, %v2687
      %v2689 = vpop.f32.mrb[0].mxu0
      %v2690 = vadd.f32 0.0, %v2689
      %2691 = vmatprep.mubr.bf16.mxu0 %v2450
      %2692 = vmatmul.mubr.bf16.gmra.mrb[0].mxu0 %v2346
      %v2693 = vpop.f32.mrb[0].mxu0
      %v2694 = vadd.f32 0.0, %v2693
      %v2695 = vpop.f32.mrb[0].mxu0
      %v2696 = vadd.f32 0.0, %v2695
      %v2697 = vpop.f32.mrb[0].mxu0
      %v2698 = vadd.f32 0.0, %v2697
      %v2699 = vpop.f32.mrb[0].mxu0
      %v2700 = vadd.f32 0.0, %v2699
      %2701 = vmatprep.mubr.bf16.mxu0 %v2453
      %2702 = vmatmul.mubr.bf16.gmra.mrb[0].mxu0 %v2348
      %v2703 = vpop.f32.mrb[0].mxu0
      %v2704 = vadd.f32 0.0, %v2703
      %v2705 = vpop.f32.mrb[0].mxu0
      %v2706 = vadd.f32 0.0, %v2705
      %v2707 = vpop.f32.mrb[0].mxu0
      %v2708 = vadd.f32 0.0, %v2707
      %v2709 = vpop.f32.mrb[0].mxu0
      %v2710 = vadd.f32 0.0, %v2709
      %2711 = vmatprep.mubr.bf16.mxu0 %v2456
      %2712 = vmatmul.mubr.bf16.gmra.mrb[0].mxu0 %v2350
      %v2713 = vpop.f32.mrb[0].mxu0
      %v2714 = vadd.f32 0.0, %v2713
      %v2715 = vpop.f32.mrb[0].mxu0
      %v2716 = vadd.f32 0.0, %v2715
      %v2717 = vpop.f32.mrb[0].mxu0
      %v2718 = vadd.f32 0.0, %v2717
      %v2719 = vpop.f32.mrb[0].mxu0
      %v2720 = vadd.f32 0.0, %v2719
      %2721 = vmatprep.mubr.bf16.mxu0 %v2459
      %2722 = vmatmul.mubr.bf16.gmra.mrb[0].mxu0 %v2352
      %v2723 = vpop.f32.mrb[0].mxu0
      %v2724 = vadd.f32 0.0, %v2723
      %v2725 = vpop.f32.mrb[0].mxu0
      %v2726 = vadd.f32 0.0, %v2725
      %v2727 = vpop.f32.mrb[0].mxu0
      %v2728 = vadd.f32 0.0, %v2727
      %v2729 = vpop.f32.mrb[0].mxu0
      %v2730 = vadd.f32 0.0, %v2729
      %2731 = vmatprep.mubr.bf16.mxu0 %v2462
      %2732 = vmatmul.mubr.bf16.gmra.mrb[0].mxu0 %v2354
      %v2733 = vpop.f32.mrb[0].mxu0
      %v2734 = vadd.f32 0.0, %v2733
      %v2735 = vpop.f32.mrb[0].mxu0
      %v2736 = vadd.f32 0.0, %v2735
      %v2737 = vpop.f32.mrb[0].mxu0
      %v2738 = vadd.f32 0.0, %v2737
      %v2739 = vpop.f32.mrb[0].mxu0
      %v2740 = vadd.f32 0.0, %v2739
      %2741 = vmatprep.mubr.bf16.mxu0 %v2465
      %2742 = vmatmul.mubr.bf16.gmra.mrb[0].mxu0 %v2356
      %v2743 = vpop.f32.mrb[0].mxu0
      %v2744 = vadd.f32 0.0, %v2743
      %v2745 = vpop.f32.mrb[0].mxu0
      %v2746 = vadd.f32 0.0, %v2745
      %v2747 = vpop.f32.mrb[0].mxu0
      %v2748 = vadd.f32 0.0, %v2747
      %v2749 = vpop.f32.mrb[0].mxu0
      %v2750 = vadd.f32 0.0, %v2749
      %2751 = vmatprep.mubr.bf16.mxu0 %v2468
      %2752 = vmatmul.mubr.bf16.gmra.mrb[0].mxu0 %v2358
      %v2753 = vpop.f32.mrb[0].mxu0
      %v2754 = vadd.f32 0.0, %v2753
      %v2755 = vpop.f32.mrb[0].mxu0
      %v2756 = vadd.f32 0.0, %v2755
      %v2757 = vpop.f32.mrb[0].mxu0
      %v2758 = vadd.f32 0.0, %v2757
      %v2759 = vpop.f32.mrb[0].mxu0
      %v2760 = vadd.f32 0.0, %v2759
      %2761 = vmatprep.mubr.bf16.mxu0 %v2471
      %2762 = vmatmul.mubr.bf16.gmra.mrb[0].mxu0 %v2360
      %v2763 = vpop.f32.mrb[0].mxu0
      %v2764 = vadd.f32 0.0, %v2763
      %v2765 = vpop.f32.mrb[0].mxu0
      %v2766 = vadd.f32 0.0, %v2765
      %v2767 = vpop.f32.mrb[0].mxu0
      %v2768 = vadd.f32 0.0, %v2767
      %v2769 = vpop.f32.mrb[0].mxu0
      %v2770 = vadd.f32 0.0, %v2769
      %2771 = vmatprep.mubr.bf16.mxu0 %v2474
      %2772 = vmatmul.mubr.bf16.gmra.mrb[0].mxu0 %v2362
      %v2773 = vpop.f32.mrb[0].mxu0
      %v2774 = vadd.f32 0.0, %v2773
      %v2775 = vpop.f32.mrb[0].mxu0
      %v2776 = vadd.f32 0.0, %v2775
      %v2777 = vpop.f32.mrb[0].mxu0
      %v2778 = vadd.f32 0.0, %v2777
      %v2779 = vpop.f32.mrb[0].mxu0
      %v2780 = vadd.f32 0.0, %v2779
      %2781 = vmatprep.mubr.bf16.mxu0 %v2477
      %2782 = vmatmul.mubr.bf16.gmra.mrb[0].mxu0 %v2364
      %v2783 = vpop.f32.mrb[0].mxu0
      %v2784 = vadd.f32 0.0, %v2783
      %v2785 = vpop.f32.mrb[0].mxu0
      %v2786 = vadd.f32 0.0, %v2785
      %v2787 = vpop.f32.mrb[0].mxu0
      %v2788 = vadd.f32 0.0, %v2787
      %v2789 = vpop.f32.mrb[0].mxu0
      %v2790 = vadd.f32 0.0, %v2789
      %2791 = vdwg.mxu0
      %2792 = vmatprep.subr.bf16.mxu0 %v2089
      %2793 = vmatpush1.bf16.msra.mxu0 %v2088
      %2794 = vmatprep.subr.bf16.mxu0 %v2093
      %2795 = vmatpush1.bf16.msra.mxu0 %v2092
      %2796 = vmatprep.subr.bf16.mxu0 %v2097
      %2797 = vmatpush1.bf16.msra.mxu0 %v2096
      %2798 = vmatprep.subr.bf16.mxu0 %v2101
      %2799 = vmatpush1.bf16.msra.mxu0 %v2100
      %2800 = vmatprep.subr.bf16.mxu0 %v2105
      %2801 = vmatpush1.bf16.msra.mxu0 %v2104
      %2802 = vmatprep.subr.bf16.mxu0 %v2109
      %2803 = vmatpush1.bf16.msra.mxu0 %v2108
      %2804 = vmatprep.subr.bf16.mxu0 %v2113
      %2805 = vmatpush1.bf16.msra.mxu0 %v2112
      %2806 = vmatprep.subr.bf16.mxu0 %v2117
      %2807 = vmatpush1.bf16.msra.mxu0 %v2116
      %2808 = vmatprep.subr.bf16.mxu0 %v2121
      %2809 = vmatpush1.bf16.msra.mxu0 %v2120
      %2810 = vmatprep.subr.bf16.mxu0 %v2125
      %2811 = vmatpush1.bf16.msra.mxu0 %v2124
      %2812 = vmatprep.subr.bf16.mxu0 %v2129
      %2813 = vmatpush1.bf16.msra.mxu0 %v2128
      %2814 = vmatprep.subr.bf16.mxu0 %v2133
      %2815 = vmatpush1.bf16.msra.mxu0 %v2132
      %2816 = vmatprep.subr.bf16.mxu0 %v2137
      %2817 = vmatpush1.bf16.msra.mxu0 %v2136
      %2818 = vmatprep.subr.bf16.mxu0 %v2141
      %2819 = vmatpush1.bf16.msra.mxu0 %v2140
      %2820 = vmatprep.subr.bf16.mxu0 0
      %2821 = vmatpush1.bf16.msra.mxu0 0
      %2822 = vmatprep.subr.bf16.mxu0 0
      %2823 = vmatpush1.bf16.msra.mxu0 0
      %2824 = vmatprep.mubr.bf16.mxu0 %v2396
      %2825 = vmatmul.mubr.bf16.gmra.mrb[0].mxu0 %v2310
      %v2826 = vpop.f32.mrb[0].mxu0
      %v2827 = vadd.f32 0.0, %v2826
      %v2828 = vpop.f32.mrb[0].mxu0
      %v2829 = vadd.f32 0.0, %v2828
      %v2830 = vpop.f32.mrb[0].mxu0
      %v2831 = vadd.f32 0.0, %v2830
      %v2832 = vpop.f32.mrb[0].mxu0
      %v2833 = vadd.f32 0.0, %v2832
      %2834 = vmatprep.mubr.bf16.mxu0 %v2399
      %2835 = vmatmul.mubr.bf16.gmra.mrb[0].mxu0 %v2312
      %v2836 = vpop.f32.mrb[0].mxu0
      %v2837 = vadd.f32 0.0, %v2836
      %v2838 = vpop.f32.mrb[0].mxu0
      %v2839 = vadd.f32 0.0, %v2838
      %v2840 = vpop.f32.mrb[0].mxu0
      %v2841 = vadd.f32 0.0, %v2840
      %v2842 = vpop.f32.mrb[0].mxu0
      %v2843 = vadd.f32 0.0, %v2842
      %2844 = vmatprep.mubr.bf16.mxu0 %v2402
      %2845 = vmatmul.mubr.bf16.gmra.mrb[0].mxu0 %v2314
      %v2846 = vpop.f32.mrb[0].mxu0
      %v2847 = vadd.f32 0.0, %v2846
      %v2848 = vpop.f32.mrb[0].mxu0
      %v2849 = vadd.f32 0.0, %v2848
      %v2850 = vpop.f32.mrb[0].mxu0
      %v2851 = vadd.f32 0.0, %v2850
      %v2852 = vpop.f32.mrb[0].mxu0
      %v2853 = vadd.f32 0.0, %v2852
      %2854 = vmatprep.mubr.bf16.mxu0 %v2405
      %2855 = vmatmul.mubr.bf16.gmra.mrb[0].mxu0 %v2316
      %v2856 = vpop.f32.mrb[0].mxu0
      %v2857 = vadd.f32 0.0, %v2856
      %v2858 = vpop.f32.mrb[0].mxu0
      %v2859 = vadd.f32 0.0, %v2858
      %v2860 = vpop.f32.mrb[0].mxu0
      %v2861 = vadd.f32 0.0, %v2860
      %v2862 = vpop.f32.mrb[0].mxu0
      %v2863 = vadd.f32 0.0, %v2862
      %2864 = vmatprep.mubr.bf16.mxu0 %v2408
      %2865 = vmatmul.mubr.bf16.gmra.mrb[0].mxu0 %v2318
      %v2866 = vpop.f32.mrb[0].mxu0
      %v2867 = vadd.f32 0.0, %v2866
      %v2868 = vpop.f32.mrb[0].mxu0
      %v2869 = vadd.f32 0.0, %v2868
      %v2870 = vpop.f32.mrb[0].mxu0
      %v2871 = vadd.f32 0.0, %v2870
      %v2872 = vpop.f32.mrb[0].mxu0
      %v2873 = vadd.f32 0.0, %v2872
      %2874 = vmatprep.mubr.bf16.mxu0 %v2411
      %2875 = vmatmul.mubr.bf16.gmra.mrb[0].mxu0 %v2320
      %v2876 = vpop.f32.mrb[0].mxu0
      %v2877 = vadd.f32 0.0, %v2876
      %v2878 = vpop.f32.mrb[0].mxu0
      %v2879 = vadd.f32 0.0, %v2878
      %v2880 = vpop.f32.mrb[0].mxu0
      %v2881 = vadd.f32 0.0, %v2880
      %v2882 = vpop.f32.mrb[0].mxu0
      %v2883 = vadd.f32 0.0, %v2882
      %2884 = vmatprep.mubr.bf16.mxu0 %v2414
      %2885 = vmatmul.mubr.bf16.gmra.mrb[0].mxu0 %v2322
      %v2886 = vpop.f32.mrb[0].mxu0
      %v2887 = vadd.f32 0.0, %v2886
      %v2888 = vpop.f32.mrb[0].mxu0
      %v2889 = vadd.f32 0.0, %v2888
      %v2890 = vpop.f32.mrb[0].mxu0
      %v2891 = vadd.f32 0.0, %v2890
      %v2892 = vpop.f32.mrb[0].mxu0
      %v2893 = vadd.f32 0.0, %v2892
      %2894 = vmatprep.mubr.bf16.mxu0 %v2417
      %2895 = vmatmul.mubr.bf16.gmra.mrb[0].mxu0 %v2324
      %v2896 = vpop.f32.mrb[0].mxu0
      %v2897 = vadd.f32 0.0, %v2896
      %v2898 = vpop.f32.mrb[0].mxu0
      %v2899 = vadd.f32 0.0, %v2898
      %v2900 = vpop.f32.mrb[0].mxu0
      %v2901 = vadd.f32 0.0, %v2900
      %v2902 = vpop.f32.mrb[0].mxu0
      %v2903 = vadd.f32 0.0, %v2902
      %2904 = vmatprep.mubr.bf16.mxu0 %v2420
      %2905 = vmatmul.mubr.bf16.gmra.mrb[0].mxu0 %v2326
      %v2906 = vpop.f32.mrb[0].mxu0
      %v2907 = vadd.f32 0.0, %v2906
      %v2908 = vpop.f32.mrb[0].mxu0
      %v2909 = vadd.f32 0.0, %v2908
      %v2910 = vpop.f32.mrb[0].mxu0
      %v2911 = vadd.f32 0.0, %v2910
      %v2912 = vpop.f32.mrb[0].mxu0
      %v2913 = vadd.f32 0.0, %v2912
      %2914 = vmatprep.mubr.bf16.mxu0 %v2423
      %2915 = vmatmul.mubr.bf16.gmra.mrb[0].mxu0 %v2328
      %v2916 = vpop.f32.mrb[0].mxu0
      %v2917 = vadd.f32 0.0, %v2916
      %v2918 = vpop.f32.mrb[0].mxu0
      %v2919 = vadd.f32 0.0, %v2918
      %v2920 = vpop.f32.mrb[0].mxu0
      %v2921 = vadd.f32 0.0, %v2920
      %v2922 = vpop.f32.mrb[0].mxu0
      %v2923 = vadd.f32 0.0, %v2922
      %2924 = vmatprep.mubr.bf16.mxu0 %v2426
      %2925 = vmatmul.mubr.bf16.gmra.mrb[0].mxu0 %v2330
      %v2926 = vpop.f32.mrb[0].mxu0
      %v2927 = vadd.f32 0.0, %v2926
      %v2928 = vpop.f32.mrb[0].mxu0
      %v2929 = vadd.f32 0.0, %v2928
      %v2930 = vpop.f32.mrb[0].mxu0
      %v2931 = vadd.f32 0.0, %v2930
      %v2932 = vpop.f32.mrb[0].mxu0
      %v2933 = vadd.f32 0.0, %v2932
      %2934 = vmatprep.mubr.bf16.mxu0 %v2429
      %2935 = vmatmul.mubr.bf16.gmra.mrb[0].mxu0 %v2332
      %v2936 = vpop.f32.mrb[0].mxu0
      %v2937 = vadd.f32 0.0, %v2936
      %v2938 = vpop.f32.mrb[0].mxu0
      %v2939 = vadd.f32 0.0, %v2938
      %v2940 = vpop.f32.mrb[0].mxu0
      %v2941 = vadd.f32 0.0, %v2940
      %v2942 = vpop.f32.mrb[0].mxu0
      %v2943 = vadd.f32 0.0, %v2942
      %2944 = vmatprep.mubr.bf16.mxu0 %v2432
      %2945 = vmatmul.mubr.bf16.gmra.mrb[0].mxu0 %v2334
      %v2946 = vpop.f32.mrb[0].mxu0
      %v2947 = vadd.f32 0.0, %v2946
      %v2948 = vpop.f32.mrb[0].mxu0
      %v2949 = vadd.f32 0.0, %v2948
      %v2950 = vpop.f32.mrb[0].mxu0
      %v2951 = vadd.f32 0.0, %v2950
      %v2952 = vpop.f32.mrb[0].mxu0
      %v2953 = vadd.f32 0.0, %v2952
      %2954 = vmatprep.mubr.bf16.mxu0 %v2435
      %2955 = vmatmul.mubr.bf16.gmra.mrb[0].mxu0 %v2336
      %v2956 = vpop.f32.mrb[0].mxu0
      %v2957 = vadd.f32 0.0, %v2956
      %v2958 = vpop.f32.mrb[0].mxu0
      %v2959 = vadd.f32 0.0, %v2958
      %v2960 = vpop.f32.mrb[0].mxu0
      %v2961 = vadd.f32 0.0, %v2960
      %v2962 = vpop.f32.mrb[0].mxu0
      %v2963 = vadd.f32 0.0, %v2962
      %2964 = vmatprep.mubr.bf16.mxu0 %v2438
      %2965 = vmatmul.mubr.bf16.gmra.mrb[0].mxu0 %v2338
      %v2966 = vpop.f32.mrb[0].mxu0
      %v2967 = vadd.f32 0.0, %v2966
      %v2968 = vpop.f32.mrb[0].mxu0
      %v2969 = vadd.f32 0.0, %v2968
      %v2970 = vpop.f32.mrb[0].mxu0
      %v2971 = vadd.f32 0.0, %v2970
      %v2972 = vpop.f32.mrb[0].mxu0
      %v2973 = vadd.f32 0.0, %v2972
      %2974 = vmatprep.mubr.bf16.mxu0 %v2441
      %2975 = vmatmul.mubr.bf16.gmra.mrb[0].mxu0 %v2340
      %v2976 = vpop.f32.mrb[0].mxu0
      %v2977 = vadd.f32 0.0, %v2976
      %v2978 = vpop.f32.mrb[0].mxu0
      %v2979 = vadd.f32 0.0, %v2978
      %v2980 = vpop.f32.mrb[0].mxu0
      %v2981 = vadd.f32 0.0, %v2980
      %v2982 = vpop.f32.mrb[0].mxu0
      %v2983 = vadd.f32 0.0, %v2982
      %2984 = vmatprep.mubr.bf16.mxu0 %v2444
      %2985 = vmatmul.mubr.bf16.gmra.mrb[0].mxu0 %v2342
      %v2986 = vpop.f32.mrb[0].mxu0
      %v2987 = vadd.f32 0.0, %v2986
      %v2988 = vpop.f32.mrb[0].mxu0
      %v2989 = vadd.f32 0.0, %v2988
      %v2990 = vpop.f32.mrb[0].mxu0
      %v2991 = vadd.f32 0.0, %v2990
      %v2992 = vpop.f32.mrb[0].mxu0
      %v2993 = vadd.f32 0.0, %v2992
      %2994 = vmatprep.mubr.bf16.mxu0 %v2447
      %2995 = vmatmul.mubr.bf16.gmra.mrb[0].mxu0 %v2344
      %v2996 = vpop.f32.mrb[0].mxu0
      %v2997 = vadd.f32 0.0, %v2996
      %v2998 = vpop.f32.mrb[0].mxu0
      %v2999 = vadd.f32 0.0, %v2998
      %v3000 = vpop.f32.mrb[0].mxu0
      %v3001 = vadd.f32 0.0, %v3000
      %v3002 = vpop.f32.mrb[0].mxu0
      %v3003 = vadd.f32 0.0, %v3002
      %3004 = vmatprep.mubr.bf16.mxu0 %v2450
      %3005 = vmatmul.mubr.bf16.gmra.mrb[0].mxu0 %v2346
      %v3006 = vpop.f32.mrb[0].mxu0
      %v3007 = vadd.f32 0.0, %v3006
      %v3008 = vpop.f32.mrb[0].mxu0
      %v3009 = vadd.f32 0.0, %v3008
      %v3010 = vpop.f32.mrb[0].mxu0
      %v3011 = vadd.f32 0.0, %v3010
      %v3012 = vpop.f32.mrb[0].mxu0
      %v3013 = vadd.f32 0.0, %v3012
      %3014 = vmatprep.mubr.bf16.mxu0 %v2453
      %3015 = vmatmul.mubr.bf16.gmra.mrb[0].mxu0 %v2348
      %v3016 = vpop.f32.mrb[0].mxu0
      %v3017 = vadd.f32 0.0, %v3016
      %v3018 = vpop.f32.mrb[0].mxu0
      %v3019 = vadd.f32 0.0, %v3018
      %v3020 = vpop.f32.mrb[0].mxu0
      %v3021 = vadd.f32 0.0, %v3020
      %v3022 = vpop.f32.mrb[0].mxu0
      %v3023 = vadd.f32 0.0, %v3022
      %3024 = vmatprep.mubr.bf16.mxu0 %v2456
      %3025 = vmatmul.mubr.bf16.gmra.mrb[0].mxu0 %v2350
      %v3026 = vpop.f32.mrb[0].mxu0
      %v3027 = vadd.f32 0.0, %v3026
      %v3028 = vpop.f32.mrb[0].mxu0
      %v3029 = vadd.f32 0.0, %v3028
      %v3030 = vpop.f32.mrb[0].mxu0
      %v3031 = vadd.f32 0.0, %v3030
      %v3032 = vpop.f32.mrb[0].mxu0
      %v3033 = vadd.f32 0.0, %v3032
      %3034 = vmatprep.mubr.bf16.mxu0 %v2459
      %3035 = vmatmul.mubr.bf16.gmra.mrb[0].mxu0 %v2352
      %v3036 = vpop.f32.mrb[0].mxu0
      %v3037 = vadd.f32 0.0, %v3036
      %v3038 = vpop.f32.mrb[0].mxu0
      %v3039 = vadd.f32 0.0, %v3038
      %v3040 = vpop.f32.mrb[0].mxu0
      %v3041 = vadd.f32 0.0, %v3040
      %v3042 = vpop.f32.mrb[0].mxu0
      %v3043 = vadd.f32 0.0, %v3042
      %3044 = vmatprep.mubr.bf16.mxu0 %v2462
      %3045 = vmatmul.mubr.bf16.gmra.mrb[0].mxu0 %v2354
      %v3046 = vpop.f32.mrb[0].mxu0
      %v3047 = vadd.f32 0.0, %v3046
      %v3048 = vpop.f32.mrb[0].mxu0
      %v3049 = vadd.f32 0.0, %v3048
      %v3050 = vpop.f32.mrb[0].mxu0
      %v3051 = vadd.f32 0.0, %v3050
      %v3052 = vpop.f32.mrb[0].mxu0
      %v3053 = vadd.f32 0.0, %v3052
      %3054 = vmatprep.mubr.bf16.mxu0 %v2465
      %3055 = vmatmul.mubr.bf16.gmra.mrb[0].mxu0 %v2356
      %v3056 = vpop.f32.mrb[0].mxu0
      %v3057 = vadd.f32 0.0, %v3056
      %v3058 = vpop.f32.mrb[0].mxu0
      %v3059 = vadd.f32 0.0, %v3058
      %v3060 = vpop.f32.mrb[0].mxu0
      %v3061 = vadd.f32 0.0, %v3060
      %v3062 = vpop.f32.mrb[0].mxu0
      %v3063 = vadd.f32 0.0, %v3062
      %3064 = vmatprep.mubr.bf16.mxu0 %v2468
      %3065 = vmatmul.mubr.bf16.gmra.mrb[0].mxu0 %v2358
      %v3066 = vpop.f32.mrb[0].mxu0
      %v3067 = vadd.f32 0.0, %v3066
      %v3068 = vpop.f32.mrb[0].mxu0
      %v3069 = vadd.f32 0.0, %v3068
      %v3070 = vpop.f32.mrb[0].mxu0
      %v3071 = vadd.f32 0.0, %v3070
      %v3072 = vpop.f32.mrb[0].mxu0
      %v3073 = vadd.f32 0.0, %v3072
      %3074 = vmatprep.mubr.bf16.mxu0 %v2471
      %3075 = vmatmul.mubr.bf16.gmra.mrb[0].mxu0 %v2360
      %v3076 = vpop.f32.mrb[0].mxu0
      %v3077 = vadd.f32 0.0, %v3076
      %v3078 = vpop.f32.mrb[0].mxu0
      %v3079 = vadd.f32 0.0, %v3078
      %v3080 = vpop.f32.mrb[0].mxu0
      %v3081 = vadd.f32 0.0, %v3080
      %v3082 = vpop.f32.mrb[0].mxu0
      %v3083 = vadd.f32 0.0, %v3082
      %3084 = vmatprep.mubr.bf16.mxu0 %v2474
      %3085 = vmatmul.mubr.bf16.gmra.mrb[0].mxu0 %v2362
      %v3086 = vpop.f32.mrb[0].mxu0
      %v3087 = vadd.f32 0.0, %v3086
      %v3088 = vpop.f32.mrb[0].mxu0
      %v3089 = vadd.f32 0.0, %v3088
      %v3090 = vpop.f32.mrb[0].mxu0
      %v3091 = vadd.f32 0.0, %v3090
      %v3092 = vpop.f32.mrb[0].mxu0
      %v3093 = vadd.f32 0.0, %v3092
      %3094 = vmatprep.mubr.bf16.mxu0 %v2477
      %3095 = vmatmul.mubr.bf16.gmra.mrb[0].mxu0 %v2364
      %v3096 = vpop.f32.mrb[0].mxu0
      %v3097 = vadd.f32 0.0, %v3096
      %v3098 = vpop.f32.mrb[0].mxu0
      %v3099 = vadd.f32 0.0, %v3098
      %v3100 = vpop.f32.mrb[0].mxu0
      %v3101 = vadd.f32 0.0, %v3100
      %v3102 = vpop.f32.mrb[0].mxu0
      %v3103 = vadd.f32 0.0, %v3102
      %3104 = vdwg.mxu0
      %3105 = vrot.lane.b32.xlu0 %v2514, 66
      %v3106 = vpop.permute.xlu0 %3105
      %3107 = vrot.lane.b32.xlu0 %v2518, 66
      %v3108 = vpop.permute.xlu0 %3107
      %3109 = vrot.lane.b32.xlu0 %v2524, 66
      %v3110 = vpop.permute.xlu0 %3109
      %3111 = vrot.lane.b32.xlu0 %v2528, 66
      %v3112 = vpop.permute.xlu0 %3111
      %3113 = vrot.lane.b32.xlu0 %v2534, 66
      %v3114 = vpop.permute.xlu0 %3113
      %3115 = vrot.lane.b32.xlu0 %v2538, 66
      %v3116 = vpop.permute.xlu0 %3115
      %3117 = vrot.lane.b32.xlu0 %v2544, 66
      %v3118 = vpop.permute.xlu0 %3117
      %3119 = vrot.lane.b32.xlu0 %v2548, 66
      %v3120 = vpop.permute.xlu0 %3119
      %3121 = vrot.lane.b32.xlu0 %v2516, 66
      %v3122 = vpop.permute.xlu0 %3121
      %3123 = vrot.lane.b32.xlu0 %v2520, 66
      %v3124 = vpop.permute.xlu0 %3123
      %3125 = vrot.lane.b32.xlu0 %v2526, 66
      %v3126 = vpop.permute.xlu0 %3125
      %3127 = vrot.lane.b32.xlu0 %v2530, 66
      %v3128 = vpop.permute.xlu0 %3127
      %3129 = vrot.lane.b32.xlu0 %v2536, 66
      %v3130 = vpop.permute.xlu0 %3129
      %3131 = vrot.lane.b32.xlu0 %v2540, 66
      %v3132 = vpop.permute.xlu0 %3131
      %3133 = vrot.lane.b32.xlu0 %v2546, 66
      %v3134 = vpop.permute.xlu0 %3133
      %3135 = vrot.lane.b32.xlu0 %v2550, 66
      %v3136 = vpop.permute.xlu0 %3135
      %3137 = vrot.lane.b32.xlu0 %v2827, 66
      %v3138 = vpop.permute.xlu0 %3137
      %3139 = vrot.lane.b32.xlu0 %v2831, 66
      %v3140 = vpop.permute.xlu0 %3139
      %3141 = vrot.lane.b32.xlu0 %v2837, 66
      %v3142 = vpop.permute.xlu0 %3141
      %3143 = vrot.lane.b32.xlu0 %v2841, 66
      %v3144 = vpop.permute.xlu0 %3143
      %3145 = vrot.lane.b32.xlu0 %v2847, 66
      %v3146 = vpop.permute.xlu0 %3145
      %3147 = vrot.lane.b32.xlu0 %v2851, 66
      %v3148 = vpop.permute.xlu0 %3147
      %3149 = vrot.lane.b32.xlu0 %v2857, 66
      %v3150 = vpop.permute.xlu0 %3149
      %3151 = vrot.lane.b32.xlu0 %v2861, 66
      %v3152 = vpop.permute.xlu0 %3151
      %3153 = vrot.lane.b32.xlu0 %v2829, 66
      %v3154 = vpop.permute.xlu0 %3153
      %3155 = vrot.lane.b32.xlu0 %v2833, 66
      %v3156 = vpop.permute.xlu0 %3155
      %3157 = vrot.lane.b32.xlu0 %v2839, 66
      %v3158 = vpop.permute.xlu0 %3157
      %3159 = vrot.lane.b32.xlu0 %v2843, 66
      %v3160 = vpop.permute.xlu0 %3159
      %3161 = vrot.lane.b32.xlu0 %v2849, 66
      %v3162 = vpop.permute.xlu0 %3161
      %3163 = vrot.lane.b32.xlu0 %v2853, 66
      %v3164 = vpop.permute.xlu0 %3163
      %3165 = vrot.lane.b32.xlu0 %v2859, 66
      %v3166 = vpop.permute.xlu0 %3165
      %3167 = vrot.lane.b32.xlu0 %v2863, 66
      %v3168 = vpop.permute.xlu0 %3167
      %v3169 = vsel %vm1179, %v3138, %v3154
      %v3170 = vsel %vm1179, %v3140, %v3156
      %v3171 = vsel %vm1179, %v3142, %v3158
      %v3172 = vsel %vm1179, %v3144, %v3160
      %v3173 = vsel %vm1179, %v3146, %v3162
      %v3174 = vsel %vm1179, %v3148, %v3164
      %v3175 = vsel %vm1179, %v3150, %v3166
      %v3176 = vsel %vm1179, %v3152, %v3168
      %v3177 = vsel %vm1179, %v3122, %v3138
      %v3178 = vsel %vm1179, %v3124, %v3140
      %v3179 = vsel %vm1179, %v3126, %v3142
      %v3180 = vsel %vm1179, %v3128, %v3144
      %v3181 = vsel %vm1179, %v3130, %v3146
      %v3182 = vsel %vm1179, %v3132, %v3148
      %v3183 = vsel %vm1179, %v3134, %v3150
      %v3184 = vsel %vm1179, %v3136, %v3152
      %v3185 = vsel %vm1179, %v3106, %v3122
      %v3186 = vsel %vm1179, %v3108, %v3124
      %v3187 = vsel %vm1179, %v3110, %v3126
      %v3188 = vsel %vm1179, %v3112, %v3128
      %v3189 = vsel %vm1179, %v3114, %v3130
      %v3190 = vsel %vm1179, %v3116, %v3132
      %v3191 = vsel %vm1179, %v3118, %v3134
      %v3192 = vsel %vm1179, %v3120, %v3136
      %v3193 = vsel %vm1179, %v3154, %v3106
      %v3194 = vsel %vm1179, %v3156, %v3108
      %v3195 = vsel %vm1179, %v3158, %v3110
      %v3196 = vsel %vm1179, %v3160, %v3112
      %v3197 = vsel %vm1179, %v3162, %v3114
      %v3198 = vsel %vm1179, %v3164, %v3116
      %v3199 = vsel %vm1179, %v3166, %v3118
      %v3200 = vsel %vm1179, %v3168, %v3120
      %v3201 = vadd.f32 %v2634, %v3193
      %v3202 = vadd.f32 %v2636, %v3185
      %v3203 = vadd.f32 %v2947, %v3177
      %v3204 = vadd.f32 %v2949, %v3169
      %v3205 = vadd.f32 %v2638, %v3194
      %v3206 = vadd.f32 %v2640, %v3186
      %v3207 = vadd.f32 %v2951, %v3178
      %v3208 = vadd.f32 %v2953, %v3170
      %v3209 = vadd.f32 %v2644, %v3195
      %v3210 = vadd.f32 %v2646, %v3187
      %v3211 = vadd.f32 %v2957, %v3179
      %v3212 = vadd.f32 %v2959, %v3171
      %v3213 = vadd.f32 %v2648, %v3196
      %v3214 = vadd.f32 %v2650, %v3188
      %v3215 = vadd.f32 %v2961, %v3180
      %v3216 = vadd.f32 %v2963, %v3172
      %v3217 = vadd.f32 %v2654, %v3197
      %v3218 = vadd.f32 %v2656, %v3189
      %v3219 = vadd.f32 %v2967, %v3181
      %v3220 = vadd.f32 %v2969, %v3173
      %v3221 = vadd.f32 %v2658, %v3198
      %v3222 = vadd.f32 %v2660, %v3190
      %v3223 = vadd.f32 %v2971, %v3182
      %v3224 = vadd.f32 %v2973, %v3174
      %v3225 = vadd.f32 %v2664, %v3199
      %v3226 = vadd.f32 %v2666, %v3191
      %v3227 = vadd.f32 %v2977, %v3183
      %v3228 = vadd.f32 %v2979, %v3175
      %v3229 = vadd.f32 %v2668, %v3200
      %v3230 = vadd.f32 %v2670, %v3192
      %v3231 = vadd.f32 %v2981, %v3184
      %v3232 = vadd.f32 %v2983, %v3176
      %3233 = vrot.lane.b32.xlu0 %v2554, 44
      %v3234 = vpop.permute.xlu0 %3233
      %3235 = vrot.lane.b32.xlu0 %v2558, 44
      %v3236 = vpop.permute.xlu0 %3235
      %3237 = vrot.lane.b32.xlu0 %v2564, 44
      %v3238 = vpop.permute.xlu0 %3237
      %3239 = vrot.lane.b32.xlu0 %v2568, 44
      %v3240 = vpop.permute.xlu0 %3239
      %3241 = vrot.lane.b32.xlu0 %v2574, 44
      %v3242 = vpop.permute.xlu0 %3241
      %3243 = vrot.lane.b32.xlu0 %v2578, 44
      %v3244 = vpop.permute.xlu0 %3243
      %3245 = vrot.lane.b32.xlu0 %v2584, 44
      %v3246 = vpop.permute.xlu0 %3245
      %3247 = vrot.lane.b32.xlu0 %v2588, 44
      %v3248 = vpop.permute.xlu0 %3247
      %3249 = vrot.lane.b32.xlu0 %v2556, 44
      %v3250 = vpop.permute.xlu0 %3249
      %3251 = vrot.lane.b32.xlu0 %v2560, 44
      %v3252 = vpop.permute.xlu0 %3251
      %3253 = vrot.lane.b32.xlu0 %v2566, 44
      %v3254 = vpop.permute.xlu0 %3253
      %3255 = vrot.lane.b32.xlu0 %v2570, 44
      %v3256 = vpop.permute.xlu0 %3255
      %3257 = vrot.lane.b32.xlu0 %v2576, 44
      %v3258 = vpop.permute.xlu0 %3257
      %3259 = vrot.lane.b32.xlu0 %v2580, 44
      %v3260 = vpop.permute.xlu0 %3259
      %3261 = vrot.lane.b32.xlu0 %v2586, 44
      %v3262 = vpop.permute.xlu0 %3261
      %3263 = vrot.lane.b32.xlu0 %v2590, 44
      %v3264 = vpop.permute.xlu0 %3263
      %3265 = vrot.lane.b32.xlu0 %v2867, 44
      %v3266 = vpop.permute.xlu0 %3265
      %3267 = vrot.lane.b32.xlu0 %v2871, 44
      %v3268 = vpop.permute.xlu0 %3267
      %3269 = vrot.lane.b32.xlu0 %v2877, 44
      %v3270 = vpop.permute.xlu0 %3269
      %3271 = vrot.lane.b32.xlu0 %v2881, 44
      %v3272 = vpop.permute.xlu0 %3271
      %3273 = vrot.lane.b32.xlu0 %v2887, 44
      %v3274 = vpop.permute.xlu0 %3273
      %3275 = vrot.lane.b32.xlu0 %v2891, 44
      %v3276 = vpop.permute.xlu0 %3275
      %3277 = vrot.lane.b32.xlu0 %v2897, 44
      %v3278 = vpop.permute.xlu0 %3277
      %3279 = vrot.lane.b32.xlu0 %v2901, 44
      %v3280 = vpop.permute.xlu0 %3279
      %3281 = vrot.lane.b32.xlu0 %v2869, 44
      %v3282 = vpop.permute.xlu0 %3281
      %3283 = vrot.lane.b32.xlu0 %v2873, 44
      %v3284 = vpop.permute.xlu0 %3283
      %3285 = vrot.lane.b32.xlu0 %v2879, 44
      %v3286 = vpop.permute.xlu0 %3285
      %3287 = vrot.lane.b32.xlu0 %v2883, 44
      %v3288 = vpop.permute.xlu0 %3287
      %3289 = vrot.lane.b32.xlu0 %v2889, 44
      %v3290 = vpop.permute.xlu0 %3289
      %3291 = vrot.lane.b32.xlu0 %v2893, 44
      %v3292 = vpop.permute.xlu0 %3291
      %3293 = vrot.lane.b32.xlu0 %v2899, 44
      %v3294 = vpop.permute.xlu0 %3293
      %3295 = vrot.lane.b32.xlu0 %v2903, 44
      %v3296 = vpop.permute.xlu0 %3295
      %v3297 = vsel %vm1244, %v3266, %v3282
      %v3298 = vsel %vm1244, %v3268, %v3284
      %v3299 = vsel %vm1244, %v3270, %v3286
      %v3300 = vsel %vm1244, %v3272, %v3288
      %v3301 = vsel %vm1244, %v3274, %v3290
      %v3302 = vsel %vm1244, %v3276, %v3292
      %v3303 = vsel %vm1244, %v3278, %v3294
      %v3304 = vsel %vm1244, %v3280, %v3296
      %v3305 = vsel %vm1244, %v3250, %v3266
      %v3306 = vsel %vm1244, %v3252, %v3268
      %v3307 = vsel %vm1244, %v3254, %v3270
      %v3308 = vsel %vm1244, %v3256, %v3272
      %v3309 = vsel %vm1244, %v3258, %v3274
      %v3310 = vsel %vm1244, %v3260, %v3276
      %v3311 = vsel %vm1244, %v3262, %v3278
      %v3312 = vsel %vm1244, %v3264, %v3280
      %v3313 = vsel %vm1244, %v3234, %v3250
      %v3314 = vsel %vm1244, %v3236, %v3252
      %v3315 = vsel %vm1244, %v3238, %v3254
      %v3316 = vsel %vm1244, %v3240, %v3256
      %v3317 = vsel %vm1244, %v3242, %v3258
      %v3318 = vsel %vm1244, %v3244, %v3260
      %v3319 = vsel %vm1244, %v3246, %v3262
      %v3320 = vsel %vm1244, %v3248, %v3264
      %v3321 = vsel %vm1244, %v3282, %v3234
      %v3322 = vsel %vm1244, %v3284, %v3236
      %v3323 = vsel %vm1244, %v3286, %v3238
      %v3324 = vsel %vm1244, %v3288, %v3240
      %v3325 = vsel %vm1244, %v3290, %v3242
      %v3326 = vsel %vm1244, %v3292, %v3244
      %v3327 = vsel %vm1244, %v3294, %v3246
      %v3328 = vsel %vm1244, %v3296, %v3248
      %v3329 = vadd.f32 %v3201, %v3321
      %v3330 = vadd.f32 %v3202, %v3313
      %v3331 = vadd.f32 %v3203, %v3305
      %v3332 = vadd.f32 %v3204, %v3297
      %v3333 = vadd.f32 %v3205, %v3322
      %v3334 = vadd.f32 %v3206, %v3314
      %v3335 = vadd.f32 %v3207, %v3306
      %v3336 = vadd.f32 %v3208, %v3298
      %v3337 = vadd.f32 %v3209, %v3323
      %v3338 = vadd.f32 %v3210, %v3315
      %v3339 = vadd.f32 %v3211, %v3307
      %v3340 = vadd.f32 %v3212, %v3299
      %v3341 = vadd.f32 %v3213, %v3324
      %v3342 = vadd.f32 %v3214, %v3316
      %v3343 = vadd.f32 %v3215, %v3308
      %v3344 = vadd.f32 %v3216, %v3300
      %v3345 = vadd.f32 %v3217, %v3325
      %v3346 = vadd.f32 %v3218, %v3317
      %v3347 = vadd.f32 %v3219, %v3309
      %v3348 = vadd.f32 %v3220, %v3301
      %v3349 = vadd.f32 %v3221, %v3326
      %v3350 = vadd.f32 %v3222, %v3318
      %v3351 = vadd.f32 %v3223, %v3310
      %v3352 = vadd.f32 %v3224, %v3302
      %v3353 = vadd.f32 %v3225, %v3327
      %v3354 = vadd.f32 %v3226, %v3319
      %v3355 = vadd.f32 %v3227, %v3311
      %v3356 = vadd.f32 %v3228, %v3303
      %v3357 = vadd.f32 %v3229, %v3328
      %v3358 = vadd.f32 %v3230, %v3320
      %v3359 = vadd.f32 %v3231, %v3312
      %v3360 = vadd.f32 %v3232, %v3304
      %3361 = vrot.lane.b32.xlu0 %v2594, 22
      %v3362 = vpop.permute.xlu0 %3361
      %3363 = vrot.lane.b32.xlu0 %v2598, 22
      %v3364 = vpop.permute.xlu0 %3363
      %3365 = vrot.lane.b32.xlu0 %v2604, 22
      %v3366 = vpop.permute.xlu0 %3365
      %3367 = vrot.lane.b32.xlu0 %v2608, 22
      %v3368 = vpop.permute.xlu0 %3367
      %3369 = vrot.lane.b32.xlu0 %v2614, 22
      %v3370 = vpop.permute.xlu0 %3369
      %3371 = vrot.lane.b32.xlu0 %v2618, 22
      %v3372 = vpop.permute.xlu0 %3371
      %3373 = vrot.lane.b32.xlu0 %v2624, 22
      %v3374 = vpop.permute.xlu0 %3373
      %3375 = vrot.lane.b32.xlu0 %v2628, 22
      %v3376 = vpop.permute.xlu0 %3375
      %3377 = vrot.lane.b32.xlu0 %v2596, 22
      %v3378 = vpop.permute.xlu0 %3377
      %3379 = vrot.lane.b32.xlu0 %v2600, 22
      %v3380 = vpop.permute.xlu0 %3379
      %3381 = vrot.lane.b32.xlu0 %v2606, 22
      %v3382 = vpop.permute.xlu0 %3381
      %3383 = vrot.lane.b32.xlu0 %v2610, 22
      %v3384 = vpop.permute.xlu0 %3383
      %3385 = vrot.lane.b32.xlu0 %v2616, 22
      %v3386 = vpop.permute.xlu0 %3385
      %3387 = vrot.lane.b32.xlu0 %v2620, 22
      %v3388 = vpop.permute.xlu0 %3387
      %3389 = vrot.lane.b32.xlu0 %v2626, 22
      %v3390 = vpop.permute.xlu0 %3389
      %3391 = vrot.lane.b32.xlu0 %v2630, 22
      %v3392 = vpop.permute.xlu0 %3391
      %3393 = vrot.lane.b32.xlu0 %v2907, 22
      %v3394 = vpop.permute.xlu0 %3393
      %3395 = vrot.lane.b32.xlu0 %v2911, 22
      %v3396 = vpop.permute.xlu0 %3395
      %3397 = vrot.lane.b32.xlu0 %v2917, 22
      %v3398 = vpop.permute.xlu0 %3397
      %3399 = vrot.lane.b32.xlu0 %v2921, 22
      %v3400 = vpop.permute.xlu0 %3399
      %3401 = vrot.lane.b32.xlu0 %v2927, 22
      %v3402 = vpop.permute.xlu0 %3401
      %3403 = vrot.lane.b32.xlu0 %v2931, 22
      %v3404 = vpop.permute.xlu0 %3403
      %3405 = vrot.lane.b32.xlu0 %v2937, 22
      %v3406 = vpop.permute.xlu0 %3405
      %3407 = vrot.lane.b32.xlu0 %v2941, 22
      %v3408 = vpop.permute.xlu0 %3407
      %3409 = vrot.lane.b32.xlu0 %v2909, 22
      %v3410 = vpop.permute.xlu0 %3409
      %3411 = vrot.lane.b32.xlu0 %v2913, 22
      %v3412 = vpop.permute.xlu0 %3411
      %3413 = vrot.lane.b32.xlu0 %v2919, 22
      %v3414 = vpop.permute.xlu0 %3413
      %3415 = vrot.lane.b32.xlu0 %v2923, 22
      %v3416 = vpop.permute.xlu0 %3415
      %3417 = vrot.lane.b32.xlu0 %v2929, 22
      %v3418 = vpop.permute.xlu0 %3417
      %3419 = vrot.lane.b32.xlu0 %v2933, 22
      %v3420 = vpop.permute.xlu0 %3419
      %3421 = vrot.lane.b32.xlu0 %v2939, 22
      %v3422 = vpop.permute.xlu0 %3421
      %3423 = vrot.lane.b32.xlu0 %v2943, 22
      %v3424 = vpop.permute.xlu0 %3423
      %v3425 = vsel %vm1309, %v3394, %v3410
      %v3426 = vsel %vm1309, %v3396, %v3412
      %v3427 = vsel %vm1309, %v3398, %v3414
      %v3428 = vsel %vm1309, %v3400, %v3416
      %v3429 = vsel %vm1309, %v3402, %v3418
      %v3430 = vsel %vm1309, %v3404, %v3420
      %v3431 = vsel %vm1309, %v3406, %v3422
      %v3432 = vsel %vm1309, %v3408, %v3424
      %v3433 = vsel %vm1309, %v3378, %v3394
      %v3434 = vsel %vm1309, %v3380, %v3396
      %v3435 = vsel %vm1309, %v3382, %v3398
      %v3436 = vsel %vm1309, %v3384, %v3400
      %v3437 = vsel %vm1309, %v3386, %v3402
      %v3438 = vsel %vm1309, %v3388, %v3404
      %v3439 = vsel %vm1309, %v3390, %v3406
      %v3440 = vsel %vm1309, %v3392, %v3408
      %v3441 = vsel %vm1309, %v3362, %v3378
      %v3442 = vsel %vm1309, %v3364, %v3380
      %v3443 = vsel %vm1309, %v3366, %v3382
      %v3444 = vsel %vm1309, %v3368, %v3384
      %v3445 = vsel %vm1309, %v3370, %v3386
      %v3446 = vsel %vm1309, %v3372, %v3388
      %v3447 = vsel %vm1309, %v3374, %v3390
      %v3448 = vsel %vm1309, %v3376, %v3392
      %v3449 = vsel %vm1309, %v3410, %v3362
      %v3450 = vsel %vm1309, %v3412, %v3364
      %v3451 = vsel %vm1309, %v3414, %v3366
      %v3452 = vsel %vm1309, %v3416, %v3368
      %v3453 = vsel %vm1309, %v3418, %v3370
      %v3454 = vsel %vm1309, %v3420, %v3372
      %v3455 = vsel %vm1309, %v3422, %v3374
      %v3456 = vsel %vm1309, %v3424, %v3376
      %v3457 = vadd.f32 %v3329, %v3449
      %v3458 = vadd.f32 %v3330, %v3441
      %v3459 = vadd.f32 %v3331, %v3433
      %v3460 = vadd.f32 %v3332, %v3425
      %v3461 = vadd.f32 %v3333, %v3450
      %v3462 = vadd.f32 %v3334, %v3442
      %v3463 = vadd.f32 %v3335, %v3434
      %v3464 = vadd.f32 %v3336, %v3426
      %v3465 = vadd.f32 %v3337, %v3451
      %v3466 = vadd.f32 %v3338, %v3443
      %v3467 = vadd.f32 %v3339, %v3435
      %v3468 = vadd.f32 %v3340, %v3427
      %v3469 = vadd.f32 %v3341, %v3452
      %v3470 = vadd.f32 %v3342, %v3444
      %v3471 = vadd.f32 %v3343, %v3436
      %v3472 = vadd.f32 %v3344, %v3428
      %v3473 = vadd.f32 %v3345, %v3453
      %v3474 = vadd.f32 %v3346, %v3445
      %v3475 = vadd.f32 %v3347, %v3437
      %v3476 = vadd.f32 %v3348, %v3429
      %v3477 = vadd.f32 %v3349, %v3454
      %v3478 = vadd.f32 %v3350, %v3446
      %v3479 = vadd.f32 %v3351, %v3438
      %v3480 = vadd.f32 %v3352, %v3430
      %v3481 = vadd.f32 %v3353, %v3455
      %v3482 = vadd.f32 %v3354, %v3447
      %v3483 = vadd.f32 %v3355, %v3439
      %v3484 = vadd.f32 %v3356, %v3431
      %v3485 = vadd.f32 %v3357, %v3456
      %v3486 = vadd.f32 %v3358, %v3448
      %v3487 = vadd.f32 %v3359, %v3440
      %v3488 = vadd.f32 %v3360, %v3432
      %3489 = vrot.lane.b32.xlu0 %v2674, 106
      %v3490 = vpop.permute.xlu0 %3489
      %3491 = vrot.lane.b32.xlu0 %v2678, 106
      %v3492 = vpop.permute.xlu0 %3491
      %3493 = vrot.lane.b32.xlu0 %v2684, 106
      %v3494 = vpop.permute.xlu0 %3493
      %3495 = vrot.lane.b32.xlu0 %v2688, 106
      %v3496 = vpop.permute.xlu0 %3495
      %3497 = vrot.lane.b32.xlu0 %v2694, 106
      %v3498 = vpop.permute.xlu0 %3497
      %3499 = vrot.lane.b32.xlu0 %v2698, 106
      %v3500 = vpop.permute.xlu0 %3499
      %3501 = vrot.lane.b32.xlu0 %v2704, 106
      %v3502 = vpop.permute.xlu0 %3501
      %3503 = vrot.lane.b32.xlu0 %v2708, 106
      %v3504 = vpop.permute.xlu0 %3503
      %3505 = vrot.lane.b32.xlu0 %v2676, 106
      %v3506 = vpop.permute.xlu0 %3505
      %3507 = vrot.lane.b32.xlu0 %v2680, 106
      %v3508 = vpop.permute.xlu0 %3507
      %3509 = vrot.lane.b32.xlu0 %v2686, 106
      %v3510 = vpop.permute.xlu0 %3509
      %3511 = vrot.lane.b32.xlu0 %v2690, 106
      %v3512 = vpop.permute.xlu0 %3511
      %3513 = vrot.lane.b32.xlu0 %v2696, 106
      %v3514 = vpop.permute.xlu0 %3513
      %3515 = vrot.lane.b32.xlu0 %v2700, 106
      %v3516 = vpop.permute.xlu0 %3515
      %3517 = vrot.lane.b32.xlu0 %v2706, 106
      %v3518 = vpop.permute.xlu0 %3517
      %3519 = vrot.lane.b32.xlu0 %v2710, 106
      %v3520 = vpop.permute.xlu0 %3519
      %3521 = vrot.lane.b32.xlu0 %v2987, 106
      %v3522 = vpop.permute.xlu0 %3521
      %3523 = vrot.lane.b32.xlu0 %v2991, 106
      %v3524 = vpop.permute.xlu0 %3523
      %3525 = vrot.lane.b32.xlu0 %v2997, 106
      %v3526 = vpop.permute.xlu0 %3525
      %3527 = vrot.lane.b32.xlu0 %v3001, 106
      %v3528 = vpop.permute.xlu0 %3527
      %3529 = vrot.lane.b32.xlu0 %v3007, 106
      %v3530 = vpop.permute.xlu0 %3529
      %3531 = vrot.lane.b32.xlu0 %v3011, 106
      %v3532 = vpop.permute.xlu0 %3531
      %3533 = vrot.lane.b32.xlu0 %v3017, 106
      %v3534 = vpop.permute.xlu0 %3533
      %3535 = vrot.lane.b32.xlu0 %v3021, 106
      %v3536 = vpop.permute.xlu0 %3535
      %3537 = vrot.lane.b32.xlu0 %v2989, 106
      %v3538 = vpop.permute.xlu0 %3537
      %3539 = vrot.lane.b32.xlu0 %v2993, 106
      %v3540 = vpop.permute.xlu0 %3539
      %3541 = vrot.lane.b32.xlu0 %v2999, 106
      %v3542 = vpop.permute.xlu0 %3541
      %3543 = vrot.lane.b32.xlu0 %v3003, 106
      %v3544 = vpop.permute.xlu0 %3543
      %3545 = vrot.lane.b32.xlu0 %v3009, 106
      %v3546 = vpop.permute.xlu0 %3545
      %3547 = vrot.lane.b32.xlu0 %v3013, 106
      %v3548 = vpop.permute.xlu0 %3547
      %3549 = vrot.lane.b32.xlu0 %v3019, 106
      %v3550 = vpop.permute.xlu0 %3549
      %3551 = vrot.lane.b32.xlu0 %v3023, 106
      %v3552 = vpop.permute.xlu0 %3551
      %v3553 = vsel %vm1374, %v3522, %v3538
      %v3554 = vsel %vm1374, %v3524, %v3540
      %v3555 = vsel %vm1374, %v3526, %v3542
      %v3556 = vsel %vm1374, %v3528, %v3544
      %v3557 = vsel %vm1374, %v3530, %v3546
      %v3558 = vsel %vm1374, %v3532, %v3548
      %v3559 = vsel %vm1374, %v3534, %v3550
      %v3560 = vsel %vm1374, %v3536, %v3552
      %v3561 = vsel %vm1374, %v3506, %v3522
      %v3562 = vsel %vm1374, %v3508, %v3524
      %v3563 = vsel %vm1374, %v3510, %v3526
      %v3564 = vsel %vm1374, %v3512, %v3528
      %v3565 = vsel %vm1374, %v3514, %v3530
      %v3566 = vsel %vm1374, %v3516, %v3532
      %v3567 = vsel %vm1374, %v3518, %v3534
      %v3568 = vsel %vm1374, %v3520, %v3536
      %v3569 = vsel %vm1374, %v3490, %v3506
      %v3570 = vsel %vm1374, %v3492, %v3508
      %v3571 = vsel %vm1374, %v3494, %v3510
      %v3572 = vsel %vm1374, %v3496, %v3512
      %v3573 = vsel %vm1374, %v3498, %v3514
      %v3574 = vsel %vm1374, %v3500, %v3516
      %v3575 = vsel %vm1374, %v3502, %v3518
      %v3576 = vsel %vm1374, %v3504, %v3520
      %v3577 = vsel %vm1374, %v3538, %v3490
      %v3578 = vsel %vm1374, %v3540, %v3492
      %v3579 = vsel %vm1374, %v3542, %v3494
      %v3580 = vsel %vm1374, %v3544, %v3496
      %v3581 = vsel %vm1374, %v3546, %v3498
      %v3582 = vsel %vm1374, %v3548, %v3500
      %v3583 = vsel %vm1374, %v3550, %v3502
      %v3584 = vsel %vm1374, %v3552, %v3504
      %v3585 = vadd.f32 %v3457, %v3569
      %v3586 = vadd.f32 %v3458, %v3561
      %v3587 = vadd.f32 %v3459, %v3553
      %v3588 = vadd.f32 %v3460, %v3577
      %v3589 = vadd.f32 %v3461, %v3570
      %v3590 = vadd.f32 %v3462, %v3562
      %v3591 = vadd.f32 %v3463, %v3554
      %v3592 = vadd.f32 %v3464, %v3578
      %v3593 = vadd.f32 %v3465, %v3571
      %v3594 = vadd.f32 %v3466, %v3563
      %v3595 = vadd.f32 %v3467, %v3555
      %v3596 = vadd.f32 %v3468, %v3579
      %v3597 = vadd.f32 %v3469, %v3572
      %v3598 = vadd.f32 %v3470, %v3564
      %v3599 = vadd.f32 %v3471, %v3556
      %v3600 = vadd.f32 %v3472, %v3580
      %v3601 = vadd.f32 %v3473, %v3573
      %v3602 = vadd.f32 %v3474, %v3565
      %v3603 = vadd.f32 %v3475, %v3557
      %v3604 = vadd.f32 %v3476, %v3581
      %v3605 = vadd.f32 %v3477, %v3574
      %v3606 = vadd.f32 %v3478, %v3566
      %v3607 = vadd.f32 %v3479, %v3558
      %v3608 = vadd.f32 %v3480, %v3582
      %v3609 = vadd.f32 %v3481, %v3575
      %v3610 = vadd.f32 %v3482, %v3567
      %v3611 = vadd.f32 %v3483, %v3559
      %v3612 = vadd.f32 %v3484, %v3583
      %v3613 = vadd.f32 %v3485, %v3576
      %v3614 = vadd.f32 %v3486, %v3568
      %v3615 = vadd.f32 %v3487, %v3560
      %v3616 = vadd.f32 %v3488, %v3584
      %3617 = vrot.lane.b32.xlu0 %v2714, 84
      %v3618 = vpop.permute.xlu0 %3617
      %3619 = vrot.lane.b32.xlu0 %v2718, 84
      %v3620 = vpop.permute.xlu0 %3619
      %3621 = vrot.lane.b32.xlu0 %v2724, 84
      %v3622 = vpop.permute.xlu0 %3621
      %3623 = vrot.lane.b32.xlu0 %v2728, 84
      %v3624 = vpop.permute.xlu0 %3623
      %3625 = vrot.lane.b32.xlu0 %v2734, 84
      %v3626 = vpop.permute.xlu0 %3625
      %3627 = vrot.lane.b32.xlu0 %v2738, 84
      %v3628 = vpop.permute.xlu0 %3627
      %3629 = vrot.lane.b32.xlu0 %v2744, 84
      %v3630 = vpop.permute.xlu0 %3629
      %3631 = vrot.lane.b32.xlu0 %v2748, 84
      %v3632 = vpop.permute.xlu0 %3631
      %3633 = vrot.lane.b32.xlu0 %v2716, 84
      %v3634 = vpop.permute.xlu0 %3633
      %3635 = vrot.lane.b32.xlu0 %v2720, 84
      %v3636 = vpop.permute.xlu0 %3635
      %3637 = vrot.lane.b32.xlu0 %v2726, 84
      %v3638 = vpop.permute.xlu0 %3637
      %3639 = vrot.lane.b32.xlu0 %v2730, 84
      %v3640 = vpop.permute.xlu0 %3639
      %3641 = vrot.lane.b32.xlu0 %v2736, 84
      %v3642 = vpop.permute.xlu0 %3641
      %3643 = vrot.lane.b32.xlu0 %v2740, 84
      %v3644 = vpop.permute.xlu0 %3643
      %3645 = vrot.lane.b32.xlu0 %v2746, 84
      %v3646 = vpop.permute.xlu0 %3645
      %3647 = vrot.lane.b32.xlu0 %v2750, 84
      %v3648 = vpop.permute.xlu0 %3647
      %3649 = vrot.lane.b32.xlu0 %v3027, 84
      %v3650 = vpop.permute.xlu0 %3649
      %3651 = vrot.lane.b32.xlu0 %v3031, 84
      %v3652 = vpop.permute.xlu0 %3651
      %3653 = vrot.lane.b32.xlu0 %v3037, 84
      %v3654 = vpop.permute.xlu0 %3653
      %3655 = vrot.lane.b32.xlu0 %v3041, 84
      %v3656 = vpop.permute.xlu0 %3655
      %3657 = vrot.lane.b32.xlu0 %v3047, 84
      %v3658 = vpop.permute.xlu0 %3657
      %3659 = vrot.lane.b32.xlu0 %v3051, 84
      %v3660 = vpop.permute.xlu0 %3659
      %3661 = vrot.lane.b32.xlu0 %v3057, 84
      %v3662 = vpop.permute.xlu0 %3661
      %3663 = vrot.lane.b32.xlu0 %v3061, 84
      %v3664 = vpop.permute.xlu0 %3663
      %3665 = vrot.lane.b32.xlu0 %v3029, 84
      %v3666 = vpop.permute.xlu0 %3665
      %3667 = vrot.lane.b32.xlu0 %v3033, 84
      %v3668 = vpop.permute.xlu0 %3667
      %3669 = vrot.lane.b32.xlu0 %v3039, 84
      %v3670 = vpop.permute.xlu0 %3669
      %3671 = vrot.lane.b32.xlu0 %v3043, 84
      %v3672 = vpop.permute.xlu0 %3671
      %3673 = vrot.lane.b32.xlu0 %v3049, 84
      %v3674 = vpop.permute.xlu0 %3673
      %3675 = vrot.lane.b32.xlu0 %v3053, 84
      %v3676 = vpop.permute.xlu0 %3675
      %3677 = vrot.lane.b32.xlu0 %v3059, 84
      %v3678 = vpop.permute.xlu0 %3677
      %3679 = vrot.lane.b32.xlu0 %v3063, 84
      %v3680 = vpop.permute.xlu0 %3679
      %v3681 = vsel %vm1439, %v3650, %v3666
      %v3682 = vsel %vm1439, %v3652, %v3668
      %v3683 = vsel %vm1439, %v3654, %v3670
      %v3684 = vsel %vm1439, %v3656, %v3672
      %v3685 = vsel %vm1439, %v3658, %v3674
      %v3686 = vsel %vm1439, %v3660, %v3676
      %v3687 = vsel %vm1439, %v3662, %v3678
      %v3688 = vsel %vm1439, %v3664, %v3680
      %v3689 = vsel %vm1439, %v3634, %v3650
      %v3690 = vsel %vm1439, %v3636, %v3652
      %v3691 = vsel %vm1439, %v3638, %v3654
      %v3692 = vsel %vm1439, %v3640, %v3656
      %v3693 = vsel %vm1439, %v3642, %v3658
      %v3694 = vsel %vm1439, %v3644, %v3660
      %v3695 = vsel %vm1439, %v3646, %v3662
      %v3696 = vsel %vm1439, %v3648, %v3664
      %v3697 = vsel %vm1439, %v3618, %v3634
      %v3698 = vsel %vm1439, %v3620, %v3636
      %v3699 = vsel %vm1439, %v3622, %v3638
      %v3700 = vsel %vm1439, %v3624, %v3640
      %v3701 = vsel %vm1439, %v3626, %v3642
      %v3702 = vsel %vm1439, %v3628, %v3644
      %v3703 = vsel %vm1439, %v3630, %v3646
      %v3704 = vsel %vm1439, %v3632, %v3648
      %v3705 = vsel %vm1439, %v3666, %v3618
      %v3706 = vsel %vm1439, %v3668, %v3620
      %v3707 = vsel %vm1439, %v3670, %v3622
      %v3708 = vsel %vm1439, %v3672, %v3624
      %v3709 = vsel %vm1439, %v3674, %v3626
      %v3710 = vsel %vm1439, %v3676, %v3628
      %v3711 = vsel %vm1439, %v3678, %v3630
      %v3712 = vsel %vm1439, %v3680, %v3632
      %v3713 = vadd.f32 %v3585, %v3697
      %v3714 = vadd.f32 %v3586, %v3689
      %v3715 = vadd.f32 %v3587, %v3681
      %v3716 = vadd.f32 %v3588, %v3705
      %v3717 = vadd.f32 %v3589, %v3698
      %v3718 = vadd.f32 %v3590, %v3690
      %v3719 = vadd.f32 %v3591, %v3682
      %v3720 = vadd.f32 %v3592, %v3706
      %v3721 = vadd.f32 %v3593, %v3699
      %v3722 = vadd.f32 %v3594, %v3691
      %v3723 = vadd.f32 %v3595, %v3683
      %v3724 = vadd.f32 %v3596, %v3707
      %v3725 = vadd.f32 %v3597, %v3700
      %v3726 = vadd.f32 %v3598, %v3692
      %v3727 = vadd.f32 %v3599, %v3684
      %v3728 = vadd.f32 %v3600, %v3708
      %v3729 = vadd.f32 %v3601, %v3701
      %v3730 = vadd.f32 %v3602, %v3693
      %v3731 = vadd.f32 %v3603, %v3685
      %v3732 = vadd.f32 %v3604, %v3709
      %v3733 = vadd.f32 %v3605, %v3702
      %v3734 = vadd.f32 %v3606, %v3694
      %v3735 = vadd.f32 %v3607, %v3686
      %v3736 = vadd.f32 %v3608, %v3710
      %v3737 = vadd.f32 %v3609, %v3703
      %v3738 = vadd.f32 %v3610, %v3695
      %v3739 = vadd.f32 %v3611, %v3687
      %v3740 = vadd.f32 %v3612, %v3711
      %v3741 = vadd.f32 %v3613, %v3704
      %v3742 = vadd.f32 %v3614, %v3696
      %v3743 = vadd.f32 %v3615, %v3688
      %v3744 = vadd.f32 %v3616, %v3712
      %3745 = vrot.lane.b32.xlu0 %v2754, 62
      %v3746 = vpop.permute.xlu0 %3745
      %3747 = vrot.lane.b32.xlu0 %v2758, 62
      %v3748 = vpop.permute.xlu0 %3747
      %3749 = vrot.lane.b32.xlu0 %v2764, 62
      %v3750 = vpop.permute.xlu0 %3749
      %3751 = vrot.lane.b32.xlu0 %v2768, 62
      %v3752 = vpop.permute.xlu0 %3751
      %3753 = vrot.lane.b32.xlu0 %v2774, 62
      %v3754 = vpop.permute.xlu0 %3753
      %3755 = vrot.lane.b32.xlu0 %v2778, 62
      %v3756 = vpop.permute.xlu0 %3755
      %3757 = vrot.lane.b32.xlu0 %v2784, 62
      %v3758 = vpop.permute.xlu0 %3757
      %3759 = vrot.lane.b32.xlu0 %v2788, 62
      %v3760 = vpop.permute.xlu0 %3759
      %3761 = vrot.lane.b32.xlu0 %v2756, 62
      %v3762 = vpop.permute.xlu0 %3761
      %3763 = vrot.lane.b32.xlu0 %v2760, 62
      %v3764 = vpop.permute.xlu0 %3763
      %3765 = vrot.lane.b32.xlu0 %v2766, 62
      %v3766 = vpop.permute.xlu0 %3765
      %3767 = vrot.lane.b32.xlu0 %v2770, 62
      %v3768 = vpop.permute.xlu0 %3767
      %3769 = vrot.lane.b32.xlu0 %v2776, 62
      %v3770 = vpop.permute.xlu0 %3769
      %3771 = vrot.lane.b32.xlu0 %v2780, 62
      %v3772 = vpop.permute.xlu0 %3771
      %3773 = vrot.lane.b32.xlu0 %v2786, 62
      %v3774 = vpop.permute.xlu0 %3773
      %3775 = vrot.lane.b32.xlu0 %v2790, 62
      %v3776 = vpop.permute.xlu0 %3775
      %3777 = vrot.lane.b32.xlu0 %v3067, 62
      %v3778 = vpop.permute.xlu0 %3777
      %3779 = vrot.lane.b32.xlu0 %v3071, 62
      %v3780 = vpop.permute.xlu0 %3779
      %3781 = vrot.lane.b32.xlu0 %v3077, 62
      %v3782 = vpop.permute.xlu0 %3781
      %3783 = vrot.lane.b32.xlu0 %v3081, 62
      %v3784 = vpop.permute.xlu0 %3783
      %3785 = vrot.lane.b32.xlu0 %v3087, 62
      %v3786 = vpop.permute.xlu0 %3785
      %3787 = vrot.lane.b32.xlu0 %v3091, 62
      %v3788 = vpop.permute.xlu0 %3787
      %3789 = vrot.lane.b32.xlu0 %v3097, 62
      %v3790 = vpop.permute.xlu0 %3789
      %3791 = vrot.lane.b32.xlu0 %v3101, 62
      %v3792 = vpop.permute.xlu0 %3791
      %3793 = vrot.lane.b32.xlu0 %v3069, 62
      %v3794 = vpop.permute.xlu0 %3793
      %3795 = vrot.lane.b32.xlu0 %v3073, 62
      %v3796 = vpop.permute.xlu0 %3795
      %3797 = vrot.lane.b32.xlu0 %v3079, 62
      %v3798 = vpop.permute.xlu0 %3797
      %3799 = vrot.lane.b32.xlu0 %v3083, 62
      %v3800 = vpop.permute.xlu0 %3799
      %3801 = vrot.lane.b32.xlu0 %v3089, 62
      %v3802 = vpop.permute.xlu0 %3801
      %3803 = vrot.lane.b32.xlu0 %v3093, 62
      %v3804 = vpop.permute.xlu0 %3803
      %3805 = vrot.lane.b32.xlu0 %v3099, 62
      %v3806 = vpop.permute.xlu0 %3805
      %3807 = vrot.lane.b32.xlu0 %v3103, 62
      %v3808 = vpop.permute.xlu0 %3807
      %v3809 = vsel %vm1504, %v3778, %v3794
      %v3810 = vsel %vm1504, %v3780, %v3796
      %v3811 = vsel %vm1504, %v3782, %v3798
      %v3812 = vsel %vm1504, %v3784, %v3800
      %v3813 = vsel %vm1504, %v3786, %v3802
      %v3814 = vsel %vm1504, %v3788, %v3804
      %v3815 = vsel %vm1504, %v3790, %v3806
      %v3816 = vsel %vm1504, %v3792, %v3808
      %v3817 = vsel %vm1504, %v3762, %v3778
      %v3818 = vsel %vm1504, %v3764, %v3780
      %v3819 = vsel %vm1504, %v3766, %v3782
      %v3820 = vsel %vm1504, %v3768, %v3784
      %v3821 = vsel %vm1504, %v3770, %v3786
      %v3822 = vsel %vm1504, %v3772, %v3788
      %v3823 = vsel %vm1504, %v3774, %v3790
      %v3824 = vsel %vm1504, %v3776, %v3792
      %v3825 = vsel %vm1504, %v3746, %v3762
      %v3826 = vsel %vm1504, %v3748, %v3764
      %v3827 = vsel %vm1504, %v3750, %v3766
      %v3828 = vsel %vm1504, %v3752, %v3768
      %v3829 = vsel %vm1504, %v3754, %v3770
      %v3830 = vsel %vm1504, %v3756, %v3772
      %v3831 = vsel %vm1504, %v3758, %v3774
      %v3832 = vsel %vm1504, %v3760, %v3776
      %v3833 = vsel %vm1504, %v3794, %v3746
      %v3834 = vsel %vm1504, %v3796, %v3748
      %v3835 = vsel %vm1504, %v3798, %v3750
      %v3836 = vsel %vm1504, %v3800, %v3752
      %v3837 = vsel %vm1504, %v3802, %v3754
      %v3838 = vsel %vm1504, %v3804, %v3756
      %v3839 = vsel %vm1504, %v3806, %v3758
      %v3840 = vsel %vm1504, %v3808, %v3760
      %v3841 = vadd.f32 %v3713, %v3825
      %v3842 = vadd.f32 %v3714, %v3817
      %v3843 = vadd.f32 %v3715, %v3809
      %v3844 = vadd.f32 %v3716, %v3833
      %v3845 = vadd.f32 %v3717, %v3826
      %v3846 = vadd.f32 %v3718, %v3818
      %v3847 = vadd.f32 %v3719, %v3810
      %v3848 = vadd.f32 %v3720, %v3834
      %v3849 = vadd.f32 %v3721, %v3827
      %v3850 = vadd.f32 %v3722, %v3819
      %v3851 = vadd.f32 %v3723, %v3811
      %v3852 = vadd.f32 %v3724, %v3835
      %v3853 = vadd.f32 %v3725, %v3828
      %v3854 = vadd.f32 %v3726, %v3820
      %v3855 = vadd.f32 %v3727, %v3812
      %v3856 = vadd.f32 %v3728, %v3836
      %v3857 = vadd.f32 %v3729, %v3829
      %v3858 = vadd.f32 %v3730, %v3821
      %v3859 = vadd.f32 %v3731, %v3813
      %v3860 = vadd.f32 %v3732, %v3837
      %v3861 = vadd.f32 %v3733, %v3830
      %v3862 = vadd.f32 %v3734, %v3822
      %v3863 = vadd.f32 %v3735, %v3814
      %v3864 = vadd.f32 %v3736, %v3838
      %v3865 = vadd.f32 %v3737, %v3831
      %v3866 = vadd.f32 %v3738, %v3823
      %v3867 = vadd.f32 %v3739, %v3815
      %v3868 = vadd.f32 %v3740, %v3839
      %v3869 = vadd.f32 %v3741, %v3832
      %v3870 = vadd.f32 %v3742, %v3824
      %v3871 = vadd.f32 %v3743, %v3816
      %v3872 = vadd.f32 %v3744, %v3840
      %v3873 = vld [vmem:[%s5] sm:$0xff]
      %v3874 = vld [vmem:[%s5 + $0x8] sm:$0xff]
      %v3875 = vld [vmem:[%s5 + $0x10] sm:$0xff]
      %v3876 = vld [vmem:[%s5 + $0x18] sm:$0xff]
      %v3877 = vld [vmem:[%s5 + $0x20] sm:$0xff]
      %v3878 = vld [vmem:[%s5 + $0x28] sm:$0xff]
      %v3879 = vld [vmem:[%s5 + $0x30] sm:$0xff]
      %v3880 = vld [vmem:[%s5 + $0x38] sm:$0xff]
      %3882 = vset.pattern.permute.xlu0 0
      %3883 = vperm.xlu0 %3882, %v3873
      %v3884 = vpop.permute.xlu0 %3883
      %3887 = vset.pattern.permute.xlu0 0
      %3888 = vperm.xlu0 %3887, %v3874
      %v3889 = vpop.permute.xlu0 %3888
      %3892 = vset.pattern.permute.xlu0 0
      %3893 = vperm.xlu0 %3892, %v3875
      %v3894 = vpop.permute.xlu0 %3893
      %3897 = vset.pattern.permute.xlu0 0
      %3898 = vperm.xlu0 %3897, %v3876
      %v3899 = vpop.permute.xlu0 %3898
      %3902 = vset.pattern.permute.xlu0 0
      %3903 = vperm.xlu0 %3902, %v3877
      %v3904 = vpop.permute.xlu0 %3903
      %3907 = vset.pattern.permute.xlu0 0
      %3908 = vperm.xlu0 %3907, %v3878
      %v3909 = vpop.permute.xlu0 %3908
      %3912 = vset.pattern.permute.xlu0 0
      %3913 = vperm.xlu0 %3912, %v3879
      %v3914 = vpop.permute.xlu0 %3913
      %3917 = vset.pattern.permute.xlu0 0
      %3918 = vperm.xlu0 %3917, %v3880
      %v3919 = vpop.permute.xlu0 %3918
      %v3921 = vadd.f32 %v3841, %v3884
      %v3922 = vadd.f32 %v3842, %v3884
      %v3923 = vadd.f32 %v3843, %v3884
      %v3924 = vadd.f32 %v3844, %v3884
      %v3925 = vadd.f32 %v3845, %v3889
      %v3926 = vadd.f32 %v3846, %v3889
      %v3927 = vadd.f32 %v3847, %v3889
      %v3928 = vadd.f32 %v3848, %v3889
      %v3929 = vadd.f32 %v3849, %v3894
      %v3930 = vadd.f32 %v3850, %v3894
      %v3931 = vadd.f32 %v3851, %v3894
      %v3932 = vadd.f32 %v3852, %v3894
      %v3933 = vadd.f32 %v3853, %v3899
      %v3934 = vadd.f32 %v3854, %v3899
      %v3935 = vadd.f32 %v3855, %v3899
      %v3936 = vadd.f32 %v3856, %v3899
      %v3937 = vadd.f32 %v3857, %v3904
      %v3938 = vadd.f32 %v3858, %v3904
      %v3939 = vadd.f32 %v3859, %v3904
      %v3940 = vadd.f32 %v3860, %v3904
      %v3941 = vadd.f32 %v3861, %v3909
      %v3942 = vadd.f32 %v3862, %v3909
      %v3943 = vadd.f32 %v3863, %v3909
      %v3944 = vadd.f32 %v3864, %v3909
      %v3945 = vadd.f32 %v3865, %v3914
      %v3946 = vadd.f32 %v3866, %v3914
      %v3947 = vadd.f32 %v3867, %v3914
      %v3948 = vadd.f32 %v3868, %v3914
      %v3949 = vadd.f32 %v3869, %v3919
      %v3950 = vadd.f32 %v3870, %v3919
      %v3951 = vadd.f32 %v3871, %v3919
      %v3952 = vadd.f32 %v3872, %v3919
      %v3953 = vmax.f32 %v3921, 0.0
      %v3954 = vmax.f32 %v3922, 0.0
      %v3955 = vmax.f32 %v3923, 0.0
      %v3956 = vmax.f32 %v3924, 0.0
      %v3957 = vmax.f32 %v3925, 0.0
      %v3958 = vmax.f32 %v3926, 0.0
      %v3959 = vmax.f32 %v3927, 0.0
      %v3960 = vmax.f32 %v3928, 0.0
      %v3961 = vmax.f32 %v3929, 0.0
      %v3962 = vmax.f32 %v3930, 0.0
      %v3963 = vmax.f32 %v3931, 0.0
      %v3964 = vmax.f32 %v3932, 0.0
      %v3965 = vmax.f32 %v3933, 0.0
      %v3966 = vmax.f32 %v3934, 0.0
      %v3967 = vmax.f32 %v3935, 0.0
      %v3968 = vmax.f32 %v3936, 0.0
      %v3969 = vmax.f32 %v3937, 0.0
      %v3970 = vmax.f32 %v3938, 0.0
      %v3971 = vmax.f32 %v3939, 0.0
      %v3972 = vmax.f32 %v3940, 0.0
      %v3973 = vmax.f32 %v3941, 0.0
      %v3974 = vmax.f32 %v3942, 0.0
      %v3975 = vmax.f32 %v3943, 0.0
      %v3976 = vmax.f32 %v3944, 0.0
      %v3977 = vmax.f32 %v3945, 0.0
      %v3978 = vmax.f32 %v3946, 0.0
      %v3979 = vmax.f32 %v3947, 0.0
      %v3980 = vmax.f32 %v3948, 0.0
      %v3981 = vmax.f32 %v3949, 0.0
      %v3982 = vmax.f32 %v3950, 0.0
      %v3983 = vmax.f32 %v3951, 0.0
      %v3984 = vmax.f32 %v3952, 0.0
      %v3985 = vmul.f32 %v3953, %v1597
      %v3986 = vmul.f32 %v3954, %v1601
      %v3987 = vmul.f32 %v3955, %v1605
      %v3988 = vmul.f32 %v3956, %v1609
      %v3989 = vmul.f32 %v3957, %v1597
      %v3990 = vmul.f32 %v3958, %v1601
      %v3991 = vmul.f32 %v3959, %v1605
      %v3992 = vmul.f32 %v3960, %v1609
      %v3993 = vmul.f32 %v3961, %v1597
      %v3994 = vmul.f32 %v3962, %v1601
      %v3995 = vmul.f32 %v3963, %v1605
      %v3996 = vmul.f32 %v3964, %v1609
      %v3997 = vmul.f32 %v3965, %v1597
      %v3998 = vmul.f32 %v3966, %v1601
      %v3999 = vmul.f32 %v3967, %v1605
      %v4000 = vmul.f32 %v3968, %v1609
      %v4001 = vmul.f32 %v3969, %v1597
      %v4002 = vmul.f32 %v3970, %v1601
      %v4003 = vmul.f32 %v3971, %v1605
      %v4004 = vmul.f32 %v3972, %v1609
      %v4005 = vmul.f32 %v3973, %v1597
      %v4006 = vmul.f32 %v3974, %v1601
      %v4007 = vmul.f32 %v3975, %v1605
      %v4008 = vmul.f32 %v3976, %v1609
      %v4009 = vmul.f32 %v3977, %v1597
      %v4010 = vmul.f32 %v3978, %v1601
      %v4011 = vmul.f32 %v3979, %v1605
      %v4012 = vmul.f32 %v3980, %v1609
      %v4013 = vmul.f32 %v3981, %v1597
      %v4014 = vmul.f32 %v3982, %v1601
      %v4015 = vmul.f32 %v3983, %v1605
      %v4016 = vmul.f32 %v3984, %v1609
      %4017 = vrot.lane.b32.xlu0 %v3985, 3
      %v4018 = vpop.permute.xlu0 %4017
      %4019 = vrot.lane.b32.xlu0 %v3989, 3
      %v4020 = vpop.permute.xlu0 %4019
      %4021 = vrot.lane.b32.xlu0 %v3993, 3
      %v4022 = vpop.permute.xlu0 %4021
      %4023 = vrot.lane.b32.xlu0 %v3997, 3
      %v4024 = vpop.permute.xlu0 %4023
      %4025 = vrot.lane.b32.xlu0 %v4001, 3
      %v4026 = vpop.permute.xlu0 %4025
      %4027 = vrot.lane.b32.xlu0 %v4005, 3
      %v4028 = vpop.permute.xlu0 %4027
      %4029 = vrot.lane.b32.xlu0 %v4009, 3
      %v4030 = vpop.permute.xlu0 %4029
      %4031 = vrot.lane.b32.xlu0 %v4013, 3
      %v4032 = vpop.permute.xlu0 %4031
      %4033 = vrot.lane.b32.xlu0 %v3986, 3
      %v4034 = vpop.permute.xlu0 %4033
      %4035 = vrot.lane.b32.xlu0 %v3990, 3
      %v4036 = vpop.permute.xlu0 %4035
      %4037 = vrot.lane.b32.xlu0 %v3994, 3
      %v4038 = vpop.permute.xlu0 %4037
      %4039 = vrot.lane.b32.xlu0 %v3998, 3
      %v4040 = vpop.permute.xlu0 %4039
      %4041 = vrot.lane.b32.xlu0 %v4002, 3
      %v4042 = vpop.permute.xlu0 %4041
      %4043 = vrot.lane.b32.xlu0 %v4006, 3
      %v4044 = vpop.permute.xlu0 %4043
      %4045 = vrot.lane.b32.xlu0 %v4010, 3
      %v4046 = vpop.permute.xlu0 %4045
      %4047 = vrot.lane.b32.xlu0 %v4014, 3
      %v4048 = vpop.permute.xlu0 %4047
      %4049 = vrot.lane.b32.xlu0 %v3987, 3
      %v4050 = vpop.permute.xlu0 %4049
      %4051 = vrot.lane.b32.xlu0 %v3991, 3
      %v4052 = vpop.permute.xlu0 %4051
      %4053 = vrot.lane.b32.xlu0 %v3995, 3
      %v4054 = vpop.permute.xlu0 %4053
      %4055 = vrot.lane.b32.xlu0 %v3999, 3
      %v4056 = vpop.permute.xlu0 %4055
      %4057 = vrot.lane.b32.xlu0 %v4003, 3
      %v4058 = vpop.permute.xlu0 %4057
      %4059 = vrot.lane.b32.xlu0 %v4007, 3
      %v4060 = vpop.permute.xlu0 %4059
      %4061 = vrot.lane.b32.xlu0 %v4011, 3
      %v4062 = vpop.permute.xlu0 %4061
      %4063 = vrot.lane.b32.xlu0 %v4015, 3
      %v4064 = vpop.permute.xlu0 %4063
      %4065 = vrot.lane.b32.xlu0 %v3988, 3
      %v4066 = vpop.permute.xlu0 %4065
      %4067 = vrot.lane.b32.xlu0 %v3992, 3
      %v4068 = vpop.permute.xlu0 %4067
      %4069 = vrot.lane.b32.xlu0 %v3996, 3
      %v4070 = vpop.permute.xlu0 %4069
      %4071 = vrot.lane.b32.xlu0 %v4000, 3
      %v4072 = vpop.permute.xlu0 %4071
      %4073 = vrot.lane.b32.xlu0 %v4004, 3
      %v4074 = vpop.permute.xlu0 %4073
      %4075 = vrot.lane.b32.xlu0 %v4008, 3
      %v4076 = vpop.permute.xlu0 %4075
      %4077 = vrot.lane.b32.xlu0 %v4012, 3
      %v4078 = vpop.permute.xlu0 %4077
      %4079 = vrot.lane.b32.xlu0 %v4016, 3
      %v4080 = vpop.permute.xlu0 %4079
      %v4081 = vsel %vm442, %v4050, %v4066
      %v4082 = vsel %vm442, %v4052, %v4068
      %v4083 = vsel %vm442, %v4054, %v4070
      %v4084 = vsel %vm442, %v4056, %v4072
      %v4085 = vsel %vm442, %v4058, %v4074
      %v4086 = vsel %vm442, %v4060, %v4076
      %v4087 = vsel %vm442, %v4062, %v4078
      %v4088 = vsel %vm442, %v4064, %v4080
      %v4089 = vsel %vm442, %v4034, %v4050
      %v4090 = vsel %vm442, %v4036, %v4052
      %v4091 = vsel %vm442, %v4038, %v4054
      %v4092 = vsel %vm442, %v4040, %v4056
      %v4093 = vsel %vm442, %v4042, %v4058
      %v4094 = vsel %vm442, %v4044, %v4060
      %v4095 = vsel %vm442, %v4046, %v4062
      %v4096 = vsel %vm442, %v4048, %v4064
      %v4097 = vsel %vm442, %v4018, %v4034
      %v4098 = vsel %vm442, %v4020, %v4036
      %v4099 = vsel %vm442, %v4022, %v4038
      %v4100 = vsel %vm442, %v4024, %v4040
      %v4101 = vsel %vm442, %v4026, %v4042
      %v4102 = vsel %vm442, %v4028, %v4044
      %v4103 = vsel %vm442, %v4030, %v4046
      %v4104 = vsel %vm442, %v4032, %v4048
      %v4105 = vsel %vm442, %v4066, %v4018
      %v4106 = vsel %vm442, %v4068, %v4020
      %v4107 = vsel %vm442, %v4070, %v4022
      %v4108 = vsel %vm442, %v4072, %v4024
      %v4109 = vsel %vm442, %v4074, %v4026
      %v4110 = vsel %vm442, %v4076, %v4028
      %v4111 = vsel %vm442, %v4078, %v4030
      %v4112 = vsel %vm442, %v4080, %v4032
      %v4113 = vpack.c.bf16 %v4106, %v4105
      %v4114 = vpack.c.bf16 %v4098, %v4097
      %v4115 = vpack.c.bf16 %v4090, %v4089
      %v4116 = vpack.c.bf16 %v4082, %v4081
      %v4117 = vpack.c.bf16 %v4108, %v4107
      %v4118 = vpack.c.bf16 %v4100, %v4099
      %v4119 = vpack.c.bf16 %v4092, %v4091
      %v4120 = vpack.c.bf16 %v4084, %v4083
      %v4121 = vpack.c.bf16 %v4110, %v4109
      %v4122 = vpack.c.bf16 %v4102, %v4101
      %v4123 = vpack.c.bf16 %v4094, %v4093
      %v4124 = vpack.c.bf16 %v4086, %v4085
      %v4125 = vpack.c.bf16 %v4112, %v4111
      %v4126 = vpack.c.bf16 %v4104, %v4103
      %v4127 = vpack.c.bf16 %v4096, %v4095
      %v4128 = vpack.c.bf16 %v4088, %v4087
      %4129 = vst [vmem:[#allocation2] sm:$0xff] %v4113
      %4130 = vst [vmem:[#allocation2 + $0x8] sm:$0xff] %v4114
      %4131 = vst [vmem:[#allocation2 + $0x10] sm:$0xff] %v4115
      %4132 = vst [vmem:[#allocation2 + $0x18] sm:$0xff] %v4116
      %4133 = vst [vmem:[#allocation2 + $0x20] sm:$0xff] %v4117
      %4134 = vst [vmem:[#allocation2 + $0x28] sm:$0xff] %v4118
      %4135 = vst [vmem:[#allocation2 + $0x30] sm:$0xff] %v4119
      %4136 = vst [vmem:[#allocation2 + $0x38] sm:$0xff] %v4120
      %4137 = vst [vmem:[#allocation2 + $0x40] sm:$0xff] %v4121
      %4138 = vst [vmem:[#allocation2 + $0x48] sm:$0xff] %v4122
      %4139 = vst [vmem:[#allocation2 + $0x50] sm:$0xff] %v4123
      %4140 = vst [vmem:[#allocation2 + $0x58] sm:$0xff] %v4124
      %4141 = vst [vmem:[#allocation2 + $0x60] sm:$0xff] %v4125
      %4142 = vst [vmem:[#allocation2 + $0x68] sm:$0xff] %v4126
      %4143 = vst [vmem:[#allocation2 + $0x70] sm:$0xff] %v4127
      %4144 = vst [vmem:[#allocation2 + $0x78] sm:$0xff] %v4128
      %4145 = vrot.lane.b32.xlu0 %v3985, 2
      %v4146 = vpop.permute.xlu0 %4145
      %4147 = vrot.lane.b32.xlu0 %v3989, 2
      %v4148 = vpop.permute.xlu0 %4147
      %4149 = vrot.lane.b32.xlu0 %v3993, 2
      %v4150 = vpop.permute.xlu0 %4149
      %4151 = vrot.lane.b32.xlu0 %v3997, 2
      %v4152 = vpop.permute.xlu0 %4151
      %4153 = vrot.lane.b32.xlu0 %v4001, 2
      %v4154 = vpop.permute.xlu0 %4153
      %4155 = vrot.lane.b32.xlu0 %v4005, 2
      %v4156 = vpop.permute.xlu0 %4155
      %4157 = vrot.lane.b32.xlu0 %v4009, 2
      %v4158 = vpop.permute.xlu0 %4157
      %4159 = vrot.lane.b32.xlu0 %v4013, 2
      %v4160 = vpop.permute.xlu0 %4159
      %4161 = vrot.lane.b32.xlu0 %v3986, 2
      %v4162 = vpop.permute.xlu0 %4161
      %4163 = vrot.lane.b32.xlu0 %v3990, 2
      %v4164 = vpop.permute.xlu0 %4163
      %4165 = vrot.lane.b32.xlu0 %v3994, 2
      %v4166 = vpop.permute.xlu0 %4165
      %4167 = vrot.lane.b32.xlu0 %v3998, 2
      %v4168 = vpop.permute.xlu0 %4167
      %4169 = vrot.lane.b32.xlu0 %v4002, 2
      %v4170 = vpop.permute.xlu0 %4169
      %4171 = vrot.lane.b32.xlu0 %v4006, 2
      %v4172 = vpop.permute.xlu0 %4171
      %4173 = vrot.lane.b32.xlu0 %v4010, 2
      %v4174 = vpop.permute.xlu0 %4173
      %4175 = vrot.lane.b32.xlu0 %v4014, 2
      %v4176 = vpop.permute.xlu0 %4175
      %4177 = vrot.lane.b32.xlu0 %v3987, 2
      %v4178 = vpop.permute.xlu0 %4177
      %4179 = vrot.lane.b32.xlu0 %v3991, 2
      %v4180 = vpop.permute.xlu0 %4179
      %4181 = vrot.lane.b32.xlu0 %v3995, 2
      %v4182 = vpop.permute.xlu0 %4181
      %4183 = vrot.lane.b32.xlu0 %v3999, 2
      %v4184 = vpop.permute.xlu0 %4183
      %4185 = vrot.lane.b32.xlu0 %v4003, 2
      %v4186 = vpop.permute.xlu0 %4185
      %4187 = vrot.lane.b32.xlu0 %v4007, 2
      %v4188 = vpop.permute.xlu0 %4187
      %4189 = vrot.lane.b32.xlu0 %v4011, 2
      %v4190 = vpop.permute.xlu0 %4189
      %4191 = vrot.lane.b32.xlu0 %v4015, 2
      %v4192 = vpop.permute.xlu0 %4191
      %4193 = vrot.lane.b32.xlu0 %v3988, 2
      %v4194 = vpop.permute.xlu0 %4193
      %4195 = vrot.lane.b32.xlu0 %v3992, 2
      %v4196 = vpop.permute.xlu0 %4195
      %4197 = vrot.lane.b32.xlu0 %v3996, 2
      %v4198 = vpop.permute.xlu0 %4197
      %4199 = vrot.lane.b32.xlu0 %v4000, 2
      %v4200 = vpop.permute.xlu0 %4199
      %4201 = vrot.lane.b32.xlu0 %v4004, 2
      %v4202 = vpop.permute.xlu0 %4201
      %4203 = vrot.lane.b32.xlu0 %v4008, 2
      %v4204 = vpop.permute.xlu0 %4203
      %4205 = vrot.lane.b32.xlu0 %v4012, 2
      %v4206 = vpop.permute.xlu0 %4205
      %4207 = vrot.lane.b32.xlu0 %v4016, 2
      %v4208 = vpop.permute.xlu0 %4207
      %v4209 = vsel %vm475, %v4178, %v4194
      %v4210 = vsel %vm475, %v4180, %v4196
      %v4211 = vsel %vm475, %v4182, %v4198
      %v4212 = vsel %vm475, %v4184, %v4200
      %v4213 = vsel %vm475, %v4186, %v4202
      %v4214 = vsel %vm475, %v4188, %v4204
      %v4215 = vsel %vm475, %v4190, %v4206
      %v4216 = vsel %vm475, %v4192, %v4208
      %v4217 = vsel %vm475, %v4162, %v4178
      %v4218 = vsel %vm475, %v4164, %v4180
      %v4219 = vsel %vm475, %v4166, %v4182
      %v4220 = vsel %vm475, %v4168, %v4184
      %v4221 = vsel %vm475, %v4170, %v4186
      %v4222 = vsel %vm475, %v4172, %v4188
      %v4223 = vsel %vm475, %v4174, %v4190
      %v4224 = vsel %vm475, %v4176, %v4192
      %v4225 = vsel %vm475, %v4146, %v4162
      %v4226 = vsel %vm475, %v4148, %v4164
      %v4227 = vsel %vm475, %v4150, %v4166
      %v4228 = vsel %vm475, %v4152, %v4168
      %v4229 = vsel %vm475, %v4154, %v4170
      %v4230 = vsel %vm475, %v4156, %v4172
      %v4231 = vsel %vm475, %v4158, %v4174
      %v4232 = vsel %vm475, %v4160, %v4176
      %v4233 = vsel %vm475, %v4194, %v4146
      %v4234 = vsel %vm475, %v4196, %v4148
      %v4235 = vsel %vm475, %v4198, %v4150
      %v4236 = vsel %vm475, %v4200, %v4152
      %v4237 = vsel %vm475, %v4202, %v4154
      %v4238 = vsel %vm475, %v4204, %v4156
      %v4239 = vsel %vm475, %v4206, %v4158
      %v4240 = vsel %vm475, %v4208, %v4160
      %v4241 = vpack.c.bf16 %v4234, %v4233
      %v4242 = vpack.c.bf16 %v4226, %v4225
      %v4243 = vpack.c.bf16 %v4218, %v4217
      %v4244 = vpack.c.bf16 %v4210, %v4209
      %v4245 = vpack.c.bf16 %v4236, %v4235
      %v4246 = vpack.c.bf16 %v4228, %v4227
      %v4247 = vpack.c.bf16 %v4220, %v4219
      %v4248 = vpack.c.bf16 %v4212, %v4211
      %v4249 = vpack.c.bf16 %v4238, %v4237
      %v4250 = vpack.c.bf16 %v4230, %v4229
      %v4251 = vpack.c.bf16 %v4222, %v4221
      %v4252 = vpack.c.bf16 %v4214, %v4213
      %v4253 = vpack.c.bf16 %v4240, %v4239
      %v4254 = vpack.c.bf16 %v4232, %v4231
      %v4255 = vpack.c.bf16 %v4224, %v4223
      %v4256 = vpack.c.bf16 %v4216, %v4215
      %4257 = vst [vmem:[#allocation2 + $0x80] sm:$0xff] %v4241
      %4258 = vst [vmem:[#allocation2 + $0x88] sm:$0xff] %v4242
      %4259 = vst [vmem:[#allocation2 + $0x90] sm:$0xff] %v4243
      %4260 = vst [vmem:[#allocation2 + $0x98] sm:$0xff] %v4244
      %4261 = vst [vmem:[#allocation2 + $0xa0] sm:$0xff] %v4245
      %4262 = vst [vmem:[#allocation2 + $0xa8] sm:$0xff] %v4246
      %4263 = vst [vmem:[#allocation2 + $0xb0] sm:$0xff] %v4247
      %4264 = vst [vmem:[#allocation2 + $0xb8] sm:$0xff] %v4248
      %4265 = vst [vmem:[#allocation2 + $0xc0] sm:$0xff] %v4249
      %4266 = vst [vmem:[#allocation2 + $0xc8] sm:$0xff] %v4250
      %4267 = vst [vmem:[#allocation2 + $0xd0] sm:$0xff] %v4251
      %4268 = vst [vmem:[#allocation2 + $0xd8] sm:$0xff] %v4252
      %4269 = vst [vmem:[#allocation2 + $0xe0] sm:$0xff] %v4253
      %4270 = vst [vmem:[#allocation2 + $0xe8] sm:$0xff] %v4254
      %4271 = vst [vmem:[#allocation2 + $0xf0] sm:$0xff] %v4255
      %4272 = vst [vmem:[#allocation2 + $0xf8] sm:$0xff] %v4256
      %4273 = vrot.lane.b32.xlu0 %v3985, 1
      %v4274 = vpop.permute.xlu0 %4273
      %4275 = vrot.lane.b32.xlu0 %v3989, 1
      %v4276 = vpop.permute.xlu0 %4275
      %4277 = vrot.lane.b32.xlu0 %v3993, 1
      %v4278 = vpop.permute.xlu0 %4277
      %4279 = vrot.lane.b32.xlu0 %v3997, 1
      %v4280 = vpop.permute.xlu0 %4279
      %4281 = vrot.lane.b32.xlu0 %v4001, 1
      %v4282 = vpop.permute.xlu0 %4281
      %4283 = vrot.lane.b32.xlu0 %v4005, 1
      %v4284 = vpop.permute.xlu0 %4283
      %4285 = vrot.lane.b32.xlu0 %v4009, 1
      %v4286 = vpop.permute.xlu0 %4285
      %4287 = vrot.lane.b32.xlu0 %v4013, 1
      %v4288 = vpop.permute.xlu0 %4287
      %4289 = vrot.lane.b32.xlu0 %v3986, 1
      %v4290 = vpop.permute.xlu0 %4289
      %4291 = vrot.lane.b32.xlu0 %v3990, 1
      %v4292 = vpop.permute.xlu0 %4291
      %4293 = vrot.lane.b32.xlu0 %v3994, 1
      %v4294 = vpop.permute.xlu0 %4293
      %4295 = vrot.lane.b32.xlu0 %v3998, 1
      %v4296 = vpop.permute.xlu0 %4295
      %4297 = vrot.lane.b32.xlu0 %v4002, 1
      %v4298 = vpop.permute.xlu0 %4297
      %4299 = vrot.lane.b32.xlu0 %v4006, 1
      %v4300 = vpop.permute.xlu0 %4299
      %4301 = vrot.lane.b32.xlu0 %v4010, 1
      %v4302 = vpop.permute.xlu0 %4301
      %4303 = vrot.lane.b32.xlu0 %v4014, 1
      %v4304 = vpop.permute.xlu0 %4303
      %4305 = vrot.lane.b32.xlu0 %v3987, 1
      %v4306 = vpop.permute.xlu0 %4305
      %4307 = vrot.lane.b32.xlu0 %v3991, 1
      %v4308 = vpop.permute.xlu0 %4307
      %4309 = vrot.lane.b32.xlu0 %v3995, 1
      %v4310 = vpop.permute.xlu0 %4309
      %4311 = vrot.lane.b32.xlu0 %v3999, 1
      %v4312 = vpop.permute.xlu0 %4311
      %4313 = vrot.lane.b32.xlu0 %v4003, 1
      %v4314 = vpop.permute.xlu0 %4313
      %4315 = vrot.lane.b32.xlu0 %v4007, 1
      %v4316 = vpop.permute.xlu0 %4315
      %4317 = vrot.lane.b32.xlu0 %v4011, 1
      %v4318 = vpop.permute.xlu0 %4317
      %4319 = vrot.lane.b32.xlu0 %v4015, 1
      %v4320 = vpop.permute.xlu0 %4319
      %4321 = vrot.lane.b32.xlu0 %v3988, 1
      %v4322 = vpop.permute.xlu0 %4321
      %4323 = vrot.lane.b32.xlu0 %v3992, 1
      %v4324 = vpop.permute.xlu0 %4323
      %4325 = vrot.lane.b32.xlu0 %v3996, 1
      %v4326 = vpop.permute.xlu0 %4325
      %4327 = vrot.lane.b32.xlu0 %v4000, 1
      %v4328 = vpop.permute.xlu0 %4327
      %4329 = vrot.lane.b32.xlu0 %v4004, 1
      %v4330 = vpop.permute.xlu0 %4329
      %4331 = vrot.lane.b32.xlu0 %v4008, 1
      %v4332 = vpop.permute.xlu0 %4331
      %4333 = vrot.lane.b32.xlu0 %v4012, 1
      %v4334 = vpop.permute.xlu0 %4333
      %4335 = vrot.lane.b32.xlu0 %v4016, 1
      %v4336 = vpop.permute.xlu0 %4335
      %v4337 = vsel %vm508, %v4306, %v4322
      %v4338 = vsel %vm508, %v4308, %v4324
      %v4339 = vsel %vm508, %v4310, %v4326
      %v4340 = vsel %vm508, %v4312, %v4328
      %v4341 = vsel %vm508, %v4314, %v4330
      %v4342 = vsel %vm508, %v4316, %v4332
      %v4343 = vsel %vm508, %v4318, %v4334
      %v4344 = vsel %vm508, %v4320, %v4336
      %v4345 = vsel %vm508, %v4290, %v4306
      %v4346 = vsel %vm508, %v4292, %v4308
      %v4347 = vsel %vm508, %v4294, %v4310
      %v4348 = vsel %vm508, %v4296, %v4312
      %v4349 = vsel %vm508, %v4298, %v4314
      %v4350 = vsel %vm508, %v4300, %v4316
      %v4351 = vsel %vm508, %v4302, %v4318
      %v4352 = vsel %vm508, %v4304, %v4320
      %v4353 = vsel %vm508, %v4274, %v4290
      %v4354 = vsel %vm508, %v4276, %v4292
      %v4355 = vsel %vm508, %v4278, %v4294
      %v4356 = vsel %vm508, %v4280, %v4296
      %v4357 = vsel %vm508, %v4282, %v4298
      %v4358 = vsel %vm508, %v4284, %v4300
      %v4359 = vsel %vm508, %v4286, %v4302
      %v4360 = vsel %vm508, %v4288, %v4304
      %v4361 = vsel %vm508, %v4322, %v4274
      %v4362 = vsel %vm508, %v4324, %v4276
      %v4363 = vsel %vm508, %v4326, %v4278
      %v4364 = vsel %vm508, %v4328, %v4280
      %v4365 = vsel %vm508, %v4330, %v4282
      %v4366 = vsel %vm508, %v4332, %v4284
      %v4367 = vsel %vm508, %v4334, %v4286
      %v4368 = vsel %vm508, %v4336, %v4288
      %v4369 = vpack.c.bf16 %v4362, %v4361
      %v4370 = vpack.c.bf16 %v4354, %v4353
      %v4371 = vpack.c.bf16 %v4346, %v4345
      %v4372 = vpack.c.bf16 %v4338, %v4337
      %v4373 = vpack.c.bf16 %v4364, %v4363
      %v4374 = vpack.c.bf16 %v4356, %v4355
      %v4375 = vpack.c.bf16 %v4348, %v4347
      %v4376 = vpack.c.bf16 %v4340, %v4339
      %v4377 = vpack.c.bf16 %v4366, %v4365
      %v4378 = vpack.c.bf16 %v4358, %v4357
      %v4379 = vpack.c.bf16 %v4350, %v4349
      %v4380 = vpack.c.bf16 %v4342, %v4341
      %v4381 = vpack.c.bf16 %v4368, %v4367
      %v4382 = vpack.c.bf16 %v4360, %v4359
      %v4383 = vpack.c.bf16 %v4352, %v4351
      %v4384 = vpack.c.bf16 %v4344, %v4343
      %4385 = vst [vmem:[#allocation2 + $0x100] sm:$0xff] %v4369
      %4386 = vst [vmem:[#allocation2 + $0x108] sm:$0xff] %v4370
      %4387 = vst [vmem:[#allocation2 + $0x110] sm:$0xff] %v4371
      %4388 = vst [vmem:[#allocation2 + $0x118] sm:$0xff] %v4372
      %4389 = vst [vmem:[#allocation2 + $0x120] sm:$0xff] %v4373
      %4390 = vst [vmem:[#allocation2 + $0x128] sm:$0xff] %v4374
      %4391 = vst [vmem:[#allocation2 + $0x130] sm:$0xff] %v4375
      %4392 = vst [vmem:[#allocation2 + $0x138] sm:$0xff] %v4376
      %4393 = vst [vmem:[#allocation2 + $0x140] sm:$0xff] %v4377
      %4394 = vst [vmem:[#allocation2 + $0x148] sm:$0xff] %v4378
      %4395 = vst [vmem:[#allocation2 + $0x150] sm:$0xff] %v4379
      %4396 = vst [vmem:[#allocation2 + $0x158] sm:$0xff] %v4380
      %4397 = vst [vmem:[#allocation2 + $0x160] sm:$0xff] %v4381
      %4398 = vst [vmem:[#allocation2 + $0x168] sm:$0xff] %v4382
      %4399 = vst [vmem:[#allocation2 + $0x170] sm:$0xff] %v4383
      %4400 = vst [vmem:[#allocation2 + $0x178] sm:$0xff] %v4384
      %v4401 = vpack.c.bf16 %v3989, %v3985
      %v4402 = vpack.c.bf16 %v3990, %v3986
      %v4403 = vpack.c.bf16 %v3991, %v3987
      %v4404 = vpack.c.bf16 %v3992, %v3988
      %v4405 = vpack.c.bf16 %v3997, %v3993
      %v4406 = vpack.c.bf16 %v3998, %v3994
      %v4407 = vpack.c.bf16 %v3999, %v3995
      %v4408 = vpack.c.bf16 %v4000, %v3996
      %v4409 = vpack.c.bf16 %v4005, %v4001
      %v4410 = vpack.c.bf16 %v4006, %v4002
      %v4411 = vpack.c.bf16 %v4007, %v4003
      %v4412 = vpack.c.bf16 %v4008, %v4004
      %v4413 = vpack.c.bf16 %v4013, %v4009
      %v4414 = vpack.c.bf16 %v4014, %v4010
      %v4415 = vpack.c.bf16 %v4015, %v4011
      %v4416 = vpack.c.bf16 %v4016, %v4012
      %4417 = vst [vmem:[#allocation2 + $0x180] sm:$0xff] %v4401
      %4418 = vst [vmem:[#allocation2 + $0x188] sm:$0xff] %v4402
      %4419 = vst [vmem:[#allocation2 + $0x190] sm:$0xff] %v4403
      %4420 = vst [vmem:[#allocation2 + $0x198] sm:$0xff] %v4404
      %4421 = vst [vmem:[#allocation2 + $0x1a0] sm:$0xff] %v4405
      %4422 = vst [vmem:[#allocation2 + $0x1a8] sm:$0xff] %v4406
      %4423 = vst [vmem:[#allocation2 + $0x1b0] sm:$0xff] %v4407
      %4424 = vst [vmem:[#allocation2 + $0x1b8] sm:$0xff] %v4408
      %4425 = vst [vmem:[#allocation2 + $0x1c0] sm:$0xff] %v4409
      %4426 = vst [vmem:[#allocation2 + $0x1c8] sm:$0xff] %v4410
      %4427 = vst [vmem:[#allocation2 + $0x1d0] sm:$0xff] %v4411
      %4428 = vst [vmem:[#allocation2 + $0x1d8] sm:$0xff] %v4412
      %4429 = vst [vmem:[#allocation2 + $0x1e0] sm:$0xff] %v4413
      %4430 = vst [vmem:[#allocation2 + $0x1e8] sm:$0xff] %v4414
      %4431 = vst [vmem:[#allocation2 + $0x1f0] sm:$0xff] %v4415
      %4432 = vst [vmem:[#allocation2 + $0x1f8] sm:$0xff] %v4416
      %4433 = vrot.lane.b32.xlu0 %v3985, 127
      %v4434 = vpop.permute.xlu0 %4433
      %4435 = vrot.lane.b32.xlu0 %v3989, 127
      %v4436 = vpop.permute.xlu0 %4435
      %4437 = vrot.lane.b32.xlu0 %v3993, 127
      %v4438 = vpop.permute.xlu0 %4437
      %4439 = vrot.lane.b32.xlu0 %v3997, 127
      %v4440 = vpop.permute.xlu0 %4439
      %4441 = vrot.lane.b32.xlu0 %v4001, 127
      %v4442 = vpop.permute.xlu0 %4441
      %4443 = vrot.lane.b32.xlu0 %v4005, 127
      %v4444 = vpop.permute.xlu0 %4443
      %4445 = vrot.lane.b32.xlu0 %v4009, 127
      %v4446 = vpop.permute.xlu0 %4445
      %4447 = vrot.lane.b32.xlu0 %v4013, 127
      %v4448 = vpop.permute.xlu0 %4447
      %4449 = vrot.lane.b32.xlu0 %v3986, 127
      %v4450 = vpop.permute.xlu0 %4449
      %4451 = vrot.lane.b32.xlu0 %v3990, 127
      %v4452 = vpop.permute.xlu0 %4451
      %4453 = vrot.lane.b32.xlu0 %v3994, 127
      %v4454 = vpop.permute.xlu0 %4453
      %4455 = vrot.lane.b32.xlu0 %v3998, 127
      %v4456 = vpop.permute.xlu0 %4455
      %4457 = vrot.lane.b32.xlu0 %v4002, 127
      %v4458 = vpop.permute.xlu0 %4457
      %4459 = vrot.lane.b32.xlu0 %v4006, 127
      %v4460 = vpop.permute.xlu0 %4459
      %4461 = vrot.lane.b32.xlu0 %v4010, 127
      %v4462 = vpop.permute.xlu0 %4461
      %4463 = vrot.lane.b32.xlu0 %v4014, 127
      %v4464 = vpop.permute.xlu0 %4463
      %4465 = vrot.lane.b32.xlu0 %v3987, 127
      %v4466 = vpop.permute.xlu0 %4465
      %4467 = vrot.lane.b32.xlu0 %v3991, 127
      %v4468 = vpop.permute.xlu0 %4467
      %4469 = vrot.lane.b32.xlu0 %v3995, 127
      %v4470 = vpop.permute.xlu0 %4469
      %4471 = vrot.lane.b32.xlu0 %v3999, 127
      %v4472 = vpop.permute.xlu0 %4471
      %4473 = vrot.lane.b32.xlu0 %v4003, 127
      %v4474 = vpop.permute.xlu0 %4473
      %4475 = vrot.lane.b32.xlu0 %v4007, 127
      %v4476 = vpop.permute.xlu0 %4475
      %4477 = vrot.lane.b32.xlu0 %v4011, 127
      %v4478 = vpop.permute.xlu0 %4477
      %4479 = vrot.lane.b32.xlu0 %v4015, 127
      %v4480 = vpop.permute.xlu0 %4479
      %4481 = vrot.lane.b32.xlu0 %v3988, 127
      %v4482 = vpop.permute.xlu0 %4481
      %4483 = vrot.lane.b32.xlu0 %v3992, 127
      %v4484 = vpop.permute.xlu0 %4483
      %4485 = vrot.lane.b32.xlu0 %v3996, 127
      %v4486 = vpop.permute.xlu0 %4485
      %4487 = vrot.lane.b32.xlu0 %v4000, 127
      %v4488 = vpop.permute.xlu0 %4487
      %4489 = vrot.lane.b32.xlu0 %v4004, 127
      %v4490 = vpop.permute.xlu0 %4489
      %4491 = vrot.lane.b32.xlu0 %v4008, 127
      %v4492 = vpop.permute.xlu0 %4491
      %4493 = vrot.lane.b32.xlu0 %v4012, 127
      %v4494 = vpop.permute.xlu0 %4493
      %4495 = vrot.lane.b32.xlu0 %v4016, 127
      %v4496 = vpop.permute.xlu0 %4495
      %v4497 = vsel %vm549, %v4466, %v4482
      %v4498 = vsel %vm549, %v4468, %v4484
      %v4499 = vsel %vm549, %v4470, %v4486
      %v4500 = vsel %vm549, %v4472, %v4488
      %v4501 = vsel %vm549, %v4474, %v4490
      %v4502 = vsel %vm549, %v4476, %v4492
      %v4503 = vsel %vm549, %v4478, %v4494
      %v4504 = vsel %vm549, %v4480, %v4496
      %v4505 = vsel %vm549, %v4450, %v4466
      %v4506 = vsel %vm549, %v4452, %v4468
      %v4507 = vsel %vm549, %v4454, %v4470
      %v4508 = vsel %vm549, %v4456, %v4472
      %v4509 = vsel %vm549, %v4458, %v4474
      %v4510 = vsel %vm549, %v4460, %v4476
      %v4511 = vsel %vm549, %v4462, %v4478
      %v4512 = vsel %vm549, %v4464, %v4480
      %v4513 = vsel %vm549, %v4434, %v4450
      %v4514 = vsel %vm549, %v4436, %v4452
      %v4515 = vsel %vm549, %v4438, %v4454
      %v4516 = vsel %vm549, %v4440, %v4456
      %v4517 = vsel %vm549, %v4442, %v4458
      %v4518 = vsel %vm549, %v4444, %v4460
      %v4519 = vsel %vm549, %v4446, %v4462
      %v4520 = vsel %vm549, %v4448, %v4464
      %v4521 = vsel %vm549, %v4482, %v4434
      %v4522 = vsel %vm549, %v4484, %v4436
      %v4523 = vsel %vm549, %v4486, %v4438
      %v4524 = vsel %vm549, %v4488, %v4440
      %v4525 = vsel %vm549, %v4490, %v4442
      %v4526 = vsel %vm549, %v4492, %v4444
      %v4527 = vsel %vm549, %v4494, %v4446
      %v4528 = vsel %vm549, %v4496, %v4448
      %v4529 = vpack.c.bf16 %v4514, %v4513
      %v4530 = vpack.c.bf16 %v4506, %v4505
      %v4531 = vpack.c.bf16 %v4498, %v4497
      %v4532 = vpack.c.bf16 %v4522, %v4521
      %v4533 = vpack.c.bf16 %v4516, %v4515
      %v4534 = vpack.c.bf16 %v4508, %v4507
      %v4535 = vpack.c.bf16 %v4500, %v4499
      %v4536 = vpack.c.bf16 %v4524, %v4523
      %v4537 = vpack.c.bf16 %v4518, %v4517
      %v4538 = vpack.c.bf16 %v4510, %v4509
      %v4539 = vpack.c.bf16 %v4502, %v4501
      %v4540 = vpack.c.bf16 %v4526, %v4525
      %v4541 = vpack.c.bf16 %v4520, %v4519
      %v4542 = vpack.c.bf16 %v4512, %v4511
      %v4543 = vpack.c.bf16 %v4504, %v4503
      %v4544 = vpack.c.bf16 %v4528, %v4527
      %4545 = vst [vmem:[#allocation2 + $0x200] sm:$0xff] %v4529
      %4546 = vst [vmem:[#allocation2 + $0x208] sm:$0xff] %v4530
      %4547 = vst [vmem:[#allocation2 + $0x210] sm:$0xff] %v4531
      %4548 = vst [vmem:[#allocation2 + $0x218] sm:$0xff] %v4532
      %4549 = vst [vmem:[#allocation2 + $0x220] sm:$0xff] %v4533
      %4550 = vst [vmem:[#allocation2 + $0x228] sm:$0xff] %v4534
      %4551 = vst [vmem:[#allocation2 + $0x230] sm:$0xff] %v4535
      %4552 = vst [vmem:[#allocation2 + $0x238] sm:$0xff] %v4536
      %4553 = vst [vmem:[#allocation2 + $0x240] sm:$0xff] %v4537
      %4554 = vst [vmem:[#allocation2 + $0x248] sm:$0xff] %v4538
      %4555 = vst [vmem:[#allocation2 + $0x250] sm:$0xff] %v4539
      %4556 = vst [vmem:[#allocation2 + $0x258] sm:$0xff] %v4540
      %4557 = vst [vmem:[#allocation2 + $0x260] sm:$0xff] %v4541
      %4558 = vst [vmem:[#allocation2 + $0x268] sm:$0xff] %v4542
      %4559 = vst [vmem:[#allocation2 + $0x270] sm:$0xff] %v4543
      %4560 = vst [vmem:[#allocation2 + $0x278] sm:$0xff] %v4544
      %4561 = vrot.lane.b32.xlu0 %v3985, 126
      %v4562 = vpop.permute.xlu0 %4561
      %4563 = vrot.lane.b32.xlu0 %v3989, 126
      %v4564 = vpop.permute.xlu0 %4563
      %4565 = vrot.lane.b32.xlu0 %v3993, 126
      %v4566 = vpop.permute.xlu0 %4565
      %4567 = vrot.lane.b32.xlu0 %v3997, 126
      %v4568 = vpop.permute.xlu0 %4567
      %4569 = vrot.lane.b32.xlu0 %v4001, 126
      %v4570 = vpop.permute.xlu0 %4569
      %4571 = vrot.lane.b32.xlu0 %v4005, 126
      %v4572 = vpop.permute.xlu0 %4571
      %4573 = vrot.lane.b32.xlu0 %v4009, 126
      %v4574 = vpop.permute.xlu0 %4573
      %4575 = vrot.lane.b32.xlu0 %v4013, 126
      %v4576 = vpop.permute.xlu0 %4575
      %4577 = vrot.lane.b32.xlu0 %v3986, 126
      %v4578 = vpop.permute.xlu0 %4577
      %4579 = vrot.lane.b32.xlu0 %v3990, 126
      %v4580 = vpop.permute.xlu0 %4579
      %4581 = vrot.lane.b32.xlu0 %v3994, 126
      %v4582 = vpop.permute.xlu0 %4581
      %4583 = vrot.lane.b32.xlu0 %v3998, 126
      %v4584 = vpop.permute.xlu0 %4583
      %4585 = vrot.lane.b32.xlu0 %v4002, 126
      %v4586 = vpop.permute.xlu0 %4585
      %4587 = vrot.lane.b32.xlu0 %v4006, 126
      %v4588 = vpop.permute.xlu0 %4587
      %4589 = vrot.lane.b32.xlu0 %v4010, 126
      %v4590 = vpop.permute.xlu0 %4589
      %4591 = vrot.lane.b32.xlu0 %v4014, 126
      %v4592 = vpop.permute.xlu0 %4591
      %4593 = vrot.lane.b32.xlu0 %v3987, 126
      %v4594 = vpop.permute.xlu0 %4593
      %4595 = vrot.lane.b32.xlu0 %v3991, 126
      %v4596 = vpop.permute.xlu0 %4595
      %4597 = vrot.lane.b32.xlu0 %v3995, 126
      %v4598 = vpop.permute.xlu0 %4597
      %4599 = vrot.lane.b32.xlu0 %v3999, 126
      %v4600 = vpop.permute.xlu0 %4599
      %4601 = vrot.lane.b32.xlu0 %v4003, 126
      %v4602 = vpop.permute.xlu0 %4601
      %4603 = vrot.lane.b32.xlu0 %v4007, 126
      %v4604 = vpop.permute.xlu0 %4603
      %4605 = vrot.lane.b32.xlu0 %v4011, 126
      %v4606 = vpop.permute.xlu0 %4605
      %4607 = vrot.lane.b32.xlu0 %v4015, 126
      %v4608 = vpop.permute.xlu0 %4607
      %4609 = vrot.lane.b32.xlu0 %v3988, 126
      %v4610 = vpop.permute.xlu0 %4609
      %4611 = vrot.lane.b32.xlu0 %v3992, 126
      %v4612 = vpop.permute.xlu0 %4611
      %4613 = vrot.lane.b32.xlu0 %v3996, 126
      %v4614 = vpop.permute.xlu0 %4613
      %4615 = vrot.lane.b32.xlu0 %v4000, 126
      %v4616 = vpop.permute.xlu0 %4615
      %4617 = vrot.lane.b32.xlu0 %v4004, 126
      %v4618 = vpop.permute.xlu0 %4617
      %4619 = vrot.lane.b32.xlu0 %v4008, 126
      %v4620 = vpop.permute.xlu0 %4619
      %4621 = vrot.lane.b32.xlu0 %v4012, 126
      %v4622 = vpop.permute.xlu0 %4621
      %4623 = vrot.lane.b32.xlu0 %v4016, 126
      %v4624 = vpop.permute.xlu0 %4623
      %v4625 = vsel %vm582, %v4594, %v4610
      %v4626 = vsel %vm582, %v4596, %v4612
      %v4627 = vsel %vm582, %v4598, %v4614
      %v4628 = vsel %vm582, %v4600, %v4616
      %v4629 = vsel %vm582, %v4602, %v4618
      %v4630 = vsel %vm582, %v4604, %v4620
      %v4631 = vsel %vm582, %v4606, %v4622
      %v4632 = vsel %vm582, %v4608, %v4624
      %v4633 = vsel %vm582, %v4578, %v4594
      %v4634 = vsel %vm582, %v4580, %v4596
      %v4635 = vsel %vm582, %v4582, %v4598
      %v4636 = vsel %vm582, %v4584, %v4600
      %v4637 = vsel %vm582, %v4586, %v4602
      %v4638 = vsel %vm582, %v4588, %v4604
      %v4639 = vsel %vm582, %v4590, %v4606
      %v4640 = vsel %vm582, %v4592, %v4608
      %v4641 = vsel %vm582, %v4562, %v4578
      %v4642 = vsel %vm582, %v4564, %v4580
      %v4643 = vsel %vm582, %v4566, %v4582
      %v4644 = vsel %vm582, %v4568, %v4584
      %v4645 = vsel %vm582, %v4570, %v4586
      %v4646 = vsel %vm582, %v4572, %v4588
      %v4647 = vsel %vm582, %v4574, %v4590
      %v4648 = vsel %vm582, %v4576, %v4592
      %v4649 = vsel %vm582, %v4610, %v4562
      %v4650 = vsel %vm582, %v4612, %v4564
      %v4651 = vsel %vm582, %v4614, %v4566
      %v4652 = vsel %vm582, %v4616, %v4568
      %v4653 = vsel %vm582, %v4618, %v4570
      %v4654 = vsel %vm582, %v4620, %v4572
      %v4655 = vsel %vm582, %v4622, %v4574
      %v4656 = vsel %vm582, %v4624, %v4576
      %v4657 = vpack.c.bf16 %v4642, %v4641
      %v4658 = vpack.c.bf16 %v4634, %v4633
      %v4659 = vpack.c.bf16 %v4626, %v4625
      %v4660 = vpack.c.bf16 %v4650, %v4649
      %v4661 = vpack.c.bf16 %v4644, %v4643
      %v4662 = vpack.c.bf16 %v4636, %v4635
      %v4663 = vpack.c.bf16 %v4628, %v4627
      %v4664 = vpack.c.bf16 %v4652, %v4651
      %v4665 = vpack.c.bf16 %v4646, %v4645
      %v4666 = vpack.c.bf16 %v4638, %v4637
      %v4667 = vpack.c.bf16 %v4630, %v4629
      %v4668 = vpack.c.bf16 %v4654, %v4653
      %v4669 = vpack.c.bf16 %v4648, %v4647
      %v4670 = vpack.c.bf16 %v4640, %v4639
      %v4671 = vpack.c.bf16 %v4632, %v4631
      %v4672 = vpack.c.bf16 %v4656, %v4655
      %4673 = vst [vmem:[#allocation2 + $0x280] sm:$0xff] %v4657
      %4674 = vst [vmem:[#allocation2 + $0x288] sm:$0xff] %v4658
      %4675 = vst [vmem:[#allocation2 + $0x290] sm:$0xff] %v4659
      %4676 = vst [vmem:[#allocation2 + $0x298] sm:$0xff] %v4660
      %4677 = vst [vmem:[#allocation2 + $0x2a0] sm:$0xff] %v4661
      %4678 = vst [vmem:[#allocation2 + $0x2a8] sm:$0xff] %v4662
      %4679 = vst [vmem:[#allocation2 + $0x2b0] sm:$0xff] %v4663
      %4680 = vst [vmem:[#allocation2 + $0x2b8] sm:$0xff] %v4664
      %4681 = vst [vmem:[#allocation2 + $0x2c0] sm:$0xff] %v4665
      %4682 = vst [vmem:[#allocation2 + $0x2c8] sm:$0xff] %v4666
      %4683 = vst [vmem:[#allocation2 + $0x2d0] sm:$0xff] %v4667
      %4684 = vst [vmem:[#allocation2 + $0x2d8] sm:$0xff] %v4668
      %4685 = vst [vmem:[#allocation2 + $0x2e0] sm:$0xff] %v4669
      %4686 = vst [vmem:[#allocation2 + $0x2e8] sm:$0xff] %v4670
      %4687 = vst [vmem:[#allocation2 + $0x2f0] sm:$0xff] %v4671
      %4688 = vst [vmem:[#allocation2 + $0x2f8] sm:$0xff] %v4672
      %4689 = vrot.lane.b32.xlu0 %v3985, 125
      %v4690 = vpop.permute.xlu0 %4689
      %4691 = vrot.lane.b32.xlu0 %v3989, 125
      %v4692 = vpop.permute.xlu0 %4691
      %4693 = vrot.lane.b32.xlu0 %v3993, 125
      %v4694 = vpop.permute.xlu0 %4693
      %4695 = vrot.lane.b32.xlu0 %v3997, 125
      %v4696 = vpop.permute.xlu0 %4695
      %4697 = vrot.lane.b32.xlu0 %v4001, 125
      %v4698 = vpop.permute.xlu0 %4697
      %4699 = vrot.lane.b32.xlu0 %v4005, 125
      %v4700 = vpop.permute.xlu0 %4699
      %4701 = vrot.lane.b32.xlu0 %v4009, 125
      %v4702 = vpop.permute.xlu0 %4701
      %4703 = vrot.lane.b32.xlu0 %v4013, 125
      %v4704 = vpop.permute.xlu0 %4703
      %4705 = vrot.lane.b32.xlu0 %v3986, 125
      %v4706 = vpop.permute.xlu0 %4705
      %4707 = vrot.lane.b32.xlu0 %v3990, 125
      %v4708 = vpop.permute.xlu0 %4707
      %4709 = vrot.lane.b32.xlu0 %v3994, 125
      %v4710 = vpop.permute.xlu0 %4709
      %4711 = vrot.lane.b32.xlu0 %v3998, 125
      %v4712 = vpop.permute.xlu0 %4711
      %4713 = vrot.lane.b32.xlu0 %v4002, 125
      %v4714 = vpop.permute.xlu0 %4713
      %4715 = vrot.lane.b32.xlu0 %v4006, 125
      %v4716 = vpop.permute.xlu0 %4715
      %4717 = vrot.lane.b32.xlu0 %v4010, 125
      %v4718 = vpop.permute.xlu0 %4717
      %4719 = vrot.lane.b32.xlu0 %v4014, 125
      %v4720 = vpop.permute.xlu0 %4719
      %4721 = vrot.lane.b32.xlu0 %v3987, 125
      %v4722 = vpop.permute.xlu0 %4721
      %4723 = vrot.lane.b32.xlu0 %v3991, 125
      %v4724 = vpop.permute.xlu0 %4723
      %4725 = vrot.lane.b32.xlu0 %v3995, 125
      %v4726 = vpop.permute.xlu0 %4725
      %4727 = vrot.lane.b32.xlu0 %v3999, 125
      %v4728 = vpop.permute.xlu0 %4727
      %4729 = vrot.lane.b32.xlu0 %v4003, 125
      %v4730 = vpop.permute.xlu0 %4729
      %4731 = vrot.lane.b32.xlu0 %v4007, 125
      %v4732 = vpop.permute.xlu0 %4731
      %4733 = vrot.lane.b32.xlu0 %v4011, 125
      %v4734 = vpop.permute.xlu0 %4733
      %4735 = vrot.lane.b32.xlu0 %v4015, 125
      %v4736 = vpop.permute.xlu0 %4735
      %4737 = vrot.lane.b32.xlu0 %v3988, 125
      %v4738 = vpop.permute.xlu0 %4737
      %4739 = vrot.lane.b32.xlu0 %v3992, 125
      %v4740 = vpop.permute.xlu0 %4739
      %4741 = vrot.lane.b32.xlu0 %v3996, 125
      %v4742 = vpop.permute.xlu0 %4741
      %4743 = vrot.lane.b32.xlu0 %v4000, 125
      %v4744 = vpop.permute.xlu0 %4743
      %4745 = vrot.lane.b32.xlu0 %v4004, 125
      %v4746 = vpop.permute.xlu0 %4745
      %4747 = vrot.lane.b32.xlu0 %v4008, 125
      %v4748 = vpop.permute.xlu0 %4747
      %4749 = vrot.lane.b32.xlu0 %v4012, 125
      %v4750 = vpop.permute.xlu0 %4749
      %4751 = vrot.lane.b32.xlu0 %v4016, 125
      %v4752 = vpop.permute.xlu0 %4751
      %v4753 = vsel %vm615, %v4722, %v4738
      %v4754 = vsel %vm615, %v4724, %v4740
      %v4755 = vsel %vm615, %v4726, %v4742
      %v4756 = vsel %vm615, %v4728, %v4744
      %v4757 = vsel %vm615, %v4730, %v4746
      %v4758 = vsel %vm615, %v4732, %v4748
      %v4759 = vsel %vm615, %v4734, %v4750
      %v4760 = vsel %vm615, %v4736, %v4752
      %v4761 = vsel %vm615, %v4706, %v4722
      %v4762 = vsel %vm615, %v4708, %v4724
      %v4763 = vsel %vm615, %v4710, %v4726
      %v4764 = vsel %vm615, %v4712, %v4728
      %v4765 = vsel %vm615, %v4714, %v4730
      %v4766 = vsel %vm615, %v4716, %v4732
      %v4767 = vsel %vm615, %v4718, %v4734
      %v4768 = vsel %vm615, %v4720, %v4736
      %v4769 = vsel %vm615, %v4690, %v4706
      %v4770 = vsel %vm615, %v4692, %v4708
      %v4771 = vsel %vm615, %v4694, %v4710
      %v4772 = vsel %vm615, %v4696, %v4712
      %v4773 = vsel %vm615, %v4698, %v4714
      %v4774 = vsel %vm615, %v4700, %v4716
      %v4775 = vsel %vm615, %v4702, %v4718
      %v4776 = vsel %vm615, %v4704, %v4720
      %v4777 = vsel %vm615, %v4738, %v4690
      %v4778 = vsel %vm615, %v4740, %v4692
      %v4779 = vsel %vm615, %v4742, %v4694
      %v4780 = vsel %vm615, %v4744, %v4696
      %v4781 = vsel %vm615, %v4746, %v4698
      %v4782 = vsel %vm615, %v4748, %v4700
      %v4783 = vsel %vm615, %v4750, %v4702
      %v4784 = vsel %vm615, %v4752, %v4704
      %v4785 = vpack.c.bf16 %v4770, %v4769
      %v4786 = vpack.c.bf16 %v4762, %v4761
      %v4787 = vpack.c.bf16 %v4754, %v4753
      %v4788 = vpack.c.bf16 %v4778, %v4777
      %v4789 = vpack.c.bf16 %v4772, %v4771
      %v4790 = vpack.c.bf16 %v4764, %v4763
      %v4791 = vpack.c.bf16 %v4756, %v4755
      %v4792 = vpack.c.bf16 %v4780, %v4779
      %v4793 = vpack.c.bf16 %v4774, %v4773
      %v4794 = vpack.c.bf16 %v4766, %v4765
      %v4795 = vpack.c.bf16 %v4758, %v4757
      %v4796 = vpack.c.bf16 %v4782, %v4781
      %v4797 = vpack.c.bf16 %v4776, %v4775
      %v4798 = vpack.c.bf16 %v4768, %v4767
      %v4799 = vpack.c.bf16 %v4760, %v4759
      %v4800 = vpack.c.bf16 %v4784, %v4783
      %4801 = vst [vmem:[#allocation2 + $0x300] sm:$0xff] %v4785
      %4802 = vst [vmem:[#allocation2 + $0x308] sm:$0xff] %v4786
      %4803 = vst [vmem:[#allocation2 + $0x310] sm:$0xff] %v4787
      %4804 = vst [vmem:[#allocation2 + $0x318] sm:$0xff] %v4788
      %4805 = vst [vmem:[#allocation2 + $0x320] sm:$0xff] %v4789
      %4806 = vst [vmem:[#allocation2 + $0x328] sm:$0xff] %v4790
      %4807 = vst [vmem:[#allocation2 + $0x330] sm:$0xff] %v4791
      %4808 = vst [vmem:[#allocation2 + $0x338] sm:$0xff] %v4792
      %4809 = vst [vmem:[#allocation2 + $0x340] sm:$0xff] %v4793
      %4810 = vst [vmem:[#allocation2 + $0x348] sm:$0xff] %v4794
      %4811 = vst [vmem:[#allocation2 + $0x350] sm:$0xff] %v4795
      %4812 = vst [vmem:[#allocation2 + $0x358] sm:$0xff] %v4796
      %4813 = vst [vmem:[#allocation2 + $0x360] sm:$0xff] %v4797
      %4814 = vst [vmem:[#allocation2 + $0x368] sm:$0xff] %v4798
      %4815 = vst [vmem:[#allocation2 + $0x370] sm:$0xff] %v4799
      %4816 = vst [vmem:[#allocation2 + $0x378] sm:$0xff] %v4800
      %v4817 = vld [vmem:[%s6] sm:$0xff]
      %v4818 = vld [vmem:[%s6 + $0x8] sm:$0xff]
      %v4819 = vld [vmem:[%s6 + $0x10] sm:$0xff]
      %v4820 = vld [vmem:[%s6 + $0x18] sm:$0xff]
      %v4821 = vld [vmem:[%s6 + $0x20] sm:$0xff]
      %v4822 = vld [vmem:[%s6 + $0x28] sm:$0xff]
      %v4823 = vld [vmem:[%s6 + $0x30] sm:$0xff]
      %v4824 = vld [vmem:[%s6 + $0x38] sm:$0xff]
      %v4825 = vld [vmem:[%s6 + $0x40] sm:$0xff]
      %v4826 = vld [vmem:[%s6 + $0x48] sm:$0xff]
      %v4827 = vld [vmem:[%s6 + $0x50] sm:$0xff]
      %v4828 = vld [vmem:[%s6 + $0x58] sm:$0xff]
      %v4829 = vld [vmem:[%s6 + $0x60] sm:$0xff]
      %v4830 = vld [vmem:[%s6 + $0x68] sm:$0xff]
      %v4831 = vld [vmem:[%s6 + $0x70] sm:$0xff]
      %v4832 = vld [vmem:[%s6 + $0x78] sm:$0xff]
      %v4833 = vld [vmem:[%s6 + $0x80] sm:$0xff]
      %v4834 = vld [vmem:[%s6 + $0x88] sm:$0xff]
      %v4835 = vld [vmem:[%s6 + $0x90] sm:$0xff]
      %v4836 = vld [vmem:[%s6 + $0x98] sm:$0xff]
      %v4837 = vld [vmem:[%s6 + $0xa0] sm:$0xff]
      %v4838 = vld [vmem:[%s6 + $0xa8] sm:$0xff]
      %v4839 = vld [vmem:[%s6 + $0xb0] sm:$0xff]
      %v4840 = vld [vmem:[%s6 + $0xb8] sm:$0xff]
      %v4841 = vld [vmem:[%s6 + $0xc0] sm:$0xff]
      %v4842 = vld [vmem:[%s6 + $0xc8] sm:$0xff]
      %v4843 = vld [vmem:[%s6 + $0xd0] sm:$0xff]
      %v4844 = vld [vmem:[%s6 + $0xd8] sm:$0xff]
      %v4845 = vld [vmem:[%s6 + $0xe0] sm:$0xff]
      %v4846 = vld [vmem:[%s6 + $0xe8] sm:$0xff]
      %v4847 = vld [vmem:[%s6 + $0xf0] sm:$0xff]
      %v4848 = vld [vmem:[%s6 + $0xf8] sm:$0xff]
      %v4849 = vld [vmem:[%s6 + $0x100] sm:$0xff]
      %v4850 = vld [vmem:[%s6 + $0x108] sm:$0xff]
      %v4851 = vld [vmem:[%s6 + $0x110] sm:$0xff]
      %v4852 = vld [vmem:[%s6 + $0x118] sm:$0xff]
      %v4853 = vld [vmem:[%s6 + $0x120] sm:$0xff]
      %v4854 = vld [vmem:[%s6 + $0x128] sm:$0xff]
      %v4855 = vld [vmem:[%s6 + $0x130] sm:$0xff]
      %v4856 = vld [vmem:[%s6 + $0x138] sm:$0xff]
      %v4857 = vld [vmem:[%s6 + $0x140] sm:$0xff]
      %v4858 = vld [vmem:[%s6 + $0x148] sm:$0xff]
      %v4859 = vld [vmem:[%s6 + $0x150] sm:$0xff]
      %v4860 = vld [vmem:[%s6 + $0x158] sm:$0xff]
      %v4861 = vld [vmem:[%s6 + $0x160] sm:$0xff]
      %v4862 = vld [vmem:[%s6 + $0x168] sm:$0xff]
      %v4863 = vld [vmem:[%s6 + $0x170] sm:$0xff]
      %v4864 = vld [vmem:[%s6 + $0x178] sm:$0xff]
      %v4865 = vld [vmem:[%s6 + $0x180] sm:$0xff]
      %v4866 = vld [vmem:[%s6 + $0x188] sm:$0xff]
      %v4867 = vld [vmem:[%s6 + $0x190] sm:$0xff]
      %v4868 = vld [vmem:[%s6 + $0x198] sm:$0xff]
      %v4869 = vld [vmem:[%s6 + $0x1a0] sm:$0xff]
      %v4870 = vld [vmem:[%s6 + $0x1a8] sm:$0xff]
      %v4871 = vld [vmem:[%s6 + $0x1b0] sm:$0xff]
      %v4872 = vld [vmem:[%s6 + $0x1b8] sm:$0xff]
      %v4873 = vld [vmem:[#allocation2] sm:$0xff]
      %v4874 = vld [vmem:[#allocation2 + $0x8] sm:$0xff]
      %v4875 = vld [vmem:[#allocation2 + $0x10] sm:$0xff]
      %v4876 = vld [vmem:[#allocation2 + $0x18] sm:$0xff]
      %v4877 = vld [vmem:[#allocation2 + $0x20] sm:$0xff]
      %v4878 = vld [vmem:[#allocation2 + $0x28] sm:$0xff]
      %v4879 = vld [vmem:[#allocation2 + $0x30] sm:$0xff]
      %v4880 = vld [vmem:[#allocation2 + $0x38] sm:$0xff]
      %v4881 = vld [vmem:[#allocation2 + $0x40] sm:$0xff]
      %v4882 = vld [vmem:[#allocation2 + $0x48] sm:$0xff]
      %v4883 = vld [vmem:[#allocation2 + $0x50] sm:$0xff]
      %v4884 = vld [vmem:[#allocation2 + $0x58] sm:$0xff]
      %v4885 = vld [vmem:[#allocation2 + $0x60] sm:$0xff]
      %v4886 = vld [vmem:[#allocation2 + $0x68] sm:$0xff]
      %v4887 = vld [vmem:[#allocation2 + $0x70] sm:$0xff]
      %v4888 = vld [vmem:[#allocation2 + $0x78] sm:$0xff]
      %v4889 = vld [vmem:[#allocation2 + $0x80] sm:$0xff]
      %v4890 = vld [vmem:[#allocation2 + $0x88] sm:$0xff]
      %v4891 = vld [vmem:[#allocation2 + $0x90] sm:$0xff]
      %v4892 = vld [vmem:[#allocation2 + $0x98] sm:$0xff]
      %v4893 = vld [vmem:[#allocation2 + $0xa0] sm:$0xff]
      %v4894 = vld [vmem:[#allocation2 + $0xa8] sm:$0xff]
      %v4895 = vld [vmem:[#allocation2 + $0xb0] sm:$0xff]
      %v4896 = vld [vmem:[#allocation2 + $0xb8] sm:$0xff]
      %v4897 = vld [vmem:[#allocation2 + $0xc0] sm:$0xff]
      %v4898 = vld [vmem:[#allocation2 + $0xc8] sm:$0xff]
      %v4899 = vld [vmem:[#allocation2 + $0xd0] sm:$0xff]
      %v4900 = vld [vmem:[#allocation2 + $0xd8] sm:$0xff]
      %v4901 = vld [vmem:[#allocation2 + $0xe0] sm:$0xff]
      %v4902 = vld [vmem:[#allocation2 + $0xe8] sm:$0xff]
      %v4903 = vld [vmem:[#allocation2 + $0xf0] sm:$0xff]
      %v4904 = vld [vmem:[#allocation2 + $0xf8] sm:$0xff]
      %v4905 = vld [vmem:[#allocation2 + $0x100] sm:$0xff]
      %v4906 = vld [vmem:[#allocation2 + $0x108] sm:$0xff]
      %v4907 = vld [vmem:[#allocation2 + $0x110] sm:$0xff]
      %v4908 = vld [vmem:[#allocation2 + $0x118] sm:$0xff]
      %v4909 = vld [vmem:[#allocation2 + $0x120] sm:$0xff]
      %v4910 = vld [vmem:[#allocation2 + $0x128] sm:$0xff]
      %v4911 = vld [vmem:[#allocation2 + $0x130] sm:$0xff]
      %v4912 = vld [vmem:[#allocation2 + $0x138] sm:$0xff]
      %v4913 = vld [vmem:[#allocation2 + $0x140] sm:$0xff]
      %v4914 = vld [vmem:[#allocation2 + $0x148] sm:$0xff]
      %v4915 = vld [vmem:[#allocation2 + $0x150] sm:$0xff]
      %v4916 = vld [vmem:[#allocation2 + $0x158] sm:$0xff]
      %v4917 = vld [vmem:[#allocation2 + $0x160] sm:$0xff]
      %v4918 = vld [vmem:[#allocation2 + $0x168] sm:$0xff]
      %v4919 = vld [vmem:[#allocation2 + $0x170] sm:$0xff]
      %v4920 = vld [vmem:[#allocation2 + $0x178] sm:$0xff]
      %v4921 = vld [vmem:[#allocation2 + $0x180] sm:$0xff]
      %v4922 = vld [vmem:[#allocation2 + $0x188] sm:$0xff]
      %v4923 = vld [vmem:[#allocation2 + $0x190] sm:$0xff]
      %v4924 = vld [vmem:[#allocation2 + $0x198] sm:$0xff]
      %v4925 = vld [vmem:[#allocation2 + $0x1a0] sm:$0xff]
      %v4926 = vld [vmem:[#allocation2 + $0x1a8] sm:$0xff]
      %v4927 = vld [vmem:[#allocation2 + $0x1b0] sm:$0xff]
      %v4928 = vld [vmem:[#allocation2 + $0x1b8] sm:$0xff]
      %v4929 = vld [vmem:[#allocation2 + $0x1c0] sm:$0xff]
      %v4930 = vld [vmem:[#allocation2 + $0x1c8] sm:$0xff]
      %v4931 = vld [vmem:[#allocation2 + $0x1d0] sm:$0xff]
      %v4932 = vld [vmem:[#allocation2 + $0x1d8] sm:$0xff]
      %v4933 = vld [vmem:[#allocation2 + $0x1e0] sm:$0xff]
      %v4934 = vld [vmem:[#allocation2 + $0x1e8] sm:$0xff]
      %v4935 = vld [vmem:[#allocation2 + $0x1f0] sm:$0xff]
      %v4936 = vld [vmem:[#allocation2 + $0x1f8] sm:$0xff]
      %v4937 = vld [vmem:[#allocation2 + $0x200] sm:$0xff]
      %v4938 = vld [vmem:[#allocation2 + $0x208] sm:$0xff]
      %v4939 = vld [vmem:[#allocation2 + $0x210] sm:$0xff]
      %v4940 = vld [vmem:[#allocation2 + $0x218] sm:$0xff]
      %v4941 = vld [vmem:[#allocation2 + $0x220] sm:$0xff]
      %v4942 = vld [vmem:[#allocation2 + $0x228] sm:$0xff]
      %v4943 = vld [vmem:[#allocation2 + $0x230] sm:$0xff]
      %v4944 = vld [vmem:[#allocation2 + $0x238] sm:$0xff]
      %v4945 = vld [vmem:[#allocation2 + $0x240] sm:$0xff]
      %v4946 = vld [vmem:[#allocation2 + $0x248] sm:$0xff]
      %v4947 = vld [vmem:[#allocation2 + $0x250] sm:$0xff]
      %v4948 = vld [vmem:[#allocation2 + $0x258] sm:$0xff]
      %v4949 = vld [vmem:[#allocation2 + $0x260] sm:$0xff]
      %v4950 = vld [vmem:[#allocation2 + $0x268] sm:$0xff]
      %v4951 = vld [vmem:[#allocation2 + $0x270] sm:$0xff]
      %v4952 = vld [vmem:[#allocation2 + $0x278] sm:$0xff]
      %v4953 = vld [vmem:[#allocation2 + $0x280] sm:$0xff]
      %v4954 = vld [vmem:[#allocation2 + $0x288] sm:$0xff]
      %v4955 = vld [vmem:[#allocation2 + $0x290] sm:$0xff]
      %v4956 = vld [vmem:[#allocation2 + $0x298] sm:$0xff]
      %v4957 = vld [vmem:[#allocation2 + $0x2a0] sm:$0xff]
      %v4958 = vld [vmem:[#allocation2 + $0x2a8] sm:$0xff]
      %v4959 = vld [vmem:[#allocation2 + $0x2b0] sm:$0xff]
      %v4960 = vld [vmem:[#allocation2 + $0x2b8] sm:$0xff]
      %v4961 = vld [vmem:[#allocation2 + $0x2c0] sm:$0xff]
      %v4962 = vld [vmem:[#allocation2 + $0x2c8] sm:$0xff]
      %v4963 = vld [vmem:[#allocation2 + $0x2d0] sm:$0xff]
      %v4964 = vld [vmem:[#allocation2 + $0x2d8] sm:$0xff]
      %v4965 = vld [vmem:[#allocation2 + $0x2e0] sm:$0xff]
      %v4966 = vld [vmem:[#allocation2 + $0x2e8] sm:$0xff]
      %v4967 = vld [vmem:[#allocation2 + $0x2f0] sm:$0xff]
      %v4968 = vld [vmem:[#allocation2 + $0x2f8] sm:$0xff]
      %v4969 = vld [vmem:[#allocation2 + $0x300] sm:$0xff]
      %v4970 = vld [vmem:[#allocation2 + $0x308] sm:$0xff]
      %v4971 = vld [vmem:[#allocation2 + $0x310] sm:$0xff]
      %v4972 = vld [vmem:[#allocation2 + $0x318] sm:$0xff]
      %v4973 = vld [vmem:[#allocation2 + $0x320] sm:$0xff]
      %v4974 = vld [vmem:[#allocation2 + $0x328] sm:$0xff]
      %v4975 = vld [vmem:[#allocation2 + $0x330] sm:$0xff]
      %v4976 = vld [vmem:[#allocation2 + $0x338] sm:$0xff]
      %v4977 = vld [vmem:[#allocation2 + $0x340] sm:$0xff]
      %v4978 = vld [vmem:[#allocation2 + $0x348] sm:$0xff]
      %v4979 = vld [vmem:[#allocation2 + $0x350] sm:$0xff]
      %v4980 = vld [vmem:[#allocation2 + $0x358] sm:$0xff]
      %v4981 = vld [vmem:[#allocation2 + $0x360] sm:$0xff]
      %v4982 = vld [vmem:[#allocation2 + $0x368] sm:$0xff]
      %v4983 = vld [vmem:[#allocation2 + $0x370] sm:$0xff]
      %v4984 = vld [vmem:[#allocation2 + $0x378] sm:$0xff]
      %v5041 = vunpack.c.l.b16 %v4817
      %v5042 = vunpack.c.h.b16 %v4817
      %v5043 = vunpack.c.l.b16 %v4818
      %v5044 = vunpack.c.h.b16 %v4818
      %v5045 = vunpack.c.l.b16 %v4819
      %v5046 = vunpack.c.h.b16 %v4819
      %v5047 = vunpack.c.l.b16 %v4820
      %v5048 = vunpack.c.h.b16 %v4820
      %v5049 = vunpack.c.l.b16 %v4821
      %v5050 = vunpack.c.h.b16 %v4821
      %v5051 = vunpack.c.l.b16 %v4822
      %v5052 = vunpack.c.h.b16 %v4822
      %v5053 = vunpack.c.l.b16 %v4823
      %v5054 = vunpack.c.h.b16 %v4823
      %v5055 = vunpack.c.l.b16 %v4824
      %v5056 = vunpack.c.h.b16 %v4824
      %v5057 = vunpack.c.l.b16 %v4825
      %v5058 = vunpack.c.h.b16 %v4825
      %v5059 = vunpack.c.l.b16 %v4826
      %v5060 = vunpack.c.h.b16 %v4826
      %v5061 = vunpack.c.l.b16 %v4827
      %v5062 = vunpack.c.h.b16 %v4827
      %v5063 = vunpack.c.l.b16 %v4828
      %v5064 = vunpack.c.h.b16 %v4828
      %v5065 = vunpack.c.l.b16 %v4829
      %v5066 = vunpack.c.h.b16 %v4829
      %v5067 = vunpack.c.l.b16 %v4830
      %v5068 = vunpack.c.h.b16 %v4830
      %v5069 = vunpack.c.l.b16 %v4831
      %v5070 = vunpack.c.h.b16 %v4831
      %v5071 = vunpack.c.l.b16 %v4832
      %v5072 = vunpack.c.h.b16 %v4832
      %v5073 = vunpack.c.l.b16 %v4833
      %v5074 = vunpack.c.h.b16 %v4833
      %v5075 = vunpack.c.l.b16 %v4834
      %v5076 = vunpack.c.h.b16 %v4834
      %v5077 = vunpack.c.l.b16 %v4835
      %v5078 = vunpack.c.h.b16 %v4835
      %v5079 = vunpack.c.l.b16 %v4836
      %v5080 = vunpack.c.h.b16 %v4836
      %v5081 = vunpack.c.l.b16 %v4837
      %v5082 = vunpack.c.h.b16 %v4837
      %v5083 = vunpack.c.l.b16 %v4838
      %v5084 = vunpack.c.h.b16 %v4838
      %v5085 = vunpack.c.l.b16 %v4839
      %v5086 = vunpack.c.h.b16 %v4839
      %v5087 = vunpack.c.l.b16 %v4840
      %v5088 = vunpack.c.h.b16 %v4840
      %v5089 = vunpack.c.l.b16 %v4841
      %v5090 = vunpack.c.h.b16 %v4841
      %v5091 = vunpack.c.l.b16 %v4842
      %v5092 = vunpack.c.h.b16 %v4842
      %v5093 = vunpack.c.l.b16 %v4843
      %v5094 = vunpack.c.h.b16 %v4843
      %v5095 = vunpack.c.l.b16 %v4844
      %v5096 = vunpack.c.h.b16 %v4844
      %v5097 = vunpack.c.l.b16 %v4845
      %v5098 = vunpack.c.h.b16 %v4845
      %v5099 = vunpack.c.l.b16 %v4846
      %v5100 = vunpack.c.h.b16 %v4846
      %v5101 = vunpack.c.l.b16 %v4847
      %v5102 = vunpack.c.h.b16 %v4847
      %v5103 = vunpack.c.l.b16 %v4848
      %v5104 = vunpack.c.h.b16 %v4848
      %v5105 = vunpack.c.l.b16 %v4849
      %v5106 = vunpack.c.h.b16 %v4849
      %v5107 = vunpack.c.l.b16 %v4850
      %v5108 = vunpack.c.h.b16 %v4850
      %v5109 = vunpack.c.l.b16 %v4851
      %v5110 = vunpack.c.h.b16 %v4851
      %v5111 = vunpack.c.l.b16 %v4852
      %v5112 = vunpack.c.h.b16 %v4852
      %v5113 = vunpack.c.l.b16 %v4853
      %v5114 = vunpack.c.h.b16 %v4853
      %v5115 = vunpack.c.l.b16 %v4854
      %v5116 = vunpack.c.h.b16 %v4854
      %v5117 = vunpack.c.l.b16 %v4855
      %v5118 = vunpack.c.h.b16 %v4855
      %v5119 = vunpack.c.l.b16 %v4856
      %v5120 = vunpack.c.h.b16 %v4856
      %v5121 = vunpack.c.l.b16 %v4857
      %v5122 = vunpack.c.h.b16 %v4857
      %v5123 = vunpack.c.l.b16 %v4858
      %v5124 = vunpack.c.h.b16 %v4858
      %v5125 = vunpack.c.l.b16 %v4859
      %v5126 = vunpack.c.h.b16 %v4859
      %v5127 = vunpack.c.l.b16 %v4860
      %v5128 = vunpack.c.h.b16 %v4860
      %v5129 = vunpack.c.l.b16 %v4861
      %v5130 = vunpack.c.h.b16 %v4861
      %v5131 = vunpack.c.l.b16 %v4862
      %v5132 = vunpack.c.h.b16 %v4862
      %v5133 = vunpack.c.l.b16 %v4863
      %v5134 = vunpack.c.h.b16 %v4863
      %v5135 = vunpack.c.l.b16 %v4864
      %v5136 = vunpack.c.h.b16 %v4864
      %v5137 = vunpack.c.l.b16 %v4865
      %v5138 = vunpack.c.h.b16 %v4865
      %v5139 = vunpack.c.l.b16 %v4866
      %v5140 = vunpack.c.h.b16 %v4866
      %v5141 = vunpack.c.l.b16 %v4867
      %v5142 = vunpack.c.h.b16 %v4867
      %v5143 = vunpack.c.l.b16 %v4868
      %v5144 = vunpack.c.h.b16 %v4868
      %v5145 = vunpack.c.l.b16 %v4869
      %v5146 = vunpack.c.h.b16 %v4869
      %v5147 = vunpack.c.l.b16 %v4870
      %v5148 = vunpack.c.h.b16 %v4870
      %v5149 = vunpack.c.l.b16 %v4871
      %v5150 = vunpack.c.h.b16 %v4871
      %v5151 = vunpack.c.l.b16 %v4872
      %v5152 = vunpack.c.h.b16 %v4872
      %v5153 = vpack.c.b16 %v5045, %v5041
      %v5154 = vpack.c.b16 %v5046, %v5042
      %v5155 = vpack.c.b16 %v5047, %v5043
      %v5156 = vpack.c.b16 %v5048, %v5044
      %v5157 = vpack.c.b16 %v5053, %v5049
      %v5158 = vpack.c.b16 %v5054, %v5050
      %v5159 = vpack.c.b16 %v5055, %v5051
      %v5160 = vpack.c.b16 %v5056, %v5052
      %v5161 = vpack.c.b16 %v5061, %v5057
      %v5162 = vpack.c.b16 %v5062, %v5058
      %v5163 = vpack.c.b16 %v5063, %v5059
      %v5164 = vpack.c.b16 %v5064, %v5060
      %v5165 = vpack.c.b16 %v5069, %v5065
      %v5166 = vpack.c.b16 %v5070, %v5066
      %v5167 = vpack.c.b16 %v5071, %v5067
      %v5168 = vpack.c.b16 %v5072, %v5068
      %v5169 = vpack.c.b16 %v5077, %v5073
      %v5170 = vpack.c.b16 %v5078, %v5074
      %v5171 = vpack.c.b16 %v5079, %v5075
      %v5172 = vpack.c.b16 %v5080, %v5076
      %v5173 = vpack.c.b16 %v5085, %v5081
      %v5174 = vpack.c.b16 %v5086, %v5082
      %v5175 = vpack.c.b16 %v5087, %v5083
      %v5176 = vpack.c.b16 %v5088, %v5084
      %v5177 = vpack.c.b16 %v5093, %v5089
      %v5178 = vpack.c.b16 %v5094, %v5090
      %v5179 = vpack.c.b16 %v5095, %v5091
      %v5180 = vpack.c.b16 %v5096, %v5092
      %v5181 = vpack.c.b16 %v5101, %v5097
      %v5182 = vpack.c.b16 %v5102, %v5098
      %v5183 = vpack.c.b16 %v5103, %v5099
      %v5184 = vpack.c.b16 %v5104, %v5100
      %v5185 = vpack.c.b16 %v5109, %v5105
      %v5186 = vpack.c.b16 %v5110, %v5106
      %v5187 = vpack.c.b16 %v5111, %v5107
      %v5188 = vpack.c.b16 %v5112, %v5108
      %v5189 = vpack.c.b16 %v5117, %v5113
      %v5190 = vpack.c.b16 %v5118, %v5114
      %v5191 = vpack.c.b16 %v5119, %v5115
      %v5192 = vpack.c.b16 %v5120, %v5116
      %v5193 = vpack.c.b16 %v5125, %v5121
      %v5194 = vpack.c.b16 %v5126, %v5122
      %v5195 = vpack.c.b16 %v5127, %v5123
      %v5196 = vpack.c.b16 %v5128, %v5124
      %v5197 = vpack.c.b16 %v5133, %v5129
      %v5198 = vpack.c.b16 %v5134, %v5130
      %v5199 = vpack.c.b16 %v5135, %v5131
      %v5200 = vpack.c.b16 %v5136, %v5132
      %v5201 = vpack.c.b16 %v5141, %v5137
      %v5202 = vpack.c.b16 %v5142, %v5138
      %v5203 = vpack.c.b16 %v5143, %v5139
      %v5204 = vpack.c.b16 %v5144, %v5140
      %v5205 = vpack.c.b16 %v5149, %v5145
      %v5206 = vpack.c.b16 %v5150, %v5146
      %v5207 = vpack.c.b16 %v5151, %v5147
      %v5208 = vpack.c.b16 %v5152, %v5148
      %vm5251 = vcmask 523264
      %v5253 = vsel %vm5251, %v5156, 0
      %v5256 = vsel %vm5251, %v5160, 0
      %v5259 = vsel %vm5251, %v5164, 0
      %v5262 = vsel %vm5251, %v5168, 0
      %v5265 = vsel %vm5251, %v5172, 0
      %v5268 = vsel %vm5251, %v5176, 0
      %v5271 = vsel %vm5251, %v5180, 0
      %v5274 = vsel %vm5251, %v5184, 0
      %v5277 = vsel %vm5251, %v5188, 0
      %v5280 = vsel %vm5251, %v5192, 0
      %v5283 = vsel %vm5251, %v5196, 0
      %v5286 = vsel %vm5251, %v5200, 0
      %v5289 = vsel %vm5251, %v5204, 0
      %v5292 = vsel %vm5251, %v5208, 0
      %5294 = vmatprep.subr.bf16.mxu0 %v4874
      %5295 = vmatpush1.bf16.msra.mxu0 %v4873
      %5296 = vmatprep.subr.bf16.mxu0 %v4878
      %5297 = vmatpush1.bf16.msra.mxu0 %v4877
      %5298 = vmatprep.subr.bf16.mxu0 %v4882
      %5299 = vmatpush1.bf16.msra.mxu0 %v4881
      %5300 = vmatprep.subr.bf16.mxu0 %v4886
      %5301 = vmatpush1.bf16.msra.mxu0 %v4885
      %5302 = vmatprep.subr.bf16.mxu0 %v4890
      %5303 = vmatpush1.bf16.msra.mxu0 %v4889
      %5304 = vmatprep.subr.bf16.mxu0 %v4894
      %5305 = vmatpush1.bf16.msra.mxu0 %v4893
      %5306 = vmatprep.subr.bf16.mxu0 %v4898
      %5307 = vmatpush1.bf16.msra.mxu0 %v4897
      %5308 = vmatprep.subr.bf16.mxu0 %v4902
      %5309 = vmatpush1.bf16.msra.mxu0 %v4901
      %5310 = vmatprep.subr.bf16.mxu0 %v4906
      %5311 = vmatpush1.bf16.msra.mxu0 %v4905
      %5312 = vmatprep.subr.bf16.mxu0 %v4910
      %5313 = vmatpush1.bf16.msra.mxu0 %v4909
      %5314 = vmatprep.subr.bf16.mxu0 %v4914
      %5315 = vmatpush1.bf16.msra.mxu0 %v4913
      %5316 = vmatprep.subr.bf16.mxu0 %v4918
      %5317 = vmatpush1.bf16.msra.mxu0 %v4917
      %5318 = vmatprep.subr.bf16.mxu0 %v4922
      %5319 = vmatpush1.bf16.msra.mxu0 %v4921
      %5320 = vmatprep.subr.bf16.mxu0 %v4926
      %5321 = vmatpush1.bf16.msra.mxu0 %v4925
      %5322 = vmatprep.subr.bf16.mxu0 %v4930
      %5323 = vmatpush1.bf16.msra.mxu0 %v4929
      %5324 = vmatprep.subr.bf16.mxu0 %v4934
      %5325 = vmatpush1.bf16.msra.mxu0 %v4933
      %5326 = vmatprep.mubr.bf16.mxu0 %v5154
      %5327 = vmatmul.mubr.bf16.gmra.mrb[0].mxu0 %v5153
      %v5328 = vpop.f32.mrb[0].mxu0
      %v5329 = vadd.f32 0.0, %v5328
      %v5330 = vpop.f32.mrb[0].mxu0
      %v5331 = vadd.f32 0.0, %v5330
      %v5332 = vpop.f32.mrb[0].mxu0
      %v5333 = vadd.f32 0.0, %v5332
      %v5334 = vpop.f32.mrb[0].mxu0
      %v5335 = vadd.f32 0.0, %v5334
      %5336 = vmatprep.mubr.bf16.mxu0 %v5158
      %5337 = vmatmul.mubr.bf16.gmra.mrb[0].mxu0 %v5157
      %v5338 = vpop.f32.mrb[0].mxu0
      %v5339 = vadd.f32 0.0, %v5338
      %v5340 = vpop.f32.mrb[0].mxu0
      %v5341 = vadd.f32 0.0, %v5340
      %v5342 = vpop.f32.mrb[0].mxu0
      %v5343 = vadd.f32 0.0, %v5342
      %v5344 = vpop.f32.mrb[0].mxu0
      %v5345 = vadd.f32 0.0, %v5344
      %5346 = vmatprep.mubr.bf16.mxu0 %v5162
      %5347 = vmatmul.mubr.bf16.gmra.mrb[0].mxu0 %v5161
      %v5348 = vpop.f32.mrb[0].mxu0
      %v5349 = vadd.f32 0.0, %v5348
      %v5350 = vpop.f32.mrb[0].mxu0
      %v5351 = vadd.f32 0.0, %v5350
      %v5352 = vpop.f32.mrb[0].mxu0
      %v5353 = vadd.f32 0.0, %v5352
      %v5354 = vpop.f32.mrb[0].mxu0
      %v5355 = vadd.f32 0.0, %v5354
      %5356 = vmatprep.mubr.bf16.mxu0 %v5166
      %5357 = vmatmul.mubr.bf16.gmra.mrb[0].mxu0 %v5165
      %v5358 = vpop.f32.mrb[0].mxu0
      %v5359 = vadd.f32 0.0, %v5358
      %v5360 = vpop.f32.mrb[0].mxu0
      %v5361 = vadd.f32 0.0, %v5360
      %v5362 = vpop.f32.mrb[0].mxu0
      %v5363 = vadd.f32 0.0, %v5362
      %v5364 = vpop.f32.mrb[0].mxu0
      %v5365 = vadd.f32 0.0, %v5364
      %5366 = vmatprep.mubr.bf16.mxu0 %v5170
      %5367 = vmatmul.mubr.bf16.gmra.mrb[0].mxu0 %v5169
      %v5368 = vpop.f32.mrb[0].mxu0
      %v5369 = vadd.f32 0.0, %v5368
      %v5370 = vpop.f32.mrb[0].mxu0
      %v5371 = vadd.f32 0.0, %v5370
      %v5372 = vpop.f32.mrb[0].mxu0
      %v5373 = vadd.f32 0.0, %v5372
      %v5374 = vpop.f32.mrb[0].mxu0
      %v5375 = vadd.f32 0.0, %v5374
      %5376 = vmatprep.mubr.bf16.mxu0 %v5174
      %5377 = vmatmul.mubr.bf16.gmra.mrb[0].mxu0 %v5173
      %v5378 = vpop.f32.mrb[0].mxu0
      %v5379 = vadd.f32 0.0, %v5378
      %v5380 = vpop.f32.mrb[0].mxu0
      %v5381 = vadd.f32 0.0, %v5380
      %v5382 = vpop.f32.mrb[0].mxu0
      %v5383 = vadd.f32 0.0, %v5382
      %v5384 = vpop.f32.mrb[0].mxu0
      %v5385 = vadd.f32 0.0, %v5384
      %5386 = vmatprep.mubr.bf16.mxu0 %v5178
      %5387 = vmatmul.mubr.bf16.gmra.mrb[0].mxu0 %v5177
      %v5388 = vpop.f32.mrb[0].mxu0
      %v5389 = vadd.f32 0.0, %v5388
      %v5390 = vpop.f32.mrb[0].mxu0
      %v5391 = vadd.f32 0.0, %v5390
      %v5392 = vpop.f32.mrb[0].mxu0
      %v5393 = vadd.f32 0.0, %v5392
      %v5394 = vpop.f32.mrb[0].mxu0
      %v5395 = vadd.f32 0.0, %v5394
      %5396 = vmatprep.mubr.bf16.mxu0 %v5182
      %5397 = vmatmul.mubr.bf16.gmra.mrb[0].mxu0 %v5181
      %v5398 = vpop.f32.mrb[0].mxu0
      %v5399 = vadd.f32 0.0, %v5398
      %v5400 = vpop.f32.mrb[0].mxu0
      %v5401 = vadd.f32 0.0, %v5400
      %v5402 = vpop.f32.mrb[0].mxu0
      %v5403 = vadd.f32 0.0, %v5402
      %v5404 = vpop.f32.mrb[0].mxu0
      %v5405 = vadd.f32 0.0, %v5404
      %5406 = vmatprep.mubr.bf16.mxu0 %v5186
      %5407 = vmatmul.mubr.bf16.gmra.mrb[0].mxu0 %v5185
      %v5408 = vpop.f32.mrb[0].mxu0
      %v5409 = vadd.f32 0.0, %v5408
      %v5410 = vpop.f32.mrb[0].mxu0
      %v5411 = vadd.f32 0.0, %v5410
      %v5412 = vpop.f32.mrb[0].mxu0
      %v5413 = vadd.f32 0.0, %v5412
      %v5414 = vpop.f32.mrb[0].mxu0
      %v5415 = vadd.f32 0.0, %v5414
      %5416 = vmatprep.mubr.bf16.mxu0 %v5190
      %5417 = vmatmul.mubr.bf16.gmra.mrb[0].mxu0 %v5189
      %v5418 = vpop.f32.mrb[0].mxu0
      %v5419 = vadd.f32 0.0, %v5418
      %v5420 = vpop.f32.mrb[0].mxu0
      %v5421 = vadd.f32 0.0, %v5420
      %v5422 = vpop.f32.mrb[0].mxu0
      %v5423 = vadd.f32 0.0, %v5422
      %v5424 = vpop.f32.mrb[0].mxu0
      %v5425 = vadd.f32 0.0, %v5424
      %5426 = vmatprep.mubr.bf16.mxu0 %v5194
      %5427 = vmatmul.mubr.bf16.gmra.mrb[0].mxu0 %v5193
      %v5428 = vpop.f32.mrb[0].mxu0
      %v5429 = vadd.f32 0.0, %v5428
      %v5430 = vpop.f32.mrb[0].mxu0
      %v5431 = vadd.f32 0.0, %v5430
      %v5432 = vpop.f32.mrb[0].mxu0
      %v5433 = vadd.f32 0.0, %v5432
      %v5434 = vpop.f32.mrb[0].mxu0
      %v5435 = vadd.f32 0.0, %v5434
      %5436 = vmatprep.mubr.bf16.mxu0 %v5198
      %5437 = vmatmul.mubr.bf16.gmra.mrb[0].mxu0 %v5197
      %v5438 = vpop.f32.mrb[0].mxu0
      %v5439 = vadd.f32 0.0, %v5438
      %v5440 = vpop.f32.mrb[0].mxu0
      %v5441 = vadd.f32 0.0, %v5440
      %v5442 = vpop.f32.mrb[0].mxu0
      %v5443 = vadd.f32 0.0, %v5442
      %v5444 = vpop.f32.mrb[0].mxu0
      %v5445 = vadd.f32 0.0, %v5444
      %5446 = vmatprep.mubr.bf16.mxu0 %v5202
      %5447 = vmatmul.mubr.bf16.gmra.mrb[0].mxu0 %v5201
      %v5448 = vpop.f32.mrb[0].mxu0
      %v5449 = vadd.f32 0.0, %v5448
      %v5450 = vpop.f32.mrb[0].mxu0
      %v5451 = vadd.f32 0.0, %v5450
      %v5452 = vpop.f32.mrb[0].mxu0
      %v5453 = vadd.f32 0.0, %v5452
      %v5454 = vpop.f32.mrb[0].mxu0
      %v5455 = vadd.f32 0.0, %v5454
      %5456 = vmatprep.mubr.bf16.mxu0 %v5206
      %5457 = vmatmul.mubr.bf16.gmra.mrb[0].mxu0 %v5205
      %v5458 = vpop.f32.mrb[0].mxu0
      %v5459 = vadd.f32 0.0, %v5458
      %v5460 = vpop.f32.mrb[0].mxu0
      %v5461 = vadd.f32 0.0, %v5460
      %v5462 = vpop.f32.mrb[0].mxu0
      %v5463 = vadd.f32 0.0, %v5462
      %v5464 = vpop.f32.mrb[0].mxu0
      %v5465 = vadd.f32 0.0, %v5464
      %5466 = vdwg.mxu0
      %5467 = vmatprep.subr.bf16.mxu0 %v4938
      %5468 = vmatpush1.bf16.msra.mxu0 %v4937
      %5469 = vmatprep.subr.bf16.mxu0 %v4942
      %5470 = vmatpush1.bf16.msra.mxu0 %v4941
      %5471 = vmatprep.subr.bf16.mxu0 %v4946
      %5472 = vmatpush1.bf16.msra.mxu0 %v4945
      %5473 = vmatprep.subr.bf16.mxu0 %v4950
      %5474 = vmatpush1.bf16.msra.mxu0 %v4949
      %5475 = vmatprep.subr.bf16.mxu0 %v4954
      %5476 = vmatpush1.bf16.msra.mxu0 %v4953
      %5477 = vmatprep.subr.bf16.mxu0 %v4958
      %5478 = vmatpush1.bf16.msra.mxu0 %v4957
      %5479 = vmatprep.subr.bf16.mxu0 %v4962
      %5480 = vmatpush1.bf16.msra.mxu0 %v4961
      %5481 = vmatprep.subr.bf16.mxu0 %v4966
      %5482 = vmatpush1.bf16.msra.mxu0 %v4965
      %5483 = vmatprep.subr.bf16.mxu0 %v4970
      %5484 = vmatpush1.bf16.msra.mxu0 %v4969
      %5485 = vmatprep.subr.bf16.mxu0 %v4974
      %5486 = vmatpush1.bf16.msra.mxu0 %v4973
      %5487 = vmatprep.subr.bf16.mxu0 %v4978
      %5488 = vmatpush1.bf16.msra.mxu0 %v4977
      %5489 = vmatprep.subr.bf16.mxu0 %v4982
      %5490 = vmatpush1.bf16.msra.mxu0 %v4981
      %5491 = vmatprep.subr.bf16.mxu0 0
      %5492 = vmatpush1.bf16.msra.mxu0 0
      %5493 = vmatprep.subr.bf16.mxu0 0
      %5494 = vmatpush1.bf16.msra.mxu0 0
      %5495 = vmatprep.subr.bf16.mxu0 0
      %5496 = vmatpush1.bf16.msra.mxu0 0
      %5497 = vmatprep.subr.bf16.mxu0 0
      %5498 = vmatpush1.bf16.msra.mxu0 0
      %5499 = vmatprep.mubr.bf16.mxu0 %v5253
      %5500 = vmatmul.mubr.bf16.gmra.mrb[0].mxu0 %v5155
      %v5501 = vpop.f32.mrb[0].mxu0
      %v5502 = vadd.f32 %v5329, %v5501
      %v5503 = vpop.f32.mrb[0].mxu0
      %v5504 = vadd.f32 %v5331, %v5503
      %v5505 = vpop.f32.mrb[0].mxu0
      %v5506 = vadd.f32 %v5333, %v5505
      %v5507 = vpop.f32.mrb[0].mxu0
      %v5508 = vadd.f32 %v5335, %v5507
      %5509 = vmatprep.mubr.bf16.mxu0 %v5256
      %5510 = vmatmul.mubr.bf16.gmra.mrb[0].mxu0 %v5159
      %v5511 = vpop.f32.mrb[0].mxu0
      %v5512 = vadd.f32 %v5339, %v5511
      %v5513 = vpop.f32.mrb[0].mxu0
      %v5514 = vadd.f32 %v5341, %v5513
      %v5515 = vpop.f32.mrb[0].mxu0
      %v5516 = vadd.f32 %v5343, %v5515
      %v5517 = vpop.f32.mrb[0].mxu0
      %v5518 = vadd.f32 %v5345, %v5517
      %5519 = vmatprep.mubr.bf16.mxu0 %v5259
      %5520 = vmatmul.mubr.bf16.gmra.mrb[0].mxu0 %v5163
      %v5521 = vpop.f32.mrb[0].mxu0
      %v5522 = vadd.f32 %v5349, %v5521
      %v5523 = vpop.f32.mrb[0].mxu0
      %v5524 = vadd.f32 %v5351, %v5523
      %v5525 = vpop.f32.mrb[0].mxu0
      %v5526 = vadd.f32 %v5353, %v5525
      %v5527 = vpop.f32.mrb[0].mxu0
      %v5528 = vadd.f32 %v5355, %v5527
      %5529 = vmatprep.mubr.bf16.mxu0 %v5262
      %5530 = vmatmul.mubr.bf16.gmra.mrb[0].mxu0 %v5167
      %v5531 = vpop.f32.mrb[0].mxu0
      %v5532 = vadd.f32 %v5359, %v5531
      %v5533 = vpop.f32.mrb[0].mxu0
      %v5534 = vadd.f32 %v5361, %v5533
      %v5535 = vpop.f32.mrb[0].mxu0
      %v5536 = vadd.f32 %v5363, %v5535
      %v5537 = vpop.f32.mrb[0].mxu0
      %v5538 = vadd.f32 %v5365, %v5537
      %5539 = vmatprep.mubr.bf16.mxu0 %v5265
      %5540 = vmatmul.mubr.bf16.gmra.mrb[0].mxu0 %v5171
      %v5541 = vpop.f32.mrb[0].mxu0
      %v5542 = vadd.f32 %v5369, %v5541
      %v5543 = vpop.f32.mrb[0].mxu0
      %v5544 = vadd.f32 %v5371, %v5543
      %v5545 = vpop.f32.mrb[0].mxu0
      %v5546 = vadd.f32 %v5373, %v5545
      %v5547 = vpop.f32.mrb[0].mxu0
      %v5548 = vadd.f32 %v5375, %v5547
      %5549 = vmatprep.mubr.bf16.mxu0 %v5268
      %5550 = vmatmul.mubr.bf16.gmra.mrb[0].mxu0 %v5175
      %v5551 = vpop.f32.mrb[0].mxu0
      %v5552 = vadd.f32 %v5379, %v5551
      %v5553 = vpop.f32.mrb[0].mxu0
      %v5554 = vadd.f32 %v5381, %v5553
      %v5555 = vpop.f32.mrb[0].mxu0
      %v5556 = vadd.f32 %v5383, %v5555
      %v5557 = vpop.f32.mrb[0].mxu0
      %v5558 = vadd.f32 %v5385, %v5557
      %5559 = vmatprep.mubr.bf16.mxu0 %v5271
      %5560 = vmatmul.mubr.bf16.gmra.mrb[0].mxu0 %v5179
      %v5561 = vpop.f32.mrb[0].mxu0
      %v5562 = vadd.f32 %v5389, %v5561
      %v5563 = vpop.f32.mrb[0].mxu0
      %v5564 = vadd.f32 %v5391, %v5563
      %v5565 = vpop.f32.mrb[0].mxu0
      %v5566 = vadd.f32 %v5393, %v5565
      %v5567 = vpop.f32.mrb[0].mxu0
      %v5568 = vadd.f32 %v5395, %v5567
      %5569 = vmatprep.mubr.bf16.mxu0 %v5274
      %5570 = vmatmul.mubr.bf16.gmra.mrb[0].mxu0 %v5183
      %v5571 = vpop.f32.mrb[0].mxu0
      %v5572 = vadd.f32 %v5399, %v5571
      %v5573 = vpop.f32.mrb[0].mxu0
      %v5574 = vadd.f32 %v5401, %v5573
      %v5575 = vpop.f32.mrb[0].mxu0
      %v5576 = vadd.f32 %v5403, %v5575
      %v5577 = vpop.f32.mrb[0].mxu0
      %v5578 = vadd.f32 %v5405, %v5577
      %5579 = vmatprep.mubr.bf16.mxu0 %v5277
      %5580 = vmatmul.mubr.bf16.gmra.mrb[0].mxu0 %v5187
      %v5581 = vpop.f32.mrb[0].mxu0
      %v5582 = vadd.f32 %v5409, %v5581
      %v5583 = vpop.f32.mrb[0].mxu0
      %v5584 = vadd.f32 %v5411, %v5583
      %v5585 = vpop.f32.mrb[0].mxu0
      %v5586 = vadd.f32 %v5413, %v5585
      %v5587 = vpop.f32.mrb[0].mxu0
      %v5588 = vadd.f32 %v5415, %v5587
      %5589 = vmatprep.mubr.bf16.mxu0 %v5280
      %5590 = vmatmul.mubr.bf16.gmra.mrb[0].mxu0 %v5191
      %v5591 = vpop.f32.mrb[0].mxu0
      %v5592 = vadd.f32 %v5419, %v5591
      %v5593 = vpop.f32.mrb[0].mxu0
      %v5594 = vadd.f32 %v5421, %v5593
      %v5595 = vpop.f32.mrb[0].mxu0
      %v5596 = vadd.f32 %v5423, %v5595
      %v5597 = vpop.f32.mrb[0].mxu0
      %v5598 = vadd.f32 %v5425, %v5597
      %5599 = vmatprep.mubr.bf16.mxu0 %v5283
      %5600 = vmatmul.mubr.bf16.gmra.mrb[0].mxu0 %v5195
      %v5601 = vpop.f32.mrb[0].mxu0
      %v5602 = vadd.f32 %v5429, %v5601
      %v5603 = vpop.f32.mrb[0].mxu0
      %v5604 = vadd.f32 %v5431, %v5603
      %v5605 = vpop.f32.mrb[0].mxu0
      %v5606 = vadd.f32 %v5433, %v5605
      %v5607 = vpop.f32.mrb[0].mxu0
      %v5608 = vadd.f32 %v5435, %v5607
      %5609 = vmatprep.mubr.bf16.mxu0 %v5286
      %5610 = vmatmul.mubr.bf16.gmra.mrb[0].mxu0 %v5199
      %v5611 = vpop.f32.mrb[0].mxu0
      %v5612 = vadd.f32 %v5439, %v5611
      %v5613 = vpop.f32.mrb[0].mxu0
      %v5614 = vadd.f32 %v5441, %v5613
      %v5615 = vpop.f32.mrb[0].mxu0
      %v5616 = vadd.f32 %v5443, %v5615
      %v5617 = vpop.f32.mrb[0].mxu0
      %v5618 = vadd.f32 %v5445, %v5617
      %5619 = vmatprep.mubr.bf16.mxu0 %v5289
      %5620 = vmatmul.mubr.bf16.gmra.mrb[0].mxu0 %v5203
      %v5621 = vpop.f32.mrb[0].mxu0
      %v5622 = vadd.f32 %v5449, %v5621
      %v5623 = vpop.f32.mrb[0].mxu0
      %v5624 = vadd.f32 %v5451, %v5623
      %v5625 = vpop.f32.mrb[0].mxu0
      %v5626 = vadd.f32 %v5453, %v5625
      %v5627 = vpop.f32.mrb[0].mxu0
      %v5628 = vadd.f32 %v5455, %v5627
      %5629 = vmatprep.mubr.bf16.mxu0 %v5292
      %5630 = vmatmul.mubr.bf16.gmra.mrb[0].mxu0 %v5207
      %v5631 = vpop.f32.mrb[0].mxu0
      %v5632 = vadd.f32 %v5459, %v5631
      %v5633 = vpop.f32.mrb[0].mxu0
      %v5634 = vadd.f32 %v5461, %v5633
      %v5635 = vpop.f32.mrb[0].mxu0
      %v5636 = vadd.f32 %v5463, %v5635
      %v5637 = vpop.f32.mrb[0].mxu0
      %v5638 = vadd.f32 %v5465, %v5637
      %5639 = vdwg.mxu0
      %5640 = vmatprep.subr.bf16.mxu0 %v4876
      %5641 = vmatpush1.bf16.msra.mxu0 %v4875
      %5642 = vmatprep.subr.bf16.mxu0 %v4880
      %5643 = vmatpush1.bf16.msra.mxu0 %v4879
      %5644 = vmatprep.subr.bf16.mxu0 %v4884
      %5645 = vmatpush1.bf16.msra.mxu0 %v4883
      %5646 = vmatprep.subr.bf16.mxu0 %v4888
      %5647 = vmatpush1.bf16.msra.mxu0 %v4887
      %5648 = vmatprep.subr.bf16.mxu0 %v4892
      %5649 = vmatpush1.bf16.msra.mxu0 %v4891
      %5650 = vmatprep.subr.bf16.mxu0 %v4896
      %5651 = vmatpush1.bf16.msra.mxu0 %v4895
      %5652 = vmatprep.subr.bf16.mxu0 %v4900
      %5653 = vmatpush1.bf16.msra.mxu0 %v4899
      %5654 = vmatprep.subr.bf16.mxu0 %v4904
      %5655 = vmatpush1.bf16.msra.mxu0 %v4903
      %5656 = vmatprep.subr.bf16.mxu0 %v4908
      %5657 = vmatpush1.bf16.msra.mxu0 %v4907
      %5658 = vmatprep.subr.bf16.mxu0 %v4912
      %5659 = vmatpush1.bf16.msra.mxu0 %v4911
      %5660 = vmatprep.subr.bf16.mxu0 %v4916
      %5661 = vmatpush1.bf16.msra.mxu0 %v4915
      %5662 = vmatprep.subr.bf16.mxu0 %v4920
      %5663 = vmatpush1.bf16.msra.mxu0 %v4919
      %5664 = vmatprep.subr.bf16.mxu0 %v4924
      %5665 = vmatpush1.bf16.msra.mxu0 %v4923
      %5666 = vmatprep.subr.bf16.mxu0 %v4928
      %5667 = vmatpush1.bf16.msra.mxu0 %v4927
      %5668 = vmatprep.subr.bf16.mxu0 %v4932
      %5669 = vmatpush1.bf16.msra.mxu0 %v4931
      %5670 = vmatprep.subr.bf16.mxu0 %v4936
      %5671 = vmatpush1.bf16.msra.mxu0 %v4935
      %5672 = vmatprep.mubr.bf16.mxu0 %v5154
      %5673 = vmatmul.mubr.bf16.gmra.mrb[0].mxu0 %v5153
      %v5674 = vpop.f32.mrb[0].mxu0
      %v5675 = vadd.f32 0.0, %v5674
      %v5676 = vpop.f32.mrb[0].mxu0
      %v5677 = vadd.f32 0.0, %v5676
      %v5678 = vpop.f32.mrb[0].mxu0
      %v5679 = vadd.f32 0.0, %v5678
      %v5680 = vpop.f32.mrb[0].mxu0
      %v5681 = vadd.f32 0.0, %v5680
      %5682 = vmatprep.mubr.bf16.mxu0 %v5158
      %5683 = vmatmul.mubr.bf16.gmra.mrb[0].mxu0 %v5157
      %v5684 = vpop.f32.mrb[0].mxu0
      %v5685 = vadd.f32 0.0, %v5684
      %v5686 = vpop.f32.mrb[0].mxu0
      %v5687 = vadd.f32 0.0, %v5686
      %v5688 = vpop.f32.mrb[0].mxu0
      %v5689 = vadd.f32 0.0, %v5688
      %v5690 = vpop.f32.mrb[0].mxu0
      %v5691 = vadd.f32 0.0, %v5690
      %5692 = vmatprep.mubr.bf16.mxu0 %v5162
      %5693 = vmatmul.mubr.bf16.gmra.mrb[0].mxu0 %v5161
      %v5694 = vpop.f32.mrb[0].mxu0
      %v5695 = vadd.f32 0.0, %v5694
      %v5696 = vpop.f32.mrb[0].mxu0
      %v5697 = vadd.f32 0.0, %v5696
      %v5698 = vpop.f32.mrb[0].mxu0
      %v5699 = vadd.f32 0.0, %v5698
      %v5700 = vpop.f32.mrb[0].mxu0
      %v5701 = vadd.f32 0.0, %v5700
      %5702 = vmatprep.mubr.bf16.mxu0 %v5166
      %5703 = vmatmul.mubr.bf16.gmra.mrb[0].mxu0 %v5165
      %v5704 = vpop.f32.mrb[0].mxu0
      %v5705 = vadd.f32 0.0, %v5704
      %v5706 = vpop.f32.mrb[0].mxu0
      %v5707 = vadd.f32 0.0, %v5706
      %v5708 = vpop.f32.mrb[0].mxu0
      %v5709 = vadd.f32 0.0, %v5708
      %v5710 = vpop.f32.mrb[0].mxu0
      %v5711 = vadd.f32 0.0, %v5710
      %5712 = vmatprep.mubr.bf16.mxu0 %v5170
      %5713 = vmatmul.mubr.bf16.gmra.mrb[0].mxu0 %v5169
      %v5714 = vpop.f32.mrb[0].mxu0
      %v5715 = vadd.f32 0.0, %v5714
      %v5716 = vpop.f32.mrb[0].mxu0
      %v5717 = vadd.f32 0.0, %v5716
      %v5718 = vpop.f32.mrb[0].mxu0
      %v5719 = vadd.f32 0.0, %v5718
      %v5720 = vpop.f32.mrb[0].mxu0
      %v5721 = vadd.f32 0.0, %v5720
      %5722 = vmatprep.mubr.bf16.mxu0 %v5174
      %5723 = vmatmul.mubr.bf16.gmra.mrb[0].mxu0 %v5173
      %v5724 = vpop.f32.mrb[0].mxu0
      %v5725 = vadd.f32 0.0, %v5724
      %v5726 = vpop.f32.mrb[0].mxu0
      %v5727 = vadd.f32 0.0, %v5726
      %v5728 = vpop.f32.mrb[0].mxu0
      %v5729 = vadd.f32 0.0, %v5728
      %v5730 = vpop.f32.mrb[0].mxu0
      %v5731 = vadd.f32 0.0, %v5730
      %5732 = vmatprep.mubr.bf16.mxu0 %v5178
      %5733 = vmatmul.mubr.bf16.gmra.mrb[0].mxu0 %v5177
      %v5734 = vpop.f32.mrb[0].mxu0
      %v5735 = vadd.f32 0.0, %v5734
      %v5736 = vpop.f32.mrb[0].mxu0
      %v5737 = vadd.f32 0.0, %v5736
      %v5738 = vpop.f32.mrb[0].mxu0
      %v5739 = vadd.f32 0.0, %v5738
      %v5740 = vpop.f32.mrb[0].mxu0
      %v5741 = vadd.f32 0.0, %v5740
      %5742 = vmatprep.mubr.bf16.mxu0 %v5182
      %5743 = vmatmul.mubr.bf16.gmra.mrb[0].mxu0 %v5181
      %v5744 = vpop.f32.mrb[0].mxu0
      %v5745 = vadd.f32 0.0, %v5744
      %v5746 = vpop.f32.mrb[0].mxu0
      %v5747 = vadd.f32 0.0, %v5746
      %v5748 = vpop.f32.mrb[0].mxu0
      %v5749 = vadd.f32 0.0, %v5748
      %v5750 = vpop.f32.mrb[0].mxu0
      %v5751 = vadd.f32 0.0, %v5750
      %5752 = vmatprep.mubr.bf16.mxu0 %v5186
      %5753 = vmatmul.mubr.bf16.gmra.mrb[0].mxu0 %v5185
      %v5754 = vpop.f32.mrb[0].mxu0
      %v5755 = vadd.f32 0.0, %v5754
      %v5756 = vpop.f32.mrb[0].mxu0
      %v5757 = vadd.f32 0.0, %v5756
      %v5758 = vpop.f32.mrb[0].mxu0
      %v5759 = vadd.f32 0.0, %v5758
      %v5760 = vpop.f32.mrb[0].mxu0
      %v5761 = vadd.f32 0.0, %v5760
      %5762 = vmatprep.mubr.bf16.mxu0 %v5190
      %5763 = vmatmul.mubr.bf16.gmra.mrb[0].mxu0 %v5189
      %v5764 = vpop.f32.mrb[0].mxu0
      %v5765 = vadd.f32 0.0, %v5764
      %v5766 = vpop.f32.mrb[0].mxu0
      %v5767 = vadd.f32 0.0, %v5766
      %v5768 = vpop.f32.mrb[0].mxu0
      %v5769 = vadd.f32 0.0, %v5768
      %v5770 = vpop.f32.mrb[0].mxu0
      %v5771 = vadd.f32 0.0, %v5770
      %5772 = vmatprep.mubr.bf16.mxu0 %v5194
      %5773 = vmatmul.mubr.bf16.gmra.mrb[0].mxu0 %v5193
      %v5774 = vpop.f32.mrb[0].mxu0
      %v5775 = vadd.f32 0.0, %v5774
      %v5776 = vpop.f32.mrb[0].mxu0
      %v5777 = vadd.f32 0.0, %v5776
      %v5778 = vpop.f32.mrb[0].mxu0
      %v5779 = vadd.f32 0.0, %v5778
      %v5780 = vpop.f32.mrb[0].mxu0
      %v5781 = vadd.f32 0.0, %v5780
      %5782 = vmatprep.mubr.bf16.mxu0 %v5198
      %5783 = vmatmul.mubr.bf16.gmra.mrb[0].mxu0 %v5197
      %v5784 = vpop.f32.mrb[0].mxu0
      %v5785 = vadd.f32 0.0, %v5784
      %v5786 = vpop.f32.mrb[0].mxu0
      %v5787 = vadd.f32 0.0, %v5786
      %v5788 = vpop.f32.mrb[0].mxu0
      %v5789 = vadd.f32 0.0, %v5788
      %v5790 = vpop.f32.mrb[0].mxu0
      %v5791 = vadd.f32 0.0, %v5790
      %5792 = vmatprep.mubr.bf16.mxu0 %v5202
      %5793 = vmatmul.mubr.bf16.gmra.mrb[0].mxu0 %v5201
      %v5794 = vpop.f32.mrb[0].mxu0
      %v5795 = vadd.f32 0.0, %v5794
      %v5796 = vpop.f32.mrb[0].mxu0
      %v5797 = vadd.f32 0.0, %v5796
      %v5798 = vpop.f32.mrb[0].mxu0
      %v5799 = vadd.f32 0.0, %v5798
      %v5800 = vpop.f32.mrb[0].mxu0
      %v5801 = vadd.f32 0.0, %v5800
      %5802 = vmatprep.mubr.bf16.mxu0 %v5206
      %5803 = vmatmul.mubr.bf16.gmra.mrb[0].mxu0 %v5205
      %v5804 = vpop.f32.mrb[0].mxu0
      %v5805 = vadd.f32 0.0, %v5804
      %v5806 = vpop.f32.mrb[0].mxu0
      %v5807 = vadd.f32 0.0, %v5806
      %v5808 = vpop.f32.mrb[0].mxu0
      %v5809 = vadd.f32 0.0, %v5808
      %v5810 = vpop.f32.mrb[0].mxu0
      %v5811 = vadd.f32 0.0, %v5810
      %5812 = vdwg.mxu0
      %5813 = vmatprep.subr.bf16.mxu0 %v4940
      %5814 = vmatpush1.bf16.msra.mxu0 %v4939
      %5815 = vmatprep.subr.bf16.mxu0 %v4944
      %5816 = vmatpush1.bf16.msra.mxu0 %v4943
      %5817 = vmatprep.subr.bf16.mxu0 %v4948
      %5818 = vmatpush1.bf16.msra.mxu0 %v4947
      %5819 = vmatprep.subr.bf16.mxu0 %v4952
      %5820 = vmatpush1.bf16.msra.mxu0 %v4951
      %5821 = vmatprep.subr.bf16.mxu0 %v4956
      %5822 = vmatpush1.bf16.msra.mxu0 %v4955
      %5823 = vmatprep.subr.bf16.mxu0 %v4960
      %5824 = vmatpush1.bf16.msra.mxu0 %v4959
      %5825 = vmatprep.subr.bf16.mxu0 %v4964
      %5826 = vmatpush1.bf16.msra.mxu0 %v4963
      %5827 = vmatprep.subr.bf16.mxu0 %v4968
      %5828 = vmatpush1.bf16.msra.mxu0 %v4967
      %5829 = vmatprep.subr.bf16.mxu0 %v4972
      %5830 = vmatpush1.bf16.msra.mxu0 %v4971
      %5831 = vmatprep.subr.bf16.mxu0 %v4976
      %5832 = vmatpush1.bf16.msra.mxu0 %v4975
      %5833 = vmatprep.subr.bf16.mxu0 %v4980
      %5834 = vmatpush1.bf16.msra.mxu0 %v4979
      %5835 = vmatprep.subr.bf16.mxu0 %v4984
      %5836 = vmatpush1.bf16.msra.mxu0 %v4983
      %5837 = vmatprep.subr.bf16.mxu0 0
      %5838 = vmatpush1.bf16.msra.mxu0 0
      %5839 = vmatprep.subr.bf16.mxu0 0
      %5840 = vmatpush1.bf16.msra.mxu0 0
      %5841 = vmatprep.subr.bf16.mxu0 0
      %5842 = vmatpush1.bf16.msra.mxu0 0
      %5843 = vmatprep.subr.bf16.mxu0 0
      %5844 = vmatpush1.bf16.msra.mxu0 0
      %5845 = vmatprep.mubr.bf16.mxu0 %v5253
      %5846 = vmatmul.mubr.bf16.gmra.mrb[0].mxu0 %v5155
      %v5847 = vpop.f32.mrb[0].mxu0
      %v5848 = vadd.f32 %v5675, %v5847
      %v5849 = vpop.f32.mrb[0].mxu0
      %v5850 = vadd.f32 %v5677, %v5849
      %v5851 = vpop.f32.mrb[0].mxu0
      %v5852 = vadd.f32 %v5679, %v5851
      %v5853 = vpop.f32.mrb[0].mxu0
      %v5854 = vadd.f32 %v5681, %v5853
      %5855 = vmatprep.mubr.bf16.mxu0 %v5256
      %5856 = vmatmul.mubr.bf16.gmra.mrb[0].mxu0 %v5159
      %v5857 = vpop.f32.mrb[0].mxu0
      %v5858 = vadd.f32 %v5685, %v5857
      %v5859 = vpop.f32.mrb[0].mxu0
      %v5860 = vadd.f32 %v5687, %v5859
      %v5861 = vpop.f32.mrb[0].mxu0
      %v5862 = vadd.f32 %v5689, %v5861
      %v5863 = vpop.f32.mrb[0].mxu0
      %v5864 = vadd.f32 %v5691, %v5863
      %5865 = vmatprep.mubr.bf16.mxu0 %v5259
      %5866 = vmatmul.mubr.bf16.gmra.mrb[0].mxu0 %v5163
      %v5867 = vpop.f32.mrb[0].mxu0
      %v5868 = vadd.f32 %v5695, %v5867
      %v5869 = vpop.f32.mrb[0].mxu0
      %v5870 = vadd.f32 %v5697, %v5869
      %v5871 = vpop.f32.mrb[0].mxu0
      %v5872 = vadd.f32 %v5699, %v5871
      %v5873 = vpop.f32.mrb[0].mxu0
      %v5874 = vadd.f32 %v5701, %v5873
      %5875 = vmatprep.mubr.bf16.mxu0 %v5262
      %5876 = vmatmul.mubr.bf16.gmra.mrb[0].mxu0 %v5167
      %v5877 = vpop.f32.mrb[0].mxu0
      %v5878 = vadd.f32 %v5705, %v5877
      %v5879 = vpop.f32.mrb[0].mxu0
      %v5880 = vadd.f32 %v5707, %v5879
      %v5881 = vpop.f32.mrb[0].mxu0
      %v5882 = vadd.f32 %v5709, %v5881
      %v5883 = vpop.f32.mrb[0].mxu0
      %v5884 = vadd.f32 %v5711, %v5883
      %5885 = vmatprep.mubr.bf16.mxu0 %v5265
      %5886 = vmatmul.mubr.bf16.gmra.mrb[0].mxu0 %v5171
      %v5887 = vpop.f32.mrb[0].mxu0
      %v5888 = vadd.f32 %v5715, %v5887
      %v5889 = vpop.f32.mrb[0].mxu0
      %v5890 = vadd.f32 %v5717, %v5889
      %v5891 = vpop.f32.mrb[0].mxu0
      %v5892 = vadd.f32 %v5719, %v5891
      %v5893 = vpop.f32.mrb[0].mxu0
      %v5894 = vadd.f32 %v5721, %v5893
      %5895 = vmatprep.mubr.bf16.mxu0 %v5268
      %5896 = vmatmul.mubr.bf16.gmra.mrb[0].mxu0 %v5175
      %v5897 = vpop.f32.mrb[0].mxu0
      %v5898 = vadd.f32 %v5725, %v5897
      %v5899 = vpop.f32.mrb[0].mxu0
      %v5900 = vadd.f32 %v5727, %v5899
      %v5901 = vpop.f32.mrb[0].mxu0
      %v5902 = vadd.f32 %v5729, %v5901
      %v5903 = vpop.f32.mrb[0].mxu0
      %v5904 = vadd.f32 %v5731, %v5903
      %5905 = vmatprep.mubr.bf16.mxu0 %v5271
      %5906 = vmatmul.mubr.bf16.gmra.mrb[0].mxu0 %v5179
      %v5907 = vpop.f32.mrb[0].mxu0
      %v5908 = vadd.f32 %v5735, %v5907
      %v5909 = vpop.f32.mrb[0].mxu0
      %v5910 = vadd.f32 %v5737, %v5909
      %v5911 = vpop.f32.mrb[0].mxu0
      %v5912 = vadd.f32 %v5739, %v5911
      %v5913 = vpop.f32.mrb[0].mxu0
      %v5914 = vadd.f32 %v5741, %v5913
      %5915 = vmatprep.mubr.bf16.mxu0 %v5274
      %5916 = vmatmul.mubr.bf16.gmra.mrb[0].mxu0 %v5183
      %v5917 = vpop.f32.mrb[0].mxu0
      %v5918 = vadd.f32 %v5745, %v5917
      %v5919 = vpop.f32.mrb[0].mxu0
      %v5920 = vadd.f32 %v5747, %v5919
      %v5921 = vpop.f32.mrb[0].mxu0
      %v5922 = vadd.f32 %v5749, %v5921
      %v5923 = vpop.f32.mrb[0].mxu0
      %v5924 = vadd.f32 %v5751, %v5923
      %5925 = vmatprep.mubr.bf16.mxu0 %v5277
      %5926 = vmatmul.mubr.bf16.gmra.mrb[0].mxu0 %v5187
      %v5927 = vpop.f32.mrb[0].mxu0
      %v5928 = vadd.f32 %v5755, %v5927
      %v5929 = vpop.f32.mrb[0].mxu0
      %v5930 = vadd.f32 %v5757, %v5929
      %v5931 = vpop.f32.mrb[0].mxu0
      %v5932 = vadd.f32 %v5759, %v5931
      %v5933 = vpop.f32.mrb[0].mxu0
      %v5934 = vadd.f32 %v5761, %v5933
      %5935 = vmatprep.mubr.bf16.mxu0 %v5280
      %5936 = vmatmul.mubr.bf16.gmra.mrb[0].mxu0 %v5191
      %v5937 = vpop.f32.mrb[0].mxu0
      %v5938 = vadd.f32 %v5765, %v5937
      %v5939 = vpop.f32.mrb[0].mxu0
      %v5940 = vadd.f32 %v5767, %v5939
      %v5941 = vpop.f32.mrb[0].mxu0
      %v5942 = vadd.f32 %v5769, %v5941
      %v5943 = vpop.f32.mrb[0].mxu0
      %v5944 = vadd.f32 %v5771, %v5943
      %5945 = vmatprep.mubr.bf16.mxu0 %v5283
      %5946 = vmatmul.mubr.bf16.gmra.mrb[0].mxu0 %v5195
      %v5947 = vpop.f32.mrb[0].mxu0
      %v5948 = vadd.f32 %v5775, %v5947
      %v5949 = vpop.f32.mrb[0].mxu0
      %v5950 = vadd.f32 %v5777, %v5949
      %v5951 = vpop.f32.mrb[0].mxu0
      %v5952 = vadd.f32 %v5779, %v5951
      %v5953 = vpop.f32.mrb[0].mxu0
      %v5954 = vadd.f32 %v5781, %v5953
      %5955 = vmatprep.mubr.bf16.mxu0 %v5286
      %5956 = vmatmul.mubr.bf16.gmra.mrb[0].mxu0 %v5199
      %v5957 = vpop.f32.mrb[0].mxu0
      %v5958 = vadd.f32 %v5785, %v5957
      %v5959 = vpop.f32.mrb[0].mxu0
      %v5960 = vadd.f32 %v5787, %v5959
      %v5961 = vpop.f32.mrb[0].mxu0
      %v5962 = vadd.f32 %v5789, %v5961
      %v5963 = vpop.f32.mrb[0].mxu0
      %v5964 = vadd.f32 %v5791, %v5963
      %5965 = vmatprep.mubr.bf16.mxu0 %v5289
      %5966 = vmatmul.mubr.bf16.gmra.mrb[0].mxu0 %v5203
      %v5967 = vpop.f32.mrb[0].mxu0
      %v5968 = vadd.f32 %v5795, %v5967
      %v5969 = vpop.f32.mrb[0].mxu0
      %v5970 = vadd.f32 %v5797, %v5969
      %v5971 = vpop.f32.mrb[0].mxu0
      %v5972 = vadd.f32 %v5799, %v5971
      %v5973 = vpop.f32.mrb[0].mxu0
      %v5974 = vadd.f32 %v5801, %v5973
      %5975 = vmatprep.mubr.bf16.mxu0 %v5292
      %5976 = vmatmul.mubr.bf16.gmra.mrb[0].mxu0 %v5207
      %v5977 = vpop.f32.mrb[0].mxu0
      %v5978 = vadd.f32 %v5805, %v5977
      %v5979 = vpop.f32.mrb[0].mxu0
      %v5980 = vadd.f32 %v5807, %v5979
      %v5981 = vpop.f32.mrb[0].mxu0
      %v5982 = vadd.f32 %v5809, %v5981
      %v5983 = vpop.f32.mrb[0].mxu0
      %v5984 = vadd.f32 %v5811, %v5983
      %5985 = vdwg.mxu0
      %5986 = vrot.lane.b32.xlu0 %v5502, 66
      %v5987 = vpop.permute.xlu0 %5986
      %5988 = vrot.lane.b32.xlu0 %v5506, 66
      %v5989 = vpop.permute.xlu0 %5988
      %5990 = vrot.lane.b32.xlu0 %v5512, 66
      %v5991 = vpop.permute.xlu0 %5990
      %5992 = vrot.lane.b32.xlu0 %v5516, 66
      %v5993 = vpop.permute.xlu0 %5992
      %5994 = vrot.lane.b32.xlu0 %v5504, 66
      %v5995 = vpop.permute.xlu0 %5994
      %5996 = vrot.lane.b32.xlu0 %v5508, 66
      %v5997 = vpop.permute.xlu0 %5996
      %5998 = vrot.lane.b32.xlu0 %v5514, 66
      %v5999 = vpop.permute.xlu0 %5998
      %6000 = vrot.lane.b32.xlu0 %v5518, 66
      %v6001 = vpop.permute.xlu0 %6000
      %6002 = vrot.lane.b32.xlu0 %v5848, 66
      %v6003 = vpop.permute.xlu0 %6002
      %6004 = vrot.lane.b32.xlu0 %v5852, 66
      %v6005 = vpop.permute.xlu0 %6004
      %6006 = vrot.lane.b32.xlu0 %v5858, 66
      %v6007 = vpop.permute.xlu0 %6006
      %6008 = vrot.lane.b32.xlu0 %v5862, 66
      %v6009 = vpop.permute.xlu0 %6008
      %6010 = vrot.lane.b32.xlu0 %v5850, 66
      %v6011 = vpop.permute.xlu0 %6010
      %6012 = vrot.lane.b32.xlu0 %v5854, 66
      %v6013 = vpop.permute.xlu0 %6012
      %6014 = vrot.lane.b32.xlu0 %v5860, 66
      %v6015 = vpop.permute.xlu0 %6014
      %6016 = vrot.lane.b32.xlu0 %v5864, 66
      %v6017 = vpop.permute.xlu0 %6016
      %v6018 = vsel %vm1179, %v6003, %v6011
      %v6019 = vsel %vm1179, %v6005, %v6013
      %v6020 = vsel %vm1179, %v6007, %v6015
      %v6021 = vsel %vm1179, %v6009, %v6017
      %v6022 = vsel %vm1179, %v5995, %v6003
      %v6023 = vsel %vm1179, %v5997, %v6005
      %v6024 = vsel %vm1179, %v5999, %v6007
      %v6025 = vsel %vm1179, %v6001, %v6009
      %v6026 = vsel %vm1179, %v5987, %v5995
      %v6027 = vsel %vm1179, %v5989, %v5997
      %v6028 = vsel %vm1179, %v5991, %v5999
      %v6029 = vsel %vm1179, %v5993, %v6001
      %v6030 = vsel %vm1179, %v6011, %v5987
      %v6031 = vsel %vm1179, %v6013, %v5989
      %v6032 = vsel %vm1179, %v6015, %v5991
      %v6033 = vsel %vm1179, %v6017, %v5993
      %v6034 = vadd.f32 %v5562, %v6030
      %v6035 = vadd.f32 %v5564, %v6026
      %v6036 = vadd.f32 %v5908, %v6022
      %v6037 = vadd.f32 %v5910, %v6018
      %v6038 = vadd.f32 %v5566, %v6031
      %v6039 = vadd.f32 %v5568, %v6027
      %v6040 = vadd.f32 %v5912, %v6023
      %v6041 = vadd.f32 %v5914, %v6019
      %v6042 = vadd.f32 %v5572, %v6032
      %v6043 = vadd.f32 %v5574, %v6028
      %v6044 = vadd.f32 %v5918, %v6024
      %v6045 = vadd.f32 %v5920, %v6020
      %v6046 = vadd.f32 %v5576, %v6033
      %v6047 = vadd.f32 %v5578, %v6029
      %v6048 = vadd.f32 %v5922, %v6025
      %v6049 = vadd.f32 %v5924, %v6021
      %6050 = vrot.lane.b32.xlu0 %v5522, 44
      %v6051 = vpop.permute.xlu0 %6050
      %6052 = vrot.lane.b32.xlu0 %v5526, 44
      %v6053 = vpop.permute.xlu0 %6052
      %6054 = vrot.lane.b32.xlu0 %v5532, 44
      %v6055 = vpop.permute.xlu0 %6054
      %6056 = vrot.lane.b32.xlu0 %v5536, 44
      %v6057 = vpop.permute.xlu0 %6056
      %6058 = vrot.lane.b32.xlu0 %v5524, 44
      %v6059 = vpop.permute.xlu0 %6058
      %6060 = vrot.lane.b32.xlu0 %v5528, 44
      %v6061 = vpop.permute.xlu0 %6060
      %6062 = vrot.lane.b32.xlu0 %v5534, 44
      %v6063 = vpop.permute.xlu0 %6062
      %6064 = vrot.lane.b32.xlu0 %v5538, 44
      %v6065 = vpop.permute.xlu0 %6064
      %6066 = vrot.lane.b32.xlu0 %v5868, 44
      %v6067 = vpop.permute.xlu0 %6066
      %6068 = vrot.lane.b32.xlu0 %v5872, 44
      %v6069 = vpop.permute.xlu0 %6068
      %6070 = vrot.lane.b32.xlu0 %v5878, 44
      %v6071 = vpop.permute.xlu0 %6070
      %6072 = vrot.lane.b32.xlu0 %v5882, 44
      %v6073 = vpop.permute.xlu0 %6072
      %6074 = vrot.lane.b32.xlu0 %v5870, 44
      %v6075 = vpop.permute.xlu0 %6074
      %6076 = vrot.lane.b32.xlu0 %v5874, 44
      %v6077 = vpop.permute.xlu0 %6076
      %6078 = vrot.lane.b32.xlu0 %v5880, 44
      %v6079 = vpop.permute.xlu0 %6078
      %6080 = vrot.lane.b32.xlu0 %v5884, 44
      %v6081 = vpop.permute.xlu0 %6080
      %v6082 = vsel %vm1244, %v6067, %v6075
      %v6083 = vsel %vm1244, %v6069, %v6077
      %v6084 = vsel %vm1244, %v6071, %v6079
      %v6085 = vsel %vm1244, %v6073, %v6081
      %v6086 = vsel %vm1244, %v6059, %v6067
      %v6087 = vsel %vm1244, %v6061, %v6069
      %v6088 = vsel %vm1244, %v6063, %v6071
      %v6089 = vsel %vm1244, %v6065, %v6073
      %v6090 = vsel %vm1244, %v6051, %v6059
      %v6091 = vsel %vm1244, %v6053, %v6061
      %v6092 = vsel %vm1244, %v6055, %v6063
      %v6093 = vsel %vm1244, %v6057, %v6065
      %v6094 = vsel %vm1244, %v6075, %v6051
      %v6095 = vsel %vm1244, %v6077, %v6053
      %v6096 = vsel %vm1244, %v6079, %v6055
      %v6097 = vsel %vm1244, %v6081, %v6057
      %v6098 = vadd.f32 %v6034, %v6094
      %v6099 = vadd.f32 %v6035, %v6090
      %v6100 = vadd.f32 %v6036, %v6086
      %v6101 = vadd.f32 %v6037, %v6082
      %v6102 = vadd.f32 %v6038, %v6095
      %v6103 = vadd.f32 %v6039, %v6091
      %v6104 = vadd.f32 %v6040, %v6087
      %v6105 = vadd.f32 %v6041, %v6083
      %v6106 = vadd.f32 %v6042, %v6096
      %v6107 = vadd.f32 %v6043, %v6092
      %v6108 = vadd.f32 %v6044, %v6088
      %v6109 = vadd.f32 %v6045, %v6084
      %v6110 = vadd.f32 %v6046, %v6097
      %v6111 = vadd.f32 %v6047, %v6093
      %v6112 = vadd.f32 %v6048, %v6089
      %v6113 = vadd.f32 %v6049, %v6085
      %6114 = vrot.lane.b32.xlu0 %v5542, 22
      %v6115 = vpop.permute.xlu0 %6114
      %6116 = vrot.lane.b32.xlu0 %v5546, 22
      %v6117 = vpop.permute.xlu0 %6116
      %6118 = vrot.lane.b32.xlu0 %v5552, 22
      %v6119 = vpop.permute.xlu0 %6118
      %6120 = vrot.lane.b32.xlu0 %v5556, 22
      %v6121 = vpop.permute.xlu0 %6120
      %6122 = vrot.lane.b32.xlu0 %v5544, 22
      %v6123 = vpop.permute.xlu0 %6122
      %6124 = vrot.lane.b32.xlu0 %v5548, 22
      %v6125 = vpop.permute.xlu0 %6124
      %6126 = vrot.lane.b32.xlu0 %v5554, 22
      %v6127 = vpop.permute.xlu0 %6126
      %6128 = vrot.lane.b32.xlu0 %v5558, 22
      %v6129 = vpop.permute.xlu0 %6128
      %6130 = vrot.lane.b32.xlu0 %v5888, 22
      %v6131 = vpop.permute.xlu0 %6130
      %6132 = vrot.lane.b32.xlu0 %v5892, 22
      %v6133 = vpop.permute.xlu0 %6132
      %6134 = vrot.lane.b32.xlu0 %v5898, 22
      %v6135 = vpop.permute.xlu0 %6134
      %6136 = vrot.lane.b32.xlu0 %v5902, 22
      %v6137 = vpop.permute.xlu0 %6136
      %6138 = vrot.lane.b32.xlu0 %v5890, 22
      %v6139 = vpop.permute.xlu0 %6138
      %6140 = vrot.lane.b32.xlu0 %v5894, 22
      %v6141 = vpop.permute.xlu0 %6140
      %6142 = vrot.lane.b32.xlu0 %v5900, 22
      %v6143 = vpop.permute.xlu0 %6142
      %6144 = vrot.lane.b32.xlu0 %v5904, 22
      %v6145 = vpop.permute.xlu0 %6144
      %v6146 = vsel %vm1309, %v6131, %v6139
      %v6147 = vsel %vm1309, %v6133, %v6141
      %v6148 = vsel %vm1309, %v6135, %v6143
      %v6149 = vsel %vm1309, %v6137, %v6145
      %v6150 = vsel %vm1309, %v6123, %v6131
      %v6151 = vsel %vm1309, %v6125, %v6133
      %v6152 = vsel %vm1309, %v6127, %v6135
      %v6153 = vsel %vm1309, %v6129, %v6137
      %v6154 = vsel %vm1309, %v6115, %v6123
      %v6155 = vsel %vm1309, %v6117, %v6125
      %v6156 = vsel %vm1309, %v6119, %v6127
      %v6157 = vsel %vm1309, %v6121, %v6129
      %v6158 = vsel %vm1309, %v6139, %v6115
      %v6159 = vsel %vm1309, %v6141, %v6117
      %v6160 = vsel %vm1309, %v6143, %v6119
      %v6161 = vsel %vm1309, %v6145, %v6121
      %v6162 = vadd.f32 %v6098, %v6158
      %v6163 = vadd.f32 %v6099, %v6154
      %v6164 = vadd.f32 %v6100, %v6150
      %v6165 = vadd.f32 %v6101, %v6146
      %v6166 = vadd.f32 %v6102, %v6159
      %v6167 = vadd.f32 %v6103, %v6155
      %v6168 = vadd.f32 %v6104, %v6151
      %v6169 = vadd.f32 %v6105, %v6147
      %v6170 = vadd.f32 %v6106, %v6160
      %v6171 = vadd.f32 %v6107, %v6156
      %v6172 = vadd.f32 %v6108, %v6152
      %v6173 = vadd.f32 %v6109, %v6148
      %v6174 = vadd.f32 %v6110, %v6161
      %v6175 = vadd.f32 %v6111, %v6157
      %v6176 = vadd.f32 %v6112, %v6153
      %v6177 = vadd.f32 %v6113, %v6149
      %6178 = vrot.lane.b32.xlu0 %v5582, 106
      %v6179 = vpop.permute.xlu0 %6178
      %6180 = vrot.lane.b32.xlu0 %v5586, 106
      %v6181 = vpop.permute.xlu0 %6180
      %6182 = vrot.lane.b32.xlu0 %v5592, 106
      %v6183 = vpop.permute.xlu0 %6182
      %6184 = vrot.lane.b32.xlu0 %v5596, 106
      %v6185 = vpop.permute.xlu0 %6184
      %6186 = vrot.lane.b32.xlu0 %v5584, 106
      %v6187 = vpop.permute.xlu0 %6186
      %6188 = vrot.lane.b32.xlu0 %v5588, 106
      %v6189 = vpop.permute.xlu0 %6188
      %6190 = vrot.lane.b32.xlu0 %v5594, 106
      %v6191 = vpop.permute.xlu0 %6190
      %6192 = vrot.lane.b32.xlu0 %v5598, 106
      %v6193 = vpop.permute.xlu0 %6192
      %6194 = vrot.lane.b32.xlu0 %v5928, 106
      %v6195 = vpop.permute.xlu0 %6194
      %6196 = vrot.lane.b32.xlu0 %v5932, 106
      %v6197 = vpop.permute.xlu0 %6196
      %6198 = vrot.lane.b32.xlu0 %v5938, 106
      %v6199 = vpop.permute.xlu0 %6198
      %6200 = vrot.lane.b32.xlu0 %v5942, 106
      %v6201 = vpop.permute.xlu0 %6200
      %6202 = vrot.lane.b32.xlu0 %v5930, 106
      %v6203 = vpop.permute.xlu0 %6202
      %6204 = vrot.lane.b32.xlu0 %v5934, 106
      %v6205 = vpop.permute.xlu0 %6204
      %6206 = vrot.lane.b32.xlu0 %v5940, 106
      %v6207 = vpop.permute.xlu0 %6206
      %6208 = vrot.lane.b32.xlu0 %v5944, 106
      %v6209 = vpop.permute.xlu0 %6208
      %v6210 = vsel %vm1374, %v6195, %v6203
      %v6211 = vsel %vm1374, %v6197, %v6205
      %v6212 = vsel %vm1374, %v6199, %v6207
      %v6213 = vsel %vm1374, %v6201, %v6209
      %v6214 = vsel %vm1374, %v6187, %v6195
      %v6215 = vsel %vm1374, %v6189, %v6197
      %v6216 = vsel %vm1374, %v6191, %v6199
      %v6217 = vsel %vm1374, %v6193, %v6201
      %v6218 = vsel %vm1374, %v6179, %v6187
      %v6219 = vsel %vm1374, %v6181, %v6189
      %v6220 = vsel %vm1374, %v6183, %v6191
      %v6221 = vsel %vm1374, %v6185, %v6193
      %v6222 = vsel %vm1374, %v6203, %v6179
      %v6223 = vsel %vm1374, %v6205, %v6181
      %v6224 = vsel %vm1374, %v6207, %v6183
      %v6225 = vsel %vm1374, %v6209, %v6185
      %v6226 = vadd.f32 %v6162, %v6218
      %v6227 = vadd.f32 %v6163, %v6214
      %v6228 = vadd.f32 %v6164, %v6210
      %v6229 = vadd.f32 %v6165, %v6222
      %v6230 = vadd.f32 %v6166, %v6219
      %v6231 = vadd.f32 %v6167, %v6215
      %v6232 = vadd.f32 %v6168, %v6211
      %v6233 = vadd.f32 %v6169, %v6223
      %v6234 = vadd.f32 %v6170, %v6220
      %v6235 = vadd.f32 %v6171, %v6216
      %v6236 = vadd.f32 %v6172, %v6212
      %v6237 = vadd.f32 %v6173, %v6224
      %v6238 = vadd.f32 %v6174, %v6221
      %v6239 = vadd.f32 %v6175, %v6217
      %v6240 = vadd.f32 %v6176, %v6213
      %v6241 = vadd.f32 %v6177, %v6225
      %6242 = vrot.lane.b32.xlu0 %v5602, 84
      %v6243 = vpop.permute.xlu0 %6242
      %6244 = vrot.lane.b32.xlu0 %v5606, 84
      %v6245 = vpop.permute.xlu0 %6244
      %6246 = vrot.lane.b32.xlu0 %v5612, 84
      %v6247 = vpop.permute.xlu0 %6246
      %6248 = vrot.lane.b32.xlu0 %v5616, 84
      %v6249 = vpop.permute.xlu0 %6248
      %6250 = vrot.lane.b32.xlu0 %v5604, 84
      %v6251 = vpop.permute.xlu0 %6250
      %6252 = vrot.lane.b32.xlu0 %v5608, 84
      %v6253 = vpop.permute.xlu0 %6252
      %6254 = vrot.lane.b32.xlu0 %v5614, 84
      %v6255 = vpop.permute.xlu0 %6254
      %6256 = vrot.lane.b32.xlu0 %v5618, 84
      %v6257 = vpop.permute.xlu0 %6256
      %6258 = vrot.lane.b32.xlu0 %v5948, 84
      %v6259 = vpop.permute.xlu0 %6258
      %6260 = vrot.lane.b32.xlu0 %v5952, 84
      %v6261 = vpop.permute.xlu0 %6260
      %6262 = vrot.lane.b32.xlu0 %v5958, 84
      %v6263 = vpop.permute.xlu0 %6262
      %6264 = vrot.lane.b32.xlu0 %v5962, 84
      %v6265 = vpop.permute.xlu0 %6264
      %6266 = vrot.lane.b32.xlu0 %v5950, 84
      %v6267 = vpop.permute.xlu0 %6266
      %6268 = vrot.lane.b32.xlu0 %v5954, 84
      %v6269 = vpop.permute.xlu0 %6268
      %6270 = vrot.lane.b32.xlu0 %v5960, 84
      %v6271 = vpop.permute.xlu0 %6270
      %6272 = vrot.lane.b32.xlu0 %v5964, 84
      %v6273 = vpop.permute.xlu0 %6272
      %v6274 = vsel %vm1439, %v6259, %v6267
      %v6275 = vsel %vm1439, %v6261, %v6269
      %v6276 = vsel %vm1439, %v6263, %v6271
      %v6277 = vsel %vm1439, %v6265, %v6273
      %v6278 = vsel %vm1439, %v6251, %v6259
      %v6279 = vsel %vm1439, %v6253, %v6261
      %v6280 = vsel %vm1439, %v6255, %v6263
      %v6281 = vsel %vm1439, %v6257, %v6265
      %v6282 = vsel %vm1439, %v6243, %v6251
      %v6283 = vsel %vm1439, %v6245, %v6253
      %v6284 = vsel %vm1439, %v6247, %v6255
      %v6285 = vsel %vm1439, %v6249, %v6257
      %v6286 = vsel %vm1439, %v6267, %v6243
      %v6287 = vsel %vm1439, %v6269, %v6245
      %v6288 = vsel %vm1439, %v6271, %v6247
      %v6289 = vsel %vm1439, %v6273, %v6249
      %v6290 = vadd.f32 %v6226, %v6282
      %v6291 = vadd.f32 %v6227, %v6278
      %v6292 = vadd.f32 %v6228, %v6274
      %v6293 = vadd.f32 %v6229, %v6286
      %v6294 = vadd.f32 %v6230, %v6283
      %v6295 = vadd.f32 %v6231, %v6279
      %v6296 = vadd.f32 %v6232, %v6275
      %v6297 = vadd.f32 %v6233, %v6287
      %v6298 = vadd.f32 %v6234, %v6284
      %v6299 = vadd.f32 %v6235, %v6280
      %v6300 = vadd.f32 %v6236, %v6276
      %v6301 = vadd.f32 %v6237, %v6288
      %v6302 = vadd.f32 %v6238, %v6285
      %v6303 = vadd.f32 %v6239, %v6281
      %v6304 = vadd.f32 %v6240, %v6277
      %v6305 = vadd.f32 %v6241, %v6289
      %6306 = vrot.lane.b32.xlu0 %v5622, 62
      %v6307 = vpop.permute.xlu0 %6306
      %6308 = vrot.lane.b32.xlu0 %v5626, 62
      %v6309 = vpop.permute.xlu0 %6308
      %6310 = vrot.lane.b32.xlu0 %v5632, 62
      %v6311 = vpop.permute.xlu0 %6310
      %6312 = vrot.lane.b32.xlu0 %v5636, 62
      %v6313 = vpop.permute.xlu0 %6312
      %6314 = vrot.lane.b32.xlu0 %v5624, 62
      %v6315 = vpop.permute.xlu0 %6314
      %6316 = vrot.lane.b32.xlu0 %v5628, 62
      %v6317 = vpop.permute.xlu0 %6316
      %6318 = vrot.lane.b32.xlu0 %v5634, 62
      %v6319 = vpop.permute.xlu0 %6318
      %6320 = vrot.lane.b32.xlu0 %v5638, 62
      %v6321 = vpop.permute.xlu0 %6320
      %6322 = vrot.lane.b32.xlu0 %v5968, 62
      %v6323 = vpop.permute.xlu0 %6322
      %6324 = vrot.lane.b32.xlu0 %v5972, 62
      %v6325 = vpop.permute.xlu0 %6324
      %6326 = vrot.lane.b32.xlu0 %v5978, 62
      %v6327 = vpop.permute.xlu0 %6326
      %6328 = vrot.lane.b32.xlu0 %v5982, 62
      %v6329 = vpop.permute.xlu0 %6328
      %6330 = vrot.lane.b32.xlu0 %v5970, 62
      %v6331 = vpop.permute.xlu0 %6330
      %6332 = vrot.lane.b32.xlu0 %v5974, 62
      %v6333 = vpop.permute.xlu0 %6332
      %6334 = vrot.lane.b32.xlu0 %v5980, 62
      %v6335 = vpop.permute.xlu0 %6334
      %6336 = vrot.lane.b32.xlu0 %v5984, 62
      %v6337 = vpop.permute.xlu0 %6336
      %v6338 = vsel %vm1504, %v6323, %v6331
      %v6339 = vsel %vm1504, %v6325, %v6333
      %v6340 = vsel %vm1504, %v6327, %v6335
      %v6341 = vsel %vm1504, %v6329, %v6337
      %v6342 = vsel %vm1504, %v6315, %v6323
      %v6343 = vsel %vm1504, %v6317, %v6325
      %v6344 = vsel %vm1504, %v6319, %v6327
      %v6345 = vsel %vm1504, %v6321, %v6329
      %v6346 = vsel %vm1504, %v6307, %v6315
      %v6347 = vsel %vm1504, %v6309, %v6317
      %v6348 = vsel %vm1504, %v6311, %v6319
      %v6349 = vsel %vm1504, %v6313, %v6321
      %v6350 = vsel %vm1504, %v6331, %v6307
      %v6351 = vsel %vm1504, %v6333, %v6309
      %v6352 = vsel %vm1504, %v6335, %v6311
      %v6353 = vsel %vm1504, %v6337, %v6313
      %v6354 = vadd.f32 %v6290, %v6346
      %v6355 = vadd.f32 %v6291, %v6342
      %v6356 = vadd.f32 %v6292, %v6338
      %v6357 = vadd.f32 %v6293, %v6350
      %v6358 = vadd.f32 %v6294, %v6347
      %v6359 = vadd.f32 %v6295, %v6343
      %v6360 = vadd.f32 %v6296, %v6339
      %v6361 = vadd.f32 %v6297, %v6351
      %v6362 = vadd.f32 %v6298, %v6348
      %v6363 = vadd.f32 %v6299, %v6344
      %v6364 = vadd.f32 %v6300, %v6340
      %v6365 = vadd.f32 %v6301, %v6352
      %v6366 = vadd.f32 %v6302, %v6349
      %v6367 = vadd.f32 %v6303, %v6345
      %v6368 = vadd.f32 %v6304, %v6341
      %v6369 = vadd.f32 %v6305, %v6353
      %v6370 = vld [vmem:[%s7] sm:$0xff]
      %v6371 = vld [vmem:[%s7 + $0x8] sm:$0xff]
      %v6372 = vld [vmem:[%s7 + $0x10] sm:$0xff]
      %v6373 = vld [vmem:[%s7 + $0x18] sm:$0xff]
      %6375 = vset.pattern.permute.xlu0 0
      %6376 = vperm.xlu0 %6375, %v6370
      %v6377 = vpop.permute.xlu0 %6376
      %6380 = vset.pattern.permute.xlu0 0
      %6381 = vperm.xlu0 %6380, %v6371
      %v6382 = vpop.permute.xlu0 %6381
      %6385 = vset.pattern.permute.xlu0 0
      %6386 = vperm.xlu0 %6385, %v6372
      %v6387 = vpop.permute.xlu0 %6386
      %6390 = vset.pattern.permute.xlu0 0
      %6391 = vperm.xlu0 %6390, %v6373
      %v6392 = vpop.permute.xlu0 %6391
      %v6394 = vadd.f32 %v6354, %v6377
      %v6395 = vadd.f32 %v6355, %v6377
      %v6396 = vadd.f32 %v6356, %v6377
      %v6397 = vadd.f32 %v6357, %v6377
      %v6398 = vadd.f32 %v6358, %v6382
      %v6399 = vadd.f32 %v6359, %v6382
      %v6400 = vadd.f32 %v6360, %v6382
      %v6401 = vadd.f32 %v6361, %v6382
      %v6402 = vadd.f32 %v6362, %v6387
      %v6403 = vadd.f32 %v6363, %v6387
      %v6404 = vadd.f32 %v6364, %v6387
      %v6405 = vadd.f32 %v6365, %v6387
      %v6406 = vadd.f32 %v6366, %v6392
      %v6407 = vadd.f32 %v6367, %v6392
      %v6408 = vadd.f32 %v6368, %v6392
      %v6409 = vadd.f32 %v6369, %v6392
      %v6410 = vmax.f32 %v6394, 0.0
      %v6411 = vmax.f32 %v6395, 0.0
      %v6412 = vmax.f32 %v6396, 0.0
      %v6413 = vmax.f32 %v6397, 0.0
      %v6414 = vmax.f32 %v6398, 0.0
      %v6415 = vmax.f32 %v6399, 0.0
      %v6416 = vmax.f32 %v6400, 0.0
      %v6417 = vmax.f32 %v6401, 0.0
      %v6418 = vmax.f32 %v6402, 0.0
      %v6419 = vmax.f32 %v6403, 0.0
      %v6420 = vmax.f32 %v6404, 0.0
      %v6421 = vmax.f32 %v6405, 0.0
      %v6422 = vmax.f32 %v6406, 0.0
      %v6423 = vmax.f32 %v6407, 0.0
      %v6424 = vmax.f32 %v6408, 0.0
      %v6425 = vmax.f32 %v6409, 0.0
      %v6426 = vmul.f32 %v6410, %v1597
      %v6427 = vmul.f32 %v6411, %v1601
      %v6428 = vmul.f32 %v6412, %v1605
      %v6429 = vmul.f32 %v6413, %v1609
      %v6430 = vmul.f32 %v6414, %v1597
      %v6431 = vmul.f32 %v6415, %v1601
      %v6432 = vmul.f32 %v6416, %v1605
      %v6433 = vmul.f32 %v6417, %v1609
      %v6434 = vmul.f32 %v6418, %v1597
      %v6435 = vmul.f32 %v6419, %v1601
      %v6436 = vmul.f32 %v6420, %v1605
      %v6437 = vmul.f32 %v6421, %v1609
      %v6438 = vmul.f32 %v6422, %v1597
      %v6439 = vmul.f32 %v6423, %v1601
      %v6440 = vmul.f32 %v6424, %v1605
      %v6441 = vmul.f32 %v6425, %v1609
      %6442 = vrot.lane.b32.xlu0 %v6426, 3
      %v6443 = vpop.permute.xlu0 %6442
      %6444 = vrot.lane.b32.xlu0 %v6430, 3
      %v6445 = vpop.permute.xlu0 %6444
      %6446 = vrot.lane.b32.xlu0 %v6434, 3
      %v6447 = vpop.permute.xlu0 %6446
      %6448 = vrot.lane.b32.xlu0 %v6438, 3
      %v6449 = vpop.permute.xlu0 %6448
      %6450 = vrot.lane.b32.xlu0 %v6427, 3
      %v6451 = vpop.permute.xlu0 %6450
      %6452 = vrot.lane.b32.xlu0 %v6431, 3
      %v6453 = vpop.permute.xlu0 %6452
      %6454 = vrot.lane.b32.xlu0 %v6435, 3
      %v6455 = vpop.permute.xlu0 %6454
      %6456 = vrot.lane.b32.xlu0 %v6439, 3
      %v6457 = vpop.permute.xlu0 %6456
      %6458 = vrot.lane.b32.xlu0 %v6428, 3
      %v6459 = vpop.permute.xlu0 %6458
      %6460 = vrot.lane.b32.xlu0 %v6432, 3
      %v6461 = vpop.permute.xlu0 %6460
      %6462 = vrot.lane.b32.xlu0 %v6436, 3
      %v6463 = vpop.permute.xlu0 %6462
      %6464 = vrot.lane.b32.xlu0 %v6440, 3
      %v6465 = vpop.permute.xlu0 %6464
      %6466 = vrot.lane.b32.xlu0 %v6429, 3
      %v6467 = vpop.permute.xlu0 %6466
      %6468 = vrot.lane.b32.xlu0 %v6433, 3
      %v6469 = vpop.permute.xlu0 %6468
      %6470 = vrot.lane.b32.xlu0 %v6437, 3
      %v6471 = vpop.permute.xlu0 %6470
      %6472 = vrot.lane.b32.xlu0 %v6441, 3
      %v6473 = vpop.permute.xlu0 %6472
      %v6474 = vsel %vm442, %v6459, %v6467
      %v6475 = vsel %vm442, %v6461, %v6469
      %v6476 = vsel %vm442, %v6463, %v6471
      %v6477 = vsel %vm442, %v6465, %v6473
      %v6478 = vsel %vm442, %v6451, %v6459
      %v6479 = vsel %vm442, %v6453, %v6461
      %v6480 = vsel %vm442, %v6455, %v6463
      %v6481 = vsel %vm442, %v6457, %v6465
      %v6482 = vsel %vm442, %v6443, %v6451
      %v6483 = vsel %vm442, %v6445, %v6453
      %v6484 = vsel %vm442, %v6447, %v6455
      %v6485 = vsel %vm442, %v6449, %v6457
      %v6486 = vsel %vm442, %v6467, %v6443
      %v6487 = vsel %vm442, %v6469, %v6445
      %v6488 = vsel %vm442, %v6471, %v6447
      %v6489 = vsel %vm442, %v6473, %v6449
      %v6490 = vpack.c.bf16 %v6487, %v6486
      %v6491 = vpack.c.bf16 %v6483, %v6482
      %v6492 = vpack.c.bf16 %v6479, %v6478
      %v6493 = vpack.c.bf16 %v6475, %v6474
      %v6494 = vpack.c.bf16 %v6489, %v6488
      %v6495 = vpack.c.bf16 %v6485, %v6484
      %v6496 = vpack.c.bf16 %v6481, %v6480
      %v6497 = vpack.c.bf16 %v6477, %v6476
      %6498 = vst [vmem:[#allocation2] sm:$0xff] %v6490
      %6499 = vst [vmem:[#allocation2 + $0x8] sm:$0xff] %v6491
      %6500 = vst [vmem:[#allocation2 + $0x10] sm:$0xff] %v6492
      %6501 = vst [vmem:[#allocation2 + $0x18] sm:$0xff] %v6493
      %6502 = vst [vmem:[#allocation2 + $0x20] sm:$0xff] %v6494
      %6503 = vst [vmem:[#allocation2 + $0x28] sm:$0xff] %v6495
      %6504 = vst [vmem:[#allocation2 + $0x30] sm:$0xff] %v6496
      %6505 = vst [vmem:[#allocation2 + $0x38] sm:$0xff] %v6497
      %6506 = vrot.lane.b32.xlu0 %v6426, 2
      %v6507 = vpop.permute.xlu0 %6506
      %6508 = vrot.lane.b32.xlu0 %v6430, 2
      %v6509 = vpop.permute.xlu0 %6508
      %6510 = vrot.lane.b32.xlu0 %v6434, 2
      %v6511 = vpop.permute.xlu0 %6510
      %6512 = vrot.lane.b32.xlu0 %v6438, 2
      %v6513 = vpop.permute.xlu0 %6512
      %6514 = vrot.lane.b32.xlu0 %v6427, 2
      %v6515 = vpop.permute.xlu0 %6514
      %6516 = vrot.lane.b32.xlu0 %v6431, 2
      %v6517 = vpop.permute.xlu0 %6516
      %6518 = vrot.lane.b32.xlu0 %v6435, 2
      %v6519 = vpop.permute.xlu0 %6518
      %6520 = vrot.lane.b32.xlu0 %v6439, 2
      %v6521 = vpop.permute.xlu0 %6520
      %6522 = vrot.lane.b32.xlu0 %v6428, 2
      %v6523 = vpop.permute.xlu0 %6522
      %6524 = vrot.lane.b32.xlu0 %v6432, 2
      %v6525 = vpop.permute.xlu0 %6524
      %6526 = vrot.lane.b32.xlu0 %v6436, 2
      %v6527 = vpop.permute.xlu0 %6526
      %6528 = vrot.lane.b32.xlu0 %v6440, 2
      %v6529 = vpop.permute.xlu0 %6528
      %6530 = vrot.lane.b32.xlu0 %v6429, 2
      %v6531 = vpop.permute.xlu0 %6530
      %6532 = vrot.lane.b32.xlu0 %v6433, 2
      %v6533 = vpop.permute.xlu0 %6532
      %6534 = vrot.lane.b32.xlu0 %v6437, 2
      %v6535 = vpop.permute.xlu0 %6534
      %6536 = vrot.lane.b32.xlu0 %v6441, 2
      %v6537 = vpop.permute.xlu0 %6536
      %v6538 = vsel %vm475, %v6523, %v6531
      %v6539 = vsel %vm475, %v6525, %v6533
      %v6540 = vsel %vm475, %v6527, %v6535
      %v6541 = vsel %vm475, %v6529, %v6537
      %v6542 = vsel %vm475, %v6515, %v6523
      %v6543 = vsel %vm475, %v6517, %v6525
      %v6544 = vsel %vm475, %v6519, %v6527
      %v6545 = vsel %vm475, %v6521, %v6529
      %v6546 = vsel %vm475, %v6507, %v6515
      %v6547 = vsel %vm475, %v6509, %v6517
      %v6548 = vsel %vm475, %v6511, %v6519
      %v6549 = vsel %vm475, %v6513, %v6521
      %v6550 = vsel %vm475, %v6531, %v6507
      %v6551 = vsel %vm475, %v6533, %v6509
      %v6552 = vsel %vm475, %v6535, %v6511
      %v6553 = vsel %vm475, %v6537, %v6513
      %v6554 = vpack.c.bf16 %v6551, %v6550
      %v6555 = vpack.c.bf16 %v6547, %v6546
      %v6556 = vpack.c.bf16 %v6543, %v6542
      %v6557 = vpack.c.bf16 %v6539, %v6538
      %v6558 = vpack.c.bf16 %v6553, %v6552
      %v6559 = vpack.c.bf16 %v6549, %v6548
      %v6560 = vpack.c.bf16 %v6545, %v6544
      %v6561 = vpack.c.bf16 %v6541, %v6540
      %6562 = vst [vmem:[#allocation2 + $0x40] sm:$0xff] %v6554
      %6563 = vst [vmem:[#allocation2 + $0x48] sm:$0xff] %v6555
      %6564 = vst [vmem:[#allocation2 + $0x50] sm:$0xff] %v6556
      %6565 = vst [vmem:[#allocation2 + $0x58] sm:$0xff] %v6557
      %6566 = vst [vmem:[#allocation2 + $0x60] sm:$0xff] %v6558
      %6567 = vst [vmem:[#allocation2 + $0x68] sm:$0xff] %v6559
      %6568 = vst [vmem:[#allocation2 + $0x70] sm:$0xff] %v6560
      %6569 = vst [vmem:[#allocation2 + $0x78] sm:$0xff] %v6561
      %6570 = vrot.lane.b32.xlu0 %v6426, 1
      %v6571 = vpop.permute.xlu0 %6570
      %6572 = vrot.lane.b32.xlu0 %v6430, 1
      %v6573 = vpop.permute.xlu0 %6572
      %6574 = vrot.lane.b32.xlu0 %v6434, 1
      %v6575 = vpop.permute.xlu0 %6574
      %6576 = vrot.lane.b32.xlu0 %v6438, 1
      %v6577 = vpop.permute.xlu0 %6576
      %6578 = vrot.lane.b32.xlu0 %v6427, 1
      %v6579 = vpop.permute.xlu0 %6578
      %6580 = vrot.lane.b32.xlu0 %v6431, 1
      %v6581 = vpop.permute.xlu0 %6580
      %6582 = vrot.lane.b32.xlu0 %v6435, 1
      %v6583 = vpop.permute.xlu0 %6582
      %6584 = vrot.lane.b32.xlu0 %v6439, 1
      %v6585 = vpop.permute.xlu0 %6584
      %6586 = vrot.lane.b32.xlu0 %v6428, 1
      %v6587 = vpop.permute.xlu0 %6586
      %6588 = vrot.lane.b32.xlu0 %v6432, 1
      %v6589 = vpop.permute.xlu0 %6588
      %6590 = vrot.lane.b32.xlu0 %v6436, 1
      %v6591 = vpop.permute.xlu0 %6590
      %6592 = vrot.lane.b32.xlu0 %v6440, 1
      %v6593 = vpop.permute.xlu0 %6592
      %6594 = vrot.lane.b32.xlu0 %v6429, 1
      %v6595 = vpop.permute.xlu0 %6594
      %6596 = vrot.lane.b32.xlu0 %v6433, 1
      %v6597 = vpop.permute.xlu0 %6596
      %6598 = vrot.lane.b32.xlu0 %v6437, 1
      %v6599 = vpop.permute.xlu0 %6598
      %6600 = vrot.lane.b32.xlu0 %v6441, 1
      %v6601 = vpop.permute.xlu0 %6600
      %v6602 = vsel %vm508, %v6587, %v6595
      %v6603 = vsel %vm508, %v6589, %v6597
      %v6604 = vsel %vm508, %v6591, %v6599
      %v6605 = vsel %vm508, %v6593, %v6601
      %v6606 = vsel %vm508, %v6579, %v6587
      %v6607 = vsel %vm508, %v6581, %v6589
      %v6608 = vsel %vm508, %v6583, %v6591
      %v6609 = vsel %vm508, %v6585, %v6593
      %v6610 = vsel %vm508, %v6571, %v6579
      %v6611 = vsel %vm508, %v6573, %v6581
      %v6612 = vsel %vm508, %v6575, %v6583
      %v6613 = vsel %vm508, %v6577, %v6585
      %v6614 = vsel %vm508, %v6595, %v6571
      %v6615 = vsel %vm508, %v6597, %v6573
      %v6616 = vsel %vm508, %v6599, %v6575
      %v6617 = vsel %vm508, %v6601, %v6577
      %v6618 = vpack.c.bf16 %v6615, %v6614
      %v6619 = vpack.c.bf16 %v6611, %v6610
      %v6620 = vpack.c.bf16 %v6607, %v6606
      %v6621 = vpack.c.bf16 %v6603, %v6602
      %v6622 = vpack.c.bf16 %v6617, %v6616
      %v6623 = vpack.c.bf16 %v6613, %v6612
      %v6624 = vpack.c.bf16 %v6609, %v6608
      %v6625 = vpack.c.bf16 %v6605, %v6604
      %6626 = vst [vmem:[#allocation2 + $0x80] sm:$0xff] %v6618
      %6627 = vst [vmem:[#allocation2 + $0x88] sm:$0xff] %v6619
      %6628 = vst [vmem:[#allocation2 + $0x90] sm:$0xff] %v6620
      %6629 = vst [vmem:[#allocation2 + $0x98] sm:$0xff] %v6621
      %6630 = vst [vmem:[#allocation2 + $0xa0] sm:$0xff] %v6622
      %6631 = vst [vmem:[#allocation2 + $0xa8] sm:$0xff] %v6623
      %6632 = vst [vmem:[#allocation2 + $0xb0] sm:$0xff] %v6624
      %6633 = vst [vmem:[#allocation2 + $0xb8] sm:$0xff] %v6625
      %v6634 = vpack.c.bf16 %v6430, %v6426
      %v6635 = vpack.c.bf16 %v6431, %v6427
      %v6636 = vpack.c.bf16 %v6432, %v6428
      %v6637 = vpack.c.bf16 %v6433, %v6429
      %v6638 = vpack.c.bf16 %v6438, %v6434
      %v6639 = vpack.c.bf16 %v6439, %v6435
      %v6640 = vpack.c.bf16 %v6440, %v6436
      %v6641 = vpack.c.bf16 %v6441, %v6437
      %6642 = vst [vmem:[#allocation2 + $0xc0] sm:$0xff] %v6634
      %6643 = vst [vmem:[#allocation2 + $0xc8] sm:$0xff] %v6635
      %6644 = vst [vmem:[#allocation2 + $0xd0] sm:$0xff] %v6636
      %6645 = vst [vmem:[#allocation2 + $0xd8] sm:$0xff] %v6637
      %6646 = vst [vmem:[#allocation2 + $0xe0] sm:$0xff] %v6638
      %6647 = vst [vmem:[#allocation2 + $0xe8] sm:$0xff] %v6639
      %6648 = vst [vmem:[#allocation2 + $0xf0] sm:$0xff] %v6640
      %6649 = vst [vmem:[#allocation2 + $0xf8] sm:$0xff] %v6641
      %6650 = vrot.lane.b32.xlu0 %v6426, 127
      %v6651 = vpop.permute.xlu0 %6650
      %6652 = vrot.lane.b32.xlu0 %v6430, 127
      %v6653 = vpop.permute.xlu0 %6652
      %6654 = vrot.lane.b32.xlu0 %v6434, 127
      %v6655 = vpop.permute.xlu0 %6654
      %6656 = vrot.lane.b32.xlu0 %v6438, 127
      %v6657 = vpop.permute.xlu0 %6656
      %6658 = vrot.lane.b32.xlu0 %v6427, 127
      %v6659 = vpop.permute.xlu0 %6658
      %6660 = vrot.lane.b32.xlu0 %v6431, 127
      %v6661 = vpop.permute.xlu0 %6660
      %6662 = vrot.lane.b32.xlu0 %v6435, 127
      %v6663 = vpop.permute.xlu0 %6662
      %6664 = vrot.lane.b32.xlu0 %v6439, 127
      %v6665 = vpop.permute.xlu0 %6664
      %6666 = vrot.lane.b32.xlu0 %v6428, 127
      %v6667 = vpop.permute.xlu0 %6666
      %6668 = vrot.lane.b32.xlu0 %v6432, 127
      %v6669 = vpop.permute.xlu0 %6668
      %6670 = vrot.lane.b32.xlu0 %v6436, 127
      %v6671 = vpop.permute.xlu0 %6670
      %6672 = vrot.lane.b32.xlu0 %v6440, 127
      %v6673 = vpop.permute.xlu0 %6672
      %6674 = vrot.lane.b32.xlu0 %v6429, 127
      %v6675 = vpop.permute.xlu0 %6674
      %6676 = vrot.lane.b32.xlu0 %v6433, 127
      %v6677 = vpop.permute.xlu0 %6676
      %6678 = vrot.lane.b32.xlu0 %v6437, 127
      %v6679 = vpop.permute.xlu0 %6678
      %6680 = vrot.lane.b32.xlu0 %v6441, 127
      %v6681 = vpop.permute.xlu0 %6680
      %v6682 = vsel %vm549, %v6667, %v6675
      %v6683 = vsel %vm549, %v6669, %v6677
      %v6684 = vsel %vm549, %v6671, %v6679
      %v6685 = vsel %vm549, %v6673, %v6681
      %v6686 = vsel %vm549, %v6659, %v6667
      %v6687 = vsel %vm549, %v6661, %v6669
      %v6688 = vsel %vm549, %v6663, %v6671
      %v6689 = vsel %vm549, %v6665, %v6673
      %v6690 = vsel %vm549, %v6651, %v6659
      %v6691 = vsel %vm549, %v6653, %v6661
      %v6692 = vsel %vm549, %v6655, %v6663
      %v6693 = vsel %vm549, %v6657, %v6665
      %v6694 = vsel %vm549, %v6675, %v6651
      %v6695 = vsel %vm549, %v6677, %v6653
      %v6696 = vsel %vm549, %v6679, %v6655
      %v6697 = vsel %vm549, %v6681, %v6657
      %v6698 = vpack.c.bf16 %v6691, %v6690
      %v6699 = vpack.c.bf16 %v6687, %v6686
      %v6700 = vpack.c.bf16 %v6683, %v6682
      %v6701 = vpack.c.bf16 %v6695, %v6694
      %v6702 = vpack.c.bf16 %v6693, %v6692
      %v6703 = vpack.c.bf16 %v6689, %v6688
      %v6704 = vpack.c.bf16 %v6685, %v6684
      %v6705 = vpack.c.bf16 %v6697, %v6696
      %6706 = vst [vmem:[#allocation2 + $0x100] sm:$0xff] %v6698
      %6707 = vst [vmem:[#allocation2 + $0x108] sm:$0xff] %v6699
      %6708 = vst [vmem:[#allocation2 + $0x110] sm:$0xff] %v6700
      %6709 = vst [vmem:[#allocation2 + $0x118] sm:$0xff] %v6701
      %6710 = vst [vmem:[#allocation2 + $0x120] sm:$0xff] %v6702
      %6711 = vst [vmem:[#allocation2 + $0x128] sm:$0xff] %v6703
      %6712 = vst [vmem:[#allocation2 + $0x130] sm:$0xff] %v6704
      %6713 = vst [vmem:[#allocation2 + $0x138] sm:$0xff] %v6705
      %6714 = vrot.lane.b32.xlu0 %v6426, 126
      %v6715 = vpop.permute.xlu0 %6714
      %6716 = vrot.lane.b32.xlu0 %v6430, 126
      %v6717 = vpop.permute.xlu0 %6716
      %6718 = vrot.lane.b32.xlu0 %v6434, 126
      %v6719 = vpop.permute.xlu0 %6718
      %6720 = vrot.lane.b32.xlu0 %v6438, 126
      %v6721 = vpop.permute.xlu0 %6720
      %6722 = vrot.lane.b32.xlu0 %v6427, 126
      %v6723 = vpop.permute.xlu0 %6722
      %6724 = vrot.lane.b32.xlu0 %v6431, 126
      %v6725 = vpop.permute.xlu0 %6724
      %6726 = vrot.lane.b32.xlu0 %v6435, 126
      %v6727 = vpop.permute.xlu0 %6726
      %6728 = vrot.lane.b32.xlu0 %v6439, 126
      %v6729 = vpop.permute.xlu0 %6728
      %6730 = vrot.lane.b32.xlu0 %v6428, 126
      %v6731 = vpop.permute.xlu0 %6730
      %6732 = vrot.lane.b32.xlu0 %v6432, 126
      %v6733 = vpop.permute.xlu0 %6732
      %6734 = vrot.lane.b32.xlu0 %v6436, 126
      %v6735 = vpop.permute.xlu0 %6734
      %6736 = vrot.lane.b32.xlu0 %v6440, 126
      %v6737 = vpop.permute.xlu0 %6736
      %6738 = vrot.lane.b32.xlu0 %v6429, 126
      %v6739 = vpop.permute.xlu0 %6738
      %6740 = vrot.lane.b32.xlu0 %v6433, 126
      %v6741 = vpop.permute.xlu0 %6740
      %6742 = vrot.lane.b32.xlu0 %v6437, 126
      %v6743 = vpop.permute.xlu0 %6742
      %6744 = vrot.lane.b32.xlu0 %v6441, 126
      %v6745 = vpop.permute.xlu0 %6744
      %v6746 = vsel %vm582, %v6731, %v6739
      %v6747 = vsel %vm582, %v6733, %v6741
      %v6748 = vsel %vm582, %v6735, %v6743
      %v6749 = vsel %vm582, %v6737, %v6745
      %v6750 = vsel %vm582, %v6723, %v6731
      %v6751 = vsel %vm582, %v6725, %v6733
      %v6752 = vsel %vm582, %v6727, %v6735
      %v6753 = vsel %vm582, %v6729, %v6737
      %v6754 = vsel %vm582, %v6715, %v6723
      %v6755 = vsel %vm582, %v6717, %v6725
      %v6756 = vsel %vm582, %v6719, %v6727
      %v6757 = vsel %vm582, %v6721, %v6729
      %v6758 = vsel %vm582, %v6739, %v6715
      %v6759 = vsel %vm582, %v6741, %v6717
      %v6760 = vsel %vm582, %v6743, %v6719
      %v6761 = vsel %vm582, %v6745, %v6721
      %v6762 = vpack.c.bf16 %v6755, %v6754
      %v6763 = vpack.c.bf16 %v6751, %v6750
      %v6764 = vpack.c.bf16 %v6747, %v6746
      %v6765 = vpack.c.bf16 %v6759, %v6758
      %v6766 = vpack.c.bf16 %v6757, %v6756
      %v6767 = vpack.c.bf16 %v6753, %v6752
      %v6768 = vpack.c.bf16 %v6749, %v6748
      %v6769 = vpack.c.bf16 %v6761, %v6760
      %6770 = vst [vmem:[#allocation2 + $0x140] sm:$0xff] %v6762
      %6771 = vst [vmem:[#allocation2 + $0x148] sm:$0xff] %v6763
      %6772 = vst [vmem:[#allocation2 + $0x150] sm:$0xff] %v6764
      %6773 = vst [vmem:[#allocation2 + $0x158] sm:$0xff] %v6765
      %6774 = vst [vmem:[#allocation2 + $0x160] sm:$0xff] %v6766
      %6775 = vst [vmem:[#allocation2 + $0x168] sm:$0xff] %v6767
      %6776 = vst [vmem:[#allocation2 + $0x170] sm:$0xff] %v6768
      %6777 = vst [vmem:[#allocation2 + $0x178] sm:$0xff] %v6769
      %6778 = vrot.lane.b32.xlu0 %v6426, 125
      %v6779 = vpop.permute.xlu0 %6778
      %6780 = vrot.lane.b32.xlu0 %v6430, 125
      %v6781 = vpop.permute.xlu0 %6780
      %6782 = vrot.lane.b32.xlu0 %v6434, 125
      %v6783 = vpop.permute.xlu0 %6782
      %6784 = vrot.lane.b32.xlu0 %v6438, 125
      %v6785 = vpop.permute.xlu0 %6784
      %6786 = vrot.lane.b32.xlu0 %v6427, 125
      %v6787 = vpop.permute.xlu0 %6786
      %6788 = vrot.lane.b32.xlu0 %v6431, 125
      %v6789 = vpop.permute.xlu0 %6788
      %6790 = vrot.lane.b32.xlu0 %v6435, 125
      %v6791 = vpop.permute.xlu0 %6790
      %6792 = vrot.lane.b32.xlu0 %v6439, 125
      %v6793 = vpop.permute.xlu0 %6792
      %6794 = vrot.lane.b32.xlu0 %v6428, 125
      %v6795 = vpop.permute.xlu0 %6794
      %6796 = vrot.lane.b32.xlu0 %v6432, 125
      %v6797 = vpop.permute.xlu0 %6796
      %6798 = vrot.lane.b32.xlu0 %v6436, 125
      %v6799 = vpop.permute.xlu0 %6798
      %6800 = vrot.lane.b32.xlu0 %v6440, 125
      %v6801 = vpop.permute.xlu0 %6800
      %6802 = vrot.lane.b32.xlu0 %v6429, 125
      %v6803 = vpop.permute.xlu0 %6802
      %6804 = vrot.lane.b32.xlu0 %v6433, 125
      %v6805 = vpop.permute.xlu0 %6804
      %6806 = vrot.lane.b32.xlu0 %v6437, 125
      %v6807 = vpop.permute.xlu0 %6806
      %6808 = vrot.lane.b32.xlu0 %v6441, 125
      %v6809 = vpop.permute.xlu0 %6808
      %v6810 = vsel %vm615, %v6795, %v6803
      %v6811 = vsel %vm615, %v6797, %v6805
      %v6812 = vsel %vm615, %v6799, %v6807
      %v6813 = vsel %vm615, %v6801, %v6809
      %v6814 = vsel %vm615, %v6787, %v6795
      %v6815 = vsel %vm615, %v6789, %v6797
      %v6816 = vsel %vm615, %v6791, %v6799
      %v6817 = vsel %vm615, %v6793, %v6801
      %v6818 = vsel %vm615, %v6779, %v6787
      %v6819 = vsel %vm615, %v6781, %v6789
      %v6820 = vsel %vm615, %v6783, %v6791
      %v6821 = vsel %vm615, %v6785, %v6793
      %v6822 = vsel %vm615, %v6803, %v6779
      %v6823 = vsel %vm615, %v6805, %v6781
      %v6824 = vsel %vm615, %v6807, %v6783
      %v6825 = vsel %vm615, %v6809, %v6785
      %v6826 = vpack.c.bf16 %v6819, %v6818
      %v6827 = vpack.c.bf16 %v6815, %v6814
      %v6828 = vpack.c.bf16 %v6811, %v6810
      %v6829 = vpack.c.bf16 %v6823, %v6822
      %v6830 = vpack.c.bf16 %v6821, %v6820
      %v6831 = vpack.c.bf16 %v6817, %v6816
      %v6832 = vpack.c.bf16 %v6813, %v6812
      %v6833 = vpack.c.bf16 %v6825, %v6824
      %6834 = vst [vmem:[#allocation2 + $0x180] sm:$0xff] %v6826
      %6835 = vst [vmem:[#allocation2 + $0x188] sm:$0xff] %v6827
      %6836 = vst [vmem:[#allocation2 + $0x190] sm:$0xff] %v6828
      %6837 = vst [vmem:[#allocation2 + $0x198] sm:$0xff] %v6829
      %6838 = vst [vmem:[#allocation2 + $0x1a0] sm:$0xff] %v6830
      %6839 = vst [vmem:[#allocation2 + $0x1a8] sm:$0xff] %v6831
      %6840 = vst [vmem:[#allocation2 + $0x1b0] sm:$0xff] %v6832
      %6841 = vst [vmem:[#allocation2 + $0x1b8] sm:$0xff] %v6833
      %v6842 = vld [vmem:[%s8] sm:$0xff]
      %v6843 = vld [vmem:[%s8 + $0x8] sm:$0xff]
      %v6844 = vld [vmem:[%s8 + $0x10] sm:$0xff]
      %v6845 = vld [vmem:[%s8 + $0x18] sm:$0xff]
      %v6846 = vld [vmem:[%s8 + $0x20] sm:$0xff]
      %v6847 = vld [vmem:[%s8 + $0x28] sm:$0xff]
      %v6848 = vld [vmem:[%s8 + $0x30] sm:$0xff]
      %v6849 = vld [vmem:[%s8 + $0x38] sm:$0xff]
      %v6850 = vld [vmem:[%s8 + $0x40] sm:$0xff]
      %v6851 = vld [vmem:[%s8 + $0x48] sm:$0xff]
      %v6852 = vld [vmem:[%s8 + $0x50] sm:$0xff]
      %v6853 = vld [vmem:[%s8 + $0x58] sm:$0xff]
      %v6854 = vld [vmem:[%s8 + $0x60] sm:$0xff]
      %v6855 = vld [vmem:[%s8 + $0x68] sm:$0xff]
      %v6856 = vld [vmem:[#allocation2] sm:$0xff]
      %v6857 = vld [vmem:[#allocation2 + $0x8] sm:$0xff]
      %v6858 = vld [vmem:[#allocation2 + $0x10] sm:$0xff]
      %v6859 = vld [vmem:[#allocation2 + $0x18] sm:$0xff]
      %v6860 = vld [vmem:[#allocation2 + $0x20] sm:$0xff]
      %v6861 = vld [vmem:[#allocation2 + $0x28] sm:$0xff]
      %v6862 = vld [vmem:[#allocation2 + $0x30] sm:$0xff]
      %v6863 = vld [vmem:[#allocation2 + $0x38] sm:$0xff]
      %v6864 = vld [vmem:[#allocation2 + $0x40] sm:$0xff]
      %v6865 = vld [vmem:[#allocation2 + $0x48] sm:$0xff]
      %v6866 = vld [vmem:[#allocation2 + $0x50] sm:$0xff]
      %v6867 = vld [vmem:[#allocation2 + $0x58] sm:$0xff]
      %v6868 = vld [vmem:[#allocation2 + $0x60] sm:$0xff]
      %v6869 = vld [vmem:[#allocation2 + $0x68] sm:$0xff]
      %v6870 = vld [vmem:[#allocation2 + $0x70] sm:$0xff]
      %v6871 = vld [vmem:[#allocation2 + $0x78] sm:$0xff]
      %v6872 = vld [vmem:[#allocation2 + $0x80] sm:$0xff]
      %v6873 = vld [vmem:[#allocation2 + $0x88] sm:$0xff]
      %v6874 = vld [vmem:[#allocation2 + $0x90] sm:$0xff]
      %v6875 = vld [vmem:[#allocation2 + $0x98] sm:$0xff]
      %v6876 = vld [vmem:[#allocation2 + $0xa0] sm:$0xff]
      %v6877 = vld [vmem:[#allocation2 + $0xa8] sm:$0xff]
      %v6878 = vld [vmem:[#allocation2 + $0xb0] sm:$0xff]
      %v6879 = vld [vmem:[#allocation2 + $0xb8] sm:$0xff]
      %v6880 = vld [vmem:[#allocation2 + $0xc0] sm:$0xff]
      %v6881 = vld [vmem:[#allocation2 + $0xc8] sm:$0xff]
      %v6882 = vld [vmem:[#allocation2 + $0xd0] sm:$0xff]
      %v6883 = vld [vmem:[#allocation2 + $0xd8] sm:$0xff]
      %v6884 = vld [vmem:[#allocation2 + $0xe0] sm:$0xff]
      %v6885 = vld [vmem:[#allocation2 + $0xe8] sm:$0xff]
      %v6886 = vld [vmem:[#allocation2 + $0xf0] sm:$0xff]
      %v6887 = vld [vmem:[#allocation2 + $0xf8] sm:$0xff]
      %v6888 = vld [vmem:[#allocation2 + $0x100] sm:$0xff]
      %v6889 = vld [vmem:[#allocation2 + $0x108] sm:$0xff]
      %v6890 = vld [vmem:[#allocation2 + $0x110] sm:$0xff]
      %v6891 = vld [vmem:[#allocation2 + $0x118] sm:$0xff]
      %v6892 = vld [vmem:[#allocation2 + $0x120] sm:$0xff]
      %v6893 = vld [vmem:[#allocation2 + $0x128] sm:$0xff]
      %v6894 = vld [vmem:[#allocation2 + $0x130] sm:$0xff]
      %v6895 = vld [vmem:[#allocation2 + $0x138] sm:$0xff]
      %v6896 = vld [vmem:[#allocation2 + $0x140] sm:$0xff]
      %v6897 = vld [vmem:[#allocation2 + $0x148] sm:$0xff]
      %v6898 = vld [vmem:[#allocation2 + $0x150] sm:$0xff]
      %v6899 = vld [vmem:[#allocation2 + $0x158] sm:$0xff]
      %v6900 = vld [vmem:[#allocation2 + $0x160] sm:$0xff]
      %v6901 = vld [vmem:[#allocation2 + $0x168] sm:$0xff]
      %v6902 = vld [vmem:[#allocation2 + $0x170] sm:$0xff]
      %v6903 = vld [vmem:[#allocation2 + $0x178] sm:$0xff]
      %v6904 = vld [vmem:[#allocation2 + $0x180] sm:$0xff]
      %v6905 = vld [vmem:[#allocation2 + $0x188] sm:$0xff]
      %v6906 = vld [vmem:[#allocation2 + $0x190] sm:$0xff]
      %v6907 = vld [vmem:[#allocation2 + $0x198] sm:$0xff]
      %v6908 = vld [vmem:[#allocation2 + $0x1a0] sm:$0xff]
      %v6909 = vld [vmem:[#allocation2 + $0x1a8] sm:$0xff]
      %v6910 = vld [vmem:[#allocation2 + $0x1b0] sm:$0xff]
      %v6911 = vld [vmem:[#allocation2 + $0x1b8] sm:$0xff]
      %v6926 = vunpack.c.l.b16 %v6842
      %v6927 = vunpack.c.h.b16 %v6842
      %v6928 = vunpack.c.l.b16 %v6843
      %v6929 = vunpack.c.h.b16 %v6843
      %v6930 = vunpack.c.l.b16 %v6844
      %v6931 = vunpack.c.h.b16 %v6844
      %v6932 = vunpack.c.l.b16 %v6845
      %v6933 = vunpack.c.h.b16 %v6845
      %v6934 = vunpack.c.l.b16 %v6846
      %v6935 = vunpack.c.h.b16 %v6846
      %v6936 = vunpack.c.l.b16 %v6847
      %v6937 = vunpack.c.h.b16 %v6847
      %v6938 = vunpack.c.l.b16 %v6848
      %v6939 = vunpack.c.h.b16 %v6848
      %v6940 = vunpack.c.l.b16 %v6849
      %v6941 = vunpack.c.h.b16 %v6849
      %v6942 = vunpack.c.l.b16 %v6850
      %v6943 = vunpack.c.h.b16 %v6850
      %v6944 = vunpack.c.l.b16 %v6851
      %v6945 = vunpack.c.h.b16 %v6851
      %v6946 = vunpack.c.l.b16 %v6852
      %v6947 = vunpack.c.h.b16 %v6852
      %v6948 = vunpack.c.l.b16 %v6853
      %v6949 = vunpack.c.h.b16 %v6853
      %v6950 = vunpack.c.l.b16 %v6854
      %v6951 = vunpack.c.h.b16 %v6854
      %v6952 = vunpack.c.l.b16 %v6855
      %v6953 = vunpack.c.h.b16 %v6855
      %v6954 = vpack.c.b16 %v6928, %v6926
      %v6955 = vpack.c.b16 %v6929, %v6927
      %v6956 = vpack.c.b16 %v6932, %v6930
      %v6957 = vpack.c.b16 %v6933, %v6931
      %v6958 = vpack.c.b16 %v6936, %v6934
      %v6959 = vpack.c.b16 %v6937, %v6935
      %v6960 = vpack.c.b16 %v6940, %v6938
      %v6961 = vpack.c.b16 %v6941, %v6939
      %v6962 = vpack.c.b16 %v6944, %v6942
      %v6963 = vpack.c.b16 %v6945, %v6943
      %v6964 = vpack.c.b16 %v6948, %v6946
      %v6965 = vpack.c.b16 %v6949, %v6947
      %v6966 = vpack.c.b16 %v6952, %v6950
      %v6967 = vpack.c.b16 %v6953, %v6951
      %v6976 = vsel %vm2394, %v6955, 0
      %v6979 = vsel %vm2394, %v6957, 0
      %v6982 = vsel %vm2394, %v6959, 0
      %v6985 = vsel %vm2394, %v6961, 0
      %v6988 = vsel %vm2394, %v6963, 0
      %v6991 = vsel %vm2394, %v6965, 0
      %v6994 = vsel %vm2394, %v6967, 0
      %6996 = vmatprep.subr.bf16.mxu0 %v6857
      %6997 = vmatpush1.bf16.msra.mxu0 %v6856
      %6998 = vmatprep.subr.bf16.mxu0 %v6861
      %6999 = vmatpush1.bf16.msra.mxu0 %v6860
      %7000 = vmatprep.subr.bf16.mxu0 %v6865
      %7001 = vmatpush1.bf16.msra.mxu0 %v6864
      %7002 = vmatprep.subr.bf16.mxu0 %v6869
      %7003 = vmatpush1.bf16.msra.mxu0 %v6868
      %7004 = vmatprep.subr.bf16.mxu0 %v6873
      %7005 = vmatpush1.bf16.msra.mxu0 %v6872
      %7006 = vmatprep.subr.bf16.mxu0 %v6877
      %7007 = vmatpush1.bf16.msra.mxu0 %v6876
      %7008 = vmatprep.subr.bf16.mxu0 %v6881
      %7009 = vmatpush1.bf16.msra.mxu0 %v6880
      %7010 = vmatprep.subr.bf16.mxu0 %v6885
      %7011 = vmatpush1.bf16.msra.mxu0 %v6884
      %7012 = vmatprep.subr.bf16.mxu0 %v6889
      %7013 = vmatpush1.bf16.msra.mxu0 %v6888
      %7014 = vmatprep.subr.bf16.mxu0 %v6893
      %7015 = vmatpush1.bf16.msra.mxu0 %v6892
      %7016 = vmatprep.subr.bf16.mxu0 %v6897
      %7017 = vmatpush1.bf16.msra.mxu0 %v6896
      %7018 = vmatprep.subr.bf16.mxu0 %v6901
      %7019 = vmatpush1.bf16.msra.mxu0 %v6900
      %7020 = vmatprep.subr.bf16.mxu0 %v6905
      %7021 = vmatpush1.bf16.msra.mxu0 %v6904
      %7022 = vmatprep.subr.bf16.mxu0 %v6909
      %7023 = vmatpush1.bf16.msra.mxu0 %v6908
      %7024 = vmatprep.subr.bf16.mxu0 0
      %7025 = vmatpush1.bf16.msra.mxu0 0
      %7026 = vmatprep.subr.bf16.mxu0 0
      %7027 = vmatpush1.bf16.msra.mxu0 0
      %7028 = vmatprep.mubr.bf16.mxu0 %v6976
      %7029 = vmatmul.mubr.bf16.gmra.mrb[0].mxu0 %v6954
      %v7030 = vpop.f32.mrb[0].mxu0
      %v7031 = vadd.f32 0.0, %v7030
      %v7032 = vpop.f32.mrb[0].mxu0
      %v7033 = vadd.f32 0.0, %v7032
      %v7034 = vpop.f32.mrb[0].mxu0
      %v7035 = vadd.f32 0.0, %v7034
      %v7036 = vpop.f32.mrb[0].mxu0
      %v7037 = vadd.f32 0.0, %v7036
      %7038 = vmatprep.mubr.bf16.mxu0 %v6979
      %7039 = vmatmul.mubr.bf16.gmra.mrb[0].mxu0 %v6956
      %v7040 = vpop.f32.mrb[0].mxu0
      %v7041 = vadd.f32 0.0, %v7040
      %v7042 = vpop.f32.mrb[0].mxu0
      %v7043 = vadd.f32 0.0, %v7042
      %v7044 = vpop.f32.mrb[0].mxu0
      %v7045 = vadd.f32 0.0, %v7044
      %v7046 = vpop.f32.mrb[0].mxu0
      %v7047 = vadd.f32 0.0, %v7046
      %7048 = vmatprep.mubr.bf16.mxu0 %v6982
      %7049 = vmatmul.mubr.bf16.gmra.mrb[0].mxu0 %v6958
      %v7050 = vpop.f32.mrb[0].mxu0
      %v7051 = vadd.f32 0.0, %v7050
      %v7052 = vpop.f32.mrb[0].mxu0
      %v7053 = vadd.f32 0.0, %v7052
      %v7054 = vpop.f32.mrb[0].mxu0
      %v7055 = vadd.f32 0.0, %v7054
      %v7056 = vpop.f32.mrb[0].mxu0
      %v7057 = vadd.f32 0.0, %v7056
      %7058 = vmatprep.mubr.bf16.mxu0 %v6985
      %7059 = vmatmul.mubr.bf16.gmra.mrb[0].mxu0 %v6960
      %v7060 = vpop.f32.mrb[0].mxu0
      %v7061 = vadd.f32 0.0, %v7060
      %v7062 = vpop.f32.mrb[0].mxu0
      %v7063 = vadd.f32 0.0, %v7062
      %v7064 = vpop.f32.mrb[0].mxu0
      %v7065 = vadd.f32 0.0, %v7064
      %v7066 = vpop.f32.mrb[0].mxu0
      %v7067 = vadd.f32 0.0, %v7066
      %7068 = vmatprep.mubr.bf16.mxu0 %v6988
      %7069 = vmatmul.mubr.bf16.gmra.mrb[0].mxu0 %v6962
      %v7070 = vpop.f32.mrb[0].mxu0
      %v7071 = vadd.f32 0.0, %v7070
      %v7072 = vpop.f32.mrb[0].mxu0
      %v7073 = vadd.f32 0.0, %v7072
      %v7074 = vpop.f32.mrb[0].mxu0
      %v7075 = vadd.f32 0.0, %v7074
      %v7076 = vpop.f32.mrb[0].mxu0
      %v7077 = vadd.f32 0.0, %v7076
      %7078 = vmatprep.mubr.bf16.mxu0 %v6991
      %7079 = vmatmul.mubr.bf16.gmra.mrb[0].mxu0 %v6964
      %v7080 = vpop.f32.mrb[0].mxu0
      %v7081 = vadd.f32 0.0, %v7080
      %v7082 = vpop.f32.mrb[0].mxu0
      %v7083 = vadd.f32 0.0, %v7082
      %v7084 = vpop.f32.mrb[0].mxu0
      %v7085 = vadd.f32 0.0, %v7084
      %v7086 = vpop.f32.mrb[0].mxu0
      %v7087 = vadd.f32 0.0, %v7086
      %7088 = vmatprep.mubr.bf16.mxu0 %v6994
      %7089 = vmatmul.mubr.bf16.gmra.mrb[0].mxu0 %v6966
      %v7090 = vpop.f32.mrb[0].mxu0
      %v7091 = vadd.f32 0.0, %v7090
      %v7092 = vpop.f32.mrb[0].mxu0
      %v7093 = vadd.f32 0.0, %v7092
      %v7094 = vpop.f32.mrb[0].mxu0
      %v7095 = vadd.f32 0.0, %v7094
      %v7096 = vpop.f32.mrb[0].mxu0
      %v7097 = vadd.f32 0.0, %v7096
      %7098 = vdwg.mxu0
      %7099 = vmatprep.subr.bf16.mxu0 %v6859
      %7100 = vmatpush1.bf16.msra.mxu0 %v6858
      %7101 = vmatprep.subr.bf16.mxu0 %v6863
      %7102 = vmatpush1.bf16.msra.mxu0 %v6862
      %7103 = vmatprep.subr.bf16.mxu0 %v6867
      %7104 = vmatpush1.bf16.msra.mxu0 %v6866
      %7105 = vmatprep.subr.bf16.mxu0 %v6871
      %7106 = vmatpush1.bf16.msra.mxu0 %v6870
      %7107 = vmatprep.subr.bf16.mxu0 %v6875
      %7108 = vmatpush1.bf16.msra.mxu0 %v6874
      %7109 = vmatprep.subr.bf16.mxu0 %v6879
      %7110 = vmatpush1.bf16.msra.mxu0 %v6878
      %7111 = vmatprep.subr.bf16.mxu0 %v6883
      %7112 = vmatpush1.bf16.msra.mxu0 %v6882
      %7113 = vmatprep.subr.bf16.mxu0 %v6887
      %7114 = vmatpush1.bf16.msra.mxu0 %v6886
      %7115 = vmatprep.subr.bf16.mxu0 %v6891
      %7116 = vmatpush1.bf16.msra.mxu0 %v6890
      %7117 = vmatprep.subr.bf16.mxu0 %v6895
      %7118 = vmatpush1.bf16.msra.mxu0 %v6894
      %7119 = vmatprep.subr.bf16.mxu0 %v6899
      %7120 = vmatpush1.bf16.msra.mxu0 %v6898
      %7121 = vmatprep.subr.bf16.mxu0 %v6903
      %7122 = vmatpush1.bf16.msra.mxu0 %v6902
      %7123 = vmatprep.subr.bf16.mxu0 %v6907
      %7124 = vmatpush1.bf16.msra.mxu0 %v6906
      %7125 = vmatprep.subr.bf16.mxu0 %v6911
      %7126 = vmatpush1.bf16.msra.mxu0 %v6910
      %7127 = vmatprep.subr.bf16.mxu0 0
      %7128 = vmatpush1.bf16.msra.mxu0 0
      %7129 = vmatprep.subr.bf16.mxu0 0
      %7130 = vmatpush1.bf16.msra.mxu0 0
      %7131 = vmatprep.mubr.bf16.mxu0 %v6976
      %7132 = vmatmul.mubr.bf16.gmra.mrb[0].mxu0 %v6954
      %v7133 = vpop.f32.mrb[0].mxu0
      %v7134 = vadd.f32 0.0, %v7133
      %v7135 = vpop.f32.mrb[0].mxu0
      %v7136 = vadd.f32 0.0, %v7135
      %v7137 = vpop.f32.mrb[0].mxu0
      %v7138 = vadd.f32 0.0, %v7137
      %v7139 = vpop.f32.mrb[0].mxu0
      %v7140 = vadd.f32 0.0, %v7139
      %7141 = vmatprep.mubr.bf16.mxu0 %v6979
      %7142 = vmatmul.mubr.bf16.gmra.mrb[0].mxu0 %v6956
      %v7143 = vpop.f32.mrb[0].mxu0
      %v7144 = vadd.f32 0.0, %v7143
      %v7145 = vpop.f32.mrb[0].mxu0
      %v7146 = vadd.f32 0.0, %v7145
      %v7147 = vpop.f32.mrb[0].mxu0
      %v7148 = vadd.f32 0.0, %v7147
      %v7149 = vpop.f32.mrb[0].mxu0
      %v7150 = vadd.f32 0.0, %v7149
      %7151 = vmatprep.mubr.bf16.mxu0 %v6982
      %7152 = vmatmul.mubr.bf16.gmra.mrb[0].mxu0 %v6958
      %v7153 = vpop.f32.mrb[0].mxu0
      %v7154 = vadd.f32 0.0, %v7153
      %v7155 = vpop.f32.mrb[0].mxu0
      %v7156 = vadd.f32 0.0, %v7155
      %v7157 = vpop.f32.mrb[0].mxu0
      %v7158 = vadd.f32 0.0, %v7157
      %v7159 = vpop.f32.mrb[0].mxu0
      %v7160 = vadd.f32 0.0, %v7159
      %7161 = vmatprep.mubr.bf16.mxu0 %v6985
      %7162 = vmatmul.mubr.bf16.gmra.mrb[0].mxu0 %v6960
      %v7163 = vpop.f32.mrb[0].mxu0
      %v7164 = vadd.f32 0.0, %v7163
      %v7165 = vpop.f32.mrb[0].mxu0
      %v7166 = vadd.f32 0.0, %v7165
      %v7167 = vpop.f32.mrb[0].mxu0
      %v7168 = vadd.f32 0.0, %v7167
      %v7169 = vpop.f32.mrb[0].mxu0
      %v7170 = vadd.f32 0.0, %v7169
      %7171 = vmatprep.mubr.bf16.mxu0 %v6988
      %7172 = vmatmul.mubr.bf16.gmra.mrb[0].mxu0 %v6962
      %v7173 = vpop.f32.mrb[0].mxu0
      %v7174 = vadd.f32 0.0, %v7173
      %v7175 = vpop.f32.mrb[0].mxu0
      %v7176 = vadd.f32 0.0, %v7175
      %v7177 = vpop.f32.mrb[0].mxu0
      %v7178 = vadd.f32 0.0, %v7177
      %v7179 = vpop.f32.mrb[0].mxu0
      %v7180 = vadd.f32 0.0, %v7179
      %7181 = vmatprep.mubr.bf16.mxu0 %v6991
      %7182 = vmatmul.mubr.bf16.gmra.mrb[0].mxu0 %v6964
      %v7183 = vpop.f32.mrb[0].mxu0
      %v7184 = vadd.f32 0.0, %v7183
      %v7185 = vpop.f32.mrb[0].mxu0
      %v7186 = vadd.f32 0.0, %v7185
      %v7187 = vpop.f32.mrb[0].mxu0
      %v7188 = vadd.f32 0.0, %v7187
      %v7189 = vpop.f32.mrb[0].mxu0
      %v7190 = vadd.f32 0.0, %v7189
      %7191 = vmatprep.mubr.bf16.mxu0 %v6994
      %7192 = vmatmul.mubr.bf16.gmra.mrb[0].mxu0 %v6966
      %v7193 = vpop.f32.mrb[0].mxu0
      %v7194 = vadd.f32 0.0, %v7193
      %v7195 = vpop.f32.mrb[0].mxu0
      %v7196 = vadd.f32 0.0, %v7195
      %v7197 = vpop.f32.mrb[0].mxu0
      %v7198 = vadd.f32 0.0, %v7197
      %v7199 = vpop.f32.mrb[0].mxu0
      %v7200 = vadd.f32 0.0, %v7199
      %7201 = vdwg.mxu0
      %7202 = vrot.lane.b32.xlu0 %v7031, 66
      %v7203 = vpop.permute.xlu0 %7202
      %7204 = vrot.lane.b32.xlu0 %v7035, 66
      %v7205 = vpop.permute.xlu0 %7204
      %7206 = vrot.lane.b32.xlu0 %v7033, 66
      %v7207 = vpop.permute.xlu0 %7206
      %7208 = vrot.lane.b32.xlu0 %v7037, 66
      %v7209 = vpop.permute.xlu0 %7208
      %7210 = vrot.lane.b32.xlu0 %v7134, 66
      %v7211 = vpop.permute.xlu0 %7210
      %7212 = vrot.lane.b32.xlu0 %v7138, 66
      %v7213 = vpop.permute.xlu0 %7212
      %7214 = vrot.lane.b32.xlu0 %v7136, 66
      %v7215 = vpop.permute.xlu0 %7214
      %7216 = vrot.lane.b32.xlu0 %v7140, 66
      %v7217 = vpop.permute.xlu0 %7216
      %v7218 = vsel %vm1179, %v7211, %v7215
      %v7219 = vsel %vm1179, %v7213, %v7217
      %v7220 = vsel %vm1179, %v7207, %v7211
      %v7221 = vsel %vm1179, %v7209, %v7213
      %v7222 = vsel %vm1179, %v7203, %v7207
      %v7223 = vsel %vm1179, %v7205, %v7209
      %v7224 = vsel %vm1179, %v7215, %v7203
      %v7225 = vsel %vm1179, %v7217, %v7205
      %v7226 = vadd.f32 %v7061, %v7224
      %v7227 = vadd.f32 %v7063, %v7222
      %v7228 = vadd.f32 %v7164, %v7220
      %v7229 = vadd.f32 %v7166, %v7218
      %v7230 = vadd.f32 %v7065, %v7225
      %v7231 = vadd.f32 %v7067, %v7223
      %v7232 = vadd.f32 %v7168, %v7221
      %v7233 = vadd.f32 %v7170, %v7219
      %7234 = vrot.lane.b32.xlu0 %v7041, 44
      %v7235 = vpop.permute.xlu0 %7234
      %7236 = vrot.lane.b32.xlu0 %v7045, 44
      %v7237 = vpop.permute.xlu0 %7236
      %7238 = vrot.lane.b32.xlu0 %v7043, 44
      %v7239 = vpop.permute.xlu0 %7238
      %7240 = vrot.lane.b32.xlu0 %v7047, 44
      %v7241 = vpop.permute.xlu0 %7240
      %7242 = vrot.lane.b32.xlu0 %v7144, 44
      %v7243 = vpop.permute.xlu0 %7242
      %7244 = vrot.lane.b32.xlu0 %v7148, 44
      %v7245 = vpop.permute.xlu0 %7244
      %7246 = vrot.lane.b32.xlu0 %v7146, 44
      %v7247 = vpop.permute.xlu0 %7246
      %7248 = vrot.lane.b32.xlu0 %v7150, 44
      %v7249 = vpop.permute.xlu0 %7248
      %v7250 = vsel %vm1244, %v7243, %v7247
      %v7251 = vsel %vm1244, %v7245, %v7249
      %v7252 = vsel %vm1244, %v7239, %v7243
      %v7253 = vsel %vm1244, %v7241, %v7245
      %v7254 = vsel %vm1244, %v7235, %v7239
      %v7255 = vsel %vm1244, %v7237, %v7241
      %v7256 = vsel %vm1244, %v7247, %v7235
      %v7257 = vsel %vm1244, %v7249, %v7237
      %v7258 = vadd.f32 %v7226, %v7256
      %v7259 = vadd.f32 %v7227, %v7254
      %v7260 = vadd.f32 %v7228, %v7252
      %v7261 = vadd.f32 %v7229, %v7250
      %v7262 = vadd.f32 %v7230, %v7257
      %v7263 = vadd.f32 %v7231, %v7255
      %v7264 = vadd.f32 %v7232, %v7253
      %v7265 = vadd.f32 %v7233, %v7251
      %7266 = vrot.lane.b32.xlu0 %v7051, 22
      %v7267 = vpop.permute.xlu0 %7266
      %7268 = vrot.lane.b32.xlu0 %v7055, 22
      %v7269 = vpop.permute.xlu0 %7268
      %7270 = vrot.lane.b32.xlu0 %v7053, 22
      %v7271 = vpop.permute.xlu0 %7270
      %7272 = vrot.lane.b32.xlu0 %v7057, 22
      %v7273 = vpop.permute.xlu0 %7272
      %7274 = vrot.lane.b32.xlu0 %v7154, 22
      %v7275 = vpop.permute.xlu0 %7274
      %7276 = vrot.lane.b32.xlu0 %v7158, 22
      %v7277 = vpop.permute.xlu0 %7276
      %7278 = vrot.lane.b32.xlu0 %v7156, 22
      %v7279 = vpop.permute.xlu0 %7278
      %7280 = vrot.lane.b32.xlu0 %v7160, 22
      %v7281 = vpop.permute.xlu0 %7280
      %v7282 = vsel %vm1309, %v7275, %v7279
      %v7283 = vsel %vm1309, %v7277, %v7281
      %v7284 = vsel %vm1309, %v7271, %v7275
      %v7285 = vsel %vm1309, %v7273, %v7277
      %v7286 = vsel %vm1309, %v7267, %v7271
      %v7287 = vsel %vm1309, %v7269, %v7273
      %v7288 = vsel %vm1309, %v7279, %v7267
      %v7289 = vsel %vm1309, %v7281, %v7269
      %v7290 = vadd.f32 %v7258, %v7288
      %v7291 = vadd.f32 %v7259, %v7286
      %v7292 = vadd.f32 %v7260, %v7284
      %v7293 = vadd.f32 %v7261, %v7282
      %v7294 = vadd.f32 %v7262, %v7289
      %v7295 = vadd.f32 %v7263, %v7287
      %v7296 = vadd.f32 %v7264, %v7285
      %v7297 = vadd.f32 %v7265, %v7283
      %7298 = vrot.lane.b32.xlu0 %v7071, 106
      %v7299 = vpop.permute.xlu0 %7298
      %7300 = vrot.lane.b32.xlu0 %v7075, 106
      %v7301 = vpop.permute.xlu0 %7300
      %7302 = vrot.lane.b32.xlu0 %v7073, 106
      %v7303 = vpop.permute.xlu0 %7302
      %7304 = vrot.lane.b32.xlu0 %v7077, 106
      %v7305 = vpop.permute.xlu0 %7304
      %7306 = vrot.lane.b32.xlu0 %v7174, 106
      %v7307 = vpop.permute.xlu0 %7306
      %7308 = vrot.lane.b32.xlu0 %v7178, 106
      %v7309 = vpop.permute.xlu0 %7308
      %7310 = vrot.lane.b32.xlu0 %v7176, 106
      %v7311 = vpop.permute.xlu0 %7310
      %7312 = vrot.lane.b32.xlu0 %v7180, 106
      %v7313 = vpop.permute.xlu0 %7312
      %v7314 = vsel %vm1374, %v7307, %v7311
      %v7315 = vsel %vm1374, %v7309, %v7313
      %v7316 = vsel %vm1374, %v7303, %v7307
      %v7317 = vsel %vm1374, %v7305, %v7309
      %v7318 = vsel %vm1374, %v7299, %v7303
      %v7319 = vsel %vm1374, %v7301, %v7305
      %v7320 = vsel %vm1374, %v7311, %v7299
      %v7321 = vsel %vm1374, %v7313, %v7301
      %v7322 = vadd.f32 %v7290, %v7318
      %v7323 = vadd.f32 %v7291, %v7316
      %v7324 = vadd.f32 %v7292, %v7314
      %v7325 = vadd.f32 %v7293, %v7320
      %v7326 = vadd.f32 %v7294, %v7319
      %v7327 = vadd.f32 %v7295, %v7317
      %v7328 = vadd.f32 %v7296, %v7315
      %v7329 = vadd.f32 %v7297, %v7321
      %7330 = vrot.lane.b32.xlu0 %v7081, 84
      %v7331 = vpop.permute.xlu0 %7330
      %7332 = vrot.lane.b32.xlu0 %v7085, 84
      %v7333 = vpop.permute.xlu0 %7332
      %7334 = vrot.lane.b32.xlu0 %v7083, 84
      %v7335 = vpop.permute.xlu0 %7334
      %7336 = vrot.lane.b32.xlu0 %v7087, 84
      %v7337 = vpop.permute.xlu0 %7336
      %7338 = vrot.lane.b32.xlu0 %v7184, 84
      %v7339 = vpop.permute.xlu0 %7338
      %7340 = vrot.lane.b32.xlu0 %v7188, 84
      %v7341 = vpop.permute.xlu0 %7340
      %7342 = vrot.lane.b32.xlu0 %v7186, 84
      %v7343 = vpop.permute.xlu0 %7342
      %7344 = vrot.lane.b32.xlu0 %v7190, 84
      %v7345 = vpop.permute.xlu0 %7344
      %v7346 = vsel %vm1439, %v7339, %v7343
      %v7347 = vsel %vm1439, %v7341, %v7345
      %v7348 = vsel %vm1439, %v7335, %v7339
      %v7349 = vsel %vm1439, %v7337, %v7341
      %v7350 = vsel %vm1439, %v7331, %v7335
      %v7351 = vsel %vm1439, %v7333, %v7337
      %v7352 = vsel %vm1439, %v7343, %v7331
      %v7353 = vsel %vm1439, %v7345, %v7333
      %v7354 = vadd.f32 %v7322, %v7350
      %v7355 = vadd.f32 %v7323, %v7348
      %v7356 = vadd.f32 %v7324, %v7346
      %v7357 = vadd.f32 %v7325, %v7352
      %v7358 = vadd.f32 %v7326, %v7351
      %v7359 = vadd.f32 %v7327, %v7349
      %v7360 = vadd.f32 %v7328, %v7347
      %v7361 = vadd.f32 %v7329, %v7353
      %7362 = vrot.lane.b32.xlu0 %v7091, 62
      %v7363 = vpop.permute.xlu0 %7362
      %7364 = vrot.lane.b32.xlu0 %v7095, 62
      %v7365 = vpop.permute.xlu0 %7364
      %7366 = vrot.lane.b32.xlu0 %v7093, 62
      %v7367 = vpop.permute.xlu0 %7366
      %7368 = vrot.lane.b32.xlu0 %v7097, 62
      %v7369 = vpop.permute.xlu0 %7368
      %7370 = vrot.lane.b32.xlu0 %v7194, 62
      %v7371 = vpop.permute.xlu0 %7370
      %7372 = vrot.lane.b32.xlu0 %v7198, 62
      %v7373 = vpop.permute.xlu0 %7372
      %7374 = vrot.lane.b32.xlu0 %v7196, 62
      %v7375 = vpop.permute.xlu0 %7374
      %7376 = vrot.lane.b32.xlu0 %v7200, 62
      %v7377 = vpop.permute.xlu0 %7376
      %v7378 = vsel %vm1504, %v7371, %v7375
      %v7379 = vsel %vm1504, %v7373, %v7377
      %v7380 = vsel %vm1504, %v7367, %v7371
      %v7381 = vsel %vm1504, %v7369, %v7373
      %v7382 = vsel %vm1504, %v7363, %v7367
      %v7383 = vsel %vm1504, %v7365, %v7369
      %v7384 = vsel %vm1504, %v7375, %v7363
      %v7385 = vsel %vm1504, %v7377, %v7365
      %v7386 = vadd.f32 %v7354, %v7382
      %v7387 = vadd.f32 %v7355, %v7380
      %v7388 = vadd.f32 %v7356, %v7378
      %v7389 = vadd.f32 %v7357, %v7384
      %v7390 = vadd.f32 %v7358, %v7383
      %v7391 = vadd.f32 %v7359, %v7381
      %v7392 = vadd.f32 %v7360, %v7379
      %v7393 = vadd.f32 %v7361, %v7385
      %v7394 = vld [vmem:[%s9] sm:$0xff]
      %v7395 = vld [vmem:[%s9 + $0x8] sm:$0xff]
      %7397 = vset.pattern.permute.xlu0 0
      %7398 = vperm.xlu0 %7397, %v7394
      %v7399 = vpop.permute.xlu0 %7398
      %7402 = vset.pattern.permute.xlu0 0
      %7403 = vperm.xlu0 %7402, %v7395
      %v7404 = vpop.permute.xlu0 %7403
      %v7406 = vadd.f32 %v7386, %v7399
      %v7407 = vadd.f32 %v7387, %v7399
      %v7408 = vadd.f32 %v7388, %v7399
      %v7409 = vadd.f32 %v7389, %v7399
      %v7410 = vadd.f32 %v7390, %v7404
      %v7411 = vadd.f32 %v7391, %v7404
      %v7412 = vadd.f32 %v7392, %v7404
      %v7413 = vadd.f32 %v7393, %v7404
      %v7414 = vmax.f32 %v7406, 0.0
      %v7415 = vmax.f32 %v7407, 0.0
      %v7416 = vmax.f32 %v7408, 0.0
      %v7417 = vmax.f32 %v7409, 0.0
      %v7418 = vmax.f32 %v7410, 0.0
      %v7419 = vmax.f32 %v7411, 0.0
      %v7420 = vmax.f32 %v7412, 0.0
      %v7421 = vmax.f32 %v7413, 0.0
      %v7422 = vmul.f32 %v7414, %v1597
      %v7423 = vmul.f32 %v7415, %v1601
      %v7424 = vmul.f32 %v7416, %v1605
      %v7425 = vmul.f32 %v7417, %v1609
      %v7426 = vmul.f32 %v7418, %v1597
      %v7427 = vmul.f32 %v7419, %v1601
      %v7428 = vmul.f32 %v7420, %v1605
      %v7429 = vmul.f32 %v7421, %v1609
      %7430 = vrot.lane.b32.xlu0 %v7422, 3
      %v7431 = vpop.permute.xlu0 %7430
      %7432 = vrot.lane.b32.xlu0 %v7426, 3
      %v7433 = vpop.permute.xlu0 %7432
      %7434 = vrot.lane.b32.xlu0 %v7423, 3
      %v7435 = vpop.permute.xlu0 %7434
      %7436 = vrot.lane.b32.xlu0 %v7427, 3
      %v7437 = vpop.permute.xlu0 %7436
      %7438 = vrot.lane.b32.xlu0 %v7424, 3
      %v7439 = vpop.permute.xlu0 %7438
      %7440 = vrot.lane.b32.xlu0 %v7428, 3
      %v7441 = vpop.permute.xlu0 %7440
      %7442 = vrot.lane.b32.xlu0 %v7425, 3
      %v7443 = vpop.permute.xlu0 %7442
      %7444 = vrot.lane.b32.xlu0 %v7429, 3
      %v7445 = vpop.permute.xlu0 %7444
      %v7446 = vsel %vm442, %v7439, %v7443
      %v7447 = vsel %vm442, %v7441, %v7445
      %v7448 = vsel %vm442, %v7435, %v7439
      %v7449 = vsel %vm442, %v7437, %v7441
      %v7450 = vsel %vm442, %v7431, %v7435
      %v7451 = vsel %vm442, %v7433, %v7437
      %v7452 = vsel %vm442, %v7443, %v7431
      %v7453 = vsel %vm442, %v7445, %v7433
      %v7454 = vpack.c.bf16 %v7453, %v7452
      %v7455 = vpack.c.bf16 %v7451, %v7450
      %v7456 = vpack.c.bf16 %v7449, %v7448
      %v7457 = vpack.c.bf16 %v7447, %v7446
      %7458 = vst [vmem:[#allocation2] sm:$0xff] %v7454
      %7459 = vst [vmem:[#allocation2 + $0x8] sm:$0xff] %v7455
      %7460 = vst [vmem:[#allocation2 + $0x10] sm:$0xff] %v7456
      %7461 = vst [vmem:[#allocation2 + $0x18] sm:$0xff] %v7457
      %7462 = vrot.lane.b32.xlu0 %v7422, 2
      %v7463 = vpop.permute.xlu0 %7462
      %7464 = vrot.lane.b32.xlu0 %v7426, 2
      %v7465 = vpop.permute.xlu0 %7464
      %7466 = vrot.lane.b32.xlu0 %v7423, 2
      %v7467 = vpop.permute.xlu0 %7466
      %7468 = vrot.lane.b32.xlu0 %v7427, 2
      %v7469 = vpop.permute.xlu0 %7468
      %7470 = vrot.lane.b32.xlu0 %v7424, 2
      %v7471 = vpop.permute.xlu0 %7470
      %7472 = vrot.lane.b32.xlu0 %v7428, 2
      %v7473 = vpop.permute.xlu0 %7472
      %7474 = vrot.lane.b32.xlu0 %v7425, 2
      %v7475 = vpop.permute.xlu0 %7474
      %7476 = vrot.lane.b32.xlu0 %v7429, 2
      %v7477 = vpop.permute.xlu0 %7476
      %v7478 = vsel %vm475, %v7471, %v7475
      %v7479 = vsel %vm475, %v7473, %v7477
      %v7480 = vsel %vm475, %v7467, %v7471
      %v7481 = vsel %vm475, %v7469, %v7473
      %v7482 = vsel %vm475, %v7463, %v7467
      %v7483 = vsel %vm475, %v7465, %v7469
      %v7484 = vsel %vm475, %v7475, %v7463
      %v7485 = vsel %vm475, %v7477, %v7465
      %v7486 = vpack.c.bf16 %v7485, %v7484
      %v7487 = vpack.c.bf16 %v7483, %v7482
      %v7488 = vpack.c.bf16 %v7481, %v7480
      %v7489 = vpack.c.bf16 %v7479, %v7478
      %7490 = vst [vmem:[#allocation2 + $0x20] sm:$0xff] %v7486
      %7491 = vst [vmem:[#allocation2 + $0x28] sm:$0xff] %v7487
      %7492 = vst [vmem:[#allocation2 + $0x30] sm:$0xff] %v7488
      %7493 = vst [vmem:[#allocation2 + $0x38] sm:$0xff] %v7489
      %7494 = vrot.lane.b32.xlu0 %v7422, 1
      %v7495 = vpop.permute.xlu0 %7494
      %7496 = vrot.lane.b32.xlu0 %v7426, 1
      %v7497 = vpop.permute.xlu0 %7496
      %7498 = vrot.lane.b32.xlu0 %v7423, 1
      %v7499 = vpop.permute.xlu0 %7498
      %7500 = vrot.lane.b32.xlu0 %v7427, 1
      %v7501 = vpop.permute.xlu0 %7500
      %7502 = vrot.lane.b32.xlu0 %v7424, 1
      %v7503 = vpop.permute.xlu0 %7502
      %7504 = vrot.lane.b32.xlu0 %v7428, 1
      %v7505 = vpop.permute.xlu0 %7504
      %7506 = vrot.lane.b32.xlu0 %v7425, 1
      %v7507 = vpop.permute.xlu0 %7506
      %7508 = vrot.lane.b32.xlu0 %v7429, 1
      %v7509 = vpop.permute.xlu0 %7508
      %v7510 = vsel %vm508, %v7503, %v7507
      %v7511 = vsel %vm508, %v7505, %v7509
      %v7512 = vsel %vm508, %v7499, %v7503
      %v7513 = vsel %vm508, %v7501, %v7505
      %v7514 = vsel %vm508, %v7495, %v7499
      %v7515 = vsel %vm508, %v7497, %v7501
      %v7516 = vsel %vm508, %v7507, %v7495
      %v7517 = vsel %vm508, %v7509, %v7497
      %v7518 = vpack.c.bf16 %v7517, %v7516
      %v7519 = vpack.c.bf16 %v7515, %v7514
      %v7520 = vpack.c.bf16 %v7513, %v7512
      %v7521 = vpack.c.bf16 %v7511, %v7510
      %7522 = vst [vmem:[#allocation2 + $0x40] sm:$0xff] %v7518
      %7523 = vst [vmem:[#allocation2 + $0x48] sm:$0xff] %v7519
      %7524 = vst [vmem:[#allocation2 + $0x50] sm:$0xff] %v7520
      %7525 = vst [vmem:[#allocation2 + $0x58] sm:$0xff] %v7521
      %v7526 = vpack.c.bf16 %v7426, %v7422
      %v7527 = vpack.c.bf16 %v7427, %v7423
      %v7528 = vpack.c.bf16 %v7428, %v7424
      %v7529 = vpack.c.bf16 %v7429, %v7425
      %7530 = vst [vmem:[#allocation2 + $0x60] sm:$0xff] %v7526
      %7531 = vst [vmem:[#allocation2 + $0x68] sm:$0xff] %v7527
      %7532 = vst [vmem:[#allocation2 + $0x70] sm:$0xff] %v7528
      %7533 = vst [vmem:[#allocation2 + $0x78] sm:$0xff] %v7529
      %7534 = vrot.lane.b32.xlu0 %v7422, 127
      %v7535 = vpop.permute.xlu0 %7534
      %7536 = vrot.lane.b32.xlu0 %v7426, 127
      %v7537 = vpop.permute.xlu0 %7536
      %7538 = vrot.lane.b32.xlu0 %v7423, 127
      %v7539 = vpop.permute.xlu0 %7538
      %7540 = vrot.lane.b32.xlu0 %v7427, 127
      %v7541 = vpop.permute.xlu0 %7540
      %7542 = vrot.lane.b32.xlu0 %v7424, 127
      %v7543 = vpop.permute.xlu0 %7542
      %7544 = vrot.lane.b32.xlu0 %v7428, 127
      %v7545 = vpop.permute.xlu0 %7544
      %7546 = vrot.lane.b32.xlu0 %v7425, 127
      %v7547 = vpop.permute.xlu0 %7546
      %7548 = vrot.lane.b32.xlu0 %v7429, 127
      %v7549 = vpop.permute.xlu0 %7548
      %v7550 = vsel %vm549, %v7543, %v7547
      %v7551 = vsel %vm549, %v7545, %v7549
      %v7552 = vsel %vm549, %v7539, %v7543
      %v7553 = vsel %vm549, %v7541, %v7545
      %v7554 = vsel %vm549, %v7535, %v7539
      %v7555 = vsel %vm549, %v7537, %v7541
      %v7556 = vsel %vm549, %v7547, %v7535
      %v7557 = vsel %vm549, %v7549, %v7537
      %v7558 = vpack.c.bf16 %v7555, %v7554
      %v7559 = vpack.c.bf16 %v7553, %v7552
      %v7560 = vpack.c.bf16 %v7551, %v7550
      %v7561 = vpack.c.bf16 %v7557, %v7556
      %7562 = vst [vmem:[#allocation2 + $0x80] sm:$0xff] %v7558
      %7563 = vst [vmem:[#allocation2 + $0x88] sm:$0xff] %v7559
      %7564 = vst [vmem:[#allocation2 + $0x90] sm:$0xff] %v7560
      %7565 = vst [vmem:[#allocation2 + $0x98] sm:$0xff] %v7561
      %7566 = vrot.lane.b32.xlu0 %v7422, 126
      %v7567 = vpop.permute.xlu0 %7566
      %7568 = vrot.lane.b32.xlu0 %v7426, 126
      %v7569 = vpop.permute.xlu0 %7568
      %7570 = vrot.lane.b32.xlu0 %v7423, 126
      %v7571 = vpop.permute.xlu0 %7570
      %7572 = vrot.lane.b32.xlu0 %v7427, 126
      %v7573 = vpop.permute.xlu0 %7572
      %7574 = vrot.lane.b32.xlu0 %v7424, 126
      %v7575 = vpop.permute.xlu0 %7574
      %7576 = vrot.lane.b32.xlu0 %v7428, 126
      %v7577 = vpop.permute.xlu0 %7576
      %7578 = vrot.lane.b32.xlu0 %v7425, 126
      %v7579 = vpop.permute.xlu0 %7578
      %7580 = vrot.lane.b32.xlu0 %v7429, 126
      %v7581 = vpop.permute.xlu0 %7580
      %v7582 = vsel %vm582, %v7575, %v7579
      %v7583 = vsel %vm582, %v7577, %v7581
      %v7584 = vsel %vm582, %v7571, %v7575
      %v7585 = vsel %vm582, %v7573, %v7577
      %v7586 = vsel %vm582, %v7567, %v7571
      %v7587 = vsel %vm582, %v7569, %v7573
      %v7588 = vsel %vm582, %v7579, %v7567
      %v7589 = vsel %vm582, %v7581, %v7569
      %v7590 = vpack.c.bf16 %v7587, %v7586
      %v7591 = vpack.c.bf16 %v7585, %v7584
      %v7592 = vpack.c.bf16 %v7583, %v7582
      %v7593 = vpack.c.bf16 %v7589, %v7588
      %7594 = vst [vmem:[#allocation2 + $0xa0] sm:$0xff] %v7590
      %7595 = vst [vmem:[#allocation2 + $0xa8] sm:$0xff] %v7591
      %7596 = vst [vmem:[#allocation2 + $0xb0] sm:$0xff] %v7592
      %7597 = vst [vmem:[#allocation2 + $0xb8] sm:$0xff] %v7593
      %7598 = vrot.lane.b32.xlu0 %v7422, 125
      %v7599 = vpop.permute.xlu0 %7598
      %7600 = vrot.lane.b32.xlu0 %v7426, 125
      %v7601 = vpop.permute.xlu0 %7600
      %7602 = vrot.lane.b32.xlu0 %v7423, 125
      %v7603 = vpop.permute.xlu0 %7602
      %7604 = vrot.lane.b32.xlu0 %v7427, 125
      %v7605 = vpop.permute.xlu0 %7604
      %7606 = vrot.lane.b32.xlu0 %v7424, 125
      %v7607 = vpop.permute.xlu0 %7606
      %7608 = vrot.lane.b32.xlu0 %v7428, 125
      %v7609 = vpop.permute.xlu0 %7608
      %7610 = vrot.lane.b32.xlu0 %v7425, 125
      %v7611 = vpop.permute.xlu0 %7610
      %7612 = vrot.lane.b32.xlu0 %v7429, 125
      %v7613 = vpop.permute.xlu0 %7612
      %v7614 = vsel %vm615, %v7607, %v7611
      %v7615 = vsel %vm615, %v7609, %v7613
      %v7616 = vsel %vm615, %v7603, %v7607
      %v7617 = vsel %vm615, %v7605, %v7609
      %v7618 = vsel %vm615, %v7599, %v7603
      %v7619 = vsel %vm615, %v7601, %v7605
      %v7620 = vsel %vm615, %v7611, %v7599
      %v7621 = vsel %vm615, %v7613, %v7601
      %v7622 = vpack.c.bf16 %v7619, %v7618
      %v7623 = vpack.c.bf16 %v7617, %v7616
      %v7624 = vpack.c.bf16 %v7615, %v7614
      %v7625 = vpack.c.bf16 %v7621, %v7620
      %7626 = vst [vmem:[#allocation2 + $0xc0] sm:$0xff] %v7622
      %7627 = vst [vmem:[#allocation2 + $0xc8] sm:$0xff] %v7623
      %7628 = vst [vmem:[#allocation2 + $0xd0] sm:$0xff] %v7624
      %7629 = vst [vmem:[#allocation2 + $0xd8] sm:$0xff] %v7625
      %v7630 = vld [vmem:[%s10] sm:$0xf]
      %v7631 = vld [vmem:[%s10 + $0x4] sm:$0xf]
      %v7632 = vld [vmem:[%s10 + $0x8] sm:$0xf]
      %v7633 = vld [vmem:[%s10 + $0xc] sm:$0xf]
      %v7634 = vld [vmem:[%s10 + $0x10] sm:$0xf]
      %v7635 = vld [vmem:[%s10 + $0x14] sm:$0xf]
      %v7636 = vld [vmem:[%s10 + $0x18] sm:$0xf]
      %v7637 = vld [vmem:[#allocation2] sm:$0xff]
      %v7638 = vld [vmem:[#allocation2 + $0x8] sm:$0xff]
      %v7639 = vld [vmem:[#allocation2 + $0x10] sm:$0xff]
      %v7640 = vld [vmem:[#allocation2 + $0x18] sm:$0xff]
      %v7641 = vld [vmem:[#allocation2 + $0x20] sm:$0xff]
      %v7642 = vld [vmem:[#allocation2 + $0x28] sm:$0xff]
      %v7643 = vld [vmem:[#allocation2 + $0x30] sm:$0xff]
      %v7644 = vld [vmem:[#allocation2 + $0x38] sm:$0xff]
      %v7645 = vld [vmem:[#allocation2 + $0x40] sm:$0xff]
      %v7646 = vld [vmem:[#allocation2 + $0x48] sm:$0xff]
      %v7647 = vld [vmem:[#allocation2 + $0x50] sm:$0xff]
      %v7648 = vld [vmem:[#allocation2 + $0x58] sm:$0xff]
      %v7649 = vld [vmem:[#allocation2 + $0x60] sm:$0xff]
      %v7650 = vld [vmem:[#allocation2 + $0x68] sm:$0xff]
      %v7651 = vld [vmem:[#allocation2 + $0x70] sm:$0xff]
      %v7652 = vld [vmem:[#allocation2 + $0x78] sm:$0xff]
      %v7653 = vld [vmem:[#allocation2 + $0x80] sm:$0xff]
      %v7654 = vld [vmem:[#allocation2 + $0x88] sm:$0xff]
      %v7655 = vld [vmem:[#allocation2 + $0x90] sm:$0xff]
      %v7656 = vld [vmem:[#allocation2 + $0x98] sm:$0xff]
      %v7657 = vld [vmem:[#allocation2 + $0xa0] sm:$0xff]
      %v7658 = vld [vmem:[#allocation2 + $0xa8] sm:$0xff]
      %v7659 = vld [vmem:[#allocation2 + $0xb0] sm:$0xff]
      %v7660 = vld [vmem:[#allocation2 + $0xb8] sm:$0xff]
      %v7661 = vld [vmem:[#allocation2 + $0xc0] sm:$0xff]
      %v7662 = vld [vmem:[#allocation2 + $0xc8] sm:$0xff]
      %v7663 = vld [vmem:[#allocation2 + $0xd0] sm:$0xff]
      %v7664 = vld [vmem:[#allocation2 + $0xd8] sm:$0xff]
      %v7672 = vunpack.c.l.b16 %v7630
      %v7673 = vunpack.c.l.b16 %v7631
      %v7674 = vunpack.c.l.b16 %v7632
      %v7675 = vunpack.c.l.b16 %v7633
      %v7676 = vunpack.c.l.b16 %v7634
      %v7677 = vunpack.c.l.b16 %v7635
      %v7678 = vunpack.c.l.b16 %v7636
      %v7679 = vpack.c.b16 %v7673, %v7672
      %v7680 = vpack.c.b16 %v7675, %v7674
      %v7681 = vpack.c.b16 %v7677, %v7676
      %v7682 = vpack.c.b16 %v7678, %v7678
      %v7684 = vsel %vm758, %v7679, 0
      %v7687 = vsel %vm758, %v7680, 0
      %v7690 = vsel %vm758, %v7681, 0
      %v7693 = vsel %vm758, %v7682, 0
      %7695 = vmatprep.subr.bf16.mxu0 %v7638
      %7696 = vmatpush1.bf16.msra.mxu0 %v7637
      %7697 = vmatprep.subr.bf16.mxu0 %v7642
      %7698 = vmatpush1.bf16.msra.mxu0 %v7641
      %7699 = vmatprep.subr.bf16.mxu0 %v7646
      %7700 = vmatpush1.bf16.msra.mxu0 %v7645
      %7701 = vmatprep.subr.bf16.mxu0 %v7650
      %7702 = vmatpush1.bf16.msra.mxu0 %v7649
      %7703 = vmatprep.subr.bf16.mxu0 %v7654
      %7704 = vmatpush1.bf16.msra.mxu0 %v7653
      %7705 = vmatprep.subr.bf16.mxu0 %v7658
      %7706 = vmatpush1.bf16.msra.mxu0 %v7657
      %7707 = vmatprep.subr.bf16.mxu0 %v7662
      %7708 = vmatpush1.bf16.msra.mxu0 %v7661
      %7709 = vmatprep.subr.bf16.mxu0 0
      %7710 = vmatpush1.bf16.msra.mxu0 0
      %7711 = vmatprep.subr.bf16.mxu0 0
      %7712 = vmatpush1.bf16.msra.mxu0 0
      %7713 = vmatprep.subr.bf16.mxu0 0
      %7714 = vmatpush1.bf16.msra.mxu0 0
      %7715 = vmatprep.subr.bf16.mxu0 0
      %7716 = vmatpush1.bf16.msra.mxu0 0
      %7717 = vmatprep.subr.bf16.mxu0 0
      %7718 = vmatpush1.bf16.msra.mxu0 0
      %7719 = vmatprep.subr.bf16.mxu0 0
      %7720 = vmatpush1.bf16.msra.mxu0 0
      %7721 = vmatprep.subr.bf16.mxu0 0
      %7722 = vmatpush1.bf16.msra.mxu0 0
      %7723 = vmatprep.subr.bf16.mxu0 0
      %7724 = vmatpush1.bf16.msra.mxu0 0
      %7725 = vmatprep.subr.bf16.mxu0 0
      %7726 = vmatpush1.bf16.msra.mxu0 0
      %7727 = vmatprep.mubr.bf16.mxu0 0
      %7728 = vmatmul.mubr.bf16.gmra.mrb[0].mxu0 %v7684
      %v7729 = vpop.f32.mrb[0].mxu0
      %v7730 = vadd.f32 0.0, %v7729
      %v7731 = vpop.f32.mrb[0].mxu0
      %v7732 = vadd.f32 0.0, %v7731
      %v7733 = vpop.f32.mrb[0].mxu0
      %v7734 = vadd.f32 0.0, %v7733
      %v7735 = vpop.f32.mrb[0].mxu0
      %v7736 = vadd.f32 0.0, %v7735
      %7737 = vmatprep.mubr.bf16.mxu0 0
      %7738 = vmatmul.mubr.bf16.gmra.mrb[0].mxu0 %v7687
      %v7739 = vpop.f32.mrb[0].mxu0
      %v7740 = vadd.f32 0.0, %v7739
      %v7741 = vpop.f32.mrb[0].mxu0
      %v7742 = vadd.f32 0.0, %v7741
      %v7743 = vpop.f32.mrb[0].mxu0
      %v7744 = vadd.f32 0.0, %v7743
      %v7745 = vpop.f32.mrb[0].mxu0
      %v7746 = vadd.f32 0.0, %v7745
      %7747 = vmatprep.mubr.bf16.mxu0 0
      %7748 = vmatmul.mubr.bf16.gmra.mrb[0].mxu0 %v7690
      %v7749 = vpop.f32.mrb[0].mxu0
      %v7750 = vadd.f32 0.0, %v7749
      %v7751 = vpop.f32.mrb[0].mxu0
      %v7752 = vadd.f32 0.0, %v7751
      %v7753 = vpop.f32.mrb[0].mxu0
      %v7754 = vadd.f32 0.0, %v7753
      %v7755 = vpop.f32.mrb[0].mxu0
      %v7756 = vadd.f32 0.0, %v7755
      %7757 = vmatprep.mubr.bf16.mxu0 0
      %7758 = vmatmul.mubr.bf16.gmra.mrb[0].mxu0 %v7693
      %v7759 = vpop.f32.mrb[0].mxu0
      %v7760 = vadd.f32 0.0, %v7759
      %v7761 = vpop.f32.mrb[0].mxu0
      %v7762 = vadd.f32 0.0, %v7761
      %v7763 = vpop.f32.mrb[0].mxu0
      %v7764 = vpop.f32.mrb[0].mxu0
      %7765 = vdwg.mxu0
      %7766 = vmatprep.subr.bf16.mxu0 %v7640
      %7767 = vmatpush1.bf16.msra.mxu0 %v7639
      %7768 = vmatprep.subr.bf16.mxu0 %v7644
      %7769 = vmatpush1.bf16.msra.mxu0 %v7643
      %7770 = vmatprep.subr.bf16.mxu0 %v7648
      %7771 = vmatpush1.bf16.msra.mxu0 %v7647
      %7772 = vmatprep.subr.bf16.mxu0 %v7652
      %7773 = vmatpush1.bf16.msra.mxu0 %v7651
      %7774 = vmatprep.subr.bf16.mxu0 %v7656
      %7775 = vmatpush1.bf16.msra.mxu0 %v7655
      %7776 = vmatprep.subr.bf16.mxu0 %v7660
      %7777 = vmatpush1.bf16.msra.mxu0 %v7659
      %7778 = vmatprep.subr.bf16.mxu0 %v7664
      %7779 = vmatpush1.bf16.msra.mxu0 %v7663
      %7780 = vmatprep.subr.bf16.mxu0 0
      %7781 = vmatpush1.bf16.msra.mxu0 0
      %7782 = vmatprep.subr.bf16.mxu0 0
      %7783 = vmatpush1.bf16.msra.mxu0 0
      %7784 = vmatprep.subr.bf16.mxu0 0
      %7785 = vmatpush1.bf16.msra.mxu0 0
      %7786 = vmatprep.subr.bf16.mxu0 0
      %7787 = vmatpush1.bf16.msra.mxu0 0
      %7788 = vmatprep.subr.bf16.mxu0 0
      %7789 = vmatpush1.bf16.msra.mxu0 0
      %7790 = vmatprep.subr.bf16.mxu0 0
      %7791 = vmatpush1.bf16.msra.mxu0 0
      %7792 = vmatprep.subr.bf16.mxu0 0
      %7793 = vmatpush1.bf16.msra.mxu0 0
      %7794 = vmatprep.subr.bf16.mxu0 0
      %7795 = vmatpush1.bf16.msra.mxu0 0
      %7796 = vmatprep.subr.bf16.mxu0 0
      %7797 = vmatpush1.bf16.msra.mxu0 0
      %7798 = vmatprep.mubr.bf16.mxu0 0
      %7799 = vmatmul.mubr.bf16.gmra.mrb[0].mxu0 %v7684
      %v7800 = vpop.f32.mrb[0].mxu0
      %v7801 = vadd.f32 0.0, %v7800
      %v7802 = vpop.f32.mrb[0].mxu0
      %v7803 = vadd.f32 0.0, %v7802
      %v7804 = vpop.f32.mrb[0].mxu0
      %v7805 = vadd.f32 0.0, %v7804
      %v7806 = vpop.f32.mrb[0].mxu0
      %v7807 = vadd.f32 0.0, %v7806
      %7808 = vmatprep.mubr.bf16.mxu0 0
      %7809 = vmatmul.mubr.bf16.gmra.mrb[0].mxu0 %v7687
      %v7810 = vpop.f32.mrb[0].mxu0
      %v7811 = vadd.f32 0.0, %v7810
      %v7812 = vpop.f32.mrb[0].mxu0
      %v7813 = vadd.f32 0.0, %v7812
      %v7814 = vpop.f32.mrb[0].mxu0
      %v7815 = vadd.f32 0.0, %v7814
      %v7816 = vpop.f32.mrb[0].mxu0
      %v7817 = vadd.f32 0.0, %v7816
      %7818 = vmatprep.mubr.bf16.mxu0 0
      %7819 = vmatmul.mubr.bf16.gmra.mrb[0].mxu0 %v7690
      %v7820 = vpop.f32.mrb[0].mxu0
      %v7821 = vadd.f32 0.0, %v7820
      %v7822 = vpop.f32.mrb[0].mxu0
      %v7823 = vadd.f32 0.0, %v7822
      %v7824 = vpop.f32.mrb[0].mxu0
      %v7825 = vadd.f32 0.0, %v7824
      %v7826 = vpop.f32.mrb[0].mxu0
      %v7827 = vadd.f32 0.0, %v7826
      %7828 = vmatprep.mubr.bf16.mxu0 0
      %7829 = vmatmul.mubr.bf16.gmra.mrb[0].mxu0 %v7693
      %v7830 = vpop.f32.mrb[0].mxu0
      %v7831 = vadd.f32 0.0, %v7830
      %v7832 = vpop.f32.mrb[0].mxu0
      %v7833 = vadd.f32 0.0, %v7832
      %v7834 = vpop.f32.mrb[0].mxu0
      %v7835 = vpop.f32.mrb[0].mxu0
      %7836 = vdwg.mxu0
      %7837 = vrot.lane.b32.xlu0 %v7730, 66
      %v7838 = vpop.permute.xlu0 %7837
      %7839 = vrot.lane.b32.xlu0 %v7732, 66
      %v7840 = vpop.permute.xlu0 %7839
      %7841 = vrot.lane.b32.xlu0 %v7801, 66
      %v7842 = vpop.permute.xlu0 %7841
      %7843 = vrot.lane.b32.xlu0 %v7803, 66
      %v7844 = vpop.permute.xlu0 %7843
      %v7845 = vsel %vm1179, %v7842, %v7844
      %v7846 = vsel %vm1179, %v7840, %v7842
      %v7847 = vsel %vm1179, %v7838, %v7840
      %v7848 = vsel %vm1179, %v7844, %v7838
      %v7849 = vadd.f32 %v7744, %v7848
      %v7850 = vadd.f32 %v7746, %v7847
      %v7851 = vadd.f32 %v7815, %v7846
      %v7852 = vadd.f32 %v7817, %v7845
      %7853 = vrot.lane.b32.xlu0 %v7734, 44
      %v7854 = vpop.permute.xlu0 %7853
      %7855 = vrot.lane.b32.xlu0 %v7736, 44
      %v7856 = vpop.permute.xlu0 %7855
      %7857 = vrot.lane.b32.xlu0 %v7805, 44
      %v7858 = vpop.permute.xlu0 %7857
      %7859 = vrot.lane.b32.xlu0 %v7807, 44
      %v7860 = vpop.permute.xlu0 %7859
      %v7861 = vsel %vm1244, %v7858, %v7860
      %v7862 = vsel %vm1244, %v7856, %v7858
      %v7863 = vsel %vm1244, %v7854, %v7856
      %v7864 = vsel %vm1244, %v7860, %v7854
      %v7865 = vadd.f32 %v7849, %v7864
      %v7866 = vadd.f32 %v7850, %v7863
      %v7867 = vadd.f32 %v7851, %v7862
      %v7868 = vadd.f32 %v7852, %v7861
      %7869 = vrot.lane.b32.xlu0 %v7740, 22
      %v7870 = vpop.permute.xlu0 %7869
      %7871 = vrot.lane.b32.xlu0 %v7742, 22
      %v7872 = vpop.permute.xlu0 %7871
      %7873 = vrot.lane.b32.xlu0 %v7811, 22
      %v7874 = vpop.permute.xlu0 %7873
      %7875 = vrot.lane.b32.xlu0 %v7813, 22
      %v7876 = vpop.permute.xlu0 %7875
      %v7877 = vsel %vm1309, %v7874, %v7876
      %v7878 = vsel %vm1309, %v7872, %v7874
      %v7879 = vsel %vm1309, %v7870, %v7872
      %v7880 = vsel %vm1309, %v7876, %v7870
      %v7881 = vadd.f32 %v7865, %v7880
      %v7882 = vadd.f32 %v7866, %v7879
      %v7883 = vadd.f32 %v7867, %v7878
      %v7884 = vadd.f32 %v7868, %v7877
      %7885 = vrot.lane.b32.xlu0 %v7750, 106
      %v7886 = vpop.permute.xlu0 %7885
      %7887 = vrot.lane.b32.xlu0 %v7752, 106
      %v7888 = vpop.permute.xlu0 %7887
      %7889 = vrot.lane.b32.xlu0 %v7821, 106
      %v7890 = vpop.permute.xlu0 %7889
      %7891 = vrot.lane.b32.xlu0 %v7823, 106
      %v7892 = vpop.permute.xlu0 %7891
      %v7893 = vsel %vm1374, %v7890, %v7892
      %v7894 = vsel %vm1374, %v7888, %v7890
      %v7895 = vsel %vm1374, %v7886, %v7888
      %v7896 = vsel %vm1374, %v7892, %v7886
      %v7897 = vadd.f32 %v7881, %v7895
      %v7898 = vadd.f32 %v7882, %v7894
      %v7899 = vadd.f32 %v7883, %v7893
      %v7900 = vadd.f32 %v7884, %v7896
      %7901 = vrot.lane.b32.xlu0 %v7754, 84
      %v7902 = vpop.permute.xlu0 %7901
      %7903 = vrot.lane.b32.xlu0 %v7756, 84
      %v7904 = vpop.permute.xlu0 %7903
      %7905 = vrot.lane.b32.xlu0 %v7825, 84
      %v7906 = vpop.permute.xlu0 %7905
      %7907 = vrot.lane.b32.xlu0 %v7827, 84
      %v7908 = vpop.permute.xlu0 %7907
      %v7909 = vsel %vm1439, %v7906, %v7908
      %v7910 = vsel %vm1439, %v7904, %v7906
      %v7911 = vsel %vm1439, %v7902, %v7904
      %v7912 = vsel %vm1439, %v7908, %v7902
      %v7913 = vadd.f32 %v7897, %v7911
      %v7914 = vadd.f32 %v7898, %v7910
      %v7915 = vadd.f32 %v7899, %v7909
      %v7916 = vadd.f32 %v7900, %v7912
      %7917 = vrot.lane.b32.xlu0 %v7760, 62
      %v7918 = vpop.permute.xlu0 %7917
      %7919 = vrot.lane.b32.xlu0 %v7762, 62
      %v7920 = vpop.permute.xlu0 %7919
      %7921 = vrot.lane.b32.xlu0 %v7831, 62
      %v7922 = vpop.permute.xlu0 %7921
      %7923 = vrot.lane.b32.xlu0 %v7833, 62
      %v7924 = vpop.permute.xlu0 %7923
      %v7925 = vsel %vm1504, %v7922, %v7924
      %v7926 = vsel %vm1504, %v7920, %v7922
      %v7927 = vsel %vm1504, %v7918, %v7920
      %v7928 = vsel %vm1504, %v7924, %v7918
      %v7929 = vadd.f32 %v7913, %v7927
      %v7930 = vadd.f32 %v7914, %v7926
      %v7931 = vadd.f32 %v7915, %v7925
      %v7932 = vadd.f32 %v7916, %v7928
      %v7933 = vld [vmem:[%s11] sm:$0xff]
      %7935 = vset.pattern.permute.xlu0 0
      %7936 = vperm.xlu0 %7935, %v7933
      %v7937 = vpop.permute.xlu0 %7936
      %v7939 = vadd.f32 %v7929, %v7937
      %v7940 = vadd.f32 %v7930, %v7937
      %v7941 = vadd.f32 %v7931, %v7937
      %v7942 = vadd.f32 %v7932, %v7937
      %7943 = vst [vmem:[%s413] sm:$0xff] %v7939
      %7944 = vst [vmem:[%s413 + $0x8] sm:$0xff] %v7940
      %7945 = vst [vmem:[%s413 + $0x10] sm:$0xff] %v7941
      %7946 = vst [vmem:[%s413 + $0x18] sm:$0xff] %v7942
      %p7947 = scmp.lt.s32.totalorder %s23, 1
      %s7948 = scalar_select %p7947, %s23, 1
      %s7949 = smul.addr %s7948, 4
      %s7950 = smul.addr %s7949, 8
      %s7951 = scalar_lea.vmem %s12, %s7950
      // Predicated region
      $region69: #{network_forward.1} parent=67 // pred_check
        %p7952 = pneg %p298
      $region70: #{network_forward.1} parent=67 // pred_check_branch
        %7954 = sbr.rel (%p7952) target = $region72
      $region71: #{network_forward.1} parent=67 // pred_region
        _
      $region72: #{network_forward.1} parent=67 // pred_fallthru
        _
    $region68: #{network_forward.1} parent=5 // pred_fallthru
      _
    %p7955 = scmp.le.s32.totalorder 2, %s18
    // Predicated region
    $region73: #{network_forward.1} parent=5 // pred_check
      %p7956 = pneg %p7955
    $region74: #{network_forward.1} parent=5 // pred_check_branch
      %7958 = sbr.rel (%p7956) target = $region76
    $region75: #{network_forward.1} parent=5 // pred_region
      %s7959 = ssub.s32 %s18, 2
      // Predicated region
      $region77: #{network_forward.1} parent=75 // pred_check
        %p7960 = pneg %p304
      $region78: #{network_forward.1} parent=75 // pred_check_branch
        %7962 = sbr.rel (%p7960) target = $region80
      $region79: #{network_forward.1} parent=75 // pred_region
        %p7963 = scmp.lt.s32.totalorder %s24, 1
        %s7964 = scalar_select %p7963, %s24, 1
        %s7965 = smul.addr %s7964, 4
        %s7966 = smul.addr %s7965, 8
        %s7967 = scalar_lea.vmem %s12, %s7966
      $region80: #{network_forward.1} parent=75 // pred_fallthru
        _
    $region76: #{network_forward.1} parent=5 // pred_fallthru
      _
  $region6: #{network_forward.1} parent=0 // loop_footer
    %s22 = sadd.s32 1, %s18
  $region7: #{network_forward.1} parent=0 // loop_footer_branch
    %17 = sbr.rel target = $region3
  $region8: #{network_forward.1} parent=0 // loop_exit
    _

</llo_original>
